<compile_context>
chip_gen: v6e
topology: v6e:2x2x1
jax: 0.10.0
libtpu: 0.0.40
codegen_flags: <defaults>
</compile_context>

<pallas_src>
import functools
import math

import numpy as np

import jax
import jax.numpy as jnp
from jax import lax
from jax.experimental import pallas as pl
from jax.experimental.pallas import tpu as pltpu


# -----------------------------------------------------------------------------
# Host-side (trace-time) helpers
# -----------------------------------------------------------------------------
def _bilinear_tables(out_size, in_size):
    """Source indices / weights of F.interpolate(mode='bilinear',
    align_corners=False) along one axis (matches PyTorch exactly)."""
    scale = in_size / out_size
    i0 = np.zeros((out_size,), np.int32)
    i1 = np.zeros((out_size,), np.int32)
    w0 = np.zeros((out_size,), np.float32)
    for i in range(out_size):
        src = max((i + 0.5) * scale - 0.5, 0.0)
        j0 = min(int(math.floor(src)), in_size - 1)
        j1 = min(j0 + 1, in_size - 1)
        lam = src - j0
        i0[i], i1[i], w0[i] = j0, j1, np.float32(1.0 - lam)
    return i0, i1, w0


def _pick_row_block(h_out):
    for rb in (16, 8, 32, 64):
        if rb <= h_out and h_out % rb == 0:
            return rb
    return h_out


# -----------------------------------------------------------------------------
# Kernel
# -----------------------------------------------------------------------------
def _bn_deconv_kernel(hi0_ref, hi1_ref, hw0_ref,   # SMEM: H-axis interp tables
                      x_ref,                       # VMEM: [H_in, W_in, C_in]
                      uwp_ref,                     # VMEM: [W_pitch, W_in]
                      w_ref,                       # VMEM: [KH*KW, C_in, C_out]
                      scale_ref, shift_ref,        # VMEM: [1, C_out]
                      out_ref,                     # VMEM: [RB, W_out, C_out]
                      up_ref,                      # scratch: [band*W_pitch, C_in]
                      *, H_up, W_pitch, W_out, RB, KH, KW, dil, pad, relu):
    h0 = pl.program_id(1) * RB                 # first output row of this block
    band = RB + (KH - 1) * dil                 # padded-image rows needed here
    uwp = uwp_ref[...]                         # W-upsample (+ W zero-pad) matrix

    # ---- Phase 1: bilinear-upsample the band of rows into the VMEM scratch --
    for i in range(band):
        ru = h0 + i - pad                      # row index in the upsampled image
        valid = jnp.logical_and(ru >= 0, ru < H_up)
        ruc = jnp.clip(ru, 0, H_up - 1)
        j0 = hi0_ref[ruc]
        j1 = hi1_ref[ruc]
        w0 = hw0_ref[ruc]
        row_in = w0 * x_ref[j0] + (1.0 - w0) * x_ref[j1]          # [W_in, C_in]
        row_up = jnp.dot(uwp, row_in,
                         preferred_element_type=jnp.float32)       # [W_pitch, C_in]
        row_up = jnp.where(valid, row_up, 0.0)                     # H zero padding
        up_ref[i * W_pitch:(i + 1) * W_pitch, :] = row_up

    # ---- Phase 2: conv as KH*KW shifted matmuls over the flat scratch -------
    L = (RB - 1) * W_pitch + W_out
    c_out = out_ref.shape[-1]
    acc = jnp.zeros((L, c_out), jnp.float32)
    for kh in range(KH):
        for kw in range(KW):
            off = (kh * W_pitch + kw) * dil
            acc = acc + jnp.dot(up_ref[off:off + L, :],
                                w_ref[kh * KW + kw],
                                preferred_element_type=jnp.float32)

    # fused conv-bias + BatchNorm (inference) + ReLU
    y = acc * scale_ref[...] + shift_ref[...]
    if relu:
        y = jnp.maximum(y, 0.0)
    y = y.astype(out_ref.dtype)

    # ---- Phase 3: keep only the valid W_out columns of every output row -----
    for j in range(RB):
        out_ref[j] = y[j * W_pitch:j * W_pitch + W_out, :]


# -----------------------------------------------------------------------------
# Wrapper
# -----------------------------------------------------------------------------
def bn_deconv_forward(x, conv_w, conv_b=None, bn_gamma=None, bn_beta=None,
                      bn_mean=None, bn_var=None, *, stride=1, padding=0,
                      dilation=1, groups=1, relu=True, bn=True, eps=1e-5,
                      scale_factor=2):
    """Fused Pallas forward of BNDeConv.  x is NCHW, conv_w is [Co, Ci, KH, KW].

    BatchNorm is applied in inference mode with the provided running stats.
    """
    assert stride == 1, "stride != 1 is not supported by this kernel"
    assert groups == 1, "groups != 1 is not supported by this kernel"
    # TODO(synk): training-mode BatchNorm (batch statistics + running-stat
    # update) is not implemented; inference-mode (running-stats) BN is fused.

    B, C_in, H_in, W_in = x.shape
    C_out, _, KH, KW = conv_w.shape
    H_up = int(math.floor(H_in * scale_factor))
    W_up = int(math.floor(W_in * scale_factor))
    KHs = (KH - 1) * dilation + 1
    KWs = (KW - 1) * dilation + 1
    H_out = H_up + 2 * padding - KHs + 1
    W_out = W_up + 2 * padding - KWs + 1
    W_pad = W_up + 2 * padding
    W_pitch = ((W_pad + 7) // 8) * 8           # sublane-aligned row pitch

    # H-axis bilinear lookup tables (SMEM) and the W-axis upsample matrix with
    # the conv zero padding folded in (zero rows at both edges + pitch tail).
    hi0, hi1, hw0 = _bilinear_tables(H_up, H_in)
    wi0, wi1, ww0 = _bilinear_tables(W_up, W_in)
    uwp = np.zeros((W_pitch, W_in), np.float32)
    for w in range(W_up):
        uwp[padding + w, wi0[w]] += ww0[w]
        uwp[padding + w, wi1[w]] += np.float32(1.0) - ww0[w]

    # Conv weight as channels-last taps: [KH*KW, C_in, C_out].
    w_taps = jnp.transpose(conv_w, (2, 3, 1, 0)).reshape(KH * KW, C_in, C_out)

    # Fold conv bias + BatchNorm into a single per-channel scale & shift.
    if bn:
        scale = bn_gamma / jnp.sqrt(bn_var + eps)
        shift = bn_beta - bn_mean * scale
    else:
        scale = jnp.ones((C_out,), jnp.float32)
        shift = jnp.zeros((C_out,), jnp.float32)
    if conv_b is not None:
        shift = shift + conv_b * scale
    scale = scale.reshape(1, C_out).astype(jnp.float32)
    shift = shift.reshape(1, C_out).astype(jnp.float32)

    # NCHW -> NHWC: layout plumbing so every in-kernel matmul is
    # [rows, C_in] @ [C_in, C_out] with no transposes.  Ideally the producing
    # layer already emits NHWC and this transpose disappears.
    x_nhwc = jnp.transpose(x, (0, 2, 3, 1))

    RB = _pick_row_block(H_out)
    n_rb = H_out // RB
    band = RB + (KH - 1) * dilation

    kernel = functools.partial(
        _bn_deconv_kernel, H_up=H_up, W_pitch=W_pitch, W_out=W_out, RB=RB,
        KH=KH, KW=KW, dil=dilation, pad=padding, relu=relu)

    smem = pl.BlockSpec(memory_space=pltpu.MemorySpace.SMEM)
    out_nhwc = pl.pallas_call(
        kernel,
        out_shape=jax.ShapeDtypeStruct((B, H_out, W_out, C_out), x.dtype),
        grid=(B, n_rb),
        in_specs=[
            smem, smem, smem,
            # whole input image per batch element, resident across row blocks
            pl.BlockSpec((None, H_in, W_in, C_in), lambda b, r: (b, 0, 0, 0)),
            pl.BlockSpec((W_pitch, W_in), lambda b, r: (0, 0)),
            pl.BlockSpec((KH * KW, C_in, C_out), lambda b, r: (0, 0, 0)),
            pl.BlockSpec((1, C_out), lambda b, r: (0, 0)),
            pl.BlockSpec((1, C_out), lambda b, r: (0, 0)),
        ],
        out_specs=pl.BlockSpec((None, RB, W_out, C_out),
                               lambda b, r: (b, r, 0, 0)),
        scratch_shapes=[pltpu.VMEM((band * W_pitch, C_in), jnp.float32)],
        compiler_params=pltpu.CompilerParams(
            dimension_semantics=("parallel", "parallel")),
    )(jnp.asarray(hi0), jnp.asarray(hi1), jnp.asarray(hw0),
      x_nhwc, jnp.asarray(uwp), w_taps, scale, shift)

    return jnp.transpose(out_nhwc, (0, 3, 1, 2))     # back to NCHW


# -----------------------------------------------------------------------------
# Pure-JAX reference (mirrors the PyTorch forward)
# -----------------------------------------------------------------------------
def bn_deconv_forward_ref(x, conv_w, conv_b=None, bn_gamma=None, bn_beta=None,
                          bn_mean=None, bn_var=None, *, stride=1, padding=0,
                          dilation=1, groups=1, relu=True, bn=True, eps=1e-5,
                          scale_factor=2):
    B, C_in, H_in, W_in = x.shape
    H_up = int(math.floor(H_in * scale_factor))
    W_up = int(math.floor(W_in * scale_factor))
    hi0, hi1, hw0 = _bilinear_tables(H_up, H_in)
    wi0, wi1, ww0 = _bilinear_tables(W_up, W_in)
    xh = (x[:, :, hi0, :] * hw0[None, None, :, None]
          + x[:, :, hi1, :] * (1.0 - hw0)[None, None, :, None])
    xu = (xh[:, :, :, wi0] * ww0[None, None, None, :]
          + xh[:, :, :, wi1] * (1.0 - ww0)[None, None, None, :])
    y = lax.conv_general_dilated(
        xu, conv_w, window_strides=(stride, stride),
        padding=[(padding, padding), (padding, padding)],
        rhs_dilation=(dilation, dilation),
        dimension_numbers=("NCHW", "OIHW", "NCHW"),
        feature_group_count=groups,
        precision=lax.Precision.HIGHEST)
    if conv_b is not None:
        y = y + conv_b[None, :, None, None]
    if bn:
        s = (bn_gamma / jnp.sqrt(bn_var + eps))[None, :, None, None]
        y = (y - bn_mean[None, :, None, None]) * s + bn_beta[None, :, None, None]
    if relu:
        y = jnp.maximum(y, 0.0)
    return y


if __name__ == "__main__":
    # Small shapes consistent with the module (channels shrunk from production).
    B, C_in, C_out, H, W = 2, 4, 8, 16, 16
    KH = KW = 3
    padding = 1

    key = jax.random.PRNGKey(0)
    kx, kw_, kg, kb, km, kv = jax.random.split(key, 6)
    x = jax.random.normal(kx, (B, C_in, H, W), dtype=jnp.float32)
    conv_w = 0.2 * jax.random.normal(kw_, (C_out, C_in, KH, KW), dtype=jnp.float32)
    gamma = 1.0 + 0.1 * jax.random.normal(kg, (C_out,), dtype=jnp.float32)
    beta = 0.1 * jax.random.normal(kb, (C_out,), dtype=jnp.float32)
    mean = 0.1 * jax.random.normal(km, (C_out,), dtype=jnp.float32)
    var = jax.random.uniform(kv, (C_out,), dtype=jnp.float32,
                             minval=0.5, maxval=1.5)

    out = bn_deconv_forward(x, conv_w, None, gamma, beta, mean, var,
                            stride=1, padding=padding, dilation=1, groups=1,
                            relu=True, bn=True, scale_factor=2)
    out = jax.block_until_ready(out)

    ref = bn_deconv_forward_ref(x, conv_w, None, gamma, beta, mean, var,
                                stride=1, padding=padding, dilation=1,
                                groups=1, relu=True, bn=True, scale_factor=2)

    assert out.shape == (B, C_out, 2 * H, 2 * W), out.shape
    err = float(jnp.max(jnp.abs(out - ref)))
    assert jnp.allclose(out, ref, atol=1e-3, rtol=1e-3), err
    print("KERNEL_OK")
</pallas_src>

<mosaic_0001>
module attributes {stable_mosaic.version = 11 : i64} {
  func.func @_bn_deconv_kernel(%arg0: i32, %arg1: i32, %arg2: memref<32xi32, #tpu.memory_space<smem>>, %arg3: memref<32xi32, #tpu.memory_space<smem>>, %arg4: memref<32xf32, #tpu.memory_space<smem>>, %arg5: memref<1x16x16x4xf32, #tpu.memory_space<vmem>>, %arg6: memref<40x16xf32, #tpu.memory_space<vmem>>, %arg7: memref<9x4x8xf32, #tpu.memory_space<vmem>>, %arg8: memref<1x8xf32, #tpu.memory_space<vmem>>, %arg9: memref<1x8xf32, #tpu.memory_space<vmem>>, %arg10: memref<1x16x32x8xf32, #tpu.memory_space<vmem>>, %arg11: memref<720x4xf32, #tpu.memory_space<vmem>>) attributes {dimension_semantics = [#tpu.dimension_semantics<parallel>, #tpu.dimension_semantics<parallel>], iteration_bounds = array<i64: 2, 2>, scalar_prefetch = 0 : i64, scratch_operands = 1 : i64, tpu.core_type = #tpu.core_type<tc>, window_params = [{transform_indices = @transform_0, window_bounds = array<i64: 32>}, {transform_indices = @transform_1, window_bounds = array<i64: 32>}, {transform_indices = @transform_2, window_bounds = array<i64: 32>}, {transform_indices = @transform_3, window_bounds = array<i64: 1, 16, 16, 4>}, {pipeline_mode = #tpu.pipeline_mode<synchronous>, transform_indices = @transform_4, window_bounds = array<i64: 40, 16>}, {pipeline_mode = #tpu.pipeline_mode<synchronous>, transform_indices = @transform_5, window_bounds = array<i64: 9, 4, 8>}, {pipeline_mode = #tpu.pipeline_mode<synchronous>, transform_indices = @transform_6, window_bounds = array<i64: 1, 8>}, {pipeline_mode = #tpu.pipeline_mode<synchronous>, transform_indices = @transform_7, window_bounds = array<i64: 1, 8>}, {transform_indices = @transform_8, window_bounds = array<i64: 1, 16, 32, 8>}]} {
    %c16_i32 = arith.constant 16 : i32
    %0 = arith.muli %arg1, %c16_i32 : i32
    %c0 = arith.constant 0 : index
    %c0_0 = arith.constant 0 : index
    %1 = vector.load %arg6[%c0, %c0_0] : memref<40x16xf32, #tpu.memory_space<vmem>>, vector<40x16xf32>
    %c0_i32 = arith.constant 0 : i32
    %2 = arith.addi %0, %c0_i32 : i32
    %c1_i32 = arith.constant 1 : i32
    %3 = arith.subi %2, %c1_i32 : i32
    %c0_i32_1 = arith.constant 0 : i32
    %4 = arith.cmpi sge, %3, %c0_i32_1 : i32
    %c32_i32 = arith.constant 32 : i32
    %5 = arith.cmpi slt, %3, %c32_i32 : i32
    %6 = arith.andi %4, %5 : i1
    %c0_i32_2 = arith.constant 0 : i32
    %c31_i32 = arith.constant 31 : i32
    %7 = arith.maxsi %c0_i32_2, %3 : i32
    %8 = arith.minsi %c31_i32, %7 : i32
    %9 = arith.index_cast %8 : i32 to index
    %10 = memref.load %arg2[%9] : memref<32xi32, #tpu.memory_space<smem>>
    %11 = arith.index_cast %8 : i32 to index
    %12 = memref.load %arg3[%11] : memref<32xi32, #tpu.memory_space<smem>>
    %13 = arith.index_cast %8 : i32 to index
    %14 = memref.load %arg4[%13] : memref<32xf32, #tpu.memory_space<smem>>
    %c0_3 = arith.constant 0 : index
    %15 = arith.index_cast %10 : i32 to index
    %c0_4 = arith.constant 0 : index
    %c0_5 = arith.constant 0 : index
    %16 = vector.load %arg5[%c0_3, %15, %c0_4, %c0_5] : memref<1x16x16x4xf32, #tpu.memory_space<vmem>>, vector<1x1x16x4xf32>
    %17 = vector.shape_cast %16 : vector<1x1x16x4xf32> to vector<16x4xf32>
    %18 = vector.broadcast %14 : f32 to vector<16x4xf32>
    %19 = arith.mulf %18, %17 : vector<16x4xf32>
    %cst = arith.constant 1.000000e+00 : f32
    %20 = arith.subf %cst, %14 : f32
    %c0_6 = arith.constant 0 : index
    %21 = arith.index_cast %12 : i32 to index
    %c0_7 = arith.constant 0 : index
    %c0_8 = arith.constant 0 : index
    %22 = vector.load %arg5[%c0_6, %21, %c0_7, %c0_8] : memref<1x16x16x4xf32, #tpu.memory_space<vmem>>, vector<1x1x16x4xf32>
    %23 = vector.shape_cast %22 : vector<1x1x16x4xf32> to vector<16x4xf32>
    %24 = vector.broadcast %20 : f32 to vector<16x4xf32>
    %25 = arith.mulf %24, %23 : vector<16x4xf32>
    %26 = arith.addf %19, %25 : vector<16x4xf32>
    %cst_9 = arith.constant dense<0.000000e+00> : vector<40x4xf32>
    %27 = tpu.matmul %1, %26, %cst_9 {dimension_numbers = #tpu.dot_dimension_numbers<[1], [0], [0], [1], [0, 0, 1, 1], [], []>} : vector<40x16xf32>, vector<16x4xf32>, vector<40x4xf32> -> vector<40x4xf32>
    %cst_10 = arith.constant 0.000000e+00 : f32
    %28 = vector.broadcast %cst_10 : f32 to vector<40x4xf32>
    %29 = arith.select %6, %27, %28 : vector<40x4xf32>
    %c0_11 = arith.constant 0 : index
    %c0_12 = arith.constant 0 : index
    %30 = vector.load %arg11[%c0_11, %c0_12] : memref<720x4xf32, #tpu.memory_space<vmem>>, vector<40x4xf32>
    tpu.vector_store %arg11[%c0_11, %c0_12], %29 {strides = array<i32>} : memref<720x4xf32, #tpu.memory_space<vmem>>, vector<40x4xf32>,
    %c1_i32_13 = arith.constant 1 : i32
    %31 = arith.addi %0, %c1_i32_13 : i32
    %c1_i32_14 = arith.constant 1 : i32
    %32 = arith.subi %31, %c1_i32_14 : i32
    %c0_i32_15 = arith.constant 0 : i32
    %33 = arith.cmpi sge, %32, %c0_i32_15 : i32
    %c32_i32_16 = arith.constant 32 : i32
    %34 = arith.cmpi slt, %32, %c32_i32_16 : i32
    %35 = arith.andi %33, %34 : i1
    %c0_i32_17 = arith.constant 0 : i32
    %c31_i32_18 = arith.constant 31 : i32
    %36 = arith.maxsi %c0_i32_17, %32 : i32
    %37 = arith.minsi %c31_i32_18, %36 : i32
    %38 = arith.index_cast %37 : i32 to index
    %39 = memref.load %arg2[%38] : memref<32xi32, #tpu.memory_space<smem>>
    %40 = arith.index_cast %37 : i32 to index
    %41 = memref.load %arg3[%40] : memref<32xi32, #tpu.memory_space<smem>>
    %42 = arith.index_cast %37 : i32 to index
    %43 = memref.load %arg4[%42] : memref<32xf32, #tpu.memory_space<smem>>
    %c0_19 = arith.constant 0 : index
    %44 = arith.index_cast %39 : i32 to index
    %c0_20 = arith.constant 0 : index
    %c0_21 = arith.constant 0 : index
    %45 = vector.load %arg5[%c0_19, %44, %c0_20, %c0_21] : memref<1x16x16x4xf32, #tpu.memory_space<vmem>>, vector<1x1x16x4xf32>
    %46 = vector.shape_cast %45 : vector<1x1x16x4xf32> to vector<16x4xf32>
    %47 = vector.broadcast %43 : f32 to vector<16x4xf32>
    %48 = arith.mulf %47, %46 : vector<16x4xf32>
    %cst_22 = arith.constant 1.000000e+00 : f32
    %49 = arith.subf %cst_22, %43 : f32
    %c0_23 = arith.constant 0 : index
    %50 = arith.index_cast %41 : i32 to index
    %c0_24 = arith.constant 0 : index
    %c0_25 = arith.constant 0 : index
    %51 = vector.load %arg5[%c0_23, %50, %c0_24, %c0_25] : memref<1x16x16x4xf32, #tpu.memory_space<vmem>>, vector<1x1x16x4xf32>
    %52 = vector.shape_cast %51 : vector<1x1x16x4xf32> to vector<16x4xf32>
    %53 = vector.broadcast %49 : f32 to vector<16x4xf32>
    %54 = arith.mulf %53, %52 : vector<16x4xf32>
    %55 = arith.addf %48, %54 : vector<16x4xf32>
    %cst_26 = arith.constant dense<0.000000e+00> : vector<40x4xf32>
    %56 = tpu.matmul %1, %55, %cst_26 {dimension_numbers = #tpu.dot_dimension_numbers<[1], [0], [0], [1], [0, 0, 1, 1], [], []>} : vector<40x16xf32>, vector<16x4xf32>, vector<40x4xf32> -> vector<40x4xf32>
    %cst_27 = arith.constant 0.000000e+00 : f32
    %57 = vector.broadcast %cst_27 : f32 to vector<40x4xf32>
    %58 = arith.select %35, %56, %57 : vector<40x4xf32>
    %c40 = arith.constant 40 : index
    %c0_28 = arith.constant 0 : index
    %59 = vector.load %arg11[%c40, %c0_28] : memref<720x4xf32, #tpu.memory_space<vmem>>, vector<40x4xf32>
    tpu.vector_store %arg11[%c40, %c0_28], %58 {strides = array<i32>} : memref<720x4xf32, #tpu.memory_space<vmem>>, vector<40x4xf32>,
    %c2_i32 = arith.constant 2 : i32
    %60 = arith.addi %0, %c2_i32 : i32
    %c1_i32_29 = arith.constant 1 : i32
    %61 = arith.subi %60, %c1_i32_29 : i32
    %c0_i32_30 = arith.constant 0 : i32
    %62 = arith.cmpi sge, %61, %c0_i32_30 : i32
    %c32_i32_31 = arith.constant 32 : i32
    %63 = arith.cmpi slt, %61, %c32_i32_31 : i32
    %64 = arith.andi %62, %63 : i1
    %c0_i32_32 = arith.constant 0 : i32
    %c31_i32_33 = arith.constant 31 : i32
    %65 = arith.maxsi %c0_i32_32, %61 : i32
    %66 = arith.minsi %c31_i32_33, %65 : i32
    %67 = arith.index_cast %66 : i32 to index
    %68 = memref.load %arg2[%67] : memref<32xi32, #tpu.memory_space<smem>>
    %69 = arith.index_cast %66 : i32 to index
    %70 = memref.load %arg3[%69] : memref<32xi32, #tpu.memory_space<smem>>
    %71 = arith.index_cast %66 : i32 to index
    %72 = memref.load %arg4[%71] : memref<32xf32, #tpu.memory_space<smem>>
    %c0_34 = arith.constant 0 : index
    %73 = arith.index_cast %68 : i32 to index
    %c0_35 = arith.constant 0 : index
    %c0_36 = arith.constant 0 : index
    %74 = vector.load %arg5[%c0_34, %73, %c0_35, %c0_36] : memref<1x16x16x4xf32, #tpu.memory_space<vmem>>, vector<1x1x16x4xf32>
    %75 = vector.shape_cast %74 : vector<1x1x16x4xf32> to vector<16x4xf32>
    %76 = vector.broadcast %72 : f32 to vector<16x4xf32>
    %77 = arith.mulf %76, %75 : vector<16x4xf32>
    %cst_37 = arith.constant 1.000000e+00 : f32
    %78 = arith.subf %cst_37, %72 : f32
    %c0_38 = arith.constant 0 : index
    %79 = arith.index_cast %70 : i32 to index
    %c0_39 = arith.constant 0 : index
    %c0_40 = arith.constant 0 : index
    %80 = vector.load %arg5[%c0_38, %79, %c0_39, %c0_40] : memref<1x16x16x4xf32, #tpu.memory_space<vmem>>, vector<1x1x16x4xf32>
    %81 = vector.shape_cast %80 : vector<1x1x16x4xf32> to vector<16x4xf32>
    %82 = vector.broadcast %78 : f32 to vector<16x4xf32>
    %83 = arith.mulf %82, %81 : vector<16x4xf32>
    %84 = arith.addf %77, %83 : vector<16x4xf32>
    %cst_41 = arith.constant dense<0.000000e+00> : vector<40x4xf32>
    %85 = tpu.matmul %1, %84, %cst_41 {dimension_numbers = #tpu.dot_dimension_numbers<[1], [0], [0], [1], [0, 0, 1, 1], [], []>} : vector<40x16xf32>, vector<16x4xf32>, vector<40x4xf32> -> vector<40x4xf32>
    %cst_42 = arith.constant 0.000000e+00 : f32
    %86 = vector.broadcast %cst_42 : f32 to vector<40x4xf32>
    %87 = arith.select %64, %85, %86 : vector<40x4xf32>
    %c80 = arith.constant 80 : index
    %c0_43 = arith.constant 0 : index
    %88 = vector.load %arg11[%c80, %c0_43] : memref<720x4xf32, #tpu.memory_space<vmem>>, vector<40x4xf32>
    tpu.vector_store %arg11[%c80, %c0_43], %87 {strides = array<i32>} : memref<720x4xf32, #tpu.memory_space<vmem>>, vector<40x4xf32>,
    %c3_i32 = arith.constant 3 : i32
    %89 = arith.addi %0, %c3_i32 : i32
    %c1_i32_44 = arith.constant 1 : i32
    %90 = arith.subi %89, %c1_i32_44 : i32
    %c0_i32_45 = arith.constant 0 : i32
    %91 = arith.cmpi sge, %90, %c0_i32_45 : i32
    %c32_i32_46 = arith.constant 32 : i32
    %92 = arith.cmpi slt, %90, %c32_i32_46 : i32
    %93 = arith.andi %91, %92 : i1
    %c0_i32_47 = arith.constant 0 : i32
    %c31_i32_48 = arith.constant 31 : i32
    %94 = arith.maxsi %c0_i32_47, %90 : i32
    %95 = arith.minsi %c31_i32_48, %94 : i32
    %96 = arith.index_cast %95 : i32 to index
    %97 = memref.load %arg2[%96] : memref<32xi32, #tpu.memory_space<smem>>
    %98 = arith.index_cast %95 : i32 to index
    %99 = memref.load %arg3[%98] : memref<32xi32, #tpu.memory_space<smem>>
    %100 = arith.index_cast %95 : i32 to index
    %101 = memref.load %arg4[%100] : memref<32xf32, #tpu.memory_space<smem>>
    %c0_49 = arith.constant 0 : index
    %102 = arith.index_cast %97 : i32 to index
    %c0_50 = arith.constant 0 : index
    %c0_51 = arith.constant 0 : index
    %103 = vector.load %arg5[%c0_49, %102, %c0_50, %c0_51] : memref<1x16x16x4xf32, #tpu.memory_space<vmem>>, vector<1x1x16x4xf32>
    %104 = vector.shape_cast %103 : vector<1x1x16x4xf32> to vector<16x4xf32>
    %105 = vector.broadcast %101 : f32 to vector<16x4xf32>
    %106 = arith.mulf %105, %104 : vector<16x4xf32>
    %cst_52 = arith.constant 1.000000e+00 : f32
    %107 = arith.subf %cst_52, %101 : f32
    %c0_53 = arith.constant 0 : index
    %108 = arith.index_cast %99 : i32 to index
    %c0_54 = arith.constant 0 : index
    %c0_55 = arith.constant 0 : index
    %109 = vector.load %arg5[%c0_53, %108, %c0_54, %c0_55] : memref<1x16x16x4xf32, #tpu.memory_space<vmem>>, vector<1x1x16x4xf32>
    %110 = vector.shape_cast %109 : vector<1x1x16x4xf32> to vector<16x4xf32>
    %111 = vector.broadcast %107 : f32 to vector<16x4xf32>
    %112 = arith.mulf %111, %110 : vector<16x4xf32>
    %113 = arith.addf %106, %112 : vector<16x4xf32>
    %cst_56 = arith.constant dense<0.000000e+00> : vector<40x4xf32>
    %114 = tpu.matmul %1, %113, %cst_56 {dimension_numbers = #tpu.dot_dimension_numbers<[1], [0], [0], [1], [0, 0, 1, 1], [], []>} : vector<40x16xf32>, vector<16x4xf32>, vector<40x4xf32> -> vector<40x4xf32>
    %cst_57 = arith.constant 0.000000e+00 : f32
    %115 = vector.broadcast %cst_57 : f32 to vector<40x4xf32>
    %116 = arith.select %93, %114, %115 : vector<40x4xf32>
    %c120 = arith.constant 120 : index
    %c0_58 = arith.constant 0 : index
    %117 = vector.load %arg11[%c120, %c0_58] : memref<720x4xf32, #tpu.memory_space<vmem>>, vector<40x4xf32>
    tpu.vector_store %arg11[%c120, %c0_58], %116 {strides = array<i32>} : memref<720x4xf32, #tpu.memory_space<vmem>>, vector<40x4xf32>,
    %c4_i32 = arith.constant 4 : i32
    %118 = arith.addi %0, %c4_i32 : i32
    %c1_i32_59 = arith.constant 1 : i32
    %119 = arith.subi %118, %c1_i32_59 : i32
    %c0_i32_60 = arith.constant 0 : i32
    %120 = arith.cmpi sge, %119, %c0_i32_60 : i32
    %c32_i32_61 = arith.constant 32 : i32
    %121 = arith.cmpi slt, %119, %c32_i32_61 : i32
    %122 = arith.andi %120, %121 : i1
    %c0_i32_62 = arith.constant 0 : i32
    %c31_i32_63 = arith.constant 31 : i32
    %123 = arith.maxsi %c0_i32_62, %119 : i32
    %124 = arith.minsi %c31_i32_63, %123 : i32
    %125 = arith.index_cast %124 : i32 to index
    %126 = memref.load %arg2[%125] : memref<32xi32, #tpu.memory_space<smem>>
    %127 = arith.index_cast %124 : i32 to index
    %128 = memref.load %arg3[%127] : memref<32xi32, #tpu.memory_space<smem>>
    %129 = arith.index_cast %124 : i32 to index
    %130 = memref.load %arg4[%129] : memref<32xf32, #tpu.memory_space<smem>>
    %c0_64 = arith.constant 0 : index
    %131 = arith.index_cast %126 : i32 to index
    %c0_65 = arith.constant 0 : index
    %c0_66 = arith.constant 0 : index
    %132 = vector.load %arg5[%c0_64, %131, %c0_65, %c0_66] : memref<1x16x16x4xf32, #tpu.memory_space<vmem>>, vector<1x1x16x4xf32>
    %133 = vector.shape_cast %132 : vector<1x1x16x4xf32> to vector<16x4xf32>
    %134 = vector.broadcast %130 : f32 to vector<16x4xf32>
    %135 = arith.mulf %134, %133 : vector<16x4xf32>
    %cst_67 = arith.constant 1.000000e+00 : f32
    %136 = arith.subf %cst_67, %130 : f32
    %c0_68 = arith.constant 0 : index
    %137 = arith.index_cast %128 : i32 to index
    %c0_69 = arith.constant 0 : index
    %c0_70 = arith.constant 0 : index
    %138 = vector.load %arg5[%c0_68, %137, %c0_69, %c0_70] : memref<1x16x16x4xf32, #tpu.memory_space<vmem>>, vector<1x1x16x4xf32>
    %139 = vector.shape_cast %138 : vector<1x1x16x4xf32> to vector<16x4xf32>
    %140 = vector.broadcast %136 : f32 to vector<16x4xf32>
    %141 = arith.mulf %140, %139 : vector<16x4xf32>
    %142 = arith.addf %135, %141 : vector<16x4xf32>
    %cst_71 = arith.constant dense<0.000000e+00> : vector<40x4xf32>
    %143 = tpu.matmul %1, %142, %cst_71 {dimension_numbers = #tpu.dot_dimension_numbers<[1], [0], [0], [1], [0, 0, 1, 1], [], []>} : vector<40x16xf32>, vector<16x4xf32>, vector<40x4xf32> -> vector<40x4xf32>
    %cst_72 = arith.constant 0.000000e+00 : f32
    %144 = vector.broadcast %cst_72 : f32 to vector<40x4xf32>
    %145 = arith.select %122, %143, %144 : vector<40x4xf32>
    %c160 = arith.constant 160 : index
    %c0_73 = arith.constant 0 : index
    %146 = vector.load %arg11[%c160, %c0_73] : memref<720x4xf32, #tpu.memory_space<vmem>>, vector<40x4xf32>
    tpu.vector_store %arg11[%c160, %c0_73], %145 {strides = array<i32>} : memref<720x4xf32, #tpu.memory_space<vmem>>, vector<40x4xf32>,
    %c5_i32 = arith.constant 5 : i32
    %147 = arith.addi %0, %c5_i32 : i32
    %c1_i32_74 = arith.constant 1 : i32
    %148 = arith.subi %147, %c1_i32_74 : i32
    %c0_i32_75 = arith.constant 0 : i32
    %149 = arith.cmpi sge, %148, %c0_i32_75 : i32
    %c32_i32_76 = arith.constant 32 : i32
    %150 = arith.cmpi slt, %148, %c32_i32_76 : i32
    %151 = arith.andi %149, %150 : i1
    %c0_i32_77 = arith.constant 0 : i32
    %c31_i32_78 = arith.constant 31 : i32
    %152 = arith.maxsi %c0_i32_77, %148 : i32
    %153 = arith.minsi %c31_i32_78, %152 : i32
    %154 = arith.index_cast %153 : i32 to index
    %155 = memref.load %arg2[%154] : memref<32xi32, #tpu.memory_space<smem>>
    %156 = arith.index_cast %153 : i32 to index
    %157 = memref.load %arg3[%156] : memref<32xi32, #tpu.memory_space<smem>>
    %158 = arith.index_cast %153 : i32 to index
    %159 = memref.load %arg4[%158] : memref<32xf32, #tpu.memory_space<smem>>
    %c0_79 = arith.constant 0 : index
    %160 = arith.index_cast %155 : i32 to index
    %c0_80 = arith.constant 0 : index
    %c0_81 = arith.constant 0 : index
    %161 = vector.load %arg5[%c0_79, %160, %c0_80, %c0_81] : memref<1x16x16x4xf32, #tpu.memory_space<vmem>>, vector<1x1x16x4xf32>
    %162 = vector.shape_cast %161 : vector<1x1x16x4xf32> to vector<16x4xf32>
    %163 = vector.broadcast %159 : f32 to vector<16x4xf32>
    %164 = arith.mulf %163, %162 : vector<16x4xf32>
    %cst_82 = arith.constant 1.000000e+00 : f32
    %165 = arith.subf %cst_82, %159 : f32
    %c0_83 = arith.constant 0 : index
    %166 = arith.index_cast %157 : i32 to index
    %c0_84 = arith.constant 0 : index
    %c0_85 = arith.constant 0 : index
    %167 = vector.load %arg5[%c0_83, %166, %c0_84, %c0_85] : memref<1x16x16x4xf32, #tpu.memory_space<vmem>>, vector<1x1x16x4xf32>
    %168 = vector.shape_cast %167 : vector<1x1x16x4xf32> to vector<16x4xf32>
    %169 = vector.broadcast %165 : f32 to vector<16x4xf32>
    %170 = arith.mulf %169, %168 : vector<16x4xf32>
    %171 = arith.addf %164, %170 : vector<16x4xf32>
    %cst_86 = arith.constant dense<0.000000e+00> : vector<40x4xf32>
    %172 = tpu.matmul %1, %171, %cst_86 {dimension_numbers = #tpu.dot_dimension_numbers<[1], [0], [0], [1], [0, 0, 1, 1], [], []>} : vector<40x16xf32>, vector<16x4xf32>, vector<40x4xf32> -> vector<40x4xf32>
    %cst_87 = arith.constant 0.000000e+00 : f32
    %173 = vector.broadcast %cst_87 : f32 to vector<40x4xf32>
    %174 = arith.select %151, %172, %173 : vector<40x4xf32>
    %c200 = arith.constant 200 : index
    %c0_88 = arith.constant 0 : index
    %175 = vector.load %arg11[%c200, %c0_88] : memref<720x4xf32, #tpu.memory_space<vmem>>, vector<40x4xf32>
    tpu.vector_store %arg11[%c200, %c0_88], %174 {strides = array<i32>} : memref<720x4xf32, #tpu.memory_space<vmem>>, vector<40x4xf32>,
    %c6_i32 = arith.constant 6 : i32
    %176 = arith.addi %0, %c6_i32 : i32
    %c1_i32_89 = arith.constant 1 : i32
    %177 = arith.subi %176, %c1_i32_89 : i32
    %c0_i32_90 = arith.constant 0 : i32
    %178 = arith.cmpi sge, %177, %c0_i32_90 : i32
    %c32_i32_91 = arith.constant 32 : i32
    %179 = arith.cmpi slt, %177, %c32_i32_91 : i32
    %180 = arith.andi %178, %179 : i1
    %c0_i32_92 = arith.constant 0 : i32
    %c31_i32_93 = arith.constant 31 : i32
    %181 = arith.maxsi %c0_i32_92, %177 : i32
    %182 = arith.minsi %c31_i32_93, %181 : i32
    %183 = arith.index_cast %182 : i32 to index
    %184 = memref.load %arg2[%183] : memref<32xi32, #tpu.memory_space<smem>>
    %185 = arith.index_cast %182 : i32 to index
    %186 = memref.load %arg3[%185] : memref<32xi32, #tpu.memory_space<smem>>
    %187 = arith.index_cast %182 : i32 to index
    %188 = memref.load %arg4[%187] : memref<32xf32, #tpu.memory_space<smem>>
    %c0_94 = arith.constant 0 : index
    %189 = arith.index_cast %184 : i32 to index
    %c0_95 = arith.constant 0 : index
    %c0_96 = arith.constant 0 : index
    %190 = vector.load %arg5[%c0_94, %189, %c0_95, %c0_96] : memref<1x16x16x4xf32, #tpu.memory_space<vmem>>, vector<1x1x16x4xf32>
    %191 = vector.shape_cast %190 : vector<1x1x16x4xf32> to vector<16x4xf32>
    %192 = vector.broadcast %188 : f32 to vector<16x4xf32>
    %193 = arith.mulf %192, %191 : vector<16x4xf32>
    %cst_97 = arith.constant 1.000000e+00 : f32
    %194 = arith.subf %cst_97, %188 : f32
    %c0_98 = arith.constant 0 : index
    %195 = arith.index_cast %186 : i32 to index
    %c0_99 = arith.constant 0 : index
    %c0_100 = arith.constant 0 : index
    %196 = vector.load %arg5[%c0_98, %195, %c0_99, %c0_100] : memref<1x16x16x4xf32, #tpu.memory_space<vmem>>, vector<1x1x16x4xf32>
    %197 = vector.shape_cast %196 : vector<1x1x16x4xf32> to vector<16x4xf32>
    %198 = vector.broadcast %194 : f32 to vector<16x4xf32>
    %199 = arith.mulf %198, %197 : vector<16x4xf32>
    %200 = arith.addf %193, %199 : vector<16x4xf32>
    %cst_101 = arith.constant dense<0.000000e+00> : vector<40x4xf32>
    %201 = tpu.matmul %1, %200, %cst_101 {dimension_numbers = #tpu.dot_dimension_numbers<[1], [0], [0], [1], [0, 0, 1, 1], [], []>} : vector<40x16xf32>, vector<16x4xf32>, vector<40x4xf32> -> vector<40x4xf32>
    %cst_102 = arith.constant 0.000000e+00 : f32
    %202 = vector.broadcast %cst_102 : f32 to vector<40x4xf32>
    %203 = arith.select %180, %201, %202 : vector<40x4xf32>
    %c240 = arith.constant 240 : index
    %c0_103 = arith.constant 0 : index
    %204 = vector.load %arg11[%c240, %c0_103] : memref<720x4xf32, #tpu.memory_space<vmem>>, vector<40x4xf32>
    tpu.vector_store %arg11[%c240, %c0_103], %203 {strides = array<i32>} : memref<720x4xf32, #tpu.memory_space<vmem>>, vector<40x4xf32>,
    %c7_i32 = arith.constant 7 : i32
    %205 = arith.addi %0, %c7_i32 : i32
    %c1_i32_104 = arith.constant 1 : i32
    %206 = arith.subi %205, %c1_i32_104 : i32
    %c0_i32_105 = arith.constant 0 : i32
    %207 = arith.cmpi sge, %206, %c0_i32_105 : i32
    %c32_i32_106 = arith.constant 32 : i32
    %208 = arith.cmpi slt, %206, %c32_i32_106 : i32
    %209 = arith.andi %207, %208 : i1
    %c0_i32_107 = arith.constant 0 : i32
    %c31_i32_108 = arith.constant 31 : i32
    %210 = arith.maxsi %c0_i32_107, %206 : i32
    %211 = arith.minsi %c31_i32_108, %210 : i32
    %212 = arith.index_cast %211 : i32 to index
    %213 = memref.load %arg2[%212] : memref<32xi32, #tpu.memory_space<smem>>
    %214 = arith.index_cast %211 : i32 to index
    %215 = memref.load %arg3[%214] : memref<32xi32, #tpu.memory_space<smem>>
    %216 = arith.index_cast %211 : i32 to index
    %217 = memref.load %arg4[%216] : memref<32xf32, #tpu.memory_space<smem>>
    %c0_109 = arith.constant 0 : index
    %218 = arith.index_cast %213 : i32 to index
    %c0_110 = arith.constant 0 : index
    %c0_111 = arith.constant 0 : index
    %219 = vector.load %arg5[%c0_109, %218, %c0_110, %c0_111] : memref<1x16x16x4xf32, #tpu.memory_space<vmem>>, vector<1x1x16x4xf32>
    %220 = vector.shape_cast %219 : vector<1x1x16x4xf32> to vector<16x4xf32>
    %221 = vector.broadcast %217 : f32 to vector<16x4xf32>
    %222 = arith.mulf %221, %220 : vector<16x4xf32>
    %cst_112 = arith.constant 1.000000e+00 : f32
    %223 = arith.subf %cst_112, %217 : f32
    %c0_113 = arith.constant 0 : index
    %224 = arith.index_cast %215 : i32 to index
    %c0_114 = arith.constant 0 : index
    %c0_115 = arith.constant 0 : index
    %225 = vector.load %arg5[%c0_113, %224, %c0_114, %c0_115] : memref<1x16x16x4xf32, #tpu.memory_space<vmem>>, vector<1x1x16x4xf32>
    %226 = vector.shape_cast %225 : vector<1x1x16x4xf32> to vector<16x4xf32>
    %227 = vector.broadcast %223 : f32 to vector<16x4xf32>
    %228 = arith.mulf %227, %226 : vector<16x4xf32>
    %229 = arith.addf %222, %228 : vector<16x4xf32>
    %cst_116 = arith.constant dense<0.000000e+00> : vector<40x4xf32>
    %230 = tpu.matmul %1, %229, %cst_116 {dimension_numbers = #tpu.dot_dimension_numbers<[1], [0], [0], [1], [0, 0, 1, 1], [], []>} : vector<40x16xf32>, vector<16x4xf32>, vector<40x4xf32> -> vector<40x4xf32>
    %cst_117 = arith.constant 0.000000e+00 : f32
    %231 = vector.broadcast %cst_117 : f32 to vector<40x4xf32>
    %232 = arith.select %209, %230, %231 : vector<40x4xf32>
    %c280 = arith.constant 280 : index
    %c0_118 = arith.constant 0 : index
    %233 = vector.load %arg11[%c280, %c0_118] : memref<720x4xf32, #tpu.memory_space<vmem>>, vector<40x4xf32>
    tpu.vector_store %arg11[%c280, %c0_118], %232 {strides = array<i32>} : memref<720x4xf32, #tpu.memory_space<vmem>>, vector<40x4xf32>,
    %c8_i32 = arith.constant 8 : i32
    %234 = arith.addi %0, %c8_i32 : i32
    %c1_i32_119 = arith.constant 1 : i32
    %235 = arith.subi %234, %c1_i32_119 : i32
    %c0_i32_120 = arith.constant 0 : i32
    %236 = arith.cmpi sge, %235, %c0_i32_120 : i32
    %c32_i32_121 = arith.constant 32 : i32
    %237 = arith.cmpi slt, %235, %c32_i32_121 : i32
    %238 = arith.andi %236, %237 : i1
    %c0_i32_122 = arith.constant 0 : i32
    %c31_i32_123 = arith.constant 31 : i32
    %239 = arith.maxsi %c0_i32_122, %235 : i32
    %240 = arith.minsi %c31_i32_123, %239 : i32
    %241 = arith.index_cast %240 : i32 to index
    %242 = memref.load %arg2[%241] : memref<32xi32, #tpu.memory_space<smem>>
    %243 = arith.index_cast %240 : i32 to index
    %244 = memref.load %arg3[%243] : memref<32xi32, #tpu.memory_space<smem>>
    %245 = arith.index_cast %240 : i32 to index
    %246 = memref.load %arg4[%245] : memref<32xf32, #tpu.memory_space<smem>>
    %c0_124 = arith.constant 0 : index
    %247 = arith.index_cast %242 : i32 to index
    %c0_125 = arith.constant 0 : index
    %c0_126 = arith.constant 0 : index
    %248 = vector.load %arg5[%c0_124, %247, %c0_125, %c0_126] : memref<1x16x16x4xf32, #tpu.memory_space<vmem>>, vector<1x1x16x4xf32>
    %249 = vector.shape_cast %248 : vector<1x1x16x4xf32> to vector<16x4xf32>
    %250 = vector.broadcast %246 : f32 to vector<16x4xf32>
    %251 = arith.mulf %250, %249 : vector<16x4xf32>
    %cst_127 = arith.constant 1.000000e+00 : f32
    %252 = arith.subf %cst_127, %246 : f32
    %c0_128 = arith.constant 0 : index
    %253 = arith.index_cast %244 : i32 to index
    %c0_129 = arith.constant 0 : index
    %c0_130 = arith.constant 0 : index
    %254 = vector.load %arg5[%c0_128, %253, %c0_129, %c0_130] : memref<1x16x16x4xf32, #tpu.memory_space<vmem>>, vector<1x1x16x4xf32>
    %255 = vector.shape_cast %254 : vector<1x1x16x4xf32> to vector<16x4xf32>
    %256 = vector.broadcast %252 : f32 to vector<16x4xf32>
    %257 = arith.mulf %256, %255 : vector<16x4xf32>
    %258 = arith.addf %251, %257 : vector<16x4xf32>
    %cst_131 = arith.constant dense<0.000000e+00> : vector<40x4xf32>
    %259 = tpu.matmul %1, %258, %cst_131 {dimension_numbers = #tpu.dot_dimension_numbers<[1], [0], [0], [1], [0, 0, 1, 1], [], []>} : vector<40x16xf32>, vector<16x4xf32>, vector<40x4xf32> -> vector<40x4xf32>
    %cst_132 = arith.constant 0.000000e+00 : f32
    %260 = vector.broadcast %cst_132 : f32 to vector<40x4xf32>
    %261 = arith.select %238, %259, %260 : vector<40x4xf32>
    %c320 = arith.constant 320 : index
    %c0_133 = arith.constant 0 : index
    %262 = vector.load %arg11[%c320, %c0_133] : memref<720x4xf32, #tpu.memory_space<vmem>>, vector<40x4xf32>
    tpu.vector_store %arg11[%c320, %c0_133], %261 {strides = array<i32>} : memref<720x4xf32, #tpu.memory_space<vmem>>, vector<40x4xf32>,
    %c9_i32 = arith.constant 9 : i32
    %263 = arith.addi %0, %c9_i32 : i32
    %c1_i32_134 = arith.constant 1 : i32
    %264 = arith.subi %263, %c1_i32_134 : i32
    %c0_i32_135 = arith.constant 0 : i32
    %265 = arith.cmpi sge, %264, %c0_i32_135 : i32
    %c32_i32_136 = arith.constant 32 : i32
    %266 = arith.cmpi slt, %264, %c32_i32_136 : i32
    %267 = arith.andi %265, %266 : i1
    %c0_i32_137 = arith.constant 0 : i32
    %c31_i32_138 = arith.constant 31 : i32
    %268 = arith.maxsi %c0_i32_137, %264 : i32
    %269 = arith.minsi %c31_i32_138, %268 : i32
    %270 = arith.index_cast %269 : i32 to index
    %271 = memref.load %arg2[%270] : memref<32xi32, #tpu.memory_space<smem>>
    %272 = arith.index_cast %269 : i32 to index
    %273 = memref.load %arg3[%272] : memref<32xi32, #tpu.memory_space<smem>>
    %274 = arith.index_cast %269 : i32 to index
    %275 = memref.load %arg4[%274] : memref<32xf32, #tpu.memory_space<smem>>
    %c0_139 = arith.constant 0 : index
    %276 = arith.index_cast %271 : i32 to index
    %c0_140 = arith.constant 0 : index
    %c0_141 = arith.constant 0 : index
    %277 = vector.load %arg5[%c0_139, %276, %c0_140, %c0_141] : memref<1x16x16x4xf32, #tpu.memory_space<vmem>>, vector<1x1x16x4xf32>
    %278 = vector.shape_cast %277 : vector<1x1x16x4xf32> to vector<16x4xf32>
    %279 = vector.broadcast %275 : f32 to vector<16x4xf32>
    %280 = arith.mulf %279, %278 : vector<16x4xf32>
    %cst_142 = arith.constant 1.000000e+00 : f32
    %281 = arith.subf %cst_142, %275 : f32
    %c0_143 = arith.constant 0 : index
    %282 = arith.index_cast %273 : i32 to index
    %c0_144 = arith.constant 0 : index
    %c0_145 = arith.constant 0 : index
    %283 = vector.load %arg5[%c0_143, %282, %c0_144, %c0_145] : memref<1x16x16x4xf32, #tpu.memory_space<vmem>>, vector<1x1x16x4xf32>
    %284 = vector.shape_cast %283 : vector<1x1x16x4xf32> to vector<16x4xf32>
    %285 = vector.broadcast %281 : f32 to vector<16x4xf32>
    %286 = arith.mulf %285, %284 : vector<16x4xf32>
    %287 = arith.addf %280, %286 : vector<16x4xf32>
    %cst_146 = arith.constant dense<0.000000e+00> : vector<40x4xf32>
    %288 = tpu.matmul %1, %287, %cst_146 {dimension_numbers = #tpu.dot_dimension_numbers<[1], [0], [0], [1], [0, 0, 1, 1], [], []>} : vector<40x16xf32>, vector<16x4xf32>, vector<40x4xf32> -> vector<40x4xf32>
    %cst_147 = arith.constant 0.000000e+00 : f32
    %289 = vector.broadcast %cst_147 : f32 to vector<40x4xf32>
    %290 = arith.select %267, %288, %289 : vector<40x4xf32>
    %c360 = arith.constant 360 : index
    %c0_148 = arith.constant 0 : index
    %291 = vector.load %arg11[%c360, %c0_148] : memref<720x4xf32, #tpu.memory_space<vmem>>, vector<40x4xf32>
    tpu.vector_store %arg11[%c360, %c0_148], %290 {strides = array<i32>} : memref<720x4xf32, #tpu.memory_space<vmem>>, vector<40x4xf32>,
    %c10_i32 = arith.constant 10 : i32
    %292 = arith.addi %0, %c10_i32 : i32
    %c1_i32_149 = arith.constant 1 : i32
    %293 = arith.subi %292, %c1_i32_149 : i32
    %c0_i32_150 = arith.constant 0 : i32
    %294 = arith.cmpi sge, %293, %c0_i32_150 : i32
    %c32_i32_151 = arith.constant 32 : i32
    %295 = arith.cmpi slt, %293, %c32_i32_151 : i32
    %296 = arith.andi %294, %295 : i1
    %c0_i32_152 = arith.constant 0 : i32
    %c31_i32_153 = arith.constant 31 : i32
    %297 = arith.maxsi %c0_i32_152, %293 : i32
    %298 = arith.minsi %c31_i32_153, %297 : i32
    %299 = arith.index_cast %298 : i32 to index
    %300 = memref.load %arg2[%299] : memref<32xi32, #tpu.memory_space<smem>>
    %301 = arith.index_cast %298 : i32 to index
    %302 = memref.load %arg3[%301] : memref<32xi32, #tpu.memory_space<smem>>
    %303 = arith.index_cast %298 : i32 to index
    %304 = memref.load %arg4[%303] : memref<32xf32, #tpu.memory_space<smem>>
    %c0_154 = arith.constant 0 : index
    %305 = arith.index_cast %300 : i32 to index
    %c0_155 = arith.constant 0 : index
    %c0_156 = arith.constant 0 : index
    %306 = vector.load %arg5[%c0_154, %305, %c0_155, %c0_156] : memref<1x16x16x4xf32, #tpu.memory_space<vmem>>, vector<1x1x16x4xf32>
    %307 = vector.shape_cast %306 : vector<1x1x16x4xf32> to vector<16x4xf32>
    %308 = vector.broadcast %304 : f32 to vector<16x4xf32>
    %309 = arith.mulf %308, %307 : vector<16x4xf32>
    %cst_157 = arith.constant 1.000000e+00 : f32
    %310 = arith.subf %cst_157, %304 : f32
    %c0_158 = arith.constant 0 : index
    %311 = arith.index_cast %302 : i32 to index
    %c0_159 = arith.constant 0 : index
    %c0_160 = arith.constant 0 : index
    %312 = vector.load %arg5[%c0_158, %311, %c0_159, %c0_160] : memref<1x16x16x4xf32, #tpu.memory_space<vmem>>, vector<1x1x16x4xf32>
    %313 = vector.shape_cast %312 : vector<1x1x16x4xf32> to vector<16x4xf32>
    %314 = vector.broadcast %310 : f32 to vector<16x4xf32>
    %315 = arith.mulf %314, %313 : vector<16x4xf32>
    %316 = arith.addf %309, %315 : vector<16x4xf32>
    %cst_161 = arith.constant dense<0.000000e+00> : vector<40x4xf32>
    %317 = tpu.matmul %1, %316, %cst_161 {dimension_numbers = #tpu.dot_dimension_numbers<[1], [0], [0], [1], [0, 0, 1, 1], [], []>} : vector<40x16xf32>, vector<16x4xf32>, vector<40x4xf32> -> vector<40x4xf32>
    %cst_162 = arith.constant 0.000000e+00 : f32
    %318 = vector.broadcast %cst_162 : f32 to vector<40x4xf32>
    %319 = arith.select %296, %317, %318 : vector<40x4xf32>
    %c400 = arith.constant 400 : index
    %c0_163 = arith.constant 0 : index
    %320 = vector.load %arg11[%c400, %c0_163] : memref<720x4xf32, #tpu.memory_space<vmem>>, vector<40x4xf32>
    tpu.vector_store %arg11[%c400, %c0_163], %319 {strides = array<i32>} : memref<720x4xf32, #tpu.memory_space<vmem>>, vector<40x4xf32>,
    %c11_i32 = arith.constant 11 : i32
    %321 = arith.addi %0, %c11_i32 : i32
    %c1_i32_164 = arith.constant 1 : i32
    %322 = arith.subi %321, %c1_i32_164 : i32
    %c0_i32_165 = arith.constant 0 : i32
    %323 = arith.cmpi sge, %322, %c0_i32_165 : i32
    %c32_i32_166 = arith.constant 32 : i32
    %324 = arith.cmpi slt, %322, %c32_i32_166 : i32
    %325 = arith.andi %323, %324 : i1
    %c0_i32_167 = arith.constant 0 : i32
    %c31_i32_168 = arith.constant 31 : i32
    %326 = arith.maxsi %c0_i32_167, %322 : i32
    %327 = arith.minsi %c31_i32_168, %326 : i32
    %328 = arith.index_cast %327 : i32 to index
    %329 = memref.load %arg2[%328] : memref<32xi32, #tpu.memory_space<smem>>
    %330 = arith.index_cast %327 : i32 to index
    %331 = memref.load %arg3[%330] : memref<32xi32, #tpu.memory_space<smem>>
    %332 = arith.index_cast %327 : i32 to index
    %333 = memref.load %arg4[%332] : memref<32xf32, #tpu.memory_space<smem>>
    %c0_169 = arith.constant 0 : index
    %334 = arith.index_cast %329 : i32 to index
    %c0_170 = arith.constant 0 : index
    %c0_171 = arith.constant 0 : index
    %335 = vector.load %arg5[%c0_169, %334, %c0_170, %c0_171] : memref<1x16x16x4xf32, #tpu.memory_space<vmem>>, vector<1x1x16x4xf32>
    %336 = vector.shape_cast %335 : vector<1x1x16x4xf32> to vector<16x4xf32>
    %337 = vector.broadcast %333 : f32 to vector<16x4xf32>
    %338 = arith.mulf %337, %336 : vector<16x4xf32>
    %cst_172 = arith.constant 1.000000e+00 : f32
    %339 = arith.subf %cst_172, %333 : f32
    %c0_173 = arith.constant 0 : index
    %340 = arith.index_cast %331 : i32 to index
    %c0_174 = arith.constant 0 : index
    %c0_175 = arith.constant 0 : index
    %341 = vector.load %arg5[%c0_173, %340, %c0_174, %c0_175] : memref<1x16x16x4xf32, #tpu.memory_space<vmem>>, vector<1x1x16x4xf32>
    %342 = vector.shape_cast %341 : vector<1x1x16x4xf32> to vector<16x4xf32>
    %343 = vector.broadcast %339 : f32 to vector<16x4xf32>
    %344 = arith.mulf %343, %342 : vector<16x4xf32>
    %345 = arith.addf %338, %344 : vector<16x4xf32>
    %cst_176 = arith.constant dense<0.000000e+00> : vector<40x4xf32>
    %346 = tpu.matmul %1, %345, %cst_176 {dimension_numbers = #tpu.dot_dimension_numbers<[1], [0], [0], [1], [0, 0, 1, 1], [], []>} : vector<40x16xf32>, vector<16x4xf32>, vector<40x4xf32> -> vector<40x4xf32>
    %cst_177 = arith.constant 0.000000e+00 : f32
    %347 = vector.broadcast %cst_177 : f32 to vector<40x4xf32>
    %348 = arith.select %325, %346, %347 : vector<40x4xf32>
    %c440 = arith.constant 440 : index
    %c0_178 = arith.constant 0 : index
    %349 = vector.load %arg11[%c440, %c0_178] : memref<720x4xf32, #tpu.memory_space<vmem>>, vector<40x4xf32>
    tpu.vector_store %arg11[%c440, %c0_178], %348 {strides = array<i32>} : memref<720x4xf32, #tpu.memory_space<vmem>>, vector<40x4xf32>,
    %c12_i32 = arith.constant 12 : i32
    %350 = arith.addi %0, %c12_i32 : i32
    %c1_i32_179 = arith.constant 1 : i32
    %351 = arith.subi %350, %c1_i32_179 : i32
    %c0_i32_180 = arith.constant 0 : i32
    %352 = arith.cmpi sge, %351, %c0_i32_180 : i32
    %c32_i32_181 = arith.constant 32 : i32
    %353 = arith.cmpi slt, %351, %c32_i32_181 : i32
    %354 = arith.andi %352, %353 : i1
    %c0_i32_182 = arith.constant 0 : i32
    %c31_i32_183 = arith.constant 31 : i32
    %355 = arith.maxsi %c0_i32_182, %351 : i32
    %356 = arith.minsi %c31_i32_183, %355 : i32
    %357 = arith.index_cast %356 : i32 to index
    %358 = memref.load %arg2[%357] : memref<32xi32, #tpu.memory_space<smem>>
    %359 = arith.index_cast %356 : i32 to index
    %360 = memref.load %arg3[%359] : memref<32xi32, #tpu.memory_space<smem>>
    %361 = arith.index_cast %356 : i32 to index
    %362 = memref.load %arg4[%361] : memref<32xf32, #tpu.memory_space<smem>>
    %c0_184 = arith.constant 0 : index
    %363 = arith.index_cast %358 : i32 to index
    %c0_185 = arith.constant 0 : index
    %c0_186 = arith.constant 0 : index
    %364 = vector.load %arg5[%c0_184, %363, %c0_185, %c0_186] : memref<1x16x16x4xf32, #tpu.memory_space<vmem>>, vector<1x1x16x4xf32>
    %365 = vector.shape_cast %364 : vector<1x1x16x4xf32> to vector<16x4xf32>
    %366 = vector.broadcast %362 : f32 to vector<16x4xf32>
    %367 = arith.mulf %366, %365 : vector<16x4xf32>
    %cst_187 = arith.constant 1.000000e+00 : f32
    %368 = arith.subf %cst_187, %362 : f32
    %c0_188 = arith.constant 0 : index
    %369 = arith.index_cast %360 : i32 to index
    %c0_189 = arith.constant 0 : index
    %c0_190 = arith.constant 0 : index
    %370 = vector.load %arg5[%c0_188, %369, %c0_189, %c0_190] : memref<1x16x16x4xf32, #tpu.memory_space<vmem>>, vector<1x1x16x4xf32>
    %371 = vector.shape_cast %370 : vector<1x1x16x4xf32> to vector<16x4xf32>
    %372 = vector.broadcast %368 : f32 to vector<16x4xf32>
    %373 = arith.mulf %372, %371 : vector<16x4xf32>
    %374 = arith.addf %367, %373 : vector<16x4xf32>
    %cst_191 = arith.constant dense<0.000000e+00> : vector<40x4xf32>
    %375 = tpu.matmul %1, %374, %cst_191 {dimension_numbers = #tpu.dot_dimension_numbers<[1], [0], [0], [1], [0, 0, 1, 1], [], []>} : vector<40x16xf32>, vector<16x4xf32>, vector<40x4xf32> -> vector<40x4xf32>
    %cst_192 = arith.constant 0.000000e+00 : f32
    %376 = vector.broadcast %cst_192 : f32 to vector<40x4xf32>
    %377 = arith.select %354, %375, %376 : vector<40x4xf32>
    %c480 = arith.constant 480 : index
    %c0_193 = arith.constant 0 : index
    %378 = vector.load %arg11[%c480, %c0_193] : memref<720x4xf32, #tpu.memory_space<vmem>>, vector<40x4xf32>
    tpu.vector_store %arg11[%c480, %c0_193], %377 {strides = array<i32>} : memref<720x4xf32, #tpu.memory_space<vmem>>, vector<40x4xf32>,
    %c13_i32 = arith.constant 13 : i32
    %379 = arith.addi %0, %c13_i32 : i32
    %c1_i32_194 = arith.constant 1 : i32
    %380 = arith.subi %379, %c1_i32_194 : i32
    %c0_i32_195 = arith.constant 0 : i32
    %381 = arith.cmpi sge, %380, %c0_i32_195 : i32
    %c32_i32_196 = arith.constant 32 : i32
    %382 = arith.cmpi slt, %380, %c32_i32_196 : i32
    %383 = arith.andi %381, %382 : i1
    %c0_i32_197 = arith.constant 0 : i32
    %c31_i32_198 = arith.constant 31 : i32
    %384 = arith.maxsi %c0_i32_197, %380 : i32
    %385 = arith.minsi %c31_i32_198, %384 : i32
    %386 = arith.index_cast %385 : i32 to index
    %387 = memref.load %arg2[%386] : memref<32xi32, #tpu.memory_space<smem>>
    %388 = arith.index_cast %385 : i32 to index
    %389 = memref.load %arg3[%388] : memref<32xi32, #tpu.memory_space<smem>>
    %390 = arith.index_cast %385 : i32 to index
    %391 = memref.load %arg4[%390] : memref<32xf32, #tpu.memory_space<smem>>
    %c0_199 = arith.constant 0 : index
    %392 = arith.index_cast %387 : i32 to index
    %c0_200 = arith.constant 0 : index
    %c0_201 = arith.constant 0 : index
    %393 = vector.load %arg5[%c0_199, %392, %c0_200, %c0_201] : memref<1x16x16x4xf32, #tpu.memory_space<vmem>>, vector<1x1x16x4xf32>
    %394 = vector.shape_cast %393 : vector<1x1x16x4xf32> to vector<16x4xf32>
    %395 = vector.broadcast %391 : f32 to vector<16x4xf32>
    %396 = arith.mulf %395, %394 : vector<16x4xf32>
    %cst_202 = arith.constant 1.000000e+00 : f32
    %397 = arith.subf %cst_202, %391 : f32
    %c0_203 = arith.constant 0 : index
    %398 = arith.index_cast %389 : i32 to index
    %c0_204 = arith.constant 0 : index
    %c0_205 = arith.constant 0 : index
    %399 = vector.load %arg5[%c0_203, %398, %c0_204, %c0_205] : memref<1x16x16x4xf32, #tpu.memory_space<vmem>>, vector<1x1x16x4xf32>
    %400 = vector.shape_cast %399 : vector<1x1x16x4xf32> to vector<16x4xf32>
    %401 = vector.broadcast %397 : f32 to vector<16x4xf32>
    %402 = arith.mulf %401, %400 : vector<16x4xf32>
    %403 = arith.addf %396, %402 : vector<16x4xf32>
    %cst_206 = arith.constant dense<0.000000e+00> : vector<40x4xf32>
    %404 = tpu.matmul %1, %403, %cst_206 {dimension_numbers = #tpu.dot_dimension_numbers<[1], [0], [0], [1], [0, 0, 1, 1], [], []>} : vector<40x16xf32>, vector<16x4xf32>, vector<40x4xf32> -> vector<40x4xf32>
    %cst_207 = arith.constant 0.000000e+00 : f32
    %405 = vector.broadcast %cst_207 : f32 to vector<40x4xf32>
    %406 = arith.select %383, %404, %405 : vector<40x4xf32>
    %c520 = arith.constant 520 : index
    %c0_208 = arith.constant 0 : index
    %407 = vector.load %arg11[%c520, %c0_208] : memref<720x4xf32, #tpu.memory_space<vmem>>, vector<40x4xf32>
    tpu.vector_store %arg11[%c520, %c0_208], %406 {strides = array<i32>} : memref<720x4xf32, #tpu.memory_space<vmem>>, vector<40x4xf32>,
    %c14_i32 = arith.constant 14 : i32
    %408 = arith.addi %0, %c14_i32 : i32
    %c1_i32_209 = arith.constant 1 : i32
    %409 = arith.subi %408, %c1_i32_209 : i32
    %c0_i32_210 = arith.constant 0 : i32
    %410 = arith.cmpi sge, %409, %c0_i32_210 : i32
    %c32_i32_211 = arith.constant 32 : i32
    %411 = arith.cmpi slt, %409, %c32_i32_211 : i32
    %412 = arith.andi %410, %411 : i1
    %c0_i32_212 = arith.constant 0 : i32
    %c31_i32_213 = arith.constant 31 : i32
    %413 = arith.maxsi %c0_i32_212, %409 : i32
    %414 = arith.minsi %c31_i32_213, %413 : i32
    %415 = arith.index_cast %414 : i32 to index
    %416 = memref.load %arg2[%415] : memref<32xi32, #tpu.memory_space<smem>>
    %417 = arith.index_cast %414 : i32 to index
    %418 = memref.load %arg3[%417] : memref<32xi32, #tpu.memory_space<smem>>
    %419 = arith.index_cast %414 : i32 to index
    %420 = memref.load %arg4[%419] : memref<32xf32, #tpu.memory_space<smem>>
    %c0_214 = arith.constant 0 : index
    %421 = arith.index_cast %416 : i32 to index
    %c0_215 = arith.constant 0 : index
    %c0_216 = arith.constant 0 : index
    %422 = vector.load %arg5[%c0_214, %421, %c0_215, %c0_216] : memref<1x16x16x4xf32, #tpu.memory_space<vmem>>, vector<1x1x16x4xf32>
    %423 = vector.shape_cast %422 : vector<1x1x16x4xf32> to vector<16x4xf32>
    %424 = vector.broadcast %420 : f32 to vector<16x4xf32>
    %425 = arith.mulf %424, %423 : vector<16x4xf32>
    %cst_217 = arith.constant 1.000000e+00 : f32
    %426 = arith.subf %cst_217, %420 : f32
    %c0_218 = arith.constant 0 : index
    %427 = arith.index_cast %418 : i32 to index
    %c0_219 = arith.constant 0 : index
    %c0_220 = arith.constant 0 : index
    %428 = vector.load %arg5[%c0_218, %427, %c0_219, %c0_220] : memref<1x16x16x4xf32, #tpu.memory_space<vmem>>, vector<1x1x16x4xf32>
    %429 = vector.shape_cast %428 : vector<1x1x16x4xf32> to vector<16x4xf32>
    %430 = vector.broadcast %426 : f32 to vector<16x4xf32>
    %431 = arith.mulf %430, %429 : vector<16x4xf32>
    %432 = arith.addf %425, %431 : vector<16x4xf32>
    %cst_221 = arith.constant dense<0.000000e+00> : vector<40x4xf32>
    %433 = tpu.matmul %1, %432, %cst_221 {dimension_numbers = #tpu.dot_dimension_numbers<[1], [0], [0], [1], [0, 0, 1, 1], [], []>} : vector<40x16xf32>, vector<16x4xf32>, vector<40x4xf32> -> vector<40x4xf32>
    %cst_222 = arith.constant 0.000000e+00 : f32
    %434 = vector.broadcast %cst_222 : f32 to vector<40x4xf32>
    %435 = arith.select %412, %433, %434 : vector<40x4xf32>
    %c560 = arith.constant 560 : index
    %c0_223 = arith.constant 0 : index
    %436 = vector.load %arg11[%c560, %c0_223] : memref<720x4xf32, #tpu.memory_space<vmem>>, vector<40x4xf32>
    tpu.vector_store %arg11[%c560, %c0_223], %435 {strides = array<i32>} : memref<720x4xf32, #tpu.memory_space<vmem>>, vector<40x4xf32>,
    %c15_i32 = arith.constant 15 : i32
    %437 = arith.addi %0, %c15_i32 : i32
    %c1_i32_224 = arith.constant 1 : i32
    %438 = arith.subi %437, %c1_i32_224 : i32
    %c0_i32_225 = arith.constant 0 : i32
    %439 = arith.cmpi sge, %438, %c0_i32_225 : i32
    %c32_i32_226 = arith.constant 32 : i32
    %440 = arith.cmpi slt, %438, %c32_i32_226 : i32
    %441 = arith.andi %439, %440 : i1
    %c0_i32_227 = arith.constant 0 : i32
    %c31_i32_228 = arith.constant 31 : i32
    %442 = arith.maxsi %c0_i32_227, %438 : i32
    %443 = arith.minsi %c31_i32_228, %442 : i32
    %444 = arith.index_cast %443 : i32 to index
    %445 = memref.load %arg2[%444] : memref<32xi32, #tpu.memory_space<smem>>
    %446 = arith.index_cast %443 : i32 to index
    %447 = memref.load %arg3[%446] : memref<32xi32, #tpu.memory_space<smem>>
    %448 = arith.index_cast %443 : i32 to index
    %449 = memref.load %arg4[%448] : memref<32xf32, #tpu.memory_space<smem>>
    %c0_229 = arith.constant 0 : index
    %450 = arith.index_cast %445 : i32 to index
    %c0_230 = arith.constant 0 : index
    %c0_231 = arith.constant 0 : index
    %451 = vector.load %arg5[%c0_229, %450, %c0_230, %c0_231] : memref<1x16x16x4xf32, #tpu.memory_space<vmem>>, vector<1x1x16x4xf32>
    %452 = vector.shape_cast %451 : vector<1x1x16x4xf32> to vector<16x4xf32>
    %453 = vector.broadcast %449 : f32 to vector<16x4xf32>
    %454 = arith.mulf %453, %452 : vector<16x4xf32>
    %cst_232 = arith.constant 1.000000e+00 : f32
    %455 = arith.subf %cst_232, %449 : f32
    %c0_233 = arith.constant 0 : index
    %456 = arith.index_cast %447 : i32 to index
    %c0_234 = arith.constant 0 : index
    %c0_235 = arith.constant 0 : index
    %457 = vector.load %arg5[%c0_233, %456, %c0_234, %c0_235] : memref<1x16x16x4xf32, #tpu.memory_space<vmem>>, vector<1x1x16x4xf32>
    %458 = vector.shape_cast %457 : vector<1x1x16x4xf32> to vector<16x4xf32>
    %459 = vector.broadcast %455 : f32 to vector<16x4xf32>
    %460 = arith.mulf %459, %458 : vector<16x4xf32>
    %461 = arith.addf %454, %460 : vector<16x4xf32>
    %cst_236 = arith.constant dense<0.000000e+00> : vector<40x4xf32>
    %462 = tpu.matmul %1, %461, %cst_236 {dimension_numbers = #tpu.dot_dimension_numbers<[1], [0], [0], [1], [0, 0, 1, 1], [], []>} : vector<40x16xf32>, vector<16x4xf32>, vector<40x4xf32> -> vector<40x4xf32>
    %cst_237 = arith.constant 0.000000e+00 : f32
    %463 = vector.broadcast %cst_237 : f32 to vector<40x4xf32>
    %464 = arith.select %441, %462, %463 : vector<40x4xf32>
    %c600 = arith.constant 600 : index
    %c0_238 = arith.constant 0 : index
    %465 = vector.load %arg11[%c600, %c0_238] : memref<720x4xf32, #tpu.memory_space<vmem>>, vector<40x4xf32>
    tpu.vector_store %arg11[%c600, %c0_238], %464 {strides = array<i32>} : memref<720x4xf32, #tpu.memory_space<vmem>>, vector<40x4xf32>,
    %c16_i32_239 = arith.constant 16 : i32
    %466 = arith.addi %0, %c16_i32_239 : i32
    %c1_i32_240 = arith.constant 1 : i32
    %467 = arith.subi %466, %c1_i32_240 : i32
    %c0_i32_241 = arith.constant 0 : i32
    %468 = arith.cmpi sge, %467, %c0_i32_241 : i32
    %c32_i32_242 = arith.constant 32 : i32
    %469 = arith.cmpi slt, %467, %c32_i32_242 : i32
    %470 = arith.andi %468, %469 : i1
    %c0_i32_243 = arith.constant 0 : i32
    %c31_i32_244 = arith.constant 31 : i32
    %471 = arith.maxsi %c0_i32_243, %467 : i32
    %472 = arith.minsi %c31_i32_244, %471 : i32
    %473 = arith.index_cast %472 : i32 to index
    %474 = memref.load %arg2[%473] : memref<32xi32, #tpu.memory_space<smem>>
    %475 = arith.index_cast %472 : i32 to index
    %476 = memref.load %arg3[%475] : memref<32xi32, #tpu.memory_space<smem>>
    %477 = arith.index_cast %472 : i32 to index
    %478 = memref.load %arg4[%477] : memref<32xf32, #tpu.memory_space<smem>>
    %c0_245 = arith.constant 0 : index
    %479 = arith.index_cast %474 : i32 to index
    %c0_246 = arith.constant 0 : index
    %c0_247 = arith.constant 0 : index
    %480 = vector.load %arg5[%c0_245, %479, %c0_246, %c0_247] : memref<1x16x16x4xf32, #tpu.memory_space<vmem>>, vector<1x1x16x4xf32>
    %481 = vector.shape_cast %480 : vector<1x1x16x4xf32> to vector<16x4xf32>
    %482 = vector.broadcast %478 : f32 to vector<16x4xf32>
    %483 = arith.mulf %482, %481 : vector<16x4xf32>
    %cst_248 = arith.constant 1.000000e+00 : f32
    %484 = arith.subf %cst_248, %478 : f32
    %c0_249 = arith.constant 0 : index
    %485 = arith.index_cast %476 : i32 to index
    %c0_250 = arith.constant 0 : index
    %c0_251 = arith.constant 0 : index
    %486 = vector.load %arg5[%c0_249, %485, %c0_250, %c0_251] : memref<1x16x16x4xf32, #tpu.memory_space<vmem>>, vector<1x1x16x4xf32>
    %487 = vector.shape_cast %486 : vector<1x1x16x4xf32> to vector<16x4xf32>
    %488 = vector.broadcast %484 : f32 to vector<16x4xf32>
    %489 = arith.mulf %488, %487 : vector<16x4xf32>
    %490 = arith.addf %483, %489 : vector<16x4xf32>
    %cst_252 = arith.constant dense<0.000000e+00> : vector<40x4xf32>
    %491 = tpu.matmul %1, %490, %cst_252 {dimension_numbers = #tpu.dot_dimension_numbers<[1], [0], [0], [1], [0, 0, 1, 1], [], []>} : vector<40x16xf32>, vector<16x4xf32>, vector<40x4xf32> -> vector<40x4xf32>
    %cst_253 = arith.constant 0.000000e+00 : f32
    %492 = vector.broadcast %cst_253 : f32 to vector<40x4xf32>
    %493 = arith.select %470, %491, %492 : vector<40x4xf32>
    %c640 = arith.constant 640 : index
    %c0_254 = arith.constant 0 : index
    %494 = vector.load %arg11[%c640, %c0_254] : memref<720x4xf32, #tpu.memory_space<vmem>>, vector<40x4xf32>
    tpu.vector_store %arg11[%c640, %c0_254], %493 {strides = array<i32>} : memref<720x4xf32, #tpu.memory_space<vmem>>, vector<40x4xf32>,
    %c17_i32 = arith.constant 17 : i32
    %495 = arith.addi %0, %c17_i32 : i32
    %c1_i32_255 = arith.constant 1 : i32
    %496 = arith.subi %495, %c1_i32_255 : i32
    %c0_i32_256 = arith.constant 0 : i32
    %497 = arith.cmpi sge, %496, %c0_i32_256 : i32
    %c32_i32_257 = arith.constant 32 : i32
    %498 = arith.cmpi slt, %496, %c32_i32_257 : i32
    %499 = arith.andi %497, %498 : i1
    %c0_i32_258 = arith.constant 0 : i32
    %c31_i32_259 = arith.constant 31 : i32
    %500 = arith.maxsi %c0_i32_258, %496 : i32
    %501 = arith.minsi %c31_i32_259, %500 : i32
    %502 = arith.index_cast %501 : i32 to index
    %503 = memref.load %arg2[%502] : memref<32xi32, #tpu.memory_space<smem>>
    %504 = arith.index_cast %501 : i32 to index
    %505 = memref.load %arg3[%504] : memref<32xi32, #tpu.memory_space<smem>>
    %506 = arith.index_cast %501 : i32 to index
    %507 = memref.load %arg4[%506] : memref<32xf32, #tpu.memory_space<smem>>
    %c0_260 = arith.constant 0 : index
    %508 = arith.index_cast %503 : i32 to index
    %c0_261 = arith.constant 0 : index
    %c0_262 = arith.constant 0 : index
    %509 = vector.load %arg5[%c0_260, %508, %c0_261, %c0_262] : memref<1x16x16x4xf32, #tpu.memory_space<vmem>>, vector<1x1x16x4xf32>
    %510 = vector.shape_cast %509 : vector<1x1x16x4xf32> to vector<16x4xf32>
    %511 = vector.broadcast %507 : f32 to vector<16x4xf32>
    %512 = arith.mulf %511, %510 : vector<16x4xf32>
    %cst_263 = arith.constant 1.000000e+00 : f32
    %513 = arith.subf %cst_263, %507 : f32
    %c0_264 = arith.constant 0 : index
    %514 = arith.index_cast %505 : i32 to index
    %c0_265 = arith.constant 0 : index
    %c0_266 = arith.constant 0 : index
    %515 = vector.load %arg5[%c0_264, %514, %c0_265, %c0_266] : memref<1x16x16x4xf32, #tpu.memory_space<vmem>>, vector<1x1x16x4xf32>
    %516 = vector.shape_cast %515 : vector<1x1x16x4xf32> to vector<16x4xf32>
    %517 = vector.broadcast %513 : f32 to vector<16x4xf32>
    %518 = arith.mulf %517, %516 : vector<16x4xf32>
    %519 = arith.addf %512, %518 : vector<16x4xf32>
    %cst_267 = arith.constant dense<0.000000e+00> : vector<40x4xf32>
    %520 = tpu.matmul %1, %519, %cst_267 {dimension_numbers = #tpu.dot_dimension_numbers<[1], [0], [0], [1], [0, 0, 1, 1], [], []>} : vector<40x16xf32>, vector<16x4xf32>, vector<40x4xf32> -> vector<40x4xf32>
    %cst_268 = arith.constant 0.000000e+00 : f32
    %521 = vector.broadcast %cst_268 : f32 to vector<40x4xf32>
    %522 = arith.select %499, %520, %521 : vector<40x4xf32>
    %c680 = arith.constant 680 : index
    %c0_269 = arith.constant 0 : index
    %523 = vector.load %arg11[%c680, %c0_269] : memref<720x4xf32, #tpu.memory_space<vmem>>, vector<40x4xf32>
    tpu.vector_store %arg11[%c680, %c0_269], %522 {strides = array<i32>} : memref<720x4xf32, #tpu.memory_space<vmem>>, vector<40x4xf32>,
    %cst_270 = arith.constant 0.000000e+00 : f32
    %524 = vector.broadcast %cst_270 : f32 to vector<632x8xf32>
    %c0_271 = arith.constant 0 : index
    %c0_272 = arith.constant 0 : index
    %525 = vector.load %arg11[%c0_271, %c0_272] : memref<720x4xf32, #tpu.memory_space<vmem>>, vector<632x4xf32>
    %c0_273 = arith.constant 0 : index
    %c0_274 = arith.constant 0 : index
    %c0_275 = arith.constant 0 : index
    %526 = vector.load %arg7[%c0_273, %c0_274, %c0_275] : memref<9x4x8xf32, #tpu.memory_space<vmem>>, vector<1x4x8xf32>
    %527 = vector.shape_cast %526 : vector<1x4x8xf32> to vector<4x8xf32>
    %cst_276 = arith.constant dense<0.000000e+00> : vector<632x8xf32>
    %528 = tpu.matmul %525, %527, %cst_276 {dimension_numbers = #tpu.dot_dimension_numbers<[1], [0], [0], [1], [0, 0, 1, 1], [], []>} : vector<632x4xf32>, vector<4x8xf32>, vector<632x8xf32> -> vector<632x8xf32>
    %529 = arith.addf %524, %528 : vector<632x8xf32>
    %c1 = arith.constant 1 : index
    %c0_277 = arith.constant 0 : index
    %530 = vector.load %arg11[%c1, %c0_277] : memref<720x4xf32, #tpu.memory_space<vmem>>, vector<632x4xf32>
    %c1_278 = arith.constant 1 : index
    %c0_279 = arith.constant 0 : index
    %c0_280 = arith.constant 0 : index
    %531 = vector.load %arg7[%c1_278, %c0_279, %c0_280] : memref<9x4x8xf32, #tpu.memory_space<vmem>>, vector<1x4x8xf32>
    %532 = vector.shape_cast %531 : vector<1x4x8xf32> to vector<4x8xf32>
    %cst_281 = arith.constant dense<0.000000e+00> : vector<632x8xf32>
    %533 = tpu.matmul %530, %532, %cst_281 {dimension_numbers = #tpu.dot_dimension_numbers<[1], [0], [0], [1], [0, 0, 1, 1], [], []>} : vector<632x4xf32>, vector<4x8xf32>, vector<632x8xf32> -> vector<632x8xf32>
    %534 = arith.addf %529, %533 : vector<632x8xf32>
    %c2 = arith.constant 2 : index
    %c0_282 = arith.constant 0 : index
    %535 = vector.load %arg11[%c2, %c0_282] : memref<720x4xf32, #tpu.memory_space<vmem>>, vector<632x4xf32>
    %c2_283 = arith.constant 2 : index
    %c0_284 = arith.constant 0 : index
    %c0_285 = arith.constant 0 : index
    %536 = vector.load %arg7[%c2_283, %c0_284, %c0_285] : memref<9x4x8xf32, #tpu.memory_space<vmem>>, vector<1x4x8xf32>
    %537 = vector.shape_cast %536 : vector<1x4x8xf32> to vector<4x8xf32>
    %cst_286 = arith.constant dense<0.000000e+00> : vector<632x8xf32>
    %538 = tpu.matmul %535, %537, %cst_286 {dimension_numbers = #tpu.dot_dimension_numbers<[1], [0], [0], [1], [0, 0, 1, 1], [], []>} : vector<632x4xf32>, vector<4x8xf32>, vector<632x8xf32> -> vector<632x8xf32>
    %539 = arith.addf %534, %538 : vector<632x8xf32>
    %c40_287 = arith.constant 40 : index
    %c0_288 = arith.constant 0 : index
    %540 = vector.load %arg11[%c40_287, %c0_288] : memref<720x4xf32, #tpu.memory_space<vmem>>, vector<632x4xf32>
    %c3 = arith.constant 3 : index
    %c0_289 = arith.constant 0 : index
    %c0_290 = arith.constant 0 : index
    %541 = vector.load %arg7[%c3, %c0_289, %c0_290] : memref<9x4x8xf32, #tpu.memory_space<vmem>>, vector<1x4x8xf32>
    %542 = vector.shape_cast %541 : vector<1x4x8xf32> to vector<4x8xf32>
    %cst_291 = arith.constant dense<0.000000e+00> : vector<632x8xf32>
    %543 = tpu.matmul %540, %542, %cst_291 {dimension_numbers = #tpu.dot_dimension_numbers<[1], [0], [0], [1], [0, 0, 1, 1], [], []>} : vector<632x4xf32>, vector<4x8xf32>, vector<632x8xf32> -> vector<632x8xf32>
    %544 = arith.addf %539, %543 : vector<632x8xf32>
    %c41 = arith.constant 41 : index
    %c0_292 = arith.constant 0 : index
    %545 = vector.load %arg11[%c41, %c0_292] : memref<720x4xf32, #tpu.memory_space<vmem>>, vector<632x4xf32>
    %c4 = arith.constant 4 : index
    %c0_293 = arith.constant 0 : index
    %c0_294 = arith.constant 0 : index
    %546 = vector.load %arg7[%c4, %c0_293, %c0_294] : memref<9x4x8xf32, #tpu.memory_space<vmem>>, vector<1x4x8xf32>
    %547 = vector.shape_cast %546 : vector<1x4x8xf32> to vector<4x8xf32>
    %cst_295 = arith.constant dense<0.000000e+00> : vector<632x8xf32>
    %548 = tpu.matmul %545, %547, %cst_295 {dimension_numbers = #tpu.dot_dimension_numbers<[1], [0], [0], [1], [0, 0, 1, 1], [], []>} : vector<632x4xf32>, vector<4x8xf32>, vector<632x8xf32> -> vector<632x8xf32>
    %549 = arith.addf %544, %548 : vector<632x8xf32>
    %c42 = arith.constant 42 : index
    %c0_296 = arith.constant 0 : index
    %550 = vector.load %arg11[%c42, %c0_296] : memref<720x4xf32, #tpu.memory_space<vmem>>, vector<632x4xf32>
    %c5 = arith.constant 5 : index
    %c0_297 = arith.constant 0 : index
    %c0_298 = arith.constant 0 : index
    %551 = vector.load %arg7[%c5, %c0_297, %c0_298] : memref<9x4x8xf32, #tpu.memory_space<vmem>>, vector<1x4x8xf32>
    %552 = vector.shape_cast %551 : vector<1x4x8xf32> to vector<4x8xf32>
    %cst_299 = arith.constant dense<0.000000e+00> : vector<632x8xf32>
    %553 = tpu.matmul %550, %552, %cst_299 {dimension_numbers = #tpu.dot_dimension_numbers<[1], [0], [0], [1], [0, 0, 1, 1], [], []>} : vector<632x4xf32>, vector<4x8xf32>, vector<632x8xf32> -> vector<632x8xf32>
    %554 = arith.addf %549, %553 : vector<632x8xf32>
    %c80_300 = arith.constant 80 : index
    %c0_301 = arith.constant 0 : index
    %555 = vector.load %arg11[%c80_300, %c0_301] : memref<720x4xf32, #tpu.memory_space<vmem>>, vector<632x4xf32>
    %c6 = arith.constant 6 : index
    %c0_302 = arith.constant 0 : index
    %c0_303 = arith.constant 0 : index
    %556 = vector.load %arg7[%c6, %c0_302, %c0_303] : memref<9x4x8xf32, #tpu.memory_space<vmem>>, vector<1x4x8xf32>
    %557 = vector.shape_cast %556 : vector<1x4x8xf32> to vector<4x8xf32>
    %cst_304 = arith.constant dense<0.000000e+00> : vector<632x8xf32>
    %558 = tpu.matmul %555, %557, %cst_304 {dimension_numbers = #tpu.dot_dimension_numbers<[1], [0], [0], [1], [0, 0, 1, 1], [], []>} : vector<632x4xf32>, vector<4x8xf32>, vector<632x8xf32> -> vector<632x8xf32>
    %559 = arith.addf %554, %558 : vector<632x8xf32>
    %c81 = arith.constant 81 : index
    %c0_305 = arith.constant 0 : index
    %560 = vector.load %arg11[%c81, %c0_305] : memref<720x4xf32, #tpu.memory_space<vmem>>, vector<632x4xf32>
    %c7 = arith.constant 7 : index
    %c0_306 = arith.constant 0 : index
    %c0_307 = arith.constant 0 : index
    %561 = vector.load %arg7[%c7, %c0_306, %c0_307] : memref<9x4x8xf32, #tpu.memory_space<vmem>>, vector<1x4x8xf32>
    %562 = vector.shape_cast %561 : vector<1x4x8xf32> to vector<4x8xf32>
    %cst_308 = arith.constant dense<0.000000e+00> : vector<632x8xf32>
    %563 = tpu.matmul %560, %562, %cst_308 {dimension_numbers = #tpu.dot_dimension_numbers<[1], [0], [0], [1], [0, 0, 1, 1], [], []>} : vector<632x4xf32>, vector<4x8xf32>, vector<632x8xf32> -> vector<632x8xf32>
    %564 = arith.addf %559, %563 : vector<632x8xf32>
    %c82 = arith.constant 82 : index
    %c0_309 = arith.constant 0 : index
    %565 = vector.load %arg11[%c82, %c0_309] : memref<720x4xf32, #tpu.memory_space<vmem>>, vector<632x4xf32>
    %c8 = arith.constant 8 : index
    %c0_310 = arith.constant 0 : index
    %c0_311 = arith.constant 0 : index
    %566 = vector.load %arg7[%c8, %c0_310, %c0_311] : memref<9x4x8xf32, #tpu.memory_space<vmem>>, vector<1x4x8xf32>
    %567 = vector.shape_cast %566 : vector<1x4x8xf32> to vector<4x8xf32>
    %cst_312 = arith.constant dense<0.000000e+00> : vector<632x8xf32>
    %568 = tpu.matmul %565, %567, %cst_312 {dimension_numbers = #tpu.dot_dimension_numbers<[1], [0], [0], [1], [0, 0, 1, 1], [], []>} : vector<632x4xf32>, vector<4x8xf32>, vector<632x8xf32> -> vector<632x8xf32>
    %569 = arith.addf %564, %568 : vector<632x8xf32>
    %c0_313 = arith.constant 0 : index
    %c0_314 = arith.constant 0 : index
    %570 = vector.load %arg8[%c0_313, %c0_314] : memref<1x8xf32, #tpu.memory_space<vmem>>, vector<1x8xf32>
    %571 = vector.broadcast %570 : vector<1x8xf32> to vector<632x8xf32>
    %572 = arith.mulf %569, %571 : vector<632x8xf32>
    %c0_315 = arith.constant 0 : index
    %c0_316 = arith.constant 0 : index
    %573 = vector.load %arg9[%c0_315, %c0_316] : memref<1x8xf32, #tpu.memory_space<vmem>>, vector<1x8xf32>
    %574 = vector.broadcast %573 : vector<1x8xf32> to vector<632x8xf32>
    %575 = arith.addf %572, %574 : vector<632x8xf32>
    %cst_317 = arith.constant 0.000000e+00 : f32
    %576 = vector.broadcast %cst_317 : f32 to vector<632x8xf32>
    %577 = arith.maximumf %575, %576 : vector<632x8xf32>
    %578 = vector.extract_strided_slice %577 {offsets = [0, 0], sizes = [32, 8], strides = [1, 1]} : vector<632x8xf32> to vector<32x8xf32>
    %c0_318 = arith.constant 0 : index
    %c0_319 = arith.constant 0 : index
    %c0_320 = arith.constant 0 : index
    %c0_321 = arith.constant 0 : index
    %579 = vector.load %arg10[%c0_318, %c0_319, %c0_320, %c0_321] : memref<1x16x32x8xf32, #tpu.memory_space<vmem>>, vector<1x1x32x8xf32>
    %580 = vector.shape_cast %579 : vector<1x1x32x8xf32> to vector<32x8xf32>
    %581 = vector.shape_cast %578 : vector<32x8xf32> to vector<1x1x32x8xf32>
    tpu.vector_store %arg10[%c0_318, %c0_319, %c0_320, %c0_321], %581 {strides = array<i32>} : memref<1x16x32x8xf32, #tpu.memory_space<vmem>>, vector<1x1x32x8xf32>,
    %582 = vector.extract_strided_slice %577 {offsets = [40, 0], sizes = [32, 8], strides = [1, 1]} : vector<632x8xf32> to vector<32x8xf32>
    %c0_322 = arith.constant 0 : index
    %c1_323 = arith.constant 1 : index
    %c0_324 = arith.constant 0 : index
    %c0_325 = arith.constant 0 : index
    %583 = vector.load %arg10[%c0_322, %c1_323, %c0_324, %c0_325] : memref<1x16x32x8xf32, #tpu.memory_space<vmem>>, vector<1x1x32x8xf32>
    %584 = vector.shape_cast %583 : vector<1x1x32x8xf32> to vector<32x8xf32>
    %585 = vector.shape_cast %582 : vector<32x8xf32> to vector<1x1x32x8xf32>
    tpu.vector_store %arg10[%c0_322, %c1_323, %c0_324, %c0_325], %585 {strides = array<i32>} : memref<1x16x32x8xf32, #tpu.memory_space<vmem>>, vector<1x1x32x8xf32>,
    %586 = vector.extract_strided_slice %577 {offsets = [80, 0], sizes = [32, 8], strides = [1, 1]} : vector<632x8xf32> to vector<32x8xf32>
    %c0_326 = arith.constant 0 : index
    %c2_327 = arith.constant 2 : index
    %c0_328 = arith.constant 0 : index
    %c0_329 = arith.constant 0 : index
    %587 = vector.load %arg10[%c0_326, %c2_327, %c0_328, %c0_329] : memref<1x16x32x8xf32, #tpu.memory_space<vmem>>, vector<1x1x32x8xf32>
    %588 = vector.shape_cast %587 : vector<1x1x32x8xf32> to vector<32x8xf32>
    %589 = vector.shape_cast %586 : vector<32x8xf32> to vector<1x1x32x8xf32>
    tpu.vector_store %arg10[%c0_326, %c2_327, %c0_328, %c0_329], %589 {strides = array<i32>} : memref<1x16x32x8xf32, #tpu.memory_space<vmem>>, vector<1x1x32x8xf32>,
    %590 = vector.extract_strided_slice %577 {offsets = [120, 0], sizes = [32, 8], strides = [1, 1]} : vector<632x8xf32> to vector<32x8xf32>
    %c0_330 = arith.constant 0 : index
    %c3_331 = arith.constant 3 : index
    %c0_332 = arith.constant 0 : index
    %c0_333 = arith.constant 0 : index
    %591 = vector.load %arg10[%c0_330, %c3_331, %c0_332, %c0_333] : memref<1x16x32x8xf32, #tpu.memory_space<vmem>>, vector<1x1x32x8xf32>
    %592 = vector.shape_cast %591 : vector<1x1x32x8xf32> to vector<32x8xf32>
    %593 = vector.shape_cast %590 : vector<32x8xf32> to vector<1x1x32x8xf32>
    tpu.vector_store %arg10[%c0_330, %c3_331, %c0_332, %c0_333], %593 {strides = array<i32>} : memref<1x16x32x8xf32, #tpu.memory_space<vmem>>, vector<1x1x32x8xf32>,
    %594 = vector.extract_strided_slice %577 {offsets = [160, 0], sizes = [32, 8], strides = [1, 1]} : vector<632x8xf32> to vector<32x8xf32>
    %c0_334 = arith.constant 0 : index
    %c4_335 = arith.constant 4 : index
    %c0_336 = arith.constant 0 : index
    %c0_337 = arith.constant 0 : index
    %595 = vector.load %arg10[%c0_334, %c4_335, %c0_336, %c0_337] : memref<1x16x32x8xf32, #tpu.memory_space<vmem>>, vector<1x1x32x8xf32>
    %596 = vector.shape_cast %595 : vector<1x1x32x8xf32> to vector<32x8xf32>
    %597 = vector.shape_cast %594 : vector<32x8xf32> to vector<1x1x32x8xf32>
    tpu.vector_store %arg10[%c0_334, %c4_335, %c0_336, %c0_337], %597 {strides = array<i32>} : memref<1x16x32x8xf32, #tpu.memory_space<vmem>>, vector<1x1x32x8xf32>,
    %598 = vector.extract_strided_slice %577 {offsets = [200, 0], sizes = [32, 8], strides = [1, 1]} : vector<632x8xf32> to vector<32x8xf32>
    %c0_338 = arith.constant 0 : index
    %c5_339 = arith.constant 5 : index
    %c0_340 = arith.constant 0 : index
    %c0_341 = arith.constant 0 : index
    %599 = vector.load %arg10[%c0_338, %c5_339, %c0_340, %c0_341] : memref<1x16x32x8xf32, #tpu.memory_space<vmem>>, vector<1x1x32x8xf32>
    %600 = vector.shape_cast %599 : vector<1x1x32x8xf32> to vector<32x8xf32>
    %601 = vector.shape_cast %598 : vector<32x8xf32> to vector<1x1x32x8xf32>
    tpu.vector_store %arg10[%c0_338, %c5_339, %c0_340, %c0_341], %601 {strides = array<i32>} : memref<1x16x32x8xf32, #tpu.memory_space<vmem>>, vector<1x1x32x8xf32>,
    %602 = vector.extract_strided_slice %577 {offsets = [240, 0], sizes = [32, 8], strides = [1, 1]} : vector<632x8xf32> to vector<32x8xf32>
    %c0_342 = arith.constant 0 : index
    %c6_343 = arith.constant 6 : index
    %c0_344 = arith.constant 0 : index
    %c0_345 = arith.constant 0 : index
    %603 = vector.load %arg10[%c0_342, %c6_343, %c0_344, %c0_345] : memref<1x16x32x8xf32, #tpu.memory_space<vmem>>, vector<1x1x32x8xf32>
    %604 = vector.shape_cast %603 : vector<1x1x32x8xf32> to vector<32x8xf32>
    %605 = vector.shape_cast %602 : vector<32x8xf32> to vector<1x1x32x8xf32>
    tpu.vector_store %arg10[%c0_342, %c6_343, %c0_344, %c0_345], %605 {strides = array<i32>} : memref<1x16x32x8xf32, #tpu.memory_space<vmem>>, vector<1x1x32x8xf32>,
    %606 = vector.extract_strided_slice %577 {offsets = [280, 0], sizes = [32, 8], strides = [1, 1]} : vector<632x8xf32> to vector<32x8xf32>
    %c0_346 = arith.constant 0 : index
    %c7_347 = arith.constant 7 : index
    %c0_348 = arith.constant 0 : index
    %c0_349 = arith.constant 0 : index
    %607 = vector.load %arg10[%c0_346, %c7_347, %c0_348, %c0_349] : memref<1x16x32x8xf32, #tpu.memory_space<vmem>>, vector<1x1x32x8xf32>
    %608 = vector.shape_cast %607 : vector<1x1x32x8xf32> to vector<32x8xf32>
    %609 = vector.shape_cast %606 : vector<32x8xf32> to vector<1x1x32x8xf32>
    tpu.vector_store %arg10[%c0_346, %c7_347, %c0_348, %c0_349], %609 {strides = array<i32>} : memref<1x16x32x8xf32, #tpu.memory_space<vmem>>, vector<1x1x32x8xf32>,
    %610 = vector.extract_strided_slice %577 {offsets = [320, 0], sizes = [32, 8], strides = [1, 1]} : vector<632x8xf32> to vector<32x8xf32>
    %c0_350 = arith.constant 0 : index
    %c8_351 = arith.constant 8 : index
    %c0_352 = arith.constant 0 : index
    %c0_353 = arith.constant 0 : index
    %611 = vector.load %arg10[%c0_350, %c8_351, %c0_352, %c0_353] : memref<1x16x32x8xf32, #tpu.memory_space<vmem>>, vector<1x1x32x8xf32>
    %612 = vector.shape_cast %611 : vector<1x1x32x8xf32> to vector<32x8xf32>
    %613 = vector.shape_cast %610 : vector<32x8xf32> to vector<1x1x32x8xf32>
    tpu.vector_store %arg10[%c0_350, %c8_351, %c0_352, %c0_353], %613 {strides = array<i32>} : memref<1x16x32x8xf32, #tpu.memory_space<vmem>>, vector<1x1x32x8xf32>,
    %614 = vector.extract_strided_slice %577 {offsets = [360, 0], sizes = [32, 8], strides = [1, 1]} : vector<632x8xf32> to vector<32x8xf32>
    %c0_354 = arith.constant 0 : index
    %c9 = arith.constant 9 : index
    %c0_355 = arith.constant 0 : index
    %c0_356 = arith.constant 0 : index
    %615 = vector.load %arg10[%c0_354, %c9, %c0_355, %c0_356] : memref<1x16x32x8xf32, #tpu.memory_space<vmem>>, vector<1x1x32x8xf32>
    %616 = vector.shape_cast %615 : vector<1x1x32x8xf32> to vector<32x8xf32>
    %617 = vector.shape_cast %614 : vector<32x8xf32> to vector<1x1x32x8xf32>
    tpu.vector_store %arg10[%c0_354, %c9, %c0_355, %c0_356], %617 {strides = array<i32>} : memref<1x16x32x8xf32, #tpu.memory_space<vmem>>, vector<1x1x32x8xf32>,
    %618 = vector.extract_strided_slice %577 {offsets = [400, 0], sizes = [32, 8], strides = [1, 1]} : vector<632x8xf32> to vector<32x8xf32>
    %c0_357 = arith.constant 0 : index
    %c10 = arith.constant 10 : index
    %c0_358 = arith.constant 0 : index
    %c0_359 = arith.constant 0 : index
    %619 = vector.load %arg10[%c0_357, %c10, %c0_358, %c0_359] : memref<1x16x32x8xf32, #tpu.memory_space<vmem>>, vector<1x1x32x8xf32>
    %620 = vector.shape_cast %619 : vector<1x1x32x8xf32> to vector<32x8xf32>
    %621 = vector.shape_cast %618 : vector<32x8xf32> to vector<1x1x32x8xf32>
    tpu.vector_store %arg10[%c0_357, %c10, %c0_358, %c0_359], %621 {strides = array<i32>} : memref<1x16x32x8xf32, #tpu.memory_space<vmem>>, vector<1x1x32x8xf32>,
    %622 = vector.extract_strided_slice %577 {offsets = [440, 0], sizes = [32, 8], strides = [1, 1]} : vector<632x8xf32> to vector<32x8xf32>
    %c0_360 = arith.constant 0 : index
    %c11 = arith.constant 11 : index
    %c0_361 = arith.constant 0 : index
    %c0_362 = arith.constant 0 : index
    %623 = vector.load %arg10[%c0_360, %c11, %c0_361, %c0_362] : memref<1x16x32x8xf32, #tpu.memory_space<vmem>>, vector<1x1x32x8xf32>
    %624 = vector.shape_cast %623 : vector<1x1x32x8xf32> to vector<32x8xf32>
    %625 = vector.shape_cast %622 : vector<32x8xf32> to vector<1x1x32x8xf32>
    tpu.vector_store %arg10[%c0_360, %c11, %c0_361, %c0_362], %625 {strides = array<i32>} : memref<1x16x32x8xf32, #tpu.memory_space<vmem>>, vector<1x1x32x8xf32>,
    %626 = vector.extract_strided_slice %577 {offsets = [480, 0], sizes = [32, 8], strides = [1, 1]} : vector<632x8xf32> to vector<32x8xf32>
    %c0_363 = arith.constant 0 : index
    %c12 = arith.constant 12 : index
    %c0_364 = arith.constant 0 : index
    %c0_365 = arith.constant 0 : index
    %627 = vector.load %arg10[%c0_363, %c12, %c0_364, %c0_365] : memref<1x16x32x8xf32, #tpu.memory_space<vmem>>, vector<1x1x32x8xf32>
    %628 = vector.shape_cast %627 : vector<1x1x32x8xf32> to vector<32x8xf32>
    %629 = vector.shape_cast %626 : vector<32x8xf32> to vector<1x1x32x8xf32>
    tpu.vector_store %arg10[%c0_363, %c12, %c0_364, %c0_365], %629 {strides = array<i32>} : memref<1x16x32x8xf32, #tpu.memory_space<vmem>>, vector<1x1x32x8xf32>,
    %630 = vector.extract_strided_slice %577 {offsets = [520, 0], sizes = [32, 8], strides = [1, 1]} : vector<632x8xf32> to vector<32x8xf32>
    %c0_366 = arith.constant 0 : index
    %c13 = arith.constant 13 : index
    %c0_367 = arith.constant 0 : index
    %c0_368 = arith.constant 0 : index
    %631 = vector.load %arg10[%c0_366, %c13, %c0_367, %c0_368] : memref<1x16x32x8xf32, #tpu.memory_space<vmem>>, vector<1x1x32x8xf32>
    %632 = vector.shape_cast %631 : vector<1x1x32x8xf32> to vector<32x8xf32>
    %633 = vector.shape_cast %630 : vector<32x8xf32> to vector<1x1x32x8xf32>
    tpu.vector_store %arg10[%c0_366, %c13, %c0_367, %c0_368], %633 {strides = array<i32>} : memref<1x16x32x8xf32, #tpu.memory_space<vmem>>, vector<1x1x32x8xf32>,
    %634 = vector.extract_strided_slice %577 {offsets = [560, 0], sizes = [32, 8], strides = [1, 1]} : vector<632x8xf32> to vector<32x8xf32>
    %c0_369 = arith.constant 0 : index
    %c14 = arith.constant 14 : index
    %c0_370 = arith.constant 0 : index
    %c0_371 = arith.constant 0 : index
    %635 = vector.load %arg10[%c0_369, %c14, %c0_370, %c0_371] : memref<1x16x32x8xf32, #tpu.memory_space<vmem>>, vector<1x1x32x8xf32>
    %636 = vector.shape_cast %635 : vector<1x1x32x8xf32> to vector<32x8xf32>
    %637 = vector.shape_cast %634 : vector<32x8xf32> to vector<1x1x32x8xf32>
    tpu.vector_store %arg10[%c0_369, %c14, %c0_370, %c0_371], %637 {strides = array<i32>} : memref<1x16x32x8xf32, #tpu.memory_space<vmem>>, vector<1x1x32x8xf32>,
    %638 = vector.extract_strided_slice %577 {offsets = [600, 0], sizes = [32, 8], strides = [1, 1]} : vector<632x8xf32> to vector<32x8xf32>
    %c0_372 = arith.constant 0 : index
    %c15 = arith.constant 15 : index
    %c0_373 = arith.constant 0 : index
    %c0_374 = arith.constant 0 : index
    %639 = vector.load %arg10[%c0_372, %c15, %c0_373, %c0_374] : memref<1x16x32x8xf32, #tpu.memory_space<vmem>>, vector<1x1x32x8xf32>
    %640 = vector.shape_cast %639 : vector<1x1x32x8xf32> to vector<32x8xf32>
    %641 = vector.shape_cast %638 : vector<32x8xf32> to vector<1x1x32x8xf32>
    tpu.vector_store %arg10[%c0_372, %c15, %c0_373, %c0_374], %641 {strides = array<i32>} : memref<1x16x32x8xf32, #tpu.memory_space<vmem>>, vector<1x1x32x8xf32>,
    return
  }
  func.func @transform_0(%arg0: i32, %arg1: i32) -> i32 {
    %c0_i32 = arith.constant 0 : i32
    %c0_i32_0 = arith.constant 0 : i32
    return %c0_i32 : i32
  }
  func.func @transform_1(%arg0: i32, %arg1: i32) -> i32 {
    %c0_i32 = arith.constant 0 : i32
    %c0_i32_0 = arith.constant 0 : i32
    return %c0_i32 : i32
  }
  func.func @transform_2(%arg0: i32, %arg1: i32) -> i32 {
    %c0_i32 = arith.constant 0 : i32
    %c0_i32_0 = arith.constant 0 : i32
    return %c0_i32 : i32
  }
  func.func @transform_3(%arg0: i32, %arg1: i32) -> (i32, i32, i32, i32) {
    %c0_i32 = arith.constant 0 : i32
    %c0_i32_0 = arith.constant 0 : i32
    %c0_i32_1 = arith.constant 0 : i32
    %c0_i32_2 = arith.constant 0 : i32
    return %arg0, %c0_i32, %c0_i32_0, %c0_i32_1 : i32, i32, i32, i32
  }
  func.func @transform_4(%arg0: i32, %arg1: i32) -> (i32, i32) {
    %c0_i32 = arith.constant 0 : i32
    %c0_i32_0 = arith.constant 0 : i32
    %c0_i32_1 = arith.constant 0 : i32
    return %c0_i32, %c0_i32_0 : i32, i32
  }
  func.func @transform_5(%arg0: i32, %arg1: i32) -> (i32, i32, i32) {
    %c0_i32 = arith.constant 0 : i32
    %c0_i32_0 = arith.constant 0 : i32
    %c0_i32_1 = arith.constant 0 : i32
    %c0_i32_2 = arith.constant 0 : i32
    return %c0_i32, %c0_i32_0, %c0_i32_1 : i32, i32, i32
  }
  func.func @transform_6(%arg0: i32, %arg1: i32) -> (i32, i32) {
    %c0_i32 = arith.constant 0 : i32
    %c0_i32_0 = arith.constant 0 : i32
    %c0_i32_1 = arith.constant 0 : i32
    return %c0_i32, %c0_i32_0 : i32, i32
  }
  func.func @transform_7(%arg0: i32, %arg1: i32) -> (i32, i32) {
    %c0_i32 = arith.constant 0 : i32
    %c0_i32_0 = arith.constant 0 : i32
    %c0_i32_1 = arith.constant 0 : i32
    return %c0_i32, %c0_i32_0 : i32, i32
  }
  func.func @transform_8(%arg0: i32, %arg1: i32) -> (i32, i32, i32, i32) {
    %c0_i32 = arith.constant 0 : i32
    %c0_i32_0 = arith.constant 0 : i32
    %c0_i32_1 = arith.constant 0 : i32
    return %arg0, %arg1, %c0_i32, %c0_i32_0 : i32, i32, i32, i32
  }
}

</mosaic_0001>

<llo_original>
// kernel: tpu_custom_call.1
$region0: #{tpu_custom_call.1}
  #allocation0 [shape = 'u32[]', space=smem, size = 0x4, offset = 0x4, fixed_abs, tag = 'smem constant byte address 0x4 - core index']
  #allocation1 [shape = 'u32[144,128]{1,0:T(1,128)}', space=vmem, size = 0x12000, scoped, tag = 'internal scratch']
  #allocation2 [shape = 'f32[720,4]{1,0:T(8,128)}', space=vmem, size = 0x5a000, scoped, tag = 'scratch operand']
  %s0 = inlined_call_operand.vmem [shape: s32[32], index: 0, kind: input, shape index: {}]
  %s1 = inlined_call_operand.vmem [shape: s32[32], index: 1, kind: input, shape index: {}]
  %s2 = inlined_call_operand.vmem [shape: f32[32], index: 2, kind: input, shape index: {}]
  %s3 = inlined_call_operand.vmem [shape: f32[2,16,16,4], index: 3, kind: input, shape index: {}]
  %s4 = inlined_call_operand.vmem [shape: f32[40,16], index: 4, kind: input, shape index: {}]
  %s5 = inlined_call_operand.vmem [shape: f32[9,4,8], index: 5, kind: input, shape index: {}]
  %s6 = inlined_call_operand.vmem [shape: f32[1,8], index: 6, kind: input, shape index: {}]
  %s7 = inlined_call_operand.vmem [shape: f32[1,8], index: 7, kind: input, shape index: {}]
  %s8 = inlined_call_operand.vmem [shape: f32[2,32,32,8], index: 8, kind: output, shape index: {}]
  %s9 = sld [smem:[#allocation0]]
  $region77: #{tpu_custom_call.1} parent=0
    _
  %s11 = ssub.s32 1, %s9
  %s12 = scalar_select 0, %s11, %s9
  $region1: #{tpu_custom_call.1} parent=0
    #allocation3 [shape = 'u8[512]{0}', space=smem, size = 0x200, scoped, tag = 'input window, operand 0, single buffered']
    #allocation4 [shape = 's32[2]{0}', space=sflag, size = 0x8, scoped, tag = 'scoped memory for tpu_custom_call.1']
    #allocation5 [shape = 'u8[512]{0}', space=smem, size = 0x200, scoped, tag = 'input window, operand 1, single buffered']
    #allocation6 [shape = 's32[1]{0}', space=sflag, size = 0x4, scoped, tag = 'scoped memory for tpu_custom_call.1']
    #allocation7 [shape = 'u8[512]{0}', space=smem, size = 0x200, scoped, tag = 'input window, operand 2, single buffered']
    %13 = vsyncpa [#allocation4], 0
    %14 = vsyncpa [#allocation6], 0
    loop: start=0, step=1, limit=6
    $region2: #{tpu_custom_call.1} parent=1 // loop_pre_header
      _
    $region3: #{tpu_custom_call.1} parent=1 // loop_header
      %s16 = sphi 0, %s20
      %p17 = scmp.ge.s32.totalorder %s16, 6
      %s23 = sphi 0, %s35
      %s24 = sphi 0, %s31
      %s25 = sphi 0, %s23
      %s26 = sphi 0, %s24
      %s27 = sphi 0, %s25
      %s28 = sphi 0, %s26
      %s36 = sphi 0, %s36
      %s38 = sphi 0, %s36
      %s39 = sphi 0, %s38
      %s53 = sphi 0, %s39
      %s57 = sphi 0, %s57
      %s59 = sphi 0, %s57
      %s60 = sphi 0, %s59
      %s74 = sphi 0, %s60
      %s78 = sphi 0, %s78
      %s80 = sphi 0, %s78
      %s81 = sphi 0, %s80
      %s95 = sphi 0, %s81
      %s101 = sphi 0, %s103
      %s104 = sphi 0, %s101
      %s105 = sphi 0, %s104
      %s121 = sphi 0, %s105
      %s125 = sphi 0, %s125
      %s127 = sphi 0, %s125
      %s128 = sphi 0, %s127
      %s142 = sphi 0, %s128
      %s146 = sphi 0, %s146
      %s148 = sphi 0, %s146
      %s149 = sphi 0, %s148
      %s163 = sphi 0, %s149
      %s167 = sphi 0, %s167
      %s169 = sphi 0, %s167
      %s170 = sphi 0, %s169
      %s184 = sphi 0, %s170
      %s188 = sphi 0, %s188
      %s190 = sphi 0, %s188
      %s191 = sphi 0, %s190
      %s205 = sphi 0, %s191
      %s213 = sphi 0, %s215
      %s216 = sphi 0, %s213
      %s217 = sphi 0, %s216
      %s233 = sphi 0, %s217
    $region4: #{tpu_custom_call.1} parent=1 // loop_header_branch
      %19 = sbr.rel (%p17) target = $region8
    $region5: #{tpu_custom_call.1} parent=1 // loop_body
      %s21 = ssub.s32 %s16, 1
      %s22 = ssub.s32 %s16, 2
      %s29 = sadd.s32 1, %s24
      %p30 = scmp.ge.s32.totalorder %s29, 2
      %s31 = scalar_select %p30, 0, %s29
      %s32 = sadd.s32 1, %s23
      %s33 = scalar_select %p30, %s32, %s23
      %p34 = scmp.ge.s32.totalorder %s33, 2
      %s35 = scalar_select %p34, 0, %s33
      %s37 = sadd.s32 %s36, 1
      %p40 = scmp.eq.s32.totalorder %s16, 3
      %p41 = scmp.ne.s32.totalorder %s36, %s38
      %p42 = scmp.eq.s32.totalorder %s16, 0
      %p43 = por %p41, %p42
      %p44 = scmp.ne.s32.totalorder %s36, %s38
      %p45 = scmp.eq.s32.totalorder %s21, 3
      %p46 = por %p44, %p45
      %p47 = scmp.ne.s32.totalorder %s38, %s39
      %p48 = scmp.eq.s32.totalorder %s21, 0
      %p49 = por %p47, %p48
      %p50 = scmp.ne.s32.totalorder %s38, %s39
      %p51 = scmp.eq.s32.totalorder %s22, 3
      %p52 = por %p50, %p51
      %p54 = scmp.ne.s32.totalorder %s39, %s53
      %p55 = scmp.eq.s32.totalorder %s22, 0
      %p56 = por %p54, %p55
      %s58 = sadd.s32 %s57, 1
      %p61 = scmp.eq.s32.totalorder %s16, 3
      %p62 = scmp.ne.s32.totalorder %s57, %s59
      %p63 = scmp.eq.s32.totalorder %s16, 0
      %p64 = por %p62, %p63
      %p65 = scmp.ne.s32.totalorder %s57, %s59
      %p66 = scmp.eq.s32.totalorder %s21, 3
      %p67 = por %p65, %p66
      %p68 = scmp.ne.s32.totalorder %s59, %s60
      %p69 = scmp.eq.s32.totalorder %s21, 0
      %p70 = por %p68, %p69
      %p71 = scmp.ne.s32.totalorder %s59, %s60
      %p72 = scmp.eq.s32.totalorder %s22, 3
      %p73 = por %p71, %p72
      %p75 = scmp.ne.s32.totalorder %s60, %s74
      %p76 = scmp.eq.s32.totalorder %s22, 0
      %p77 = por %p75, %p76
      %s79 = sadd.s32 %s78, 1
      %p82 = scmp.eq.s32.totalorder %s16, 3
      %p83 = scmp.ne.s32.totalorder %s78, %s80
      %p84 = scmp.eq.s32.totalorder %s16, 0
      %p85 = por %p83, %p84
      %p86 = scmp.ne.s32.totalorder %s78, %s80
      %p87 = scmp.eq.s32.totalorder %s21, 3
      %p88 = por %p86, %p87
      %p89 = scmp.ne.s32.totalorder %s80, %s81
      %p90 = scmp.eq.s32.totalorder %s21, 0
      %p91 = por %p89, %p90
      %p92 = scmp.ne.s32.totalorder %s80, %s81
      %p93 = scmp.eq.s32.totalorder %s22, 3
      %p94 = por %p92, %p93
      %p96 = scmp.ne.s32.totalorder %s81, %s95
      %p97 = scmp.eq.s32.totalorder %s22, 0
      %p98 = por %p96, %p97
      %s99 = ssub.s32 %s23, %s35
      %p100 = scmp.eq.s32.totalorder %s99, 0
      %s102 = sadd.s32 %s101, 1
      %s103 = scalar_select %p100, %s101, %s102
      %p106 = pneg %p100
      %p107 = scmp.eq.s32.totalorder %s16, 3
      %p108 = por %p106, %p107
      %p109 = scmp.ne.s32.totalorder %s101, %s104
      %p110 = scmp.eq.s32.totalorder %s16, 0
      %p111 = por %p109, %p110
      %p112 = scmp.ne.s32.totalorder %s101, %s104
      %p113 = scmp.eq.s32.totalorder %s21, 3
      %p114 = por %p112, %p113
      %p115 = scmp.ne.s32.totalorder %s104, %s105
      %p116 = scmp.eq.s32.totalorder %s21, 0
      %p117 = por %p115, %p116
      %p118 = scmp.ne.s32.totalorder %s104, %s105
      %p119 = scmp.eq.s32.totalorder %s22, 3
      %p120 = por %p118, %p119
      %p122 = scmp.ne.s32.totalorder %s105, %s121
      %p123 = scmp.eq.s32.totalorder %s22, 0
      %p124 = por %p122, %p123
      %s126 = sadd.s32 %s125, 1
      %p129 = scmp.eq.s32.totalorder %s16, 3
      %p130 = scmp.ne.s32.totalorder %s125, %s127
      %p131 = scmp.eq.s32.totalorder %s16, 0
      %p132 = por %p130, %p131
      %p133 = scmp.ne.s32.totalorder %s125, %s127
      %p134 = scmp.eq.s32.totalorder %s21, 3
      %p135 = por %p133, %p134
      %p136 = scmp.ne.s32.totalorder %s127, %s128
      %p137 = scmp.eq.s32.totalorder %s21, 0
      %p138 = por %p136, %p137
      %p139 = scmp.ne.s32.totalorder %s127, %s128
      %p140 = scmp.eq.s32.totalorder %s22, 3
      %p141 = por %p139, %p140
      %p143 = scmp.ne.s32.totalorder %s128, %s142
      %p144 = scmp.eq.s32.totalorder %s22, 0
      %p145 = por %p143, %p144
      %s147 = sadd.s32 %s146, 1
      %p150 = scmp.eq.s32.totalorder %s16, 3
      %p151 = scmp.ne.s32.totalorder %s146, %s148
      %p152 = scmp.eq.s32.totalorder %s16, 0
      %p153 = por %p151, %p152
      %p154 = scmp.ne.s32.totalorder %s146, %s148
      %p155 = scmp.eq.s32.totalorder %s21, 3
      %p156 = por %p154, %p155
      %p157 = scmp.ne.s32.totalorder %s148, %s149
      %p158 = scmp.eq.s32.totalorder %s21, 0
      %p159 = por %p157, %p158
      %p160 = scmp.ne.s32.totalorder %s148, %s149
      %p161 = scmp.eq.s32.totalorder %s22, 3
      %p162 = por %p160, %p161
      %p164 = scmp.ne.s32.totalorder %s149, %s163
      %p165 = scmp.eq.s32.totalorder %s22, 0
      %p166 = por %p164, %p165
      %s168 = sadd.s32 %s167, 1
      %p171 = scmp.eq.s32.totalorder %s16, 3
      %p172 = scmp.ne.s32.totalorder %s167, %s169
      %p173 = scmp.eq.s32.totalorder %s16, 0
      %p174 = por %p172, %p173
      %p175 = scmp.ne.s32.totalorder %s167, %s169
      %p176 = scmp.eq.s32.totalorder %s21, 3
      %p177 = por %p175, %p176
      %p178 = scmp.ne.s32.totalorder %s169, %s170
      %p179 = scmp.eq.s32.totalorder %s21, 0
      %p180 = por %p178, %p179
      %p181 = scmp.ne.s32.totalorder %s169, %s170
      %p182 = scmp.eq.s32.totalorder %s22, 3
      %p183 = por %p181, %p182
      %p185 = scmp.ne.s32.totalorder %s170, %s184
      %p186 = scmp.eq.s32.totalorder %s22, 0
      %p187 = por %p185, %p186
      %s189 = sadd.s32 %s188, 1
      %p192 = scmp.eq.s32.totalorder %s16, 3
      %p193 = scmp.ne.s32.totalorder %s188, %s190
      %p194 = scmp.eq.s32.totalorder %s16, 0
      %p195 = por %p193, %p194
      %p196 = scmp.ne.s32.totalorder %s188, %s190
      %p197 = scmp.eq.s32.totalorder %s21, 3
      %p198 = por %p196, %p197
      %p199 = scmp.ne.s32.totalorder %s190, %s191
      %p200 = scmp.eq.s32.totalorder %s21, 0
      %p201 = por %p199, %p200
      %p202 = scmp.ne.s32.totalorder %s190, %s191
      %p203 = scmp.eq.s32.totalorder %s22, 3
      %p204 = por %p202, %p203
      %p206 = scmp.ne.s32.totalorder %s191, %s205
      %p207 = scmp.eq.s32.totalorder %s22, 0
      %p208 = por %p206, %p207
      %s209 = ssub.s32 %s23, %s35
      %s210 = ssub.s32 %s24, %s31
      %s211 = sor.u32 %s209, %s210
      %p212 = scmp.eq.s32.totalorder %s211, 0
      %s214 = sadd.s32 %s213, 1
      %s215 = scalar_select %p212, %s213, %s214
      %p218 = pneg %p212
      %p219 = scmp.eq.s32.totalorder %s16, 3
      %p220 = por %p218, %p219
      %p221 = scmp.ne.s32.totalorder %s213, %s216
      %p222 = scmp.eq.s32.totalorder %s16, 0
      %p223 = por %p221, %p222
      %p224 = scmp.ne.s32.totalorder %s213, %s216
      %p225 = scmp.eq.s32.totalorder %s21, 3
      %p226 = por %p224, %p225
      %p227 = scmp.ne.s32.totalorder %s216, %s217
      %p228 = scmp.eq.s32.totalorder %s21, 0
      %p229 = por %p227, %p228
      %p230 = scmp.ne.s32.totalorder %s216, %s217
      %p231 = scmp.eq.s32.totalorder %s22, 3
      %p232 = por %p230, %p231
      %p234 = scmp.ne.s32.totalorder %s217, %s233
      %p235 = scmp.eq.s32.totalorder %s22, 0
      %p236 = por %p234, %p235
      %p237 = scmp.le.s32.totalorder 1, %s16
      %p238 = scmp.lt.s32.totalorder %s16, 5
      %p239 = pnand %p237, %p238
      %p240 = pneg %p239
      // Predicated region
      $region9: #{tpu_custom_call.1} parent=5 // pred_check
        _
      $region10: #{tpu_custom_call.1} parent=5 // pred_check_branch
        %242 = sbr.rel (%p239) target = $region12
      $region11: #{tpu_custom_call.1} parent=5 // pred_region
        %s243 = ssub.s32 %s16, 1
        // Predicated region
        $region13: #{tpu_custom_call.1} parent=11 // pred_check
          %p244 = pneg %p49
        $region14: #{tpu_custom_call.1} parent=11 // pred_check_branch
          %246 = sbr.rel (%p244) target = $region16
        $region15: #{tpu_custom_call.1} parent=11 // pred_region
          %s248 = ssub.s32 16, 16
          %249 = vsyncadd [#allocation4], %s248
          %s251 = sshll.u32 %s0, 4
          %s252 = int_to_ptr.vmem [resolvable:$true] %s251
          %254 = dma.vmem_to_smem %s252, 16, [#allocation3], [#allocation4]
        $region16: #{tpu_custom_call.1} parent=11 // pred_fallthru
          _
        // Predicated region
        $region17: #{tpu_custom_call.1} parent=11 // pred_check
          %p255 = pneg %p70
        $region18: #{tpu_custom_call.1} parent=11 // pred_check_branch
          %257 = sbr.rel (%p255) target = $region20
        $region19: #{tpu_custom_call.1} parent=11 // pred_region
          %s259 = ssub.s32 16, 16
          %260 = vsyncadd [#allocation6], %s259
          %s262 = sshll.u32 %s1, 4
          %s263 = int_to_ptr.vmem [resolvable:$true] %s262
          %265 = dma.vmem_to_smem %s263, 16, [#allocation5], [#allocation6]
        $region20: #{tpu_custom_call.1} parent=11 // pred_fallthru
          _
        // Predicated region
        $region21: #{tpu_custom_call.1} parent=11 // pred_check
          %p266 = pneg %p91
        $region22: #{tpu_custom_call.1} parent=11 // pred_check_branch
          %268 = sbr.rel (%p266) target = $region24
        $region23: #{tpu_custom_call.1} parent=11 // pred_region
          %s270 = ssub.s32 16, 16
          %271 = vsyncadd [#allocation6], %s270
          %s273 = sshll.u32 %s2, 4
          %s274 = int_to_ptr.vmem [resolvable:$true] %s273
          %276 = dma.vmem_to_smem %s274, 16, [#allocation7], [#allocation6]
        $region24: #{tpu_custom_call.1} parent=11 // pred_fallthru
          _
        // Predicated region
        $region25: #{tpu_custom_call.1} parent=11 // pred_check
          %p277 = pneg %p138
        $region26: #{tpu_custom_call.1} parent=11 // pred_check_branch
          %279 = sbr.rel (%p277) target = $region28
        $region27: #{tpu_custom_call.1} parent=11 // pred_region
          _
        $region28: #{tpu_custom_call.1} parent=11 // pred_fallthru
          _
        // Predicated region
        $region29: #{tpu_custom_call.1} parent=11 // pred_check
          %p280 = pneg %p159
        $region30: #{tpu_custom_call.1} parent=11 // pred_check_branch
          %282 = sbr.rel (%p280) target = $region32
        $region31: #{tpu_custom_call.1} parent=11 // pred_region
          _
        $region32: #{tpu_custom_call.1} parent=11 // pred_fallthru
          _
        // Predicated region
        $region33: #{tpu_custom_call.1} parent=11 // pred_check
          %p283 = pneg %p180
        $region34: #{tpu_custom_call.1} parent=11 // pred_check_branch
          %285 = sbr.rel (%p283) target = $region36
        $region35: #{tpu_custom_call.1} parent=11 // pred_region
          _
        $region36: #{tpu_custom_call.1} parent=11 // pred_fallthru
          _
        // Predicated region
        $region37: #{tpu_custom_call.1} parent=11 // pred_check
          %p286 = pneg %p201
        $region38: #{tpu_custom_call.1} parent=11 // pred_check_branch
          %288 = sbr.rel (%p286) target = $region40
        $region39: #{tpu_custom_call.1} parent=11 // pred_region
          _
        $region40: #{tpu_custom_call.1} parent=11 // pred_fallthru
          _
      $region12: #{tpu_custom_call.1} parent=5 // pred_fallthru
        _
      %p289 = scmp.lt.s32.totalorder %s16, 4
      // Predicated region
      $region41: #{tpu_custom_call.1} parent=5 // pred_check
        %p290 = pneg %p289
      $region42: #{tpu_custom_call.1} parent=5 // pred_check_branch
        %292 = sbr.rel (%p290) target = $region44
      $region43: #{tpu_custom_call.1} parent=5 // pred_region
        // Predicated region
        $region45: #{tpu_custom_call.1} parent=43 // pred_check
          %p293 = pneg %p111
        $region46: #{tpu_custom_call.1} parent=43 // pred_check_branch
          %295 = sbr.rel (%p293) target = $region48
        $region47: #{tpu_custom_call.1} parent=43 // pred_region
          %p296 = scmp.lt.s32.totalorder %s23, 1
          %s297 = scalar_select %p296, %s23, 1
          %s298 = smul.addr %s297, 32
          %s299 = smul.addr %s298, 8
          %s300 = scalar_lea.vmem %s3, %s299
        $region48: #{tpu_custom_call.1} parent=43 // pred_fallthru
          _
      $region44: #{tpu_custom_call.1} parent=5 // pred_fallthru
        _
      %p301 = scmp.le.s32.totalorder 1, %s16
      %p302 = scmp.lt.s32.totalorder %s16, 5
      %p303 = pnand %p301, %p302
      %p304 = pneg %p303
      // Predicated region
      $region49: #{tpu_custom_call.1} parent=5 // pred_check
        _
      $region50: #{tpu_custom_call.1} parent=5 // pred_check_branch
        %306 = sbr.rel (%p303) target = $region52
      $region51: #{tpu_custom_call.1} parent=5 // pred_region
        %s307 = ssub.s32 %s16, 1
        // Predicated region
        $region53: #{tpu_custom_call.1} parent=51 // pred_check
          %p308 = pneg %p49
        $region54: #{tpu_custom_call.1} parent=51 // pred_check_branch
          %310 = sbr.rel (%p308) target = $region56
        $region55: #{tpu_custom_call.1} parent=51 // pred_region
          %311 = dma.done [#allocation4], 16
        $region56: #{tpu_custom_call.1} parent=51 // pred_fallthru
          _
        // Predicated region
        $region57: #{tpu_custom_call.1} parent=51 // pred_check
          %p312 = pneg %p70
        $region58: #{tpu_custom_call.1} parent=51 // pred_check_branch
          %314 = sbr.rel (%p312) target = $region60
        $region59: #{tpu_custom_call.1} parent=51 // pred_region
          %315 = dma.done [#allocation6], 16
        $region60: #{tpu_custom_call.1} parent=51 // pred_fallthru
          _
        // Predicated region
        $region61: #{tpu_custom_call.1} parent=51 // pred_check
          %p316 = pneg %p91
        $region62: #{tpu_custom_call.1} parent=51 // pred_check_branch
          %318 = sbr.rel (%p316) target = $region64
        $region63: #{tpu_custom_call.1} parent=51 // pred_region
          %319 = dma.done [#allocation6], 16
        $region64: #{tpu_custom_call.1} parent=51 // pred_fallthru
          _
        %320 = sfence
        %p321 = pneg %p49
        %p322 = pneg %p46
        %p323 = pneg %p70
        %p324 = pneg %p67
        %p325 = pneg %p91
        %p326 = pneg %p88
        %p327 = scmp.lt.s32.totalorder %s25, 1
        %s328 = scalar_select %p327, %s25, 1
        %s329 = smul.addr %s328, 32
        %s330 = smul.addr %s329, 8
        %s331 = scalar_lea.vmem %s3, %s330
        %p332 = pneg %p117
        %p333 = pneg %p114
        %p334 = pneg %p138
        %p335 = pneg %p135
        %p336 = pneg %p159
        %p337 = pneg %p156
        %p338 = pneg %p180
        %p339 = pneg %p177
        %p340 = pneg %p201
        %p341 = pneg %p198
        %p342 = pneg %p229
        %p343 = pneg %p226
        %s344 = smul.u32 16, %s26
        %p345 = scmp.lt.s32.totalorder %s25, 1
        %s346 = scalar_select %p345, %s25, 1
        %p347 = scmp.lt.s32.totalorder %s344, 31
        %s348 = scalar_select %p347, %s344, 31
        %s349 = smul.addr %s348, 4
        %s350 = smul.addr %s346, 128
        %s351 = sadd.s32 %s349, %s350
        %s352 = smul.addr %s351, 8
        %s353 = scalar_lea.vmem %s8, %s352
        %p354 = scmp.lt.s32.totalorder %s25, 1
        %s355 = scalar_select %p354, %s25, 1
        %s356 = smul.addr %s355, 32
        %s357 = smul.addr %s356, 8
        %s358 = scalar_lea.vmem %s3, %s357
        %s359 = smul.u32 16, %s26
        %p360 = scmp.lt.s32.totalorder %s25, 1
        %s361 = scalar_select %p360, %s25, 1
        %p362 = scmp.lt.s32.totalorder %s359, 31
        %s363 = scalar_select %p362, %s359, 31
        %s364 = smul.addr %s363, 4
        %s365 = smul.addr %s361, 128
        %s366 = sadd.s32 %s364, %s365
        %s367 = smul.addr %s366, 8
        %s368 = scalar_lea.vmem %s8, %s367
        %s369 = smul.u32 16, %s26
        %s370 = smul.u32 %s26, 16
        %v371 = vld [vmem:[%s4] sm:$0xff]
        %v372 = vld [vmem:[%s4 + $0x8] sm:$0xff]
        %v373 = vld [vmem:[%s4 + $0x10] sm:$0xff]
        %v374 = vld [vmem:[%s4 + $0x18] sm:$0xff]
        %v375 = vld [vmem:[%s4 + $0x20] sm:$0xff]
        %s376 = sadd.s32 %s370, 4294967295
        %p377 = scmp.ge.s32.totalorder %s376, 0
        %p378 = scmp.lt.s32.totalorder %s376, 32
        %p379 = pnand %p377, %p378
        %p380 = pneg %p379
        %p381 = scmp.gt.s32.totalorder %s376, 0
        %s382 = scalar_select %p381, %s376, 0
        %p383 = scmp.lt.s32.totalorder %s382, 31
        %s384 = scalar_select %p383, %s382, 31
        %s385 = sld [smem:[#allocation3 + %s384]]
        %s386 = sld [smem:[#allocation5 + %s384]]
        %s387 = sld [smem:[#allocation7 + %s384]]
        %s388 = smul.u32 %s385, 16
        %s389 = scalar_lea.vmem %s358, %s388
        %v390 = vld [vmem:[%s389] sm:$0xff]
        %v391 = vld [vmem:[%s389 + $0x8] sm:$0xff]
        %v392 = vstv %s387
        %v393 = vmul.f32 %v392, %v390
        %v394 = vmul.f32 %v392, %v391
        %s395 = ssub.f32 1.0, %s387
        %s396 = smul.u32 %s386, 16
        %s397 = scalar_lea.vmem %s358, %s396
        %v398 = vld [vmem:[%s397] sm:$0xff]
        %v399 = vld [vmem:[%s397 + $0x8] sm:$0xff]
        %v400 = vstv %s395
        %v401 = vmul.f32 %v400, %v398
        %v402 = vmul.f32 %v400, %v399
        %v403 = vadd.f32 %v393, %v401
        %v404 = vadd.f32 %v394, %v402
        %vm405 = vcmask 130048
        %v407 = vsel %vm405, %v371, 0
        %v410 = vsel %vm405, %v372, 0
        %v413 = vsel %vm405, %v373, 0
        %v416 = vsel %vm405, %v374, 0
        %v419 = vsel %vm405, %v375, 0
        %421 = vmatprep.subr.mxu0 0.0
        %422 = vmatpush1.msra.mxu0 0.0
        %423 = vmatprep.subr.mxu0 0.0
        %424 = vmatpush1.msra.mxu0 0.0
        %425 = vmatprep.subr.mxu0 0.0
        %426 = vmatpush1.msra.mxu0 0.0
        %427 = vmatprep.subr.mxu0 0.0
        %428 = vmatpush1.msra.mxu0 0.0
        %429 = vmatprep.subr.mxu0 0.0
        %430 = vmatpush1.msra.mxu0 0.0
        %431 = vmatprep.subr.mxu0 0.0
        %432 = vmatpush1.msra.mxu0 0.0
        %433 = vmatprep.subr.mxu0 0.0
        %434 = vmatpush1.msra.mxu0 0.0
        %435 = vmatprep.subr.mxu0 0.0
        %436 = vmatpush1.msra.mxu0 0.0
        %437 = vmatprep.subr.mxu0 0.0
        %438 = vmatpush1.msra.mxu0 0.0
        %439 = vmatprep.subr.mxu0 0.0
        %440 = vmatpush1.msra.mxu0 0.0
        %441 = vmatprep.subr.mxu0 0.0
        %442 = vmatpush1.msra.mxu0 0.0
        %443 = vmatprep.subr.mxu0 0.0
        %444 = vmatpush1.msra.mxu0 0.0
        %445 = vmatprep.subr.mxu0 0.0
        %446 = vmatpush1.msra.mxu0 0.0
        %447 = vmatprep.subr.mxu0 0.0
        %448 = vmatpush1.msra.mxu0 0.0
        %449 = vmatprep.subr.mxu0 0.0
        %450 = vmatpush1.msra.mxu0 %v404
        %451 = vmatprep.subr.mxu0 0.0
        %452 = vmatpush1.msra.mxu0 %v403
        %453 = vmatprep.subr.mxu0 0.0
        %454 = vmatpush2.msra.mxu0 0.0
        %455 = vmatprep.subr.mxu0 0.0
        %456 = vmatpush2.msra.mxu0 0.0
        %457 = vmatprep.subr.mxu0 0.0
        %458 = vmatpush2.msra.mxu0 0.0
        %459 = vmatprep.subr.mxu0 0.0
        %460 = vmatpush2.msra.mxu0 0.0
        %461 = vmatprep.subr.mxu0 0.0
        %462 = vmatpush2.msra.mxu0 0.0
        %463 = vmatprep.subr.mxu0 0.0
        %464 = vmatpush2.msra.mxu0 0.0
        %465 = vmatprep.subr.mxu0 0.0
        %466 = vmatpush2.msra.mxu0 0.0
        %467 = vmatprep.subr.mxu0 0.0
        %468 = vmatpush2.msra.mxu0 0.0
        %469 = vmatprep.subr.mxu0 0.0
        %470 = vmatpush2.msra.mxu0 0.0
        %471 = vmatprep.subr.mxu0 0.0
        %472 = vmatpush2.msra.mxu0 0.0
        %473 = vmatprep.subr.mxu0 0.0
        %474 = vmatpush2.msra.mxu0 0.0
        %475 = vmatprep.subr.mxu0 0.0
        %476 = vmatpush2.msra.mxu0 0.0
        %477 = vmatprep.subr.mxu0 0.0
        %478 = vmatpush2.msra.mxu0 0.0
        %479 = vmatprep.subr.mxu0 0.0
        %480 = vmatpush2.msra.mxu0 0.0
        %481 = vmatprep.subr.mxu0 0.0
        %482 = vmatpush2.msra.mxu0 0.0
        %483 = vmatprep.subr.mxu0 0.0
        %484 = vmatpush2.msra.mxu0 0.0
        %485 = vmatprep.mubr.f32.mxu0 0.0
        %486 = vmatmul.mubr.f32.gmra.mxu0 %v407
        %v487 = vpop.f32.mrf.mxu0
        %v488 = vadd.f32 0.0, %v487
        %v489 = vpop.f32.mrf.mxu0
        %490 = vmatprep.mubr.f32.mxu0 0.0
        %491 = vmatmul.mubr.f32.gmra.mxu0 %v410
        %v492 = vpop.f32.mrf.mxu0
        %v493 = vadd.f32 0.0, %v492
        %v494 = vpop.f32.mrf.mxu0
        %495 = vmatprep.mubr.f32.mxu0 0.0
        %496 = vmatmul.mubr.f32.gmra.mxu0 %v413
        %v497 = vpop.f32.mrf.mxu0
        %v498 = vadd.f32 0.0, %v497
        %v499 = vpop.f32.mrf.mxu0
        %500 = vmatprep.mubr.f32.mxu0 0.0
        %501 = vmatmul.mubr.f32.gmra.mxu0 %v416
        %v502 = vpop.f32.mrf.mxu0
        %v503 = vadd.f32 0.0, %v502
        %v504 = vpop.f32.mrf.mxu0
        %505 = vmatprep.mubr.f32.mxu0 0.0
        %506 = vmatmul.mubr.f32.gmra.mxu0 %v419
        %v507 = vpop.f32.mrf.mxu0
        %v508 = vadd.f32 0.0, %v507
        %v509 = vpop.f32.mrf.mxu0
        %510 = vdwg.mxu0
        %s511 = scalar_select %p380, 1, 0
        %v512 = vstv %s511
        %vm513 = vcmp.eq.s32.totalorder %v512, 1
        %v514 = vsel %vm513, %v488, 0.0
        %v515 = vsel %vm513, %v493, 0.0
        %v516 = vsel %vm513, %v498, 0.0
        %v517 = vsel %vm513, %v503, 0.0
        %v518 = vsel %vm513, %v508, 0.0
        %vm519 = vcmask 31744
        %520 = vst.msk [vmem:[#allocation2] sm:$0xff] %vm519, %v514
        %521 = vst.msk [vmem:[#allocation2 + $0x8] sm:$0xff] %vm519, %v515
        %522 = vst.msk [vmem:[#allocation2 + $0x10] sm:$0xff] %vm519, %v516
        %523 = vst.msk [vmem:[#allocation2 + $0x18] sm:$0xff] %vm519, %v517
        %524 = vst.msk [vmem:[#allocation2 + $0x20] sm:$0xff] %vm519, %v518
        %p525 = scmp.ge.s32.totalorder %s370, 0
        %p526 = scmp.lt.s32.totalorder %s370, 32
        %p527 = pnand %p525, %p526
        %p528 = pneg %p527
        %p529 = scmp.gt.s32.totalorder %s370, 0
        %s530 = scalar_select %p529, %s370, 0
        %p531 = scmp.lt.s32.totalorder %s530, 31
        %s532 = scalar_select %p531, %s530, 31
        %s533 = sld [smem:[#allocation3 + %s532]]
        %s534 = sld [smem:[#allocation5 + %s532]]
        %s535 = sld [smem:[#allocation7 + %s532]]
        %s536 = smul.u32 %s533, 16
        %s537 = scalar_lea.vmem %s358, %s536
        %v538 = vld [vmem:[%s537] sm:$0xff]
        %v539 = vld [vmem:[%s537 + $0x8] sm:$0xff]
        %v540 = vstv %s535
        %v541 = vmul.f32 %v540, %v538
        %v542 = vmul.f32 %v540, %v539
        %s543 = ssub.f32 1.0, %s535
        %s544 = smul.u32 %s534, 16
        %s545 = scalar_lea.vmem %s358, %s544
        %v546 = vld [vmem:[%s545] sm:$0xff]
        %v547 = vld [vmem:[%s545 + $0x8] sm:$0xff]
        %v548 = vstv %s543
        %v549 = vmul.f32 %v548, %v546
        %v550 = vmul.f32 %v548, %v547
        %v551 = vadd.f32 %v541, %v549
        %v552 = vadd.f32 %v542, %v550
        %553 = vmatprep.subr.mxu0 0.0
        %554 = vmatpush1.msra.mxu0 0.0
        %555 = vmatprep.subr.mxu0 0.0
        %556 = vmatpush1.msra.mxu0 0.0
        %557 = vmatprep.subr.mxu0 0.0
        %558 = vmatpush1.msra.mxu0 0.0
        %559 = vmatprep.subr.mxu0 0.0
        %560 = vmatpush1.msra.mxu0 0.0
        %561 = vmatprep.subr.mxu0 0.0
        %562 = vmatpush1.msra.mxu0 0.0
        %563 = vmatprep.subr.mxu0 0.0
        %564 = vmatpush1.msra.mxu0 0.0
        %565 = vmatprep.subr.mxu0 0.0
        %566 = vmatpush1.msra.mxu0 0.0
        %567 = vmatprep.subr.mxu0 0.0
        %568 = vmatpush1.msra.mxu0 0.0
        %569 = vmatprep.subr.mxu0 0.0
        %570 = vmatpush1.msra.mxu0 0.0
        %571 = vmatprep.subr.mxu0 0.0
        %572 = vmatpush1.msra.mxu0 0.0
        %573 = vmatprep.subr.mxu0 0.0
        %574 = vmatpush1.msra.mxu0 0.0
        %575 = vmatprep.subr.mxu0 0.0
        %576 = vmatpush1.msra.mxu0 0.0
        %577 = vmatprep.subr.mxu0 0.0
        %578 = vmatpush1.msra.mxu0 0.0
        %579 = vmatprep.subr.mxu0 0.0
        %580 = vmatpush1.msra.mxu0 0.0
        %581 = vmatprep.subr.mxu0 0.0
        %582 = vmatpush1.msra.mxu0 %v552
        %583 = vmatprep.subr.mxu0 0.0
        %584 = vmatpush1.msra.mxu0 %v551
        %585 = vmatprep.subr.mxu0 0.0
        %586 = vmatpush2.msra.mxu0 0.0
        %587 = vmatprep.subr.mxu0 0.0
        %588 = vmatpush2.msra.mxu0 0.0
        %589 = vmatprep.subr.mxu0 0.0
        %590 = vmatpush2.msra.mxu0 0.0
        %591 = vmatprep.subr.mxu0 0.0
        %592 = vmatpush2.msra.mxu0 0.0
        %593 = vmatprep.subr.mxu0 0.0
        %594 = vmatpush2.msra.mxu0 0.0
        %595 = vmatprep.subr.mxu0 0.0
        %596 = vmatpush2.msra.mxu0 0.0
        %597 = vmatprep.subr.mxu0 0.0
        %598 = vmatpush2.msra.mxu0 0.0
        %599 = vmatprep.subr.mxu0 0.0
        %600 = vmatpush2.msra.mxu0 0.0
        %601 = vmatprep.subr.mxu0 0.0
        %602 = vmatpush2.msra.mxu0 0.0
        %603 = vmatprep.subr.mxu0 0.0
        %604 = vmatpush2.msra.mxu0 0.0
        %605 = vmatprep.subr.mxu0 0.0
        %606 = vmatpush2.msra.mxu0 0.0
        %607 = vmatprep.subr.mxu0 0.0
        %608 = vmatpush2.msra.mxu0 0.0
        %609 = vmatprep.subr.mxu0 0.0
        %610 = vmatpush2.msra.mxu0 0.0
        %611 = vmatprep.subr.mxu0 0.0
        %612 = vmatpush2.msra.mxu0 0.0
        %613 = vmatprep.subr.mxu0 0.0
        %614 = vmatpush2.msra.mxu0 0.0
        %615 = vmatprep.subr.mxu0 0.0
        %616 = vmatpush2.msra.mxu0 0.0
        %617 = vmatprep.mubr.f32.mxu0 0.0
        %618 = vmatmul.mubr.f32.gmra.mxu0 %v407
        %v619 = vpop.f32.mrf.mxu0
        %v620 = vadd.f32 0.0, %v619
        %v621 = vpop.f32.mrf.mxu0
        %622 = vmatprep.mubr.f32.mxu0 0.0
        %623 = vmatmul.mubr.f32.gmra.mxu0 %v410
        %v624 = vpop.f32.mrf.mxu0
        %v625 = vadd.f32 0.0, %v624
        %v626 = vpop.f32.mrf.mxu0
        %627 = vmatprep.mubr.f32.mxu0 0.0
        %628 = vmatmul.mubr.f32.gmra.mxu0 %v413
        %v629 = vpop.f32.mrf.mxu0
        %v630 = vadd.f32 0.0, %v629
        %v631 = vpop.f32.mrf.mxu0
        %632 = vmatprep.mubr.f32.mxu0 0.0
        %633 = vmatmul.mubr.f32.gmra.mxu0 %v416
        %v634 = vpop.f32.mrf.mxu0
        %v635 = vadd.f32 0.0, %v634
        %v636 = vpop.f32.mrf.mxu0
        %637 = vmatprep.mubr.f32.mxu0 0.0
        %638 = vmatmul.mubr.f32.gmra.mxu0 %v419
        %v639 = vpop.f32.mrf.mxu0
        %v640 = vadd.f32 0.0, %v639
        %v641 = vpop.f32.mrf.mxu0
        %642 = vdwg.mxu0
        %s643 = scalar_select %p528, 1, 0
        %v644 = vstv %s643
        %vm645 = vcmp.eq.s32.totalorder %v644, 1
        %v646 = vsel %vm645, %v620, 0.0
        %v647 = vsel %vm645, %v625, 0.0
        %v648 = vsel %vm645, %v630, 0.0
        %v649 = vsel %vm645, %v635, 0.0
        %v650 = vsel %vm645, %v640, 0.0
        %651 = vst.msk [vmem:[#allocation2 + $0x28] sm:$0xff] %vm519, %v646
        %652 = vst.msk [vmem:[#allocation2 + $0x30] sm:$0xff] %vm519, %v647
        %653 = vst.msk [vmem:[#allocation2 + $0x38] sm:$0xff] %vm519, %v648
        %654 = vst.msk [vmem:[#allocation2 + $0x40] sm:$0xff] %vm519, %v649
        %655 = vst.msk [vmem:[#allocation2 + $0x48] sm:$0xff] %vm519, %v650
        %s656 = sadd.s32 %s370, 1
        %p657 = scmp.ge.s32.totalorder %s656, 0
        %p658 = scmp.lt.s32.totalorder %s656, 32
        %p659 = pnand %p657, %p658
        %p660 = pneg %p659
        %p661 = scmp.gt.s32.totalorder %s656, 0
        %s662 = scalar_select %p661, %s656, 0
        %p663 = scmp.lt.s32.totalorder %s662, 31
        %s664 = scalar_select %p663, %s662, 31
        %s665 = sld [smem:[#allocation3 + %s664]]
        %s666 = sld [smem:[#allocation5 + %s664]]
        %s667 = sld [smem:[#allocation7 + %s664]]
        %s668 = smul.u32 %s665, 16
        %s669 = scalar_lea.vmem %s358, %s668
        %v670 = vld [vmem:[%s669] sm:$0xff]
        %v671 = vld [vmem:[%s669 + $0x8] sm:$0xff]
        %v672 = vstv %s667
        %v673 = vmul.f32 %v672, %v670
        %v674 = vmul.f32 %v672, %v671
        %s675 = ssub.f32 1.0, %s667
        %s676 = smul.u32 %s666, 16
        %s677 = scalar_lea.vmem %s358, %s676
        %v678 = vld [vmem:[%s677] sm:$0xff]
        %v679 = vld [vmem:[%s677 + $0x8] sm:$0xff]
        %v680 = vstv %s675
        %v681 = vmul.f32 %v680, %v678
        %v682 = vmul.f32 %v680, %v679
        %v683 = vadd.f32 %v673, %v681
        %v684 = vadd.f32 %v674, %v682
        %685 = vmatprep.subr.mxu0 0.0
        %686 = vmatpush1.msra.mxu0 0.0
        %687 = vmatprep.subr.mxu0 0.0
        %688 = vmatpush1.msra.mxu0 0.0
        %689 = vmatprep.subr.mxu0 0.0
        %690 = vmatpush1.msra.mxu0 0.0
        %691 = vmatprep.subr.mxu0 0.0
        %692 = vmatpush1.msra.mxu0 0.0
        %693 = vmatprep.subr.mxu0 0.0
        %694 = vmatpush1.msra.mxu0 0.0
        %695 = vmatprep.subr.mxu0 0.0
        %696 = vmatpush1.msra.mxu0 0.0
        %697 = vmatprep.subr.mxu0 0.0
        %698 = vmatpush1.msra.mxu0 0.0
        %699 = vmatprep.subr.mxu0 0.0
        %700 = vmatpush1.msra.mxu0 0.0
        %701 = vmatprep.subr.mxu0 0.0
        %702 = vmatpush1.msra.mxu0 0.0
        %703 = vmatprep.subr.mxu0 0.0
        %704 = vmatpush1.msra.mxu0 0.0
        %705 = vmatprep.subr.mxu0 0.0
        %706 = vmatpush1.msra.mxu0 0.0
        %707 = vmatprep.subr.mxu0 0.0
        %708 = vmatpush1.msra.mxu0 0.0
        %709 = vmatprep.subr.mxu0 0.0
        %710 = vmatpush1.msra.mxu0 0.0
        %711 = vmatprep.subr.mxu0 0.0
        %712 = vmatpush1.msra.mxu0 0.0
        %713 = vmatprep.subr.mxu0 0.0
        %714 = vmatpush1.msra.mxu0 %v684
        %715 = vmatprep.subr.mxu0 0.0
        %716 = vmatpush1.msra.mxu0 %v683
        %717 = vmatprep.subr.mxu0 0.0
        %718 = vmatpush2.msra.mxu0 0.0
        %719 = vmatprep.subr.mxu0 0.0
        %720 = vmatpush2.msra.mxu0 0.0
        %721 = vmatprep.subr.mxu0 0.0
        %722 = vmatpush2.msra.mxu0 0.0
        %723 = vmatprep.subr.mxu0 0.0
        %724 = vmatpush2.msra.mxu0 0.0
        %725 = vmatprep.subr.mxu0 0.0
        %726 = vmatpush2.msra.mxu0 0.0
        %727 = vmatprep.subr.mxu0 0.0
        %728 = vmatpush2.msra.mxu0 0.0
        %729 = vmatprep.subr.mxu0 0.0
        %730 = vmatpush2.msra.mxu0 0.0
        %731 = vmatprep.subr.mxu0 0.0
        %732 = vmatpush2.msra.mxu0 0.0
        %733 = vmatprep.subr.mxu0 0.0
        %734 = vmatpush2.msra.mxu0 0.0
        %735 = vmatprep.subr.mxu0 0.0
        %736 = vmatpush2.msra.mxu0 0.0
        %737 = vmatprep.subr.mxu0 0.0
        %738 = vmatpush2.msra.mxu0 0.0
        %739 = vmatprep.subr.mxu0 0.0
        %740 = vmatpush2.msra.mxu0 0.0
        %741 = vmatprep.subr.mxu0 0.0
        %742 = vmatpush2.msra.mxu0 0.0
        %743 = vmatprep.subr.mxu0 0.0
        %744 = vmatpush2.msra.mxu0 0.0
        %745 = vmatprep.subr.mxu0 0.0
        %746 = vmatpush2.msra.mxu0 0.0
        %747 = vmatprep.subr.mxu0 0.0
        %748 = vmatpush2.msra.mxu0 0.0
        %749 = vmatprep.mubr.f32.mxu0 0.0
        %750 = vmatmul.mubr.f32.gmra.mxu0 %v407
        %v751 = vpop.f32.mrf.mxu0
        %v752 = vadd.f32 0.0, %v751
        %v753 = vpop.f32.mrf.mxu0
        %754 = vmatprep.mubr.f32.mxu0 0.0
        %755 = vmatmul.mubr.f32.gmra.mxu0 %v410
        %v756 = vpop.f32.mrf.mxu0
        %v757 = vadd.f32 0.0, %v756
        %v758 = vpop.f32.mrf.mxu0
        %759 = vmatprep.mubr.f32.mxu0 0.0
        %760 = vmatmul.mubr.f32.gmra.mxu0 %v413
        %v761 = vpop.f32.mrf.mxu0
        %v762 = vadd.f32 0.0, %v761
        %v763 = vpop.f32.mrf.mxu0
        %764 = vmatprep.mubr.f32.mxu0 0.0
        %765 = vmatmul.mubr.f32.gmra.mxu0 %v416
        %v766 = vpop.f32.mrf.mxu0
        %v767 = vadd.f32 0.0, %v766
        %v768 = vpop.f32.mrf.mxu0
        %769 = vmatprep.mubr.f32.mxu0 0.0
        %770 = vmatmul.mubr.f32.gmra.mxu0 %v419
        %v771 = vpop.f32.mrf.mxu0
        %v772 = vadd.f32 0.0, %v771
        %v773 = vpop.f32.mrf.mxu0
        %774 = vdwg.mxu0
        %s775 = scalar_select %p660, 1, 0
        %v776 = vstv %s775
        %vm777 = vcmp.eq.s32.totalorder %v776, 1
        %v778 = vsel %vm777, %v752, 0.0
        %v779 = vsel %vm777, %v757, 0.0
        %v780 = vsel %vm777, %v762, 0.0
        %v781 = vsel %vm777, %v767, 0.0
        %v782 = vsel %vm777, %v772, 0.0
        %783 = vst.msk [vmem:[#allocation2 + $0x50] sm:$0xff] %vm519, %v778
        %784 = vst.msk [vmem:[#allocation2 + $0x58] sm:$0xff] %vm519, %v779
        %785 = vst.msk [vmem:[#allocation2 + $0x60] sm:$0xff] %vm519, %v780
        %786 = vst.msk [vmem:[#allocation2 + $0x68] sm:$0xff] %vm519, %v781
        %787 = vst.msk [vmem:[#allocation2 + $0x70] sm:$0xff] %vm519, %v782
        %s788 = sadd.s32 %s370, 2
        %p789 = scmp.ge.s32.totalorder %s788, 0
        %p790 = scmp.lt.s32.totalorder %s788, 32
        %p791 = pnand %p789, %p790
        %p792 = pneg %p791
        %p793 = scmp.gt.s32.totalorder %s788, 0
        %s794 = scalar_select %p793, %s788, 0
        %p795 = scmp.lt.s32.totalorder %s794, 31
        %s796 = scalar_select %p795, %s794, 31
        %s797 = sld [smem:[#allocation3 + %s796]]
        %s798 = sld [smem:[#allocation5 + %s796]]
        %s799 = sld [smem:[#allocation7 + %s796]]
        %s800 = smul.u32 %s797, 16
        %s801 = scalar_lea.vmem %s358, %s800
        %v802 = vld [vmem:[%s801] sm:$0xff]
        %v803 = vld [vmem:[%s801 + $0x8] sm:$0xff]
        %v804 = vstv %s799
        %v805 = vmul.f32 %v804, %v802
        %v806 = vmul.f32 %v804, %v803
        %s807 = ssub.f32 1.0, %s799
        %s808 = smul.u32 %s798, 16
        %s809 = scalar_lea.vmem %s358, %s808
        %v810 = vld [vmem:[%s809] sm:$0xff]
        %v811 = vld [vmem:[%s809 + $0x8] sm:$0xff]
        %v812 = vstv %s807
        %v813 = vmul.f32 %v812, %v810
        %v814 = vmul.f32 %v812, %v811
        %v815 = vadd.f32 %v805, %v813
        %v816 = vadd.f32 %v806, %v814
        %817 = vmatprep.subr.mxu0 0.0
        %818 = vmatpush1.msra.mxu0 0.0
        %819 = vmatprep.subr.mxu0 0.0
        %820 = vmatpush1.msra.mxu0 0.0
        %821 = vmatprep.subr.mxu0 0.0
        %822 = vmatpush1.msra.mxu0 0.0
        %823 = vmatprep.subr.mxu0 0.0
        %824 = vmatpush1.msra.mxu0 0.0
        %825 = vmatprep.subr.mxu0 0.0
        %826 = vmatpush1.msra.mxu0 0.0
        %827 = vmatprep.subr.mxu0 0.0
        %828 = vmatpush1.msra.mxu0 0.0
        %829 = vmatprep.subr.mxu0 0.0
        %830 = vmatpush1.msra.mxu0 0.0
        %831 = vmatprep.subr.mxu0 0.0
        %832 = vmatpush1.msra.mxu0 0.0
        %833 = vmatprep.subr.mxu0 0.0
        %834 = vmatpush1.msra.mxu0 0.0
        %835 = vmatprep.subr.mxu0 0.0
        %836 = vmatpush1.msra.mxu0 0.0
        %837 = vmatprep.subr.mxu0 0.0
        %838 = vmatpush1.msra.mxu0 0.0
        %839 = vmatprep.subr.mxu0 0.0
        %840 = vmatpush1.msra.mxu0 0.0
        %841 = vmatprep.subr.mxu0 0.0
        %842 = vmatpush1.msra.mxu0 0.0
        %843 = vmatprep.subr.mxu0 0.0
        %844 = vmatpush1.msra.mxu0 0.0
        %845 = vmatprep.subr.mxu0 0.0
        %846 = vmatpush1.msra.mxu0 %v816
        %847 = vmatprep.subr.mxu0 0.0
        %848 = vmatpush1.msra.mxu0 %v815
        %849 = vmatprep.subr.mxu0 0.0
        %850 = vmatpush2.msra.mxu0 0.0
        %851 = vmatprep.subr.mxu0 0.0
        %852 = vmatpush2.msra.mxu0 0.0
        %853 = vmatprep.subr.mxu0 0.0
        %854 = vmatpush2.msra.mxu0 0.0
        %855 = vmatprep.subr.mxu0 0.0
        %856 = vmatpush2.msra.mxu0 0.0
        %857 = vmatprep.subr.mxu0 0.0
        %858 = vmatpush2.msra.mxu0 0.0
        %859 = vmatprep.subr.mxu0 0.0
        %860 = vmatpush2.msra.mxu0 0.0
        %861 = vmatprep.subr.mxu0 0.0
        %862 = vmatpush2.msra.mxu0 0.0
        %863 = vmatprep.subr.mxu0 0.0
        %864 = vmatpush2.msra.mxu0 0.0
        %865 = vmatprep.subr.mxu0 0.0
        %866 = vmatpush2.msra.mxu0 0.0
        %867 = vmatprep.subr.mxu0 0.0
        %868 = vmatpush2.msra.mxu0 0.0
        %869 = vmatprep.subr.mxu0 0.0
        %870 = vmatpush2.msra.mxu0 0.0
        %871 = vmatprep.subr.mxu0 0.0
        %872 = vmatpush2.msra.mxu0 0.0
        %873 = vmatprep.subr.mxu0 0.0
        %874 = vmatpush2.msra.mxu0 0.0
        %875 = vmatprep.subr.mxu0 0.0
        %876 = vmatpush2.msra.mxu0 0.0
        %877 = vmatprep.subr.mxu0 0.0
        %878 = vmatpush2.msra.mxu0 0.0
        %879 = vmatprep.subr.mxu0 0.0
        %880 = vmatpush2.msra.mxu0 0.0
        %881 = vmatprep.mubr.f32.mxu0 0.0
        %882 = vmatmul.mubr.f32.gmra.mxu0 %v407
        %v883 = vpop.f32.mrf.mxu0
        %v884 = vadd.f32 0.0, %v883
        %v885 = vpop.f32.mrf.mxu0
        %886 = vmatprep.mubr.f32.mxu0 0.0
        %887 = vmatmul.mubr.f32.gmra.mxu0 %v410
        %v888 = vpop.f32.mrf.mxu0
        %v889 = vadd.f32 0.0, %v888
        %v890 = vpop.f32.mrf.mxu0
        %891 = vmatprep.mubr.f32.mxu0 0.0
        %892 = vmatmul.mubr.f32.gmra.mxu0 %v413
        %v893 = vpop.f32.mrf.mxu0
        %v894 = vadd.f32 0.0, %v893
        %v895 = vpop.f32.mrf.mxu0
        %896 = vmatprep.mubr.f32.mxu0 0.0
        %897 = vmatmul.mubr.f32.gmra.mxu0 %v416
        %v898 = vpop.f32.mrf.mxu0
        %v899 = vadd.f32 0.0, %v898
        %v900 = vpop.f32.mrf.mxu0
        %901 = vmatprep.mubr.f32.mxu0 0.0
        %902 = vmatmul.mubr.f32.gmra.mxu0 %v419
        %v903 = vpop.f32.mrf.mxu0
        %v904 = vadd.f32 0.0, %v903
        %v905 = vpop.f32.mrf.mxu0
        %906 = vdwg.mxu0
        %s907 = scalar_select %p792, 1, 0
        %v908 = vstv %s907
        %vm909 = vcmp.eq.s32.totalorder %v908, 1
        %v910 = vsel %vm909, %v884, 0.0
        %v911 = vsel %vm909, %v889, 0.0
        %v912 = vsel %vm909, %v894, 0.0
        %v913 = vsel %vm909, %v899, 0.0
        %v914 = vsel %vm909, %v904, 0.0
        %915 = vst.msk [vmem:[#allocation2 + $0x78] sm:$0xff] %vm519, %v910
        %916 = vst.msk [vmem:[#allocation2 + $0x80] sm:$0xff] %vm519, %v911
        %917 = vst.msk [vmem:[#allocation2 + $0x88] sm:$0xff] %vm519, %v912
        %918 = vst.msk [vmem:[#allocation2 + $0x90] sm:$0xff] %vm519, %v913
        %919 = vst.msk [vmem:[#allocation2 + $0x98] sm:$0xff] %vm519, %v914
        %s920 = sadd.s32 %s370, 3
        %p921 = scmp.ge.s32.totalorder %s920, 0
        %p922 = scmp.lt.s32.totalorder %s920, 32
        %p923 = pnand %p921, %p922
        %p924 = pneg %p923
        %p925 = scmp.gt.s32.totalorder %s920, 0
        %s926 = scalar_select %p925, %s920, 0
        %p927 = scmp.lt.s32.totalorder %s926, 31
        %s928 = scalar_select %p927, %s926, 31
        %s929 = sld [smem:[#allocation3 + %s928]]
        %s930 = sld [smem:[#allocation5 + %s928]]
        %s931 = sld [smem:[#allocation7 + %s928]]
        %s932 = smul.u32 %s929, 16
        %s933 = scalar_lea.vmem %s358, %s932
        %v934 = vld [vmem:[%s933] sm:$0xff]
        %v935 = vld [vmem:[%s933 + $0x8] sm:$0xff]
        %v936 = vstv %s931
        %v937 = vmul.f32 %v936, %v934
        %v938 = vmul.f32 %v936, %v935
        %s939 = ssub.f32 1.0, %s931
        %s940 = smul.u32 %s930, 16
        %s941 = scalar_lea.vmem %s358, %s940
        %v942 = vld [vmem:[%s941] sm:$0xff]
        %v943 = vld [vmem:[%s941 + $0x8] sm:$0xff]
        %v944 = vstv %s939
        %v945 = vmul.f32 %v944, %v942
        %v946 = vmul.f32 %v944, %v943
        %v947 = vadd.f32 %v937, %v945
        %v948 = vadd.f32 %v938, %v946
        %949 = vmatprep.subr.mxu0 0.0
        %950 = vmatpush1.msra.mxu0 0.0
        %951 = vmatprep.subr.mxu0 0.0
        %952 = vmatpush1.msra.mxu0 0.0
        %953 = vmatprep.subr.mxu0 0.0
        %954 = vmatpush1.msra.mxu0 0.0
        %955 = vmatprep.subr.mxu0 0.0
        %956 = vmatpush1.msra.mxu0 0.0
        %957 = vmatprep.subr.mxu0 0.0
        %958 = vmatpush1.msra.mxu0 0.0
        %959 = vmatprep.subr.mxu0 0.0
        %960 = vmatpush1.msra.mxu0 0.0
        %961 = vmatprep.subr.mxu0 0.0
        %962 = vmatpush1.msra.mxu0 0.0
        %963 = vmatprep.subr.mxu0 0.0
        %964 = vmatpush1.msra.mxu0 0.0
        %965 = vmatprep.subr.mxu0 0.0
        %966 = vmatpush1.msra.mxu0 0.0
        %967 = vmatprep.subr.mxu0 0.0
        %968 = vmatpush1.msra.mxu0 0.0
        %969 = vmatprep.subr.mxu0 0.0
        %970 = vmatpush1.msra.mxu0 0.0
        %971 = vmatprep.subr.mxu0 0.0
        %972 = vmatpush1.msra.mxu0 0.0
        %973 = vmatprep.subr.mxu0 0.0
        %974 = vmatpush1.msra.mxu0 0.0
        %975 = vmatprep.subr.mxu0 0.0
        %976 = vmatpush1.msra.mxu0 0.0
        %977 = vmatprep.subr.mxu0 0.0
        %978 = vmatpush1.msra.mxu0 %v948
        %979 = vmatprep.subr.mxu0 0.0
        %980 = vmatpush1.msra.mxu0 %v947
        %981 = vmatprep.subr.mxu0 0.0
        %982 = vmatpush2.msra.mxu0 0.0
        %983 = vmatprep.subr.mxu0 0.0
        %984 = vmatpush2.msra.mxu0 0.0
        %985 = vmatprep.subr.mxu0 0.0
        %986 = vmatpush2.msra.mxu0 0.0
        %987 = vmatprep.subr.mxu0 0.0
        %988 = vmatpush2.msra.mxu0 0.0
        %989 = vmatprep.subr.mxu0 0.0
        %990 = vmatpush2.msra.mxu0 0.0
        %991 = vmatprep.subr.mxu0 0.0
        %992 = vmatpush2.msra.mxu0 0.0
        %993 = vmatprep.subr.mxu0 0.0
        %994 = vmatpush2.msra.mxu0 0.0
        %995 = vmatprep.subr.mxu0 0.0
        %996 = vmatpush2.msra.mxu0 0.0
        %997 = vmatprep.subr.mxu0 0.0
        %998 = vmatpush2.msra.mxu0 0.0
        %999 = vmatprep.subr.mxu0 0.0
        %1000 = vmatpush2.msra.mxu0 0.0
        %1001 = vmatprep.subr.mxu0 0.0
        %1002 = vmatpush2.msra.mxu0 0.0
        %1003 = vmatprep.subr.mxu0 0.0
        %1004 = vmatpush2.msra.mxu0 0.0
        %1005 = vmatprep.subr.mxu0 0.0
        %1006 = vmatpush2.msra.mxu0 0.0
        %1007 = vmatprep.subr.mxu0 0.0
        %1008 = vmatpush2.msra.mxu0 0.0
        %1009 = vmatprep.subr.mxu0 0.0
        %1010 = vmatpush2.msra.mxu0 0.0
        %1011 = vmatprep.subr.mxu0 0.0
        %1012 = vmatpush2.msra.mxu0 0.0
        %1013 = vmatprep.mubr.f32.mxu0 0.0
        %1014 = vmatmul.mubr.f32.gmra.mxu0 %v407
        %v1015 = vpop.f32.mrf.mxu0
        %v1016 = vadd.f32 0.0, %v1015
        %v1017 = vpop.f32.mrf.mxu0
        %1018 = vmatprep.mubr.f32.mxu0 0.0
        %1019 = vmatmul.mubr.f32.gmra.mxu0 %v410
        %v1020 = vpop.f32.mrf.mxu0
        %v1021 = vadd.f32 0.0, %v1020
        %v1022 = vpop.f32.mrf.mxu0
        %1023 = vmatprep.mubr.f32.mxu0 0.0
        %1024 = vmatmul.mubr.f32.gmra.mxu0 %v413
        %v1025 = vpop.f32.mrf.mxu0
        %v1026 = vadd.f32 0.0, %v1025
        %v1027 = vpop.f32.mrf.mxu0
        %1028 = vmatprep.mubr.f32.mxu0 0.0
        %1029 = vmatmul.mubr.f32.gmra.mxu0 %v416
        %v1030 = vpop.f32.mrf.mxu0
        %v1031 = vadd.f32 0.0, %v1030
        %v1032 = vpop.f32.mrf.mxu0
        %1033 = vmatprep.mubr.f32.mxu0 0.0
        %1034 = vmatmul.mubr.f32.gmra.mxu0 %v419
        %v1035 = vpop.f32.mrf.mxu0
        %v1036 = vadd.f32 0.0, %v1035
        %v1037 = vpop.f32.mrf.mxu0
        %1038 = vdwg.mxu0
        %s1039 = scalar_select %p924, 1, 0
        %v1040 = vstv %s1039
        %vm1041 = vcmp.eq.s32.totalorder %v1040, 1
        %v1042 = vsel %vm1041, %v1016, 0.0
        %v1043 = vsel %vm1041, %v1021, 0.0
        %v1044 = vsel %vm1041, %v1026, 0.0
        %v1045 = vsel %vm1041, %v1031, 0.0
        %v1046 = vsel %vm1041, %v1036, 0.0
        %1047 = vst.msk [vmem:[#allocation2 + $0xa0] sm:$0xff] %vm519, %v1042
        %1048 = vst.msk [vmem:[#allocation2 + $0xa8] sm:$0xff] %vm519, %v1043
        %1049 = vst.msk [vmem:[#allocation2 + $0xb0] sm:$0xff] %vm519, %v1044
        %1050 = vst.msk [vmem:[#allocation2 + $0xb8] sm:$0xff] %vm519, %v1045
        %1051 = vst.msk [vmem:[#allocation2 + $0xc0] sm:$0xff] %vm519, %v1046
        %s1052 = sadd.s32 %s370, 4
        %p1053 = scmp.ge.s32.totalorder %s1052, 0
        %p1054 = scmp.lt.s32.totalorder %s1052, 32
        %p1055 = pnand %p1053, %p1054
        %p1056 = pneg %p1055
        %p1057 = scmp.gt.s32.totalorder %s1052, 0
        %s1058 = scalar_select %p1057, %s1052, 0
        %p1059 = scmp.lt.s32.totalorder %s1058, 31
        %s1060 = scalar_select %p1059, %s1058, 31
        %s1061 = sld [smem:[#allocation3 + %s1060]]
        %s1062 = sld [smem:[#allocation5 + %s1060]]
        %s1063 = sld [smem:[#allocation7 + %s1060]]
        %s1064 = smul.u32 %s1061, 16
        %s1065 = scalar_lea.vmem %s358, %s1064
        %v1066 = vld [vmem:[%s1065] sm:$0xff]
        %v1067 = vld [vmem:[%s1065 + $0x8] sm:$0xff]
        %v1068 = vstv %s1063
        %v1069 = vmul.f32 %v1068, %v1066
        %v1070 = vmul.f32 %v1068, %v1067
        %s1071 = ssub.f32 1.0, %s1063
        %s1072 = smul.u32 %s1062, 16
        %s1073 = scalar_lea.vmem %s358, %s1072
        %v1074 = vld [vmem:[%s1073] sm:$0xff]
        %v1075 = vld [vmem:[%s1073 + $0x8] sm:$0xff]
        %v1076 = vstv %s1071
        %v1077 = vmul.f32 %v1076, %v1074
        %v1078 = vmul.f32 %v1076, %v1075
        %v1079 = vadd.f32 %v1069, %v1077
        %v1080 = vadd.f32 %v1070, %v1078
        %1081 = vmatprep.subr.mxu0 0.0
        %1082 = vmatpush1.msra.mxu0 0.0
        %1083 = vmatprep.subr.mxu0 0.0
        %1084 = vmatpush1.msra.mxu0 0.0
        %1085 = vmatprep.subr.mxu0 0.0
        %1086 = vmatpush1.msra.mxu0 0.0
        %1087 = vmatprep.subr.mxu0 0.0
        %1088 = vmatpush1.msra.mxu0 0.0
        %1089 = vmatprep.subr.mxu0 0.0
        %1090 = vmatpush1.msra.mxu0 0.0
        %1091 = vmatprep.subr.mxu0 0.0
        %1092 = vmatpush1.msra.mxu0 0.0
        %1093 = vmatprep.subr.mxu0 0.0
        %1094 = vmatpush1.msra.mxu0 0.0
        %1095 = vmatprep.subr.mxu0 0.0
        %1096 = vmatpush1.msra.mxu0 0.0
        %1097 = vmatprep.subr.mxu0 0.0
        %1098 = vmatpush1.msra.mxu0 0.0
        %1099 = vmatprep.subr.mxu0 0.0
        %1100 = vmatpush1.msra.mxu0 0.0
        %1101 = vmatprep.subr.mxu0 0.0
        %1102 = vmatpush1.msra.mxu0 0.0
        %1103 = vmatprep.subr.mxu0 0.0
        %1104 = vmatpush1.msra.mxu0 0.0
        %1105 = vmatprep.subr.mxu0 0.0
        %1106 = vmatpush1.msra.mxu0 0.0
        %1107 = vmatprep.subr.mxu0 0.0
        %1108 = vmatpush1.msra.mxu0 0.0
        %1109 = vmatprep.subr.mxu0 0.0
        %1110 = vmatpush1.msra.mxu0 %v1080
        %1111 = vmatprep.subr.mxu0 0.0
        %1112 = vmatpush1.msra.mxu0 %v1079
        %1113 = vmatprep.subr.mxu0 0.0
        %1114 = vmatpush2.msra.mxu0 0.0
        %1115 = vmatprep.subr.mxu0 0.0
        %1116 = vmatpush2.msra.mxu0 0.0
        %1117 = vmatprep.subr.mxu0 0.0
        %1118 = vmatpush2.msra.mxu0 0.0
        %1119 = vmatprep.subr.mxu0 0.0
        %1120 = vmatpush2.msra.mxu0 0.0
        %1121 = vmatprep.subr.mxu0 0.0
        %1122 = vmatpush2.msra.mxu0 0.0
        %1123 = vmatprep.subr.mxu0 0.0
        %1124 = vmatpush2.msra.mxu0 0.0
        %1125 = vmatprep.subr.mxu0 0.0
        %1126 = vmatpush2.msra.mxu0 0.0
        %1127 = vmatprep.subr.mxu0 0.0
        %1128 = vmatpush2.msra.mxu0 0.0
        %1129 = vmatprep.subr.mxu0 0.0
        %1130 = vmatpush2.msra.mxu0 0.0
        %1131 = vmatprep.subr.mxu0 0.0
        %1132 = vmatpush2.msra.mxu0 0.0
        %1133 = vmatprep.subr.mxu0 0.0
        %1134 = vmatpush2.msra.mxu0 0.0
        %1135 = vmatprep.subr.mxu0 0.0
        %1136 = vmatpush2.msra.mxu0 0.0
        %1137 = vmatprep.subr.mxu0 0.0
        %1138 = vmatpush2.msra.mxu0 0.0
        %1139 = vmatprep.subr.mxu0 0.0
        %1140 = vmatpush2.msra.mxu0 0.0
        %1141 = vmatprep.subr.mxu0 0.0
        %1142 = vmatpush2.msra.mxu0 0.0
        %1143 = vmatprep.subr.mxu0 0.0
        %1144 = vmatpush2.msra.mxu0 0.0
        %1145 = vmatprep.mubr.f32.mxu0 0.0
        %1146 = vmatmul.mubr.f32.gmra.mxu0 %v407
        %v1147 = vpop.f32.mrf.mxu0
        %v1148 = vadd.f32 0.0, %v1147
        %v1149 = vpop.f32.mrf.mxu0
        %1150 = vmatprep.mubr.f32.mxu0 0.0
        %1151 = vmatmul.mubr.f32.gmra.mxu0 %v410
        %v1152 = vpop.f32.mrf.mxu0
        %v1153 = vadd.f32 0.0, %v1152
        %v1154 = vpop.f32.mrf.mxu0
        %1155 = vmatprep.mubr.f32.mxu0 0.0
        %1156 = vmatmul.mubr.f32.gmra.mxu0 %v413
        %v1157 = vpop.f32.mrf.mxu0
        %v1158 = vadd.f32 0.0, %v1157
        %v1159 = vpop.f32.mrf.mxu0
        %1160 = vmatprep.mubr.f32.mxu0 0.0
        %1161 = vmatmul.mubr.f32.gmra.mxu0 %v416
        %v1162 = vpop.f32.mrf.mxu0
        %v1163 = vadd.f32 0.0, %v1162
        %v1164 = vpop.f32.mrf.mxu0
        %1165 = vmatprep.mubr.f32.mxu0 0.0
        %1166 = vmatmul.mubr.f32.gmra.mxu0 %v419
        %v1167 = vpop.f32.mrf.mxu0
        %v1168 = vadd.f32 0.0, %v1167
        %v1169 = vpop.f32.mrf.mxu0
        %1170 = vdwg.mxu0
        %s1171 = scalar_select %p1056, 1, 0
        %v1172 = vstv %s1171
        %vm1173 = vcmp.eq.s32.totalorder %v1172, 1
        %v1174 = vsel %vm1173, %v1148, 0.0
        %v1175 = vsel %vm1173, %v1153, 0.0
        %v1176 = vsel %vm1173, %v1158, 0.0
        %v1177 = vsel %vm1173, %v1163, 0.0
        %v1178 = vsel %vm1173, %v1168, 0.0
        %1179 = vst.msk [vmem:[#allocation2 + $0xc8] sm:$0xff] %vm519, %v1174
        %1180 = vst.msk [vmem:[#allocation2 + $0xd0] sm:$0xff] %vm519, %v1175
        %1181 = vst.msk [vmem:[#allocation2 + $0xd8] sm:$0xff] %vm519, %v1176
        %1182 = vst.msk [vmem:[#allocation2 + $0xe0] sm:$0xff] %vm519, %v1177
        %1183 = vst.msk [vmem:[#allocation2 + $0xe8] sm:$0xff] %vm519, %v1178
        %s1184 = sadd.s32 %s370, 5
        %p1185 = scmp.ge.s32.totalorder %s1184, 0
        %p1186 = scmp.lt.s32.totalorder %s1184, 32
        %p1187 = pnand %p1185, %p1186
        %p1188 = pneg %p1187
        %p1189 = scmp.gt.s32.totalorder %s1184, 0
        %s1190 = scalar_select %p1189, %s1184, 0
        %p1191 = scmp.lt.s32.totalorder %s1190, 31
        %s1192 = scalar_select %p1191, %s1190, 31
        %s1193 = sld [smem:[#allocation3 + %s1192]]
        %s1194 = sld [smem:[#allocation5 + %s1192]]
        %s1195 = sld [smem:[#allocation7 + %s1192]]
        %s1196 = smul.u32 %s1193, 16
        %s1197 = scalar_lea.vmem %s358, %s1196
        %v1198 = vld [vmem:[%s1197] sm:$0xff]
        %v1199 = vld [vmem:[%s1197 + $0x8] sm:$0xff]
        %v1200 = vstv %s1195
        %v1201 = vmul.f32 %v1200, %v1198
        %v1202 = vmul.f32 %v1200, %v1199
        %s1203 = ssub.f32 1.0, %s1195
        %s1204 = smul.u32 %s1194, 16
        %s1205 = scalar_lea.vmem %s358, %s1204
        %v1206 = vld [vmem:[%s1205] sm:$0xff]
        %v1207 = vld [vmem:[%s1205 + $0x8] sm:$0xff]
        %v1208 = vstv %s1203
        %v1209 = vmul.f32 %v1208, %v1206
        %v1210 = vmul.f32 %v1208, %v1207
        %v1211 = vadd.f32 %v1201, %v1209
        %v1212 = vadd.f32 %v1202, %v1210
        %1213 = vmatprep.subr.mxu0 0.0
        %1214 = vmatpush1.msra.mxu0 0.0
        %1215 = vmatprep.subr.mxu0 0.0
        %1216 = vmatpush1.msra.mxu0 0.0
        %1217 = vmatprep.subr.mxu0 0.0
        %1218 = vmatpush1.msra.mxu0 0.0
        %1219 = vmatprep.subr.mxu0 0.0
        %1220 = vmatpush1.msra.mxu0 0.0
        %1221 = vmatprep.subr.mxu0 0.0
        %1222 = vmatpush1.msra.mxu0 0.0
        %1223 = vmatprep.subr.mxu0 0.0
        %1224 = vmatpush1.msra.mxu0 0.0
        %1225 = vmatprep.subr.mxu0 0.0
        %1226 = vmatpush1.msra.mxu0 0.0
        %1227 = vmatprep.subr.mxu0 0.0
        %1228 = vmatpush1.msra.mxu0 0.0
        %1229 = vmatprep.subr.mxu0 0.0
        %1230 = vmatpush1.msra.mxu0 0.0
        %1231 = vmatprep.subr.mxu0 0.0
        %1232 = vmatpush1.msra.mxu0 0.0
        %1233 = vmatprep.subr.mxu0 0.0
        %1234 = vmatpush1.msra.mxu0 0.0
        %1235 = vmatprep.subr.mxu0 0.0
        %1236 = vmatpush1.msra.mxu0 0.0
        %1237 = vmatprep.subr.mxu0 0.0
        %1238 = vmatpush1.msra.mxu0 0.0
        %1239 = vmatprep.subr.mxu0 0.0
        %1240 = vmatpush1.msra.mxu0 0.0
        %1241 = vmatprep.subr.mxu0 0.0
        %1242 = vmatpush1.msra.mxu0 %v1212
        %1243 = vmatprep.subr.mxu0 0.0
        %1244 = vmatpush1.msra.mxu0 %v1211
        %1245 = vmatprep.subr.mxu0 0.0
        %1246 = vmatpush2.msra.mxu0 0.0
        %1247 = vmatprep.subr.mxu0 0.0
        %1248 = vmatpush2.msra.mxu0 0.0
        %1249 = vmatprep.subr.mxu0 0.0
        %1250 = vmatpush2.msra.mxu0 0.0
        %1251 = vmatprep.subr.mxu0 0.0
        %1252 = vmatpush2.msra.mxu0 0.0
        %1253 = vmatprep.subr.mxu0 0.0
        %1254 = vmatpush2.msra.mxu0 0.0
        %1255 = vmatprep.subr.mxu0 0.0
        %1256 = vmatpush2.msra.mxu0 0.0
        %1257 = vmatprep.subr.mxu0 0.0
        %1258 = vmatpush2.msra.mxu0 0.0
        %1259 = vmatprep.subr.mxu0 0.0
        %1260 = vmatpush2.msra.mxu0 0.0
        %1261 = vmatprep.subr.mxu0 0.0
        %1262 = vmatpush2.msra.mxu0 0.0
        %1263 = vmatprep.subr.mxu0 0.0
        %1264 = vmatpush2.msra.mxu0 0.0
        %1265 = vmatprep.subr.mxu0 0.0
        %1266 = vmatpush2.msra.mxu0 0.0
        %1267 = vmatprep.subr.mxu0 0.0
        %1268 = vmatpush2.msra.mxu0 0.0
        %1269 = vmatprep.subr.mxu0 0.0
        %1270 = vmatpush2.msra.mxu0 0.0
        %1271 = vmatprep.subr.mxu0 0.0
        %1272 = vmatpush2.msra.mxu0 0.0
        %1273 = vmatprep.subr.mxu0 0.0
        %1274 = vmatpush2.msra.mxu0 0.0
        %1275 = vmatprep.subr.mxu0 0.0
        %1276 = vmatpush2.msra.mxu0 0.0
        %1277 = vmatprep.mubr.f32.mxu0 0.0
        %1278 = vmatmul.mubr.f32.gmra.mxu0 %v407
        %v1279 = vpop.f32.mrf.mxu0
        %v1280 = vadd.f32 0.0, %v1279
        %v1281 = vpop.f32.mrf.mxu0
        %1282 = vmatprep.mubr.f32.mxu0 0.0
        %1283 = vmatmul.mubr.f32.gmra.mxu0 %v410
        %v1284 = vpop.f32.mrf.mxu0
        %v1285 = vadd.f32 0.0, %v1284
        %v1286 = vpop.f32.mrf.mxu0
        %1287 = vmatprep.mubr.f32.mxu0 0.0
        %1288 = vmatmul.mubr.f32.gmra.mxu0 %v413
        %v1289 = vpop.f32.mrf.mxu0
        %v1290 = vadd.f32 0.0, %v1289
        %v1291 = vpop.f32.mrf.mxu0
        %1292 = vmatprep.mubr.f32.mxu0 0.0
        %1293 = vmatmul.mubr.f32.gmra.mxu0 %v416
        %v1294 = vpop.f32.mrf.mxu0
        %v1295 = vadd.f32 0.0, %v1294
        %v1296 = vpop.f32.mrf.mxu0
        %1297 = vmatprep.mubr.f32.mxu0 0.0
        %1298 = vmatmul.mubr.f32.gmra.mxu0 %v419
        %v1299 = vpop.f32.mrf.mxu0
        %v1300 = vadd.f32 0.0, %v1299
        %v1301 = vpop.f32.mrf.mxu0
        %1302 = vdwg.mxu0
        %s1303 = scalar_select %p1188, 1, 0
        %v1304 = vstv %s1303
        %vm1305 = vcmp.eq.s32.totalorder %v1304, 1
        %v1306 = vsel %vm1305, %v1280, 0.0
        %v1307 = vsel %vm1305, %v1285, 0.0
        %v1308 = vsel %vm1305, %v1290, 0.0
        %v1309 = vsel %vm1305, %v1295, 0.0
        %v1310 = vsel %vm1305, %v1300, 0.0
        %1311 = vst.msk [vmem:[#allocation2 + $0xf0] sm:$0xff] %vm519, %v1306
        %1312 = vst.msk [vmem:[#allocation2 + $0xf8] sm:$0xff] %vm519, %v1307
        %1313 = vst.msk [vmem:[#allocation2 + $0x100] sm:$0xff] %vm519, %v1308
        %1314 = vst.msk [vmem:[#allocation2 + $0x108] sm:$0xff] %vm519, %v1309
        %1315 = vst.msk [vmem:[#allocation2 + $0x110] sm:$0xff] %vm519, %v1310
        %s1316 = sadd.s32 %s370, 6
        %p1317 = scmp.ge.s32.totalorder %s1316, 0
        %p1318 = scmp.lt.s32.totalorder %s1316, 32
        %p1319 = pnand %p1317, %p1318
        %p1320 = pneg %p1319
        %p1321 = scmp.gt.s32.totalorder %s1316, 0
        %s1322 = scalar_select %p1321, %s1316, 0
        %p1323 = scmp.lt.s32.totalorder %s1322, 31
        %s1324 = scalar_select %p1323, %s1322, 31
        %s1325 = sld [smem:[#allocation3 + %s1324]]
        %s1326 = sld [smem:[#allocation5 + %s1324]]
        %s1327 = sld [smem:[#allocation7 + %s1324]]
        %s1328 = smul.u32 %s1325, 16
        %s1329 = scalar_lea.vmem %s358, %s1328
        %v1330 = vld [vmem:[%s1329] sm:$0xff]
        %v1331 = vld [vmem:[%s1329 + $0x8] sm:$0xff]
        %v1332 = vstv %s1327
        %v1333 = vmul.f32 %v1332, %v1330
        %v1334 = vmul.f32 %v1332, %v1331
        %s1335 = ssub.f32 1.0, %s1327
        %s1336 = smul.u32 %s1326, 16
        %s1337 = scalar_lea.vmem %s358, %s1336
        %v1338 = vld [vmem:[%s1337] sm:$0xff]
        %v1339 = vld [vmem:[%s1337 + $0x8] sm:$0xff]
        %v1340 = vstv %s1335
        %v1341 = vmul.f32 %v1340, %v1338
        %v1342 = vmul.f32 %v1340, %v1339
        %v1343 = vadd.f32 %v1333, %v1341
        %v1344 = vadd.f32 %v1334, %v1342
        %1345 = vmatprep.subr.mxu0 0.0
        %1346 = vmatpush1.msra.mxu0 0.0
        %1347 = vmatprep.subr.mxu0 0.0
        %1348 = vmatpush1.msra.mxu0 0.0
        %1349 = vmatprep.subr.mxu0 0.0
        %1350 = vmatpush1.msra.mxu0 0.0
        %1351 = vmatprep.subr.mxu0 0.0
        %1352 = vmatpush1.msra.mxu0 0.0
        %1353 = vmatprep.subr.mxu0 0.0
        %1354 = vmatpush1.msra.mxu0 0.0
        %1355 = vmatprep.subr.mxu0 0.0
        %1356 = vmatpush1.msra.mxu0 0.0
        %1357 = vmatprep.subr.mxu0 0.0
        %1358 = vmatpush1.msra.mxu0 0.0
        %1359 = vmatprep.subr.mxu0 0.0
        %1360 = vmatpush1.msra.mxu0 0.0
        %1361 = vmatprep.subr.mxu0 0.0
        %1362 = vmatpush1.msra.mxu0 0.0
        %1363 = vmatprep.subr.mxu0 0.0
        %1364 = vmatpush1.msra.mxu0 0.0
        %1365 = vmatprep.subr.mxu0 0.0
        %1366 = vmatpush1.msra.mxu0 0.0
        %1367 = vmatprep.subr.mxu0 0.0
        %1368 = vmatpush1.msra.mxu0 0.0
        %1369 = vmatprep.subr.mxu0 0.0
        %1370 = vmatpush1.msra.mxu0 0.0
        %1371 = vmatprep.subr.mxu0 0.0
        %1372 = vmatpush1.msra.mxu0 0.0
        %1373 = vmatprep.subr.mxu0 0.0
        %1374 = vmatpush1.msra.mxu0 %v1344
        %1375 = vmatprep.subr.mxu0 0.0
        %1376 = vmatpush1.msra.mxu0 %v1343
        %1377 = vmatprep.subr.mxu0 0.0
        %1378 = vmatpush2.msra.mxu0 0.0
        %1379 = vmatprep.subr.mxu0 0.0
        %1380 = vmatpush2.msra.mxu0 0.0
        %1381 = vmatprep.subr.mxu0 0.0
        %1382 = vmatpush2.msra.mxu0 0.0
        %1383 = vmatprep.subr.mxu0 0.0
        %1384 = vmatpush2.msra.mxu0 0.0
        %1385 = vmatprep.subr.mxu0 0.0
        %1386 = vmatpush2.msra.mxu0 0.0
        %1387 = vmatprep.subr.mxu0 0.0
        %1388 = vmatpush2.msra.mxu0 0.0
        %1389 = vmatprep.subr.mxu0 0.0
        %1390 = vmatpush2.msra.mxu0 0.0
        %1391 = vmatprep.subr.mxu0 0.0
        %1392 = vmatpush2.msra.mxu0 0.0
        %1393 = vmatprep.subr.mxu0 0.0
        %1394 = vmatpush2.msra.mxu0 0.0
        %1395 = vmatprep.subr.mxu0 0.0
        %1396 = vmatpush2.msra.mxu0 0.0
        %1397 = vmatprep.subr.mxu0 0.0
        %1398 = vmatpush2.msra.mxu0 0.0
        %1399 = vmatprep.subr.mxu0 0.0
        %1400 = vmatpush2.msra.mxu0 0.0
        %1401 = vmatprep.subr.mxu0 0.0
        %1402 = vmatpush2.msra.mxu0 0.0
        %1403 = vmatprep.subr.mxu0 0.0
        %1404 = vmatpush2.msra.mxu0 0.0
        %1405 = vmatprep.subr.mxu0 0.0
        %1406 = vmatpush2.msra.mxu0 0.0
        %1407 = vmatprep.subr.mxu0 0.0
        %1408 = vmatpush2.msra.mxu0 0.0
        %1409 = vmatprep.mubr.f32.mxu0 0.0
        %1410 = vmatmul.mubr.f32.gmra.mxu0 %v407
        %v1411 = vpop.f32.mrf.mxu0
        %v1412 = vadd.f32 0.0, %v1411
        %v1413 = vpop.f32.mrf.mxu0
        %1414 = vmatprep.mubr.f32.mxu0 0.0
        %1415 = vmatmul.mubr.f32.gmra.mxu0 %v410
        %v1416 = vpop.f32.mrf.mxu0
        %v1417 = vadd.f32 0.0, %v1416
        %v1418 = vpop.f32.mrf.mxu0
        %1419 = vmatprep.mubr.f32.mxu0 0.0
        %1420 = vmatmul.mubr.f32.gmra.mxu0 %v413
        %v1421 = vpop.f32.mrf.mxu0
        %v1422 = vadd.f32 0.0, %v1421
        %v1423 = vpop.f32.mrf.mxu0
        %1424 = vmatprep.mubr.f32.mxu0 0.0
        %1425 = vmatmul.mubr.f32.gmra.mxu0 %v416
        %v1426 = vpop.f32.mrf.mxu0
        %v1427 = vadd.f32 0.0, %v1426
        %v1428 = vpop.f32.mrf.mxu0
        %1429 = vmatprep.mubr.f32.mxu0 0.0
        %1430 = vmatmul.mubr.f32.gmra.mxu0 %v419
        %v1431 = vpop.f32.mrf.mxu0
        %v1432 = vadd.f32 0.0, %v1431
        %v1433 = vpop.f32.mrf.mxu0
        %1434 = vdwg.mxu0
        %s1435 = scalar_select %p1320, 1, 0
        %v1436 = vstv %s1435
        %vm1437 = vcmp.eq.s32.totalorder %v1436, 1
        %v1438 = vsel %vm1437, %v1412, 0.0
        %v1439 = vsel %vm1437, %v1417, 0.0
        %v1440 = vsel %vm1437, %v1422, 0.0
        %v1441 = vsel %vm1437, %v1427, 0.0
        %v1442 = vsel %vm1437, %v1432, 0.0
        %1443 = vst.msk [vmem:[#allocation2 + $0x118] sm:$0xff] %vm519, %v1438
        %1444 = vst.msk [vmem:[#allocation2 + $0x120] sm:$0xff] %vm519, %v1439
        %1445 = vst.msk [vmem:[#allocation2 + $0x128] sm:$0xff] %vm519, %v1440
        %1446 = vst.msk [vmem:[#allocation2 + $0x130] sm:$0xff] %vm519, %v1441
        %1447 = vst.msk [vmem:[#allocation2 + $0x138] sm:$0xff] %vm519, %v1442
        %s1448 = sadd.s32 %s370, 7
        %p1449 = scmp.ge.s32.totalorder %s1448, 0
        %p1450 = scmp.lt.s32.totalorder %s1448, 32
        %p1451 = pnand %p1449, %p1450
        %p1452 = pneg %p1451
        %p1453 = scmp.gt.s32.totalorder %s1448, 0
        %s1454 = scalar_select %p1453, %s1448, 0
        %p1455 = scmp.lt.s32.totalorder %s1454, 31
        %s1456 = scalar_select %p1455, %s1454, 31
        %s1457 = sld [smem:[#allocation3 + %s1456]]
        %s1458 = sld [smem:[#allocation5 + %s1456]]
        %s1459 = sld [smem:[#allocation7 + %s1456]]
        %s1460 = smul.u32 %s1457, 16
        %s1461 = scalar_lea.vmem %s358, %s1460
        %v1462 = vld [vmem:[%s1461] sm:$0xff]
        %v1463 = vld [vmem:[%s1461 + $0x8] sm:$0xff]
        %v1464 = vstv %s1459
        %v1465 = vmul.f32 %v1464, %v1462
        %v1466 = vmul.f32 %v1464, %v1463
        %s1467 = ssub.f32 1.0, %s1459
        %s1468 = smul.u32 %s1458, 16
        %s1469 = scalar_lea.vmem %s358, %s1468
        %v1470 = vld [vmem:[%s1469] sm:$0xff]
        %v1471 = vld [vmem:[%s1469 + $0x8] sm:$0xff]
        %v1472 = vstv %s1467
        %v1473 = vmul.f32 %v1472, %v1470
        %v1474 = vmul.f32 %v1472, %v1471
        %v1475 = vadd.f32 %v1465, %v1473
        %v1476 = vadd.f32 %v1466, %v1474
        %1477 = vmatprep.subr.mxu0 0.0
        %1478 = vmatpush1.msra.mxu0 0.0
        %1479 = vmatprep.subr.mxu0 0.0
        %1480 = vmatpush1.msra.mxu0 0.0
        %1481 = vmatprep.subr.mxu0 0.0
        %1482 = vmatpush1.msra.mxu0 0.0
        %1483 = vmatprep.subr.mxu0 0.0
        %1484 = vmatpush1.msra.mxu0 0.0
        %1485 = vmatprep.subr.mxu0 0.0
        %1486 = vmatpush1.msra.mxu0 0.0
        %1487 = vmatprep.subr.mxu0 0.0
        %1488 = vmatpush1.msra.mxu0 0.0
        %1489 = vmatprep.subr.mxu0 0.0
        %1490 = vmatpush1.msra.mxu0 0.0
        %1491 = vmatprep.subr.mxu0 0.0
        %1492 = vmatpush1.msra.mxu0 0.0
        %1493 = vmatprep.subr.mxu0 0.0
        %1494 = vmatpush1.msra.mxu0 0.0
        %1495 = vmatprep.subr.mxu0 0.0
        %1496 = vmatpush1.msra.mxu0 0.0
        %1497 = vmatprep.subr.mxu0 0.0
        %1498 = vmatpush1.msra.mxu0 0.0
        %1499 = vmatprep.subr.mxu0 0.0
        %1500 = vmatpush1.msra.mxu0 0.0
        %1501 = vmatprep.subr.mxu0 0.0
        %1502 = vmatpush1.msra.mxu0 0.0
        %1503 = vmatprep.subr.mxu0 0.0
        %1504 = vmatpush1.msra.mxu0 0.0
        %1505 = vmatprep.subr.mxu0 0.0
        %1506 = vmatpush1.msra.mxu0 %v1476
        %1507 = vmatprep.subr.mxu0 0.0
        %1508 = vmatpush1.msra.mxu0 %v1475
        %1509 = vmatprep.subr.mxu0 0.0
        %1510 = vmatpush2.msra.mxu0 0.0
        %1511 = vmatprep.subr.mxu0 0.0
        %1512 = vmatpush2.msra.mxu0 0.0
        %1513 = vmatprep.subr.mxu0 0.0
        %1514 = vmatpush2.msra.mxu0 0.0
        %1515 = vmatprep.subr.mxu0 0.0
        %1516 = vmatpush2.msra.mxu0 0.0
        %1517 = vmatprep.subr.mxu0 0.0
        %1518 = vmatpush2.msra.mxu0 0.0
        %1519 = vmatprep.subr.mxu0 0.0
        %1520 = vmatpush2.msra.mxu0 0.0
        %1521 = vmatprep.subr.mxu0 0.0
        %1522 = vmatpush2.msra.mxu0 0.0
        %1523 = vmatprep.subr.mxu0 0.0
        %1524 = vmatpush2.msra.mxu0 0.0
        %1525 = vmatprep.subr.mxu0 0.0
        %1526 = vmatpush2.msra.mxu0 0.0
        %1527 = vmatprep.subr.mxu0 0.0
        %1528 = vmatpush2.msra.mxu0 0.0
        %1529 = vmatprep.subr.mxu0 0.0
        %1530 = vmatpush2.msra.mxu0 0.0
        %1531 = vmatprep.subr.mxu0 0.0
        %1532 = vmatpush2.msra.mxu0 0.0
        %1533 = vmatprep.subr.mxu0 0.0
        %1534 = vmatpush2.msra.mxu0 0.0
        %1535 = vmatprep.subr.mxu0 0.0
        %1536 = vmatpush2.msra.mxu0 0.0
        %1537 = vmatprep.subr.mxu0 0.0
        %1538 = vmatpush2.msra.mxu0 0.0
        %1539 = vmatprep.subr.mxu0 0.0
        %1540 = vmatpush2.msra.mxu0 0.0
        %1541 = vmatprep.mubr.f32.mxu0 0.0
        %1542 = vmatmul.mubr.f32.gmra.mxu0 %v407
        %v1543 = vpop.f32.mrf.mxu0
        %v1544 = vadd.f32 0.0, %v1543
        %v1545 = vpop.f32.mrf.mxu0
        %1546 = vmatprep.mubr.f32.mxu0 0.0
        %1547 = vmatmul.mubr.f32.gmra.mxu0 %v410
        %v1548 = vpop.f32.mrf.mxu0
        %v1549 = vadd.f32 0.0, %v1548
        %v1550 = vpop.f32.mrf.mxu0
        %1551 = vmatprep.mubr.f32.mxu0 0.0
        %1552 = vmatmul.mubr.f32.gmra.mxu0 %v413
        %v1553 = vpop.f32.mrf.mxu0
        %v1554 = vadd.f32 0.0, %v1553
        %v1555 = vpop.f32.mrf.mxu0
        %1556 = vmatprep.mubr.f32.mxu0 0.0
        %1557 = vmatmul.mubr.f32.gmra.mxu0 %v416
        %v1558 = vpop.f32.mrf.mxu0
        %v1559 = vadd.f32 0.0, %v1558
        %v1560 = vpop.f32.mrf.mxu0
        %1561 = vmatprep.mubr.f32.mxu0 0.0
        %1562 = vmatmul.mubr.f32.gmra.mxu0 %v419
        %v1563 = vpop.f32.mrf.mxu0
        %v1564 = vadd.f32 0.0, %v1563
        %v1565 = vpop.f32.mrf.mxu0
        %1566 = vdwg.mxu0
        %s1567 = scalar_select %p1452, 1, 0
        %v1568 = vstv %s1567
        %vm1569 = vcmp.eq.s32.totalorder %v1568, 1
        %v1570 = vsel %vm1569, %v1544, 0.0
        %v1571 = vsel %vm1569, %v1549, 0.0
        %v1572 = vsel %vm1569, %v1554, 0.0
        %v1573 = vsel %vm1569, %v1559, 0.0
        %v1574 = vsel %vm1569, %v1564, 0.0
        %1575 = vst.msk [vmem:[#allocation2 + $0x140] sm:$0xff] %vm519, %v1570
        %1576 = vst.msk [vmem:[#allocation2 + $0x148] sm:$0xff] %vm519, %v1571
        %1577 = vst.msk [vmem:[#allocation2 + $0x150] sm:$0xff] %vm519, %v1572
        %1578 = vst.msk [vmem:[#allocation2 + $0x158] sm:$0xff] %vm519, %v1573
        %1579 = vst.msk [vmem:[#allocation2 + $0x160] sm:$0xff] %vm519, %v1574
        %s1580 = sadd.s32 %s370, 8
        %p1581 = scmp.ge.s32.totalorder %s1580, 0
        %p1582 = scmp.lt.s32.totalorder %s1580, 32
        %p1583 = pnand %p1581, %p1582
        %p1584 = pneg %p1583
        %p1585 = scmp.gt.s32.totalorder %s1580, 0
        %s1586 = scalar_select %p1585, %s1580, 0
        %p1587 = scmp.lt.s32.totalorder %s1586, 31
        %s1588 = scalar_select %p1587, %s1586, 31
        %s1589 = sld [smem:[#allocation3 + %s1588]]
        %s1590 = sld [smem:[#allocation5 + %s1588]]
        %s1591 = sld [smem:[#allocation7 + %s1588]]
        %s1592 = smul.u32 %s1589, 16
        %s1593 = scalar_lea.vmem %s358, %s1592
        %v1594 = vld [vmem:[%s1593] sm:$0xff]
        %v1595 = vld [vmem:[%s1593 + $0x8] sm:$0xff]
        %v1596 = vstv %s1591
        %v1597 = vmul.f32 %v1596, %v1594
        %v1598 = vmul.f32 %v1596, %v1595
        %s1599 = ssub.f32 1.0, %s1591
        %s1600 = smul.u32 %s1590, 16
        %s1601 = scalar_lea.vmem %s358, %s1600
        %v1602 = vld [vmem:[%s1601] sm:$0xff]
        %v1603 = vld [vmem:[%s1601 + $0x8] sm:$0xff]
        %v1604 = vstv %s1599
        %v1605 = vmul.f32 %v1604, %v1602
        %v1606 = vmul.f32 %v1604, %v1603
        %v1607 = vadd.f32 %v1597, %v1605
        %v1608 = vadd.f32 %v1598, %v1606
        %1609 = vmatprep.subr.mxu0 0.0
        %1610 = vmatpush1.msra.mxu0 0.0
        %1611 = vmatprep.subr.mxu0 0.0
        %1612 = vmatpush1.msra.mxu0 0.0
        %1613 = vmatprep.subr.mxu0 0.0
        %1614 = vmatpush1.msra.mxu0 0.0
        %1615 = vmatprep.subr.mxu0 0.0
        %1616 = vmatpush1.msra.mxu0 0.0
        %1617 = vmatprep.subr.mxu0 0.0
        %1618 = vmatpush1.msra.mxu0 0.0
        %1619 = vmatprep.subr.mxu0 0.0
        %1620 = vmatpush1.msra.mxu0 0.0
        %1621 = vmatprep.subr.mxu0 0.0
        %1622 = vmatpush1.msra.mxu0 0.0
        %1623 = vmatprep.subr.mxu0 0.0
        %1624 = vmatpush1.msra.mxu0 0.0
        %1625 = vmatprep.subr.mxu0 0.0
        %1626 = vmatpush1.msra.mxu0 0.0
        %1627 = vmatprep.subr.mxu0 0.0
        %1628 = vmatpush1.msra.mxu0 0.0
        %1629 = vmatprep.subr.mxu0 0.0
        %1630 = vmatpush1.msra.mxu0 0.0
        %1631 = vmatprep.subr.mxu0 0.0
        %1632 = vmatpush1.msra.mxu0 0.0
        %1633 = vmatprep.subr.mxu0 0.0
        %1634 = vmatpush1.msra.mxu0 0.0
        %1635 = vmatprep.subr.mxu0 0.0
        %1636 = vmatpush1.msra.mxu0 0.0
        %1637 = vmatprep.subr.mxu0 0.0
        %1638 = vmatpush1.msra.mxu0 %v1608
        %1639 = vmatprep.subr.mxu0 0.0
        %1640 = vmatpush1.msra.mxu0 %v1607
        %1641 = vmatprep.subr.mxu0 0.0
        %1642 = vmatpush2.msra.mxu0 0.0
        %1643 = vmatprep.subr.mxu0 0.0
        %1644 = vmatpush2.msra.mxu0 0.0
        %1645 = vmatprep.subr.mxu0 0.0
        %1646 = vmatpush2.msra.mxu0 0.0
        %1647 = vmatprep.subr.mxu0 0.0
        %1648 = vmatpush2.msra.mxu0 0.0
        %1649 = vmatprep.subr.mxu0 0.0
        %1650 = vmatpush2.msra.mxu0 0.0
        %1651 = vmatprep.subr.mxu0 0.0
        %1652 = vmatpush2.msra.mxu0 0.0
        %1653 = vmatprep.subr.mxu0 0.0
        %1654 = vmatpush2.msra.mxu0 0.0
        %1655 = vmatprep.subr.mxu0 0.0
        %1656 = vmatpush2.msra.mxu0 0.0
        %1657 = vmatprep.subr.mxu0 0.0
        %1658 = vmatpush2.msra.mxu0 0.0
        %1659 = vmatprep.subr.mxu0 0.0
        %1660 = vmatpush2.msra.mxu0 0.0
        %1661 = vmatprep.subr.mxu0 0.0
        %1662 = vmatpush2.msra.mxu0 0.0
        %1663 = vmatprep.subr.mxu0 0.0
        %1664 = vmatpush2.msra.mxu0 0.0
        %1665 = vmatprep.subr.mxu0 0.0
        %1666 = vmatpush2.msra.mxu0 0.0
        %1667 = vmatprep.subr.mxu0 0.0
        %1668 = vmatpush2.msra.mxu0 0.0
        %1669 = vmatprep.subr.mxu0 0.0
        %1670 = vmatpush2.msra.mxu0 0.0
        %1671 = vmatprep.subr.mxu0 0.0
        %1672 = vmatpush2.msra.mxu0 0.0
        %1673 = vmatprep.mubr.f32.mxu0 0.0
        %1674 = vmatmul.mubr.f32.gmra.mxu0 %v407
        %v1675 = vpop.f32.mrf.mxu0
        %v1676 = vadd.f32 0.0, %v1675
        %v1677 = vpop.f32.mrf.mxu0
        %1678 = vmatprep.mubr.f32.mxu0 0.0
        %1679 = vmatmul.mubr.f32.gmra.mxu0 %v410
        %v1680 = vpop.f32.mrf.mxu0
        %v1681 = vadd.f32 0.0, %v1680
        %v1682 = vpop.f32.mrf.mxu0
        %1683 = vmatprep.mubr.f32.mxu0 0.0
        %1684 = vmatmul.mubr.f32.gmra.mxu0 %v413
        %v1685 = vpop.f32.mrf.mxu0
        %v1686 = vadd.f32 0.0, %v1685
        %v1687 = vpop.f32.mrf.mxu0
        %1688 = vmatprep.mubr.f32.mxu0 0.0
        %1689 = vmatmul.mubr.f32.gmra.mxu0 %v416
        %v1690 = vpop.f32.mrf.mxu0
        %v1691 = vadd.f32 0.0, %v1690
        %v1692 = vpop.f32.mrf.mxu0
        %1693 = vmatprep.mubr.f32.mxu0 0.0
        %1694 = vmatmul.mubr.f32.gmra.mxu0 %v419
        %v1695 = vpop.f32.mrf.mxu0
        %v1696 = vadd.f32 0.0, %v1695
        %v1697 = vpop.f32.mrf.mxu0
        %1698 = vdwg.mxu0
        %s1699 = scalar_select %p1584, 1, 0
        %v1700 = vstv %s1699
        %vm1701 = vcmp.eq.s32.totalorder %v1700, 1
        %v1702 = vsel %vm1701, %v1676, 0.0
        %v1703 = vsel %vm1701, %v1681, 0.0
        %v1704 = vsel %vm1701, %v1686, 0.0
        %v1705 = vsel %vm1701, %v1691, 0.0
        %v1706 = vsel %vm1701, %v1696, 0.0
        %1707 = vst.msk [vmem:[#allocation2 + $0x168] sm:$0xff] %vm519, %v1702
        %1708 = vst.msk [vmem:[#allocation2 + $0x170] sm:$0xff] %vm519, %v1703
        %1709 = vst.msk [vmem:[#allocation2 + $0x178] sm:$0xff] %vm519, %v1704
        %1710 = vst.msk [vmem:[#allocation2 + $0x180] sm:$0xff] %vm519, %v1705
        %1711 = vst.msk [vmem:[#allocation2 + $0x188] sm:$0xff] %vm519, %v1706
        %s1712 = sadd.s32 %s370, 9
        %p1713 = scmp.ge.s32.totalorder %s1712, 0
        %p1714 = scmp.lt.s32.totalorder %s1712, 32
        %p1715 = pnand %p1713, %p1714
        %p1716 = pneg %p1715
        %p1717 = scmp.gt.s32.totalorder %s1712, 0
        %s1718 = scalar_select %p1717, %s1712, 0
        %p1719 = scmp.lt.s32.totalorder %s1718, 31
        %s1720 = scalar_select %p1719, %s1718, 31
        %s1721 = sld [smem:[#allocation3 + %s1720]]
        %s1722 = sld [smem:[#allocation5 + %s1720]]
        %s1723 = sld [smem:[#allocation7 + %s1720]]
        %s1724 = smul.u32 %s1721, 16
        %s1725 = scalar_lea.vmem %s358, %s1724
        %v1726 = vld [vmem:[%s1725] sm:$0xff]
        %v1727 = vld [vmem:[%s1725 + $0x8] sm:$0xff]
        %v1728 = vstv %s1723
        %v1729 = vmul.f32 %v1728, %v1726
        %v1730 = vmul.f32 %v1728, %v1727
        %s1731 = ssub.f32 1.0, %s1723
        %s1732 = smul.u32 %s1722, 16
        %s1733 = scalar_lea.vmem %s358, %s1732
        %v1734 = vld [vmem:[%s1733] sm:$0xff]
        %v1735 = vld [vmem:[%s1733 + $0x8] sm:$0xff]
        %v1736 = vstv %s1731
        %v1737 = vmul.f32 %v1736, %v1734
        %v1738 = vmul.f32 %v1736, %v1735
        %v1739 = vadd.f32 %v1729, %v1737
        %v1740 = vadd.f32 %v1730, %v1738
        %1741 = vmatprep.subr.mxu0 0.0
        %1742 = vmatpush1.msra.mxu0 0.0
        %1743 = vmatprep.subr.mxu0 0.0
        %1744 = vmatpush1.msra.mxu0 0.0
        %1745 = vmatprep.subr.mxu0 0.0
        %1746 = vmatpush1.msra.mxu0 0.0
        %1747 = vmatprep.subr.mxu0 0.0
        %1748 = vmatpush1.msra.mxu0 0.0
        %1749 = vmatprep.subr.mxu0 0.0
        %1750 = vmatpush1.msra.mxu0 0.0
        %1751 = vmatprep.subr.mxu0 0.0
        %1752 = vmatpush1.msra.mxu0 0.0
        %1753 = vmatprep.subr.mxu0 0.0
        %1754 = vmatpush1.msra.mxu0 0.0
        %1755 = vmatprep.subr.mxu0 0.0
        %1756 = vmatpush1.msra.mxu0 0.0
        %1757 = vmatprep.subr.mxu0 0.0
        %1758 = vmatpush1.msra.mxu0 0.0
        %1759 = vmatprep.subr.mxu0 0.0
        %1760 = vmatpush1.msra.mxu0 0.0
        %1761 = vmatprep.subr.mxu0 0.0
        %1762 = vmatpush1.msra.mxu0 0.0
        %1763 = vmatprep.subr.mxu0 0.0
        %1764 = vmatpush1.msra.mxu0 0.0
        %1765 = vmatprep.subr.mxu0 0.0
        %1766 = vmatpush1.msra.mxu0 0.0
        %1767 = vmatprep.subr.mxu0 0.0
        %1768 = vmatpush1.msra.mxu0 0.0
        %1769 = vmatprep.subr.mxu0 0.0
        %1770 = vmatpush1.msra.mxu0 %v1740
        %1771 = vmatprep.subr.mxu0 0.0
        %1772 = vmatpush1.msra.mxu0 %v1739
        %1773 = vmatprep.subr.mxu0 0.0
        %1774 = vmatpush2.msra.mxu0 0.0
        %1775 = vmatprep.subr.mxu0 0.0
        %1776 = vmatpush2.msra.mxu0 0.0
        %1777 = vmatprep.subr.mxu0 0.0
        %1778 = vmatpush2.msra.mxu0 0.0
        %1779 = vmatprep.subr.mxu0 0.0
        %1780 = vmatpush2.msra.mxu0 0.0
        %1781 = vmatprep.subr.mxu0 0.0
        %1782 = vmatpush2.msra.mxu0 0.0
        %1783 = vmatprep.subr.mxu0 0.0
        %1784 = vmatpush2.msra.mxu0 0.0
        %1785 = vmatprep.subr.mxu0 0.0
        %1786 = vmatpush2.msra.mxu0 0.0
        %1787 = vmatprep.subr.mxu0 0.0
        %1788 = vmatpush2.msra.mxu0 0.0
        %1789 = vmatprep.subr.mxu0 0.0
        %1790 = vmatpush2.msra.mxu0 0.0
        %1791 = vmatprep.subr.mxu0 0.0
        %1792 = vmatpush2.msra.mxu0 0.0
        %1793 = vmatprep.subr.mxu0 0.0
        %1794 = vmatpush2.msra.mxu0 0.0
        %1795 = vmatprep.subr.mxu0 0.0
        %1796 = vmatpush2.msra.mxu0 0.0
        %1797 = vmatprep.subr.mxu0 0.0
        %1798 = vmatpush2.msra.mxu0 0.0
        %1799 = vmatprep.subr.mxu0 0.0
        %1800 = vmatpush2.msra.mxu0 0.0
        %1801 = vmatprep.subr.mxu0 0.0
        %1802 = vmatpush2.msra.mxu0 0.0
        %1803 = vmatprep.subr.mxu0 0.0
        %1804 = vmatpush2.msra.mxu0 0.0
        %1805 = vmatprep.mubr.f32.mxu0 0.0
        %1806 = vmatmul.mubr.f32.gmra.mxu0 %v407
        %v1807 = vpop.f32.mrf.mxu0
        %v1808 = vadd.f32 0.0, %v1807
        %v1809 = vpop.f32.mrf.mxu0
        %1810 = vmatprep.mubr.f32.mxu0 0.0
        %1811 = vmatmul.mubr.f32.gmra.mxu0 %v410
        %v1812 = vpop.f32.mrf.mxu0
        %v1813 = vadd.f32 0.0, %v1812
        %v1814 = vpop.f32.mrf.mxu0
        %1815 = vmatprep.mubr.f32.mxu0 0.0
        %1816 = vmatmul.mubr.f32.gmra.mxu0 %v413
        %v1817 = vpop.f32.mrf.mxu0
        %v1818 = vadd.f32 0.0, %v1817
        %v1819 = vpop.f32.mrf.mxu0
        %1820 = vmatprep.mubr.f32.mxu0 0.0
        %1821 = vmatmul.mubr.f32.gmra.mxu0 %v416
        %v1822 = vpop.f32.mrf.mxu0
        %v1823 = vadd.f32 0.0, %v1822
        %v1824 = vpop.f32.mrf.mxu0
        %1825 = vmatprep.mubr.f32.mxu0 0.0
        %1826 = vmatmul.mubr.f32.gmra.mxu0 %v419
        %v1827 = vpop.f32.mrf.mxu0
        %v1828 = vadd.f32 0.0, %v1827
        %v1829 = vpop.f32.mrf.mxu0
        %1830 = vdwg.mxu0
        %s1831 = scalar_select %p1716, 1, 0
        %v1832 = vstv %s1831
        %vm1833 = vcmp.eq.s32.totalorder %v1832, 1
        %v1834 = vsel %vm1833, %v1808, 0.0
        %v1835 = vsel %vm1833, %v1813, 0.0
        %v1836 = vsel %vm1833, %v1818, 0.0
        %v1837 = vsel %vm1833, %v1823, 0.0
        %v1838 = vsel %vm1833, %v1828, 0.0
        %1839 = vst.msk [vmem:[#allocation2 + $0x190] sm:$0xff] %vm519, %v1834
        %1840 = vst.msk [vmem:[#allocation2 + $0x198] sm:$0xff] %vm519, %v1835
        %1841 = vst.msk [vmem:[#allocation2 + $0x1a0] sm:$0xff] %vm519, %v1836
        %1842 = vst.msk [vmem:[#allocation2 + $0x1a8] sm:$0xff] %vm519, %v1837
        %1843 = vst.msk [vmem:[#allocation2 + $0x1b0] sm:$0xff] %vm519, %v1838
        %s1844 = sadd.s32 %s370, 10
        %p1845 = scmp.ge.s32.totalorder %s1844, 0
        %p1846 = scmp.lt.s32.totalorder %s1844, 32
        %p1847 = pnand %p1845, %p1846
        %p1848 = pneg %p1847
        %p1849 = scmp.gt.s32.totalorder %s1844, 0
        %s1850 = scalar_select %p1849, %s1844, 0
        %p1851 = scmp.lt.s32.totalorder %s1850, 31
        %s1852 = scalar_select %p1851, %s1850, 31
        %s1853 = sld [smem:[#allocation3 + %s1852]]
        %s1854 = sld [smem:[#allocation5 + %s1852]]
        %s1855 = sld [smem:[#allocation7 + %s1852]]
        %s1856 = smul.u32 %s1853, 16
        %s1857 = scalar_lea.vmem %s358, %s1856
        %v1858 = vld [vmem:[%s1857] sm:$0xff]
        %v1859 = vld [vmem:[%s1857 + $0x8] sm:$0xff]
        %v1860 = vstv %s1855
        %v1861 = vmul.f32 %v1860, %v1858
        %v1862 = vmul.f32 %v1860, %v1859
        %s1863 = ssub.f32 1.0, %s1855
        %s1864 = smul.u32 %s1854, 16
        %s1865 = scalar_lea.vmem %s358, %s1864
        %v1866 = vld [vmem:[%s1865] sm:$0xff]
        %v1867 = vld [vmem:[%s1865 + $0x8] sm:$0xff]
        %v1868 = vstv %s1863
        %v1869 = vmul.f32 %v1868, %v1866
        %v1870 = vmul.f32 %v1868, %v1867
        %v1871 = vadd.f32 %v1861, %v1869
        %v1872 = vadd.f32 %v1862, %v1870
        %1873 = vmatprep.subr.mxu0 0.0
        %1874 = vmatpush1.msra.mxu0 0.0
        %1875 = vmatprep.subr.mxu0 0.0
        %1876 = vmatpush1.msra.mxu0 0.0
        %1877 = vmatprep.subr.mxu0 0.0
        %1878 = vmatpush1.msra.mxu0 0.0
        %1879 = vmatprep.subr.mxu0 0.0
        %1880 = vmatpush1.msra.mxu0 0.0
        %1881 = vmatprep.subr.mxu0 0.0
        %1882 = vmatpush1.msra.mxu0 0.0
        %1883 = vmatprep.subr.mxu0 0.0
        %1884 = vmatpush1.msra.mxu0 0.0
        %1885 = vmatprep.subr.mxu0 0.0
        %1886 = vmatpush1.msra.mxu0 0.0
        %1887 = vmatprep.subr.mxu0 0.0
        %1888 = vmatpush1.msra.mxu0 0.0
        %1889 = vmatprep.subr.mxu0 0.0
        %1890 = vmatpush1.msra.mxu0 0.0
        %1891 = vmatprep.subr.mxu0 0.0
        %1892 = vmatpush1.msra.mxu0 0.0
        %1893 = vmatprep.subr.mxu0 0.0
        %1894 = vmatpush1.msra.mxu0 0.0
        %1895 = vmatprep.subr.mxu0 0.0
        %1896 = vmatpush1.msra.mxu0 0.0
        %1897 = vmatprep.subr.mxu0 0.0
        %1898 = vmatpush1.msra.mxu0 0.0
        %1899 = vmatprep.subr.mxu0 0.0
        %1900 = vmatpush1.msra.mxu0 0.0
        %1901 = vmatprep.subr.mxu0 0.0
        %1902 = vmatpush1.msra.mxu0 %v1872
        %1903 = vmatprep.subr.mxu0 0.0
        %1904 = vmatpush1.msra.mxu0 %v1871
        %1905 = vmatprep.subr.mxu0 0.0
        %1906 = vmatpush2.msra.mxu0 0.0
        %1907 = vmatprep.subr.mxu0 0.0
        %1908 = vmatpush2.msra.mxu0 0.0
        %1909 = vmatprep.subr.mxu0 0.0
        %1910 = vmatpush2.msra.mxu0 0.0
        %1911 = vmatprep.subr.mxu0 0.0
        %1912 = vmatpush2.msra.mxu0 0.0
        %1913 = vmatprep.subr.mxu0 0.0
        %1914 = vmatpush2.msra.mxu0 0.0
        %1915 = vmatprep.subr.mxu0 0.0
        %1916 = vmatpush2.msra.mxu0 0.0
        %1917 = vmatprep.subr.mxu0 0.0
        %1918 = vmatpush2.msra.mxu0 0.0
        %1919 = vmatprep.subr.mxu0 0.0
        %1920 = vmatpush2.msra.mxu0 0.0
        %1921 = vmatprep.subr.mxu0 0.0
        %1922 = vmatpush2.msra.mxu0 0.0
        %1923 = vmatprep.subr.mxu0 0.0
        %1924 = vmatpush2.msra.mxu0 0.0
        %1925 = vmatprep.subr.mxu0 0.0
        %1926 = vmatpush2.msra.mxu0 0.0
        %1927 = vmatprep.subr.mxu0 0.0
        %1928 = vmatpush2.msra.mxu0 0.0
        %1929 = vmatprep.subr.mxu0 0.0
        %1930 = vmatpush2.msra.mxu0 0.0
        %1931 = vmatprep.subr.mxu0 0.0
        %1932 = vmatpush2.msra.mxu0 0.0
        %1933 = vmatprep.subr.mxu0 0.0
        %1934 = vmatpush2.msra.mxu0 0.0
        %1935 = vmatprep.subr.mxu0 0.0
        %1936 = vmatpush2.msra.mxu0 0.0
        %1937 = vmatprep.mubr.f32.mxu0 0.0
        %1938 = vmatmul.mubr.f32.gmra.mxu0 %v407
        %v1939 = vpop.f32.mrf.mxu0
        %v1940 = vadd.f32 0.0, %v1939
        %v1941 = vpop.f32.mrf.mxu0
        %1942 = vmatprep.mubr.f32.mxu0 0.0
        %1943 = vmatmul.mubr.f32.gmra.mxu0 %v410
        %v1944 = vpop.f32.mrf.mxu0
        %v1945 = vadd.f32 0.0, %v1944
        %v1946 = vpop.f32.mrf.mxu0
        %1947 = vmatprep.mubr.f32.mxu0 0.0
        %1948 = vmatmul.mubr.f32.gmra.mxu0 %v413
        %v1949 = vpop.f32.mrf.mxu0
        %v1950 = vadd.f32 0.0, %v1949
        %v1951 = vpop.f32.mrf.mxu0
        %1952 = vmatprep.mubr.f32.mxu0 0.0
        %1953 = vmatmul.mubr.f32.gmra.mxu0 %v416
        %v1954 = vpop.f32.mrf.mxu0
        %v1955 = vadd.f32 0.0, %v1954
        %v1956 = vpop.f32.mrf.mxu0
        %1957 = vmatprep.mubr.f32.mxu0 0.0
        %1958 = vmatmul.mubr.f32.gmra.mxu0 %v419
        %v1959 = vpop.f32.mrf.mxu0
        %v1960 = vadd.f32 0.0, %v1959
        %v1961 = vpop.f32.mrf.mxu0
        %1962 = vdwg.mxu0
        %s1963 = scalar_select %p1848, 1, 0
        %v1964 = vstv %s1963
        %vm1965 = vcmp.eq.s32.totalorder %v1964, 1
        %v1966 = vsel %vm1965, %v1940, 0.0
        %v1967 = vsel %vm1965, %v1945, 0.0
        %v1968 = vsel %vm1965, %v1950, 0.0
        %v1969 = vsel %vm1965, %v1955, 0.0
        %v1970 = vsel %vm1965, %v1960, 0.0
        %1971 = vst.msk [vmem:[#allocation2 + $0x1b8] sm:$0xff] %vm519, %v1966
        %1972 = vst.msk [vmem:[#allocation2 + $0x1c0] sm:$0xff] %vm519, %v1967
        %1973 = vst.msk [vmem:[#allocation2 + $0x1c8] sm:$0xff] %vm519, %v1968
        %1974 = vst.msk [vmem:[#allocation2 + $0x1d0] sm:$0xff] %vm519, %v1969
        %1975 = vst.msk [vmem:[#allocation2 + $0x1d8] sm:$0xff] %vm519, %v1970
        %s1976 = sadd.s32 %s370, 11
        %p1977 = scmp.ge.s32.totalorder %s1976, 0
        %p1978 = scmp.lt.s32.totalorder %s1976, 32
        %p1979 = pnand %p1977, %p1978
        %p1980 = pneg %p1979
        %p1981 = scmp.gt.s32.totalorder %s1976, 0
        %s1982 = scalar_select %p1981, %s1976, 0
        %p1983 = scmp.lt.s32.totalorder %s1982, 31
        %s1984 = scalar_select %p1983, %s1982, 31
        %s1985 = sld [smem:[#allocation3 + %s1984]]
        %s1986 = sld [smem:[#allocation5 + %s1984]]
        %s1987 = sld [smem:[#allocation7 + %s1984]]
        %s1988 = smul.u32 %s1985, 16
        %s1989 = scalar_lea.vmem %s358, %s1988
        %v1990 = vld [vmem:[%s1989] sm:$0xff]
        %v1991 = vld [vmem:[%s1989 + $0x8] sm:$0xff]
        %v1992 = vstv %s1987
        %v1993 = vmul.f32 %v1992, %v1990
        %v1994 = vmul.f32 %v1992, %v1991
        %s1995 = ssub.f32 1.0, %s1987
        %s1996 = smul.u32 %s1986, 16
        %s1997 = scalar_lea.vmem %s358, %s1996
        %v1998 = vld [vmem:[%s1997] sm:$0xff]
        %v1999 = vld [vmem:[%s1997 + $0x8] sm:$0xff]
        %v2000 = vstv %s1995
        %v2001 = vmul.f32 %v2000, %v1998
        %v2002 = vmul.f32 %v2000, %v1999
        %v2003 = vadd.f32 %v1993, %v2001
        %v2004 = vadd.f32 %v1994, %v2002
        %2005 = vmatprep.subr.mxu0 0.0
        %2006 = vmatpush1.msra.mxu0 0.0
        %2007 = vmatprep.subr.mxu0 0.0
        %2008 = vmatpush1.msra.mxu0 0.0
        %2009 = vmatprep.subr.mxu0 0.0
        %2010 = vmatpush1.msra.mxu0 0.0
        %2011 = vmatprep.subr.mxu0 0.0
        %2012 = vmatpush1.msra.mxu0 0.0
        %2013 = vmatprep.subr.mxu0 0.0
        %2014 = vmatpush1.msra.mxu0 0.0
        %2015 = vmatprep.subr.mxu0 0.0
        %2016 = vmatpush1.msra.mxu0 0.0
        %2017 = vmatprep.subr.mxu0 0.0
        %2018 = vmatpush1.msra.mxu0 0.0
        %2019 = vmatprep.subr.mxu0 0.0
        %2020 = vmatpush1.msra.mxu0 0.0
        %2021 = vmatprep.subr.mxu0 0.0
        %2022 = vmatpush1.msra.mxu0 0.0
        %2023 = vmatprep.subr.mxu0 0.0
        %2024 = vmatpush1.msra.mxu0 0.0
        %2025 = vmatprep.subr.mxu0 0.0
        %2026 = vmatpush1.msra.mxu0 0.0
        %2027 = vmatprep.subr.mxu0 0.0
        %2028 = vmatpush1.msra.mxu0 0.0
        %2029 = vmatprep.subr.mxu0 0.0
        %2030 = vmatpush1.msra.mxu0 0.0
        %2031 = vmatprep.subr.mxu0 0.0
        %2032 = vmatpush1.msra.mxu0 0.0
        %2033 = vmatprep.subr.mxu0 0.0
        %2034 = vmatpush1.msra.mxu0 %v2004
        %2035 = vmatprep.subr.mxu0 0.0
        %2036 = vmatpush1.msra.mxu0 %v2003
        %2037 = vmatprep.subr.mxu0 0.0
        %2038 = vmatpush2.msra.mxu0 0.0
        %2039 = vmatprep.subr.mxu0 0.0
        %2040 = vmatpush2.msra.mxu0 0.0
        %2041 = vmatprep.subr.mxu0 0.0
        %2042 = vmatpush2.msra.mxu0 0.0
        %2043 = vmatprep.subr.mxu0 0.0
        %2044 = vmatpush2.msra.mxu0 0.0
        %2045 = vmatprep.subr.mxu0 0.0
        %2046 = vmatpush2.msra.mxu0 0.0
        %2047 = vmatprep.subr.mxu0 0.0
        %2048 = vmatpush2.msra.mxu0 0.0
        %2049 = vmatprep.subr.mxu0 0.0
        %2050 = vmatpush2.msra.mxu0 0.0
        %2051 = vmatprep.subr.mxu0 0.0
        %2052 = vmatpush2.msra.mxu0 0.0
        %2053 = vmatprep.subr.mxu0 0.0
        %2054 = vmatpush2.msra.mxu0 0.0
        %2055 = vmatprep.subr.mxu0 0.0
        %2056 = vmatpush2.msra.mxu0 0.0
        %2057 = vmatprep.subr.mxu0 0.0
        %2058 = vmatpush2.msra.mxu0 0.0
        %2059 = vmatprep.subr.mxu0 0.0
        %2060 = vmatpush2.msra.mxu0 0.0
        %2061 = vmatprep.subr.mxu0 0.0
        %2062 = vmatpush2.msra.mxu0 0.0
        %2063 = vmatprep.subr.mxu0 0.0
        %2064 = vmatpush2.msra.mxu0 0.0
        %2065 = vmatprep.subr.mxu0 0.0
        %2066 = vmatpush2.msra.mxu0 0.0
        %2067 = vmatprep.subr.mxu0 0.0
        %2068 = vmatpush2.msra.mxu0 0.0
        %2069 = vmatprep.mubr.f32.mxu0 0.0
        %2070 = vmatmul.mubr.f32.gmra.mxu0 %v407
        %v2071 = vpop.f32.mrf.mxu0
        %v2072 = vadd.f32 0.0, %v2071
        %v2073 = vpop.f32.mrf.mxu0
        %2074 = vmatprep.mubr.f32.mxu0 0.0
        %2075 = vmatmul.mubr.f32.gmra.mxu0 %v410
        %v2076 = vpop.f32.mrf.mxu0
        %v2077 = vadd.f32 0.0, %v2076
        %v2078 = vpop.f32.mrf.mxu0
        %2079 = vmatprep.mubr.f32.mxu0 0.0
        %2080 = vmatmul.mubr.f32.gmra.mxu0 %v413
        %v2081 = vpop.f32.mrf.mxu0
        %v2082 = vadd.f32 0.0, %v2081
        %v2083 = vpop.f32.mrf.mxu0
        %2084 = vmatprep.mubr.f32.mxu0 0.0
        %2085 = vmatmul.mubr.f32.gmra.mxu0 %v416
        %v2086 = vpop.f32.mrf.mxu0
        %v2087 = vadd.f32 0.0, %v2086
        %v2088 = vpop.f32.mrf.mxu0
        %2089 = vmatprep.mubr.f32.mxu0 0.0
        %2090 = vmatmul.mubr.f32.gmra.mxu0 %v419
        %v2091 = vpop.f32.mrf.mxu0
        %v2092 = vadd.f32 0.0, %v2091
        %v2093 = vpop.f32.mrf.mxu0
        %2094 = vdwg.mxu0
        %s2095 = scalar_select %p1980, 1, 0
        %v2096 = vstv %s2095
        %vm2097 = vcmp.eq.s32.totalorder %v2096, 1
        %v2098 = vsel %vm2097, %v2072, 0.0
        %v2099 = vsel %vm2097, %v2077, 0.0
        %v2100 = vsel %vm2097, %v2082, 0.0
        %v2101 = vsel %vm2097, %v2087, 0.0
        %v2102 = vsel %vm2097, %v2092, 0.0
        %2103 = vst.msk [vmem:[#allocation2 + $0x1e0] sm:$0xff] %vm519, %v2098
        %2104 = vst.msk [vmem:[#allocation2 + $0x1e8] sm:$0xff] %vm519, %v2099
        %2105 = vst.msk [vmem:[#allocation2 + $0x1f0] sm:$0xff] %vm519, %v2100
        %2106 = vst.msk [vmem:[#allocation2 + $0x1f8] sm:$0xff] %vm519, %v2101
        %2107 = vst.msk [vmem:[#allocation2 + $0x200] sm:$0xff] %vm519, %v2102
        %s2108 = sadd.s32 %s370, 12
        %p2109 = scmp.ge.s32.totalorder %s2108, 0
        %p2110 = scmp.lt.s32.totalorder %s2108, 32
        %p2111 = pnand %p2109, %p2110
        %p2112 = pneg %p2111
        %p2113 = scmp.gt.s32.totalorder %s2108, 0
        %s2114 = scalar_select %p2113, %s2108, 0
        %p2115 = scmp.lt.s32.totalorder %s2114, 31
        %s2116 = scalar_select %p2115, %s2114, 31
        %s2117 = sld [smem:[#allocation3 + %s2116]]
        %s2118 = sld [smem:[#allocation5 + %s2116]]
        %s2119 = sld [smem:[#allocation7 + %s2116]]
        %s2120 = smul.u32 %s2117, 16
        %s2121 = scalar_lea.vmem %s358, %s2120
        %v2122 = vld [vmem:[%s2121] sm:$0xff]
        %v2123 = vld [vmem:[%s2121 + $0x8] sm:$0xff]
        %v2124 = vstv %s2119
        %v2125 = vmul.f32 %v2124, %v2122
        %v2126 = vmul.f32 %v2124, %v2123
        %s2127 = ssub.f32 1.0, %s2119
        %s2128 = smul.u32 %s2118, 16
        %s2129 = scalar_lea.vmem %s358, %s2128
        %v2130 = vld [vmem:[%s2129] sm:$0xff]
        %v2131 = vld [vmem:[%s2129 + $0x8] sm:$0xff]
        %v2132 = vstv %s2127
        %v2133 = vmul.f32 %v2132, %v2130
        %v2134 = vmul.f32 %v2132, %v2131
        %v2135 = vadd.f32 %v2125, %v2133
        %v2136 = vadd.f32 %v2126, %v2134
        %2137 = vmatprep.subr.mxu0 0.0
        %2138 = vmatpush1.msra.mxu0 0.0
        %2139 = vmatprep.subr.mxu0 0.0
        %2140 = vmatpush1.msra.mxu0 0.0
        %2141 = vmatprep.subr.mxu0 0.0
        %2142 = vmatpush1.msra.mxu0 0.0
        %2143 = vmatprep.subr.mxu0 0.0
        %2144 = vmatpush1.msra.mxu0 0.0
        %2145 = vmatprep.subr.mxu0 0.0
        %2146 = vmatpush1.msra.mxu0 0.0
        %2147 = vmatprep.subr.mxu0 0.0
        %2148 = vmatpush1.msra.mxu0 0.0
        %2149 = vmatprep.subr.mxu0 0.0
        %2150 = vmatpush1.msra.mxu0 0.0
        %2151 = vmatprep.subr.mxu0 0.0
        %2152 = vmatpush1.msra.mxu0 0.0
        %2153 = vmatprep.subr.mxu0 0.0
        %2154 = vmatpush1.msra.mxu0 0.0
        %2155 = vmatprep.subr.mxu0 0.0
        %2156 = vmatpush1.msra.mxu0 0.0
        %2157 = vmatprep.subr.mxu0 0.0
        %2158 = vmatpush1.msra.mxu0 0.0
        %2159 = vmatprep.subr.mxu0 0.0
        %2160 = vmatpush1.msra.mxu0 0.0
        %2161 = vmatprep.subr.mxu0 0.0
        %2162 = vmatpush1.msra.mxu0 0.0
        %2163 = vmatprep.subr.mxu0 0.0
        %2164 = vmatpush1.msra.mxu0 0.0
        %2165 = vmatprep.subr.mxu0 0.0
        %2166 = vmatpush1.msra.mxu0 %v2136
        %2167 = vmatprep.subr.mxu0 0.0
        %2168 = vmatpush1.msra.mxu0 %v2135
        %2169 = vmatprep.subr.mxu0 0.0
        %2170 = vmatpush2.msra.mxu0 0.0
        %2171 = vmatprep.subr.mxu0 0.0
        %2172 = vmatpush2.msra.mxu0 0.0
        %2173 = vmatprep.subr.mxu0 0.0
        %2174 = vmatpush2.msra.mxu0 0.0
        %2175 = vmatprep.subr.mxu0 0.0
        %2176 = vmatpush2.msra.mxu0 0.0
        %2177 = vmatprep.subr.mxu0 0.0
        %2178 = vmatpush2.msra.mxu0 0.0
        %2179 = vmatprep.subr.mxu0 0.0
        %2180 = vmatpush2.msra.mxu0 0.0
        %2181 = vmatprep.subr.mxu0 0.0
        %2182 = vmatpush2.msra.mxu0 0.0
        %2183 = vmatprep.subr.mxu0 0.0
        %2184 = vmatpush2.msra.mxu0 0.0
        %2185 = vmatprep.subr.mxu0 0.0
        %2186 = vmatpush2.msra.mxu0 0.0
        %2187 = vmatprep.subr.mxu0 0.0
        %2188 = vmatpush2.msra.mxu0 0.0
        %2189 = vmatprep.subr.mxu0 0.0
        %2190 = vmatpush2.msra.mxu0 0.0
        %2191 = vmatprep.subr.mxu0 0.0
        %2192 = vmatpush2.msra.mxu0 0.0
        %2193 = vmatprep.subr.mxu0 0.0
        %2194 = vmatpush2.msra.mxu0 0.0
        %2195 = vmatprep.subr.mxu0 0.0
        %2196 = vmatpush2.msra.mxu0 0.0
        %2197 = vmatprep.subr.mxu0 0.0
        %2198 = vmatpush2.msra.mxu0 0.0
        %2199 = vmatprep.subr.mxu0 0.0
        %2200 = vmatpush2.msra.mxu0 0.0
        %2201 = vmatprep.mubr.f32.mxu0 0.0
        %2202 = vmatmul.mubr.f32.gmra.mxu0 %v407
        %v2203 = vpop.f32.mrf.mxu0
        %v2204 = vadd.f32 0.0, %v2203
        %v2205 = vpop.f32.mrf.mxu0
        %2206 = vmatprep.mubr.f32.mxu0 0.0
        %2207 = vmatmul.mubr.f32.gmra.mxu0 %v410
        %v2208 = vpop.f32.mrf.mxu0
        %v2209 = vadd.f32 0.0, %v2208
        %v2210 = vpop.f32.mrf.mxu0
        %2211 = vmatprep.mubr.f32.mxu0 0.0
        %2212 = vmatmul.mubr.f32.gmra.mxu0 %v413
        %v2213 = vpop.f32.mrf.mxu0
        %v2214 = vadd.f32 0.0, %v2213
        %v2215 = vpop.f32.mrf.mxu0
        %2216 = vmatprep.mubr.f32.mxu0 0.0
        %2217 = vmatmul.mubr.f32.gmra.mxu0 %v416
        %v2218 = vpop.f32.mrf.mxu0
        %v2219 = vadd.f32 0.0, %v2218
        %v2220 = vpop.f32.mrf.mxu0
        %2221 = vmatprep.mubr.f32.mxu0 0.0
        %2222 = vmatmul.mubr.f32.gmra.mxu0 %v419
        %v2223 = vpop.f32.mrf.mxu0
        %v2224 = vadd.f32 0.0, %v2223
        %v2225 = vpop.f32.mrf.mxu0
        %2226 = vdwg.mxu0
        %s2227 = scalar_select %p2112, 1, 0
        %v2228 = vstv %s2227
        %vm2229 = vcmp.eq.s32.totalorder %v2228, 1
        %v2230 = vsel %vm2229, %v2204, 0.0
        %v2231 = vsel %vm2229, %v2209, 0.0
        %v2232 = vsel %vm2229, %v2214, 0.0
        %v2233 = vsel %vm2229, %v2219, 0.0
        %v2234 = vsel %vm2229, %v2224, 0.0
        %2235 = vst.msk [vmem:[#allocation2 + $0x208] sm:$0xff] %vm519, %v2230
        %2236 = vst.msk [vmem:[#allocation2 + $0x210] sm:$0xff] %vm519, %v2231
        %2237 = vst.msk [vmem:[#allocation2 + $0x218] sm:$0xff] %vm519, %v2232
        %2238 = vst.msk [vmem:[#allocation2 + $0x220] sm:$0xff] %vm519, %v2233
        %2239 = vst.msk [vmem:[#allocation2 + $0x228] sm:$0xff] %vm519, %v2234
        %s2240 = sadd.s32 %s370, 13
        %p2241 = scmp.ge.s32.totalorder %s2240, 0
        %p2242 = scmp.lt.s32.totalorder %s2240, 32
        %p2243 = pnand %p2241, %p2242
        %p2244 = pneg %p2243
        %p2245 = scmp.gt.s32.totalorder %s2240, 0
        %s2246 = scalar_select %p2245, %s2240, 0
        %p2247 = scmp.lt.s32.totalorder %s2246, 31
        %s2248 = scalar_select %p2247, %s2246, 31
        %s2249 = sld [smem:[#allocation3 + %s2248]]
        %s2250 = sld [smem:[#allocation5 + %s2248]]
        %s2251 = sld [smem:[#allocation7 + %s2248]]
        %s2252 = smul.u32 %s2249, 16
        %s2253 = scalar_lea.vmem %s358, %s2252
        %v2254 = vld [vmem:[%s2253] sm:$0xff]
        %v2255 = vld [vmem:[%s2253 + $0x8] sm:$0xff]
        %v2256 = vstv %s2251
        %v2257 = vmul.f32 %v2256, %v2254
        %v2258 = vmul.f32 %v2256, %v2255
        %s2259 = ssub.f32 1.0, %s2251
        %s2260 = smul.u32 %s2250, 16
        %s2261 = scalar_lea.vmem %s358, %s2260
        %v2262 = vld [vmem:[%s2261] sm:$0xff]
        %v2263 = vld [vmem:[%s2261 + $0x8] sm:$0xff]
        %v2264 = vstv %s2259
        %v2265 = vmul.f32 %v2264, %v2262
        %v2266 = vmul.f32 %v2264, %v2263
        %v2267 = vadd.f32 %v2257, %v2265
        %v2268 = vadd.f32 %v2258, %v2266
        %2269 = vmatprep.subr.mxu0 0.0
        %2270 = vmatpush1.msra.mxu0 0.0
        %2271 = vmatprep.subr.mxu0 0.0
        %2272 = vmatpush1.msra.mxu0 0.0
        %2273 = vmatprep.subr.mxu0 0.0
        %2274 = vmatpush1.msra.mxu0 0.0
        %2275 = vmatprep.subr.mxu0 0.0
        %2276 = vmatpush1.msra.mxu0 0.0
        %2277 = vmatprep.subr.mxu0 0.0
        %2278 = vmatpush1.msra.mxu0 0.0
        %2279 = vmatprep.subr.mxu0 0.0
        %2280 = vmatpush1.msra.mxu0 0.0
        %2281 = vmatprep.subr.mxu0 0.0
        %2282 = vmatpush1.msra.mxu0 0.0
        %2283 = vmatprep.subr.mxu0 0.0
        %2284 = vmatpush1.msra.mxu0 0.0
        %2285 = vmatprep.subr.mxu0 0.0
        %2286 = vmatpush1.msra.mxu0 0.0
        %2287 = vmatprep.subr.mxu0 0.0
        %2288 = vmatpush1.msra.mxu0 0.0
        %2289 = vmatprep.subr.mxu0 0.0
        %2290 = vmatpush1.msra.mxu0 0.0
        %2291 = vmatprep.subr.mxu0 0.0
        %2292 = vmatpush1.msra.mxu0 0.0
        %2293 = vmatprep.subr.mxu0 0.0
        %2294 = vmatpush1.msra.mxu0 0.0
        %2295 = vmatprep.subr.mxu0 0.0
        %2296 = vmatpush1.msra.mxu0 0.0
        %2297 = vmatprep.subr.mxu0 0.0
        %2298 = vmatpush1.msra.mxu0 %v2268
        %2299 = vmatprep.subr.mxu0 0.0
        %2300 = vmatpush1.msra.mxu0 %v2267
        %2301 = vmatprep.subr.mxu0 0.0
        %2302 = vmatpush2.msra.mxu0 0.0
        %2303 = vmatprep.subr.mxu0 0.0
        %2304 = vmatpush2.msra.mxu0 0.0
        %2305 = vmatprep.subr.mxu0 0.0
        %2306 = vmatpush2.msra.mxu0 0.0
        %2307 = vmatprep.subr.mxu0 0.0
        %2308 = vmatpush2.msra.mxu0 0.0
        %2309 = vmatprep.subr.mxu0 0.0
        %2310 = vmatpush2.msra.mxu0 0.0
        %2311 = vmatprep.subr.mxu0 0.0
        %2312 = vmatpush2.msra.mxu0 0.0
        %2313 = vmatprep.subr.mxu0 0.0
        %2314 = vmatpush2.msra.mxu0 0.0
        %2315 = vmatprep.subr.mxu0 0.0
        %2316 = vmatpush2.msra.mxu0 0.0
        %2317 = vmatprep.subr.mxu0 0.0
        %2318 = vmatpush2.msra.mxu0 0.0
        %2319 = vmatprep.subr.mxu0 0.0
        %2320 = vmatpush2.msra.mxu0 0.0
        %2321 = vmatprep.subr.mxu0 0.0
        %2322 = vmatpush2.msra.mxu0 0.0
        %2323 = vmatprep.subr.mxu0 0.0
        %2324 = vmatpush2.msra.mxu0 0.0
        %2325 = vmatprep.subr.mxu0 0.0
        %2326 = vmatpush2.msra.mxu0 0.0
        %2327 = vmatprep.subr.mxu0 0.0
        %2328 = vmatpush2.msra.mxu0 0.0
        %2329 = vmatprep.subr.mxu0 0.0
        %2330 = vmatpush2.msra.mxu0 0.0
        %2331 = vmatprep.subr.mxu0 0.0
        %2332 = vmatpush2.msra.mxu0 0.0
        %2333 = vmatprep.mubr.f32.mxu0 0.0
        %2334 = vmatmul.mubr.f32.gmra.mxu0 %v407
        %v2335 = vpop.f32.mrf.mxu0
        %v2336 = vadd.f32 0.0, %v2335
        %v2337 = vpop.f32.mrf.mxu0
        %2338 = vmatprep.mubr.f32.mxu0 0.0
        %2339 = vmatmul.mubr.f32.gmra.mxu0 %v410
        %v2340 = vpop.f32.mrf.mxu0
        %v2341 = vadd.f32 0.0, %v2340
        %v2342 = vpop.f32.mrf.mxu0
        %2343 = vmatprep.mubr.f32.mxu0 0.0
        %2344 = vmatmul.mubr.f32.gmra.mxu0 %v413
        %v2345 = vpop.f32.mrf.mxu0
        %v2346 = vadd.f32 0.0, %v2345
        %v2347 = vpop.f32.mrf.mxu0
        %2348 = vmatprep.mubr.f32.mxu0 0.0
        %2349 = vmatmul.mubr.f32.gmra.mxu0 %v416
        %v2350 = vpop.f32.mrf.mxu0
        %v2351 = vadd.f32 0.0, %v2350
        %v2352 = vpop.f32.mrf.mxu0
        %2353 = vmatprep.mubr.f32.mxu0 0.0
        %2354 = vmatmul.mubr.f32.gmra.mxu0 %v419
        %v2355 = vpop.f32.mrf.mxu0
        %v2356 = vadd.f32 0.0, %v2355
        %v2357 = vpop.f32.mrf.mxu0
        %2358 = vdwg.mxu0
        %s2359 = scalar_select %p2244, 1, 0
        %v2360 = vstv %s2359
        %vm2361 = vcmp.eq.s32.totalorder %v2360, 1
        %v2362 = vsel %vm2361, %v2336, 0.0
        %v2363 = vsel %vm2361, %v2341, 0.0
        %v2364 = vsel %vm2361, %v2346, 0.0
        %v2365 = vsel %vm2361, %v2351, 0.0
        %v2366 = vsel %vm2361, %v2356, 0.0
        %2367 = vst.msk [vmem:[#allocation2 + $0x230] sm:$0xff] %vm519, %v2362
        %2368 = vst.msk [vmem:[#allocation2 + $0x238] sm:$0xff] %vm519, %v2363
        %2369 = vst.msk [vmem:[#allocation2 + $0x240] sm:$0xff] %vm519, %v2364
        %2370 = vst.msk [vmem:[#allocation2 + $0x248] sm:$0xff] %vm519, %v2365
        %2371 = vst.msk [vmem:[#allocation2 + $0x250] sm:$0xff] %vm519, %v2366
        %s2372 = sadd.s32 %s370, 14
        %p2373 = scmp.ge.s32.totalorder %s2372, 0
        %p2374 = scmp.lt.s32.totalorder %s2372, 32
        %p2375 = pnand %p2373, %p2374
        %p2376 = pneg %p2375
        %p2377 = scmp.gt.s32.totalorder %s2372, 0
        %s2378 = scalar_select %p2377, %s2372, 0
        %p2379 = scmp.lt.s32.totalorder %s2378, 31
        %s2380 = scalar_select %p2379, %s2378, 31
        %s2381 = sld [smem:[#allocation3 + %s2380]]
        %s2382 = sld [smem:[#allocation5 + %s2380]]
        %s2383 = sld [smem:[#allocation7 + %s2380]]
        %s2384 = smul.u32 %s2381, 16
        %s2385 = scalar_lea.vmem %s358, %s2384
        %v2386 = vld [vmem:[%s2385] sm:$0xff]
        %v2387 = vld [vmem:[%s2385 + $0x8] sm:$0xff]
        %v2388 = vstv %s2383
        %v2389 = vmul.f32 %v2388, %v2386
        %v2390 = vmul.f32 %v2388, %v2387
        %s2391 = ssub.f32 1.0, %s2383
        %s2392 = smul.u32 %s2382, 16
        %s2393 = scalar_lea.vmem %s358, %s2392
        %v2394 = vld [vmem:[%s2393] sm:$0xff]
        %v2395 = vld [vmem:[%s2393 + $0x8] sm:$0xff]
        %v2396 = vstv %s2391
        %v2397 = vmul.f32 %v2396, %v2394
        %v2398 = vmul.f32 %v2396, %v2395
        %v2399 = vadd.f32 %v2389, %v2397
        %v2400 = vadd.f32 %v2390, %v2398
        %2401 = vmatprep.subr.mxu0 0.0
        %2402 = vmatpush1.msra.mxu0 0.0
        %2403 = vmatprep.subr.mxu0 0.0
        %2404 = vmatpush1.msra.mxu0 0.0
        %2405 = vmatprep.subr.mxu0 0.0
        %2406 = vmatpush1.msra.mxu0 0.0
        %2407 = vmatprep.subr.mxu0 0.0
        %2408 = vmatpush1.msra.mxu0 0.0
        %2409 = vmatprep.subr.mxu0 0.0
        %2410 = vmatpush1.msra.mxu0 0.0
        %2411 = vmatprep.subr.mxu0 0.0
        %2412 = vmatpush1.msra.mxu0 0.0
        %2413 = vmatprep.subr.mxu0 0.0
        %2414 = vmatpush1.msra.mxu0 0.0
        %2415 = vmatprep.subr.mxu0 0.0
        %2416 = vmatpush1.msra.mxu0 0.0
        %2417 = vmatprep.subr.mxu0 0.0
        %2418 = vmatpush1.msra.mxu0 0.0
        %2419 = vmatprep.subr.mxu0 0.0
        %2420 = vmatpush1.msra.mxu0 0.0
        %2421 = vmatprep.subr.mxu0 0.0
        %2422 = vmatpush1.msra.mxu0 0.0
        %2423 = vmatprep.subr.mxu0 0.0
        %2424 = vmatpush1.msra.mxu0 0.0
        %2425 = vmatprep.subr.mxu0 0.0
        %2426 = vmatpush1.msra.mxu0 0.0
        %2427 = vmatprep.subr.mxu0 0.0
        %2428 = vmatpush1.msra.mxu0 0.0
        %2429 = vmatprep.subr.mxu0 0.0
        %2430 = vmatpush1.msra.mxu0 %v2400
        %2431 = vmatprep.subr.mxu0 0.0
        %2432 = vmatpush1.msra.mxu0 %v2399
        %2433 = vmatprep.subr.mxu0 0.0
        %2434 = vmatpush2.msra.mxu0 0.0
        %2435 = vmatprep.subr.mxu0 0.0
        %2436 = vmatpush2.msra.mxu0 0.0
        %2437 = vmatprep.subr.mxu0 0.0
        %2438 = vmatpush2.msra.mxu0 0.0
        %2439 = vmatprep.subr.mxu0 0.0
        %2440 = vmatpush2.msra.mxu0 0.0
        %2441 = vmatprep.subr.mxu0 0.0
        %2442 = vmatpush2.msra.mxu0 0.0
        %2443 = vmatprep.subr.mxu0 0.0
        %2444 = vmatpush2.msra.mxu0 0.0
        %2445 = vmatprep.subr.mxu0 0.0
        %2446 = vmatpush2.msra.mxu0 0.0
        %2447 = vmatprep.subr.mxu0 0.0
        %2448 = vmatpush2.msra.mxu0 0.0
        %2449 = vmatprep.subr.mxu0 0.0
        %2450 = vmatpush2.msra.mxu0 0.0
        %2451 = vmatprep.subr.mxu0 0.0
        %2452 = vmatpush2.msra.mxu0 0.0
        %2453 = vmatprep.subr.mxu0 0.0
        %2454 = vmatpush2.msra.mxu0 0.0
        %2455 = vmatprep.subr.mxu0 0.0
        %2456 = vmatpush2.msra.mxu0 0.0
        %2457 = vmatprep.subr.mxu0 0.0
        %2458 = vmatpush2.msra.mxu0 0.0
        %2459 = vmatprep.subr.mxu0 0.0
        %2460 = vmatpush2.msra.mxu0 0.0
        %2461 = vmatprep.subr.mxu0 0.0
        %2462 = vmatpush2.msra.mxu0 0.0
        %2463 = vmatprep.subr.mxu0 0.0
        %2464 = vmatpush2.msra.mxu0 0.0
        %2465 = vmatprep.mubr.f32.mxu0 0.0
        %2466 = vmatmul.mubr.f32.gmra.mxu0 %v407
        %v2467 = vpop.f32.mrf.mxu0
        %v2468 = vadd.f32 0.0, %v2467
        %v2469 = vpop.f32.mrf.mxu0
        %2470 = vmatprep.mubr.f32.mxu0 0.0
        %2471 = vmatmul.mubr.f32.gmra.mxu0 %v410
        %v2472 = vpop.f32.mrf.mxu0
        %v2473 = vadd.f32 0.0, %v2472
        %v2474 = vpop.f32.mrf.mxu0
        %2475 = vmatprep.mubr.f32.mxu0 0.0
        %2476 = vmatmul.mubr.f32.gmra.mxu0 %v413
        %v2477 = vpop.f32.mrf.mxu0
        %v2478 = vadd.f32 0.0, %v2477
        %v2479 = vpop.f32.mrf.mxu0
        %2480 = vmatprep.mubr.f32.mxu0 0.0
        %2481 = vmatmul.mubr.f32.gmra.mxu0 %v416
        %v2482 = vpop.f32.mrf.mxu0
        %v2483 = vadd.f32 0.0, %v2482
        %v2484 = vpop.f32.mrf.mxu0
        %2485 = vmatprep.mubr.f32.mxu0 0.0
        %2486 = vmatmul.mubr.f32.gmra.mxu0 %v419
        %v2487 = vpop.f32.mrf.mxu0
        %v2488 = vadd.f32 0.0, %v2487
        %v2489 = vpop.f32.mrf.mxu0
        %2490 = vdwg.mxu0
        %s2491 = scalar_select %p2376, 1, 0
        %v2492 = vstv %s2491
        %vm2493 = vcmp.eq.s32.totalorder %v2492, 1
        %v2494 = vsel %vm2493, %v2468, 0.0
        %v2495 = vsel %vm2493, %v2473, 0.0
        %v2496 = vsel %vm2493, %v2478, 0.0
        %v2497 = vsel %vm2493, %v2483, 0.0
        %v2498 = vsel %vm2493, %v2488, 0.0
        %2499 = vst.msk [vmem:[#allocation2 + $0x258] sm:$0xff] %vm519, %v2494
        %2500 = vst.msk [vmem:[#allocation2 + $0x260] sm:$0xff] %vm519, %v2495
        %2501 = vst.msk [vmem:[#allocation2 + $0x268] sm:$0xff] %vm519, %v2496
        %2502 = vst.msk [vmem:[#allocation2 + $0x270] sm:$0xff] %vm519, %v2497
        %2503 = vst.msk [vmem:[#allocation2 + $0x278] sm:$0xff] %vm519, %v2498
        %s2504 = sadd.s32 %s370, 15
        %p2505 = scmp.ge.s32.totalorder %s2504, 0
        %p2506 = scmp.lt.s32.totalorder %s2504, 32
        %p2507 = pnand %p2505, %p2506
        %p2508 = pneg %p2507
        %p2509 = scmp.gt.s32.totalorder %s2504, 0
        %s2510 = scalar_select %p2509, %s2504, 0
        %p2511 = scmp.lt.s32.totalorder %s2510, 31
        %s2512 = scalar_select %p2511, %s2510, 31
        %s2513 = sld [smem:[#allocation3 + %s2512]]
        %s2514 = sld [smem:[#allocation5 + %s2512]]
        %s2515 = sld [smem:[#allocation7 + %s2512]]
        %s2516 = smul.u32 %s2513, 16
        %s2517 = scalar_lea.vmem %s358, %s2516
        %v2518 = vld [vmem:[%s2517] sm:$0xff]
        %v2519 = vld [vmem:[%s2517 + $0x8] sm:$0xff]
        %v2520 = vstv %s2515
        %v2521 = vmul.f32 %v2520, %v2518
        %v2522 = vmul.f32 %v2520, %v2519
        %s2523 = ssub.f32 1.0, %s2515
        %s2524 = smul.u32 %s2514, 16
        %s2525 = scalar_lea.vmem %s358, %s2524
        %v2526 = vld [vmem:[%s2525] sm:$0xff]
        %v2527 = vld [vmem:[%s2525 + $0x8] sm:$0xff]
        %v2528 = vstv %s2523
        %v2529 = vmul.f32 %v2528, %v2526
        %v2530 = vmul.f32 %v2528, %v2527
        %v2531 = vadd.f32 %v2521, %v2529
        %v2532 = vadd.f32 %v2522, %v2530
        %2533 = vmatprep.subr.mxu0 0.0
        %2534 = vmatpush1.msra.mxu0 0.0
        %2535 = vmatprep.subr.mxu0 0.0
        %2536 = vmatpush1.msra.mxu0 0.0
        %2537 = vmatprep.subr.mxu0 0.0
        %2538 = vmatpush1.msra.mxu0 0.0
        %2539 = vmatprep.subr.mxu0 0.0
        %2540 = vmatpush1.msra.mxu0 0.0
        %2541 = vmatprep.subr.mxu0 0.0
        %2542 = vmatpush1.msra.mxu0 0.0
        %2543 = vmatprep.subr.mxu0 0.0
        %2544 = vmatpush1.msra.mxu0 0.0
        %2545 = vmatprep.subr.mxu0 0.0
        %2546 = vmatpush1.msra.mxu0 0.0
        %2547 = vmatprep.subr.mxu0 0.0
        %2548 = vmatpush1.msra.mxu0 0.0
        %2549 = vmatprep.subr.mxu0 0.0
        %2550 = vmatpush1.msra.mxu0 0.0
        %2551 = vmatprep.subr.mxu0 0.0
        %2552 = vmatpush1.msra.mxu0 0.0
        %2553 = vmatprep.subr.mxu0 0.0
        %2554 = vmatpush1.msra.mxu0 0.0
        %2555 = vmatprep.subr.mxu0 0.0
        %2556 = vmatpush1.msra.mxu0 0.0
        %2557 = vmatprep.subr.mxu0 0.0
        %2558 = vmatpush1.msra.mxu0 0.0
        %2559 = vmatprep.subr.mxu0 0.0
        %2560 = vmatpush1.msra.mxu0 0.0
        %2561 = vmatprep.subr.mxu0 0.0
        %2562 = vmatpush1.msra.mxu0 %v2532
        %2563 = vmatprep.subr.mxu0 0.0
        %2564 = vmatpush1.msra.mxu0 %v2531
        %2565 = vmatprep.subr.mxu0 0.0
        %2566 = vmatpush2.msra.mxu0 0.0
        %2567 = vmatprep.subr.mxu0 0.0
        %2568 = vmatpush2.msra.mxu0 0.0
        %2569 = vmatprep.subr.mxu0 0.0
        %2570 = vmatpush2.msra.mxu0 0.0
        %2571 = vmatprep.subr.mxu0 0.0
        %2572 = vmatpush2.msra.mxu0 0.0
        %2573 = vmatprep.subr.mxu0 0.0
        %2574 = vmatpush2.msra.mxu0 0.0
        %2575 = vmatprep.subr.mxu0 0.0
        %2576 = vmatpush2.msra.mxu0 0.0
        %2577 = vmatprep.subr.mxu0 0.0
        %2578 = vmatpush2.msra.mxu0 0.0
        %2579 = vmatprep.subr.mxu0 0.0
        %2580 = vmatpush2.msra.mxu0 0.0
        %2581 = vmatprep.subr.mxu0 0.0
        %2582 = vmatpush2.msra.mxu0 0.0
        %2583 = vmatprep.subr.mxu0 0.0
        %2584 = vmatpush2.msra.mxu0 0.0
        %2585 = vmatprep.subr.mxu0 0.0
        %2586 = vmatpush2.msra.mxu0 0.0
        %2587 = vmatprep.subr.mxu0 0.0
        %2588 = vmatpush2.msra.mxu0 0.0
        %2589 = vmatprep.subr.mxu0 0.0
        %2590 = vmatpush2.msra.mxu0 0.0
        %2591 = vmatprep.subr.mxu0 0.0
        %2592 = vmatpush2.msra.mxu0 0.0
        %2593 = vmatprep.subr.mxu0 0.0
        %2594 = vmatpush2.msra.mxu0 0.0
        %2595 = vmatprep.subr.mxu0 0.0
        %2596 = vmatpush2.msra.mxu0 0.0
        %2597 = vmatprep.mubr.f32.mxu0 0.0
        %2598 = vmatmul.mubr.f32.gmra.mxu0 %v407
        %v2599 = vpop.f32.mrf.mxu0
        %v2600 = vadd.f32 0.0, %v2599
        %v2601 = vpop.f32.mrf.mxu0
        %2602 = vmatprep.mubr.f32.mxu0 0.0
        %2603 = vmatmul.mubr.f32.gmra.mxu0 %v410
        %v2604 = vpop.f32.mrf.mxu0
        %v2605 = vadd.f32 0.0, %v2604
        %v2606 = vpop.f32.mrf.mxu0
        %2607 = vmatprep.mubr.f32.mxu0 0.0
        %2608 = vmatmul.mubr.f32.gmra.mxu0 %v413
        %v2609 = vpop.f32.mrf.mxu0
        %v2610 = vadd.f32 0.0, %v2609
        %v2611 = vpop.f32.mrf.mxu0
        %2612 = vmatprep.mubr.f32.mxu0 0.0
        %2613 = vmatmul.mubr.f32.gmra.mxu0 %v416
        %v2614 = vpop.f32.mrf.mxu0
        %v2615 = vadd.f32 0.0, %v2614
        %v2616 = vpop.f32.mrf.mxu0
        %2617 = vmatprep.mubr.f32.mxu0 0.0
        %2618 = vmatmul.mubr.f32.gmra.mxu0 %v419
        %v2619 = vpop.f32.mrf.mxu0
        %v2620 = vadd.f32 0.0, %v2619
        %v2621 = vpop.f32.mrf.mxu0
        %2622 = vdwg.mxu0
        %s2623 = scalar_select %p2508, 1, 0
        %v2624 = vstv %s2623
        %vm2625 = vcmp.eq.s32.totalorder %v2624, 1
        %v2626 = vsel %vm2625, %v2600, 0.0
        %v2627 = vsel %vm2625, %v2605, 0.0
        %v2628 = vsel %vm2625, %v2610, 0.0
        %v2629 = vsel %vm2625, %v2615, 0.0
        %v2630 = vsel %vm2625, %v2620, 0.0
        %2631 = vst.msk [vmem:[#allocation2 + $0x280] sm:$0xff] %vm519, %v2626
        %2632 = vst.msk [vmem:[#allocation2 + $0x288] sm:$0xff] %vm519, %v2627
        %2633 = vst.msk [vmem:[#allocation2 + $0x290] sm:$0xff] %vm519, %v2628
        %2634 = vst.msk [vmem:[#allocation2 + $0x298] sm:$0xff] %vm519, %v2629
        %2635 = vst.msk [vmem:[#allocation2 + $0x2a0] sm:$0xff] %vm519, %v2630
        %s2636 = sadd.s32 %s370, 16
        %p2637 = scmp.ge.s32.totalorder %s2636, 0
        %p2638 = scmp.lt.s32.totalorder %s2636, 32
        %p2639 = pnand %p2637, %p2638
        %p2640 = pneg %p2639
        %p2641 = scmp.gt.s32.totalorder %s2636, 0
        %s2642 = scalar_select %p2641, %s2636, 0
        %p2643 = scmp.lt.s32.totalorder %s2642, 31
        %s2644 = scalar_select %p2643, %s2642, 31
        %s2645 = sld [smem:[#allocation3 + %s2644]]
        %s2646 = sld [smem:[#allocation5 + %s2644]]
        %s2647 = sld [smem:[#allocation7 + %s2644]]
        %s2648 = smul.u32 %s2645, 16
        %s2649 = scalar_lea.vmem %s358, %s2648
        %v2650 = vld [vmem:[%s2649] sm:$0xff]
        %v2651 = vld [vmem:[%s2649 + $0x8] sm:$0xff]
        %v2652 = vstv %s2647
        %v2653 = vmul.f32 %v2652, %v2650
        %v2654 = vmul.f32 %v2652, %v2651
        %s2655 = ssub.f32 1.0, %s2647
        %s2656 = smul.u32 %s2646, 16
        %s2657 = scalar_lea.vmem %s358, %s2656
        %v2658 = vld [vmem:[%s2657] sm:$0xff]
        %v2659 = vld [vmem:[%s2657 + $0x8] sm:$0xff]
        %v2660 = vstv %s2655
        %v2661 = vmul.f32 %v2660, %v2658
        %v2662 = vmul.f32 %v2660, %v2659
        %v2663 = vadd.f32 %v2653, %v2661
        %v2664 = vadd.f32 %v2654, %v2662
        %2665 = vmatprep.subr.mxu0 0.0
        %2666 = vmatpush1.msra.mxu0 0.0
        %2667 = vmatprep.subr.mxu0 0.0
        %2668 = vmatpush1.msra.mxu0 0.0
        %2669 = vmatprep.subr.mxu0 0.0
        %2670 = vmatpush1.msra.mxu0 0.0
        %2671 = vmatprep.subr.mxu0 0.0
        %2672 = vmatpush1.msra.mxu0 0.0
        %2673 = vmatprep.subr.mxu0 0.0
        %2674 = vmatpush1.msra.mxu0 0.0
        %2675 = vmatprep.subr.mxu0 0.0
        %2676 = vmatpush1.msra.mxu0 0.0
        %2677 = vmatprep.subr.mxu0 0.0
        %2678 = vmatpush1.msra.mxu0 0.0
        %2679 = vmatprep.subr.mxu0 0.0
        %2680 = vmatpush1.msra.mxu0 0.0
        %2681 = vmatprep.subr.mxu0 0.0
        %2682 = vmatpush1.msra.mxu0 0.0
        %2683 = vmatprep.subr.mxu0 0.0
        %2684 = vmatpush1.msra.mxu0 0.0
        %2685 = vmatprep.subr.mxu0 0.0
        %2686 = vmatpush1.msra.mxu0 0.0
        %2687 = vmatprep.subr.mxu0 0.0
        %2688 = vmatpush1.msra.mxu0 0.0
        %2689 = vmatprep.subr.mxu0 0.0
        %2690 = vmatpush1.msra.mxu0 0.0
        %2691 = vmatprep.subr.mxu0 0.0
        %2692 = vmatpush1.msra.mxu0 0.0
        %2693 = vmatprep.subr.mxu0 0.0
        %2694 = vmatpush1.msra.mxu0 %v2664
        %2695 = vmatprep.subr.mxu0 0.0
        %2696 = vmatpush1.msra.mxu0 %v2663
        %2697 = vmatprep.subr.mxu0 0.0
        %2698 = vmatpush2.msra.mxu0 0.0
        %2699 = vmatprep.subr.mxu0 0.0
        %2700 = vmatpush2.msra.mxu0 0.0
        %2701 = vmatprep.subr.mxu0 0.0
        %2702 = vmatpush2.msra.mxu0 0.0
        %2703 = vmatprep.subr.mxu0 0.0
        %2704 = vmatpush2.msra.mxu0 0.0
        %2705 = vmatprep.subr.mxu0 0.0
        %2706 = vmatpush2.msra.mxu0 0.0
        %2707 = vmatprep.subr.mxu0 0.0
        %2708 = vmatpush2.msra.mxu0 0.0
        %2709 = vmatprep.subr.mxu0 0.0
        %2710 = vmatpush2.msra.mxu0 0.0
        %2711 = vmatprep.subr.mxu0 0.0
        %2712 = vmatpush2.msra.mxu0 0.0
        %2713 = vmatprep.subr.mxu0 0.0
        %2714 = vmatpush2.msra.mxu0 0.0
        %2715 = vmatprep.subr.mxu0 0.0
        %2716 = vmatpush2.msra.mxu0 0.0
        %2717 = vmatprep.subr.mxu0 0.0
        %2718 = vmatpush2.msra.mxu0 0.0
        %2719 = vmatprep.subr.mxu0 0.0
        %2720 = vmatpush2.msra.mxu0 0.0
        %2721 = vmatprep.subr.mxu0 0.0
        %2722 = vmatpush2.msra.mxu0 0.0
        %2723 = vmatprep.subr.mxu0 0.0
        %2724 = vmatpush2.msra.mxu0 0.0
        %2725 = vmatprep.subr.mxu0 0.0
        %2726 = vmatpush2.msra.mxu0 0.0
        %2727 = vmatprep.subr.mxu0 0.0
        %2728 = vmatpush2.msra.mxu0 0.0
        %2729 = vmatprep.mubr.f32.mxu0 0.0
        %2730 = vmatmul.mubr.f32.gmra.mxu0 %v407
        %v2731 = vpop.f32.mrf.mxu0
        %v2732 = vadd.f32 0.0, %v2731
        %v2733 = vpop.f32.mrf.mxu0
        %2734 = vmatprep.mubr.f32.mxu0 0.0
        %2735 = vmatmul.mubr.f32.gmra.mxu0 %v410
        %v2736 = vpop.f32.mrf.mxu0
        %v2737 = vadd.f32 0.0, %v2736
        %v2738 = vpop.f32.mrf.mxu0
        %2739 = vmatprep.mubr.f32.mxu0 0.0
        %2740 = vmatmul.mubr.f32.gmra.mxu0 %v413
        %v2741 = vpop.f32.mrf.mxu0
        %v2742 = vadd.f32 0.0, %v2741
        %v2743 = vpop.f32.mrf.mxu0
        %2744 = vmatprep.mubr.f32.mxu0 0.0
        %2745 = vmatmul.mubr.f32.gmra.mxu0 %v416
        %v2746 = vpop.f32.mrf.mxu0
        %v2747 = vadd.f32 0.0, %v2746
        %v2748 = vpop.f32.mrf.mxu0
        %2749 = vmatprep.mubr.f32.mxu0 0.0
        %2750 = vmatmul.mubr.f32.gmra.mxu0 %v419
        %v2751 = vpop.f32.mrf.mxu0
        %v2752 = vadd.f32 0.0, %v2751
        %v2753 = vpop.f32.mrf.mxu0
        %2754 = vdwg.mxu0
        %s2755 = scalar_select %p2640, 1, 0
        %v2756 = vstv %s2755
        %vm2757 = vcmp.eq.s32.totalorder %v2756, 1
        %v2758 = vsel %vm2757, %v2732, 0.0
        %v2759 = vsel %vm2757, %v2737, 0.0
        %v2760 = vsel %vm2757, %v2742, 0.0
        %v2761 = vsel %vm2757, %v2747, 0.0
        %v2762 = vsel %vm2757, %v2752, 0.0
        %2763 = vst.msk [vmem:[#allocation2 + $0x2a8] sm:$0xff] %vm519, %v2758
        %2764 = vst.msk [vmem:[#allocation2 + $0x2b0] sm:$0xff] %vm519, %v2759
        %2765 = vst.msk [vmem:[#allocation2 + $0x2b8] sm:$0xff] %vm519, %v2760
        %2766 = vst.msk [vmem:[#allocation2 + $0x2c0] sm:$0xff] %vm519, %v2761
        %2767 = vst.msk [vmem:[#allocation2 + $0x2c8] sm:$0xff] %vm519, %v2762
        %v2768 = vld [vmem:[#allocation2] sm:$0xff]
        %v2769 = vld [vmem:[#allocation2 + $0x8] sm:$0xff]
        %v2770 = vld [vmem:[#allocation2 + $0x10] sm:$0xff]
        %v2771 = vld [vmem:[#allocation2 + $0x18] sm:$0xff]
        %v2772 = vld [vmem:[#allocation2 + $0x20] sm:$0xff]
        %v2773 = vld [vmem:[#allocation2 + $0x28] sm:$0xff]
        %v2774 = vld [vmem:[#allocation2 + $0x30] sm:$0xff]
        %v2775 = vld [vmem:[#allocation2 + $0x38] sm:$0xff]
        %v2776 = vld [vmem:[#allocation2 + $0x40] sm:$0xff]
        %v2777 = vld [vmem:[#allocation2 + $0x48] sm:$0xff]
        %v2778 = vld [vmem:[#allocation2 + $0x50] sm:$0xff]
        %v2779 = vld [vmem:[#allocation2 + $0x58] sm:$0xff]
        %v2780 = vld [vmem:[#allocation2 + $0x60] sm:$0xff]
        %v2781 = vld [vmem:[#allocation2 + $0x68] sm:$0xff]
        %v2782 = vld [vmem:[#allocation2 + $0x70] sm:$0xff]
        %v2783 = vld [vmem:[#allocation2 + $0x78] sm:$0xff]
        %v2784 = vld [vmem:[#allocation2 + $0x80] sm:$0xff]
        %v2785 = vld [vmem:[#allocation2 + $0x88] sm:$0xff]
        %v2786 = vld [vmem:[#allocation2 + $0x90] sm:$0xff]
        %v2787 = vld [vmem:[#allocation2 + $0x98] sm:$0xff]
        %v2788 = vld [vmem:[#allocation2 + $0xa0] sm:$0xff]
        %v2789 = vld [vmem:[#allocation2 + $0xa8] sm:$0xff]
        %v2790 = vld [vmem:[#allocation2 + $0xb0] sm:$0xff]
        %v2791 = vld [vmem:[#allocation2 + $0xb8] sm:$0xff]
        %v2792 = vld [vmem:[#allocation2 + $0xc0] sm:$0xff]
        %v2793 = vld [vmem:[#allocation2 + $0xc8] sm:$0xff]
        %v2794 = vld [vmem:[#allocation2 + $0xd0] sm:$0xff]
        %v2795 = vld [vmem:[#allocation2 + $0xd8] sm:$0xff]
        %v2796 = vld [vmem:[#allocation2 + $0xe0] sm:$0xff]
        %v2797 = vld [vmem:[#allocation2 + $0xe8] sm:$0xff]
        %v2798 = vld [vmem:[#allocation2 + $0xf0] sm:$0xff]
        %v2799 = vld [vmem:[#allocation2 + $0xf8] sm:$0xff]
        %v2800 = vld [vmem:[#allocation2 + $0x100] sm:$0xff]
        %v2801 = vld [vmem:[#allocation2 + $0x108] sm:$0xff]
        %v2802 = vld [vmem:[#allocation2 + $0x110] sm:$0xff]
        %v2803 = vld [vmem:[#allocation2 + $0x118] sm:$0xff]
        %v2804 = vld [vmem:[#allocation2 + $0x120] sm:$0xff]
        %v2805 = vld [vmem:[#allocation2 + $0x128] sm:$0xff]
        %v2806 = vld [vmem:[#allocation2 + $0x130] sm:$0xff]
        %v2807 = vld [vmem:[#allocation2 + $0x138] sm:$0xff]
        %v2808 = vld [vmem:[#allocation2 + $0x140] sm:$0xff]
        %v2809 = vld [vmem:[#allocation2 + $0x148] sm:$0xff]
        %v2810 = vld [vmem:[#allocation2 + $0x150] sm:$0xff]
        %v2811 = vld [vmem:[#allocation2 + $0x158] sm:$0xff]
        %v2812 = vld [vmem:[#allocation2 + $0x160] sm:$0xff]
        %v2813 = vld [vmem:[#allocation2 + $0x168] sm:$0xff]
        %v2814 = vld [vmem:[#allocation2 + $0x170] sm:$0xff]
        %v2815 = vld [vmem:[#allocation2 + $0x178] sm:$0xff]
        %v2816 = vld [vmem:[#allocation2 + $0x180] sm:$0xff]
        %v2817 = vld [vmem:[#allocation2 + $0x188] sm:$0xff]
        %v2818 = vld [vmem:[#allocation2 + $0x190] sm:$0xff]
        %v2819 = vld [vmem:[#allocation2 + $0x198] sm:$0xff]
        %v2820 = vld [vmem:[#allocation2 + $0x1a0] sm:$0xff]
        %v2821 = vld [vmem:[#allocation2 + $0x1a8] sm:$0xff]
        %v2822 = vld [vmem:[#allocation2 + $0x1b0] sm:$0xff]
        %v2823 = vld [vmem:[#allocation2 + $0x1b8] sm:$0xff]
        %v2824 = vld [vmem:[#allocation2 + $0x1c0] sm:$0xff]
        %v2825 = vld [vmem:[#allocation2 + $0x1c8] sm:$0xff]
        %v2826 = vld [vmem:[#allocation2 + $0x1d0] sm:$0xff]
        %v2827 = vld [vmem:[#allocation2 + $0x1d8] sm:$0xff]
        %v2828 = vld [vmem:[#allocation2 + $0x1e0] sm:$0xff]
        %v2829 = vld [vmem:[#allocation2 + $0x1e8] sm:$0xff]
        %v2830 = vld [vmem:[#allocation2 + $0x1f0] sm:$0xff]
        %v2831 = vld [vmem:[#allocation2 + $0x1f8] sm:$0xff]
        %v2832 = vld [vmem:[#allocation2 + $0x200] sm:$0xff]
        %v2833 = vld [vmem:[#allocation2 + $0x208] sm:$0xff]
        %v2834 = vld [vmem:[#allocation2 + $0x210] sm:$0xff]
        %v2835 = vld [vmem:[#allocation2 + $0x218] sm:$0xff]
        %v2836 = vld [vmem:[#allocation2 + $0x220] sm:$0xff]
        %v2837 = vld [vmem:[#allocation2 + $0x228] sm:$0xff]
        %v2838 = vld [vmem:[#allocation2 + $0x230] sm:$0xff]
        %v2839 = vld [vmem:[#allocation2 + $0x238] sm:$0xff]
        %v2840 = vld [vmem:[#allocation2 + $0x240] sm:$0xff]
        %v2841 = vld [vmem:[#allocation2 + $0x248] sm:$0xff]
        %v2842 = vld [vmem:[#allocation2 + $0x250] sm:$0xff]
        %v2843 = vld [vmem:[#allocation2 + $0x258] sm:$0xff]
        %v2844 = vld [vmem:[#allocation2 + $0x260] sm:$0xff]
        %v2845 = vld [vmem:[#allocation2 + $0x268] sm:$0xff]
        %v2846 = vld [vmem:[#allocation2 + $0x270] sm:$0xff]
        %v2847 = vld [vmem:[%s5] sm:$0xf]
        %v2848 = vld [vmem:[#allocation2 + $0x1] sm:$0xff]
        %v2849 = vld [vmem:[#allocation2 + $0x9] sm:$0xff]
        %v2850 = vld [vmem:[#allocation2 + $0x11] sm:$0xff]
        %v2851 = vld [vmem:[#allocation2 + $0x19] sm:$0xff]
        %v2852 = vld [vmem:[#allocation2 + $0x21] sm:$0xff]
        %v2853 = vld [vmem:[#allocation2 + $0x29] sm:$0xff]
        %v2854 = vld [vmem:[#allocation2 + $0x31] sm:$0xff]
        %v2855 = vld [vmem:[#allocation2 + $0x39] sm:$0xff]
        %v2856 = vld [vmem:[#allocation2 + $0x41] sm:$0xff]
        %v2857 = vld [vmem:[#allocation2 + $0x49] sm:$0xff]
        %v2858 = vld [vmem:[#allocation2 + $0x51] sm:$0xff]
        %v2859 = vld [vmem:[#allocation2 + $0x59] sm:$0xff]
        %v2860 = vld [vmem:[#allocation2 + $0x61] sm:$0xff]
        %v2861 = vld [vmem:[#allocation2 + $0x69] sm:$0xff]
        %v2862 = vld [vmem:[#allocation2 + $0x71] sm:$0xff]
        %v2863 = vld [vmem:[#allocation2 + $0x79] sm:$0xff]
        %v2864 = vld [vmem:[#allocation2 + $0x81] sm:$0xff]
        %v2865 = vld [vmem:[#allocation2 + $0x89] sm:$0xff]
        %v2866 = vld [vmem:[#allocation2 + $0x91] sm:$0xff]
        %v2867 = vld [vmem:[#allocation2 + $0x99] sm:$0xff]
        %v2868 = vld [vmem:[#allocation2 + $0xa1] sm:$0xff]
        %v2869 = vld [vmem:[#allocation2 + $0xa9] sm:$0xff]
        %v2870 = vld [vmem:[#allocation2 + $0xb1] sm:$0xff]
        %v2871 = vld [vmem:[#allocation2 + $0xb9] sm:$0xff]
        %v2872 = vld [vmem:[#allocation2 + $0xc1] sm:$0xff]
        %v2873 = vld [vmem:[#allocation2 + $0xc9] sm:$0xff]
        %v2874 = vld [vmem:[#allocation2 + $0xd1] sm:$0xff]
        %v2875 = vld [vmem:[#allocation2 + $0xd9] sm:$0xff]
        %v2876 = vld [vmem:[#allocation2 + $0xe1] sm:$0xff]
        %v2877 = vld [vmem:[#allocation2 + $0xe9] sm:$0xff]
        %v2878 = vld [vmem:[#allocation2 + $0xf1] sm:$0xff]
        %v2879 = vld [vmem:[#allocation2 + $0xf9] sm:$0xff]
        %v2880 = vld [vmem:[#allocation2 + $0x101] sm:$0xff]
        %v2881 = vld [vmem:[#allocation2 + $0x109] sm:$0xff]
        %v2882 = vld [vmem:[#allocation2 + $0x111] sm:$0xff]
        %v2883 = vld [vmem:[#allocation2 + $0x119] sm:$0xff]
        %v2884 = vld [vmem:[#allocation2 + $0x121] sm:$0xff]
        %v2885 = vld [vmem:[#allocation2 + $0x129] sm:$0xff]
        %v2886 = vld [vmem:[#allocation2 + $0x131] sm:$0xff]
        %v2887 = vld [vmem:[#allocation2 + $0x139] sm:$0xff]
        %v2888 = vld [vmem:[#allocation2 + $0x141] sm:$0xff]
        %v2889 = vld [vmem:[#allocation2 + $0x149] sm:$0xff]
        %v2890 = vld [vmem:[#allocation2 + $0x151] sm:$0xff]
        %v2891 = vld [vmem:[#allocation2 + $0x159] sm:$0xff]
        %v2892 = vld [vmem:[#allocation2 + $0x161] sm:$0xff]
        %v2893 = vld [vmem:[#allocation2 + $0x169] sm:$0xff]
        %v2894 = vld [vmem:[#allocation2 + $0x171] sm:$0xff]
        %v2895 = vld [vmem:[#allocation2 + $0x179] sm:$0xff]
        %v2896 = vld [vmem:[#allocation2 + $0x181] sm:$0xff]
        %v2897 = vld [vmem:[#allocation2 + $0x189] sm:$0xff]
        %v2898 = vld [vmem:[#allocation2 + $0x191] sm:$0xff]
        %v2899 = vld [vmem:[#allocation2 + $0x199] sm:$0xff]
        %v2900 = vld [vmem:[#allocation2 + $0x1a1] sm:$0xff]
        %v2901 = vld [vmem:[#allocation2 + $0x1a9] sm:$0xff]
        %v2902 = vld [vmem:[#allocation2 + $0x1b1] sm:$0xff]
        %v2903 = vld [vmem:[#allocation2 + $0x1b9] sm:$0xff]
        %v2904 = vld [vmem:[#allocation2 + $0x1c1] sm:$0xff]
        %v2905 = vld [vmem:[#allocation2 + $0x1c9] sm:$0xff]
        %v2906 = vld [vmem:[#allocation2 + $0x1d1] sm:$0xff]
        %v2907 = vld [vmem:[#allocation2 + $0x1d9] sm:$0xff]
        %v2908 = vld [vmem:[#allocation2 + $0x1e1] sm:$0xff]
        %v2909 = vld [vmem:[#allocation2 + $0x1e9] sm:$0xff]
        %v2910 = vld [vmem:[#allocation2 + $0x1f1] sm:$0xff]
        %v2911 = vld [vmem:[#allocation2 + $0x1f9] sm:$0xff]
        %v2912 = vld [vmem:[#allocation2 + $0x201] sm:$0xff]
        %v2913 = vld [vmem:[#allocation2 + $0x209] sm:$0xff]
        %v2914 = vld [vmem:[#allocation2 + $0x211] sm:$0xff]
        %v2915 = vld [vmem:[#allocation2 + $0x219] sm:$0xff]
        %v2916 = vld [vmem:[#allocation2 + $0x221] sm:$0xff]
        %v2917 = vld [vmem:[#allocation2 + $0x229] sm:$0xff]
        %v2918 = vld [vmem:[#allocation2 + $0x231] sm:$0xff]
        %v2919 = vld [vmem:[#allocation2 + $0x239] sm:$0xff]
        %v2920 = vld [vmem:[#allocation2 + $0x241] sm:$0xff]
        %v2921 = vld [vmem:[#allocation2 + $0x249] sm:$0xff]
        %v2922 = vld [vmem:[#allocation2 + $0x251] sm:$0xff]
        %v2923 = vld [vmem:[#allocation2 + $0x259] sm:$0xff]
        %v2924 = vld [vmem:[#allocation2 + $0x261] sm:$0xff]
        %v2925 = vld [vmem:[#allocation2 + $0x269] sm:$0xff]
        %v2926 = vld [vmem:[#allocation2 + $0x271] sm:$0xff]
        %s2927 = scalar_lea.vmem %s5, 4
        %v2928 = vld [vmem:[%s2927] sm:$0xf]
        %v2930 = vsel %vm519, %v2848, 0
        %v2933 = vsel %vm519, %v2849, 0
        %v2936 = vsel %vm519, %v2850, 0
        %v2939 = vsel %vm519, %v2851, 0
        %v2942 = vsel %vm519, %v2852, 0
        %v2945 = vsel %vm519, %v2853, 0
        %v2948 = vsel %vm519, %v2854, 0
        %v2951 = vsel %vm519, %v2855, 0
        %v2954 = vsel %vm519, %v2856, 0
        %v2957 = vsel %vm519, %v2857, 0
        %v2960 = vsel %vm519, %v2858, 0
        %v2963 = vsel %vm519, %v2859, 0
        %v2966 = vsel %vm519, %v2860, 0
        %v2969 = vsel %vm519, %v2861, 0
        %v2972 = vsel %vm519, %v2862, 0
        %v2975 = vsel %vm519, %v2863, 0
        %v2978 = vsel %vm519, %v2864, 0
        %v2981 = vsel %vm519, %v2865, 0
        %v2984 = vsel %vm519, %v2866, 0
        %v2987 = vsel %vm519, %v2867, 0
        %v2990 = vsel %vm519, %v2868, 0
        %v2993 = vsel %vm519, %v2869, 0
        %v2996 = vsel %vm519, %v2870, 0
        %v2999 = vsel %vm519, %v2871, 0
        %v3002 = vsel %vm519, %v2872, 0
        %v3005 = vsel %vm519, %v2873, 0
        %v3008 = vsel %vm519, %v2874, 0
        %v3011 = vsel %vm519, %v2875, 0
        %v3014 = vsel %vm519, %v2876, 0
        %v3017 = vsel %vm519, %v2877, 0
        %v3020 = vsel %vm519, %v2878, 0
        %v3023 = vsel %vm519, %v2879, 0
        %v3026 = vsel %vm519, %v2880, 0
        %v3029 = vsel %vm519, %v2881, 0
        %v3032 = vsel %vm519, %v2882, 0
        %v3035 = vsel %vm519, %v2883, 0
        %v3038 = vsel %vm519, %v2884, 0
        %v3041 = vsel %vm519, %v2885, 0
        %v3044 = vsel %vm519, %v2886, 0
        %v3047 = vsel %vm519, %v2887, 0
        %v3050 = vsel %vm519, %v2888, 0
        %v3053 = vsel %vm519, %v2889, 0
        %v3056 = vsel %vm519, %v2890, 0
        %v3059 = vsel %vm519, %v2891, 0
        %v3062 = vsel %vm519, %v2892, 0
        %v3065 = vsel %vm519, %v2893, 0
        %v3068 = vsel %vm519, %v2894, 0
        %v3071 = vsel %vm519, %v2895, 0
        %v3074 = vsel %vm519, %v2896, 0
        %v3077 = vsel %vm519, %v2897, 0
        %v3080 = vsel %vm519, %v2898, 0
        %v3083 = vsel %vm519, %v2899, 0
        %v3086 = vsel %vm519, %v2900, 0
        %v3089 = vsel %vm519, %v2901, 0
        %v3092 = vsel %vm519, %v2902, 0
        %v3095 = vsel %vm519, %v2903, 0
        %v3098 = vsel %vm519, %v2904, 0
        %v3101 = vsel %vm519, %v2905, 0
        %v3104 = vsel %vm519, %v2906, 0
        %v3107 = vsel %vm519, %v2907, 0
        %v3110 = vsel %vm519, %v2908, 0
        %v3113 = vsel %vm519, %v2909, 0
        %v3116 = vsel %vm519, %v2910, 0
        %v3119 = vsel %vm519, %v2911, 0
        %v3122 = vsel %vm519, %v2912, 0
        %v3125 = vsel %vm519, %v2913, 0
        %v3128 = vsel %vm519, %v2914, 0
        %v3131 = vsel %vm519, %v2915, 0
        %v3134 = vsel %vm519, %v2916, 0
        %v3137 = vsel %vm519, %v2917, 0
        %v3140 = vsel %vm519, %v2918, 0
        %v3143 = vsel %vm519, %v2919, 0
        %v3146 = vsel %vm519, %v2920, 0
        %v3149 = vsel %vm519, %v2921, 0
        %v3152 = vsel %vm519, %v2922, 0
        %v3155 = vsel %vm519, %v2923, 0
        %v3158 = vsel %vm519, %v2924, 0
        %v3161 = vsel %vm519, %v2925, 0
        %v3164 = vsel %vm519, %v2926, 0
        %vm3166 = vcmask 1043456
        %v3168 = vsel %vm3166, %v2928, 0
        %3170 = vmatprep.subr.mxu0 0.0
        %3171 = vmatpush1.msra.mxu0 0.0
        %3172 = vmatprep.subr.mxu0 0.0
        %3173 = vmatpush1.msra.mxu0 0.0
        %3174 = vmatprep.subr.mxu0 0.0
        %3175 = vmatpush1.msra.mxu0 0.0
        %3176 = vmatprep.subr.mxu0 0.0
        %3177 = vmatpush1.msra.mxu0 0.0
        %3178 = vmatprep.subr.mxu0 0.0
        %3179 = vmatpush1.msra.mxu0 0.0
        %3180 = vmatprep.subr.mxu0 0.0
        %3181 = vmatpush1.msra.mxu0 0.0
        %3182 = vmatprep.subr.mxu0 0.0
        %3183 = vmatpush1.msra.mxu0 0.0
        %3184 = vmatprep.subr.mxu0 0.0
        %3185 = vmatpush1.msra.mxu0 0.0
        %3186 = vmatprep.subr.mxu0 0.0
        %3187 = vmatpush1.msra.mxu0 0.0
        %3188 = vmatprep.subr.mxu0 0.0
        %3189 = vmatpush1.msra.mxu0 0.0
        %3190 = vmatprep.subr.mxu0 0.0
        %3191 = vmatpush1.msra.mxu0 0.0
        %3192 = vmatprep.subr.mxu0 0.0
        %3193 = vmatpush1.msra.mxu0 0.0
        %3194 = vmatprep.subr.mxu0 0.0
        %3195 = vmatpush1.msra.mxu0 0.0
        %3196 = vmatprep.subr.mxu0 0.0
        %3197 = vmatpush1.msra.mxu0 0.0
        %3198 = vmatprep.subr.mxu0 0.0
        %3199 = vmatpush1.msra.mxu0 0.0
        %3200 = vmatprep.subr.mxu0 0.0
        %3201 = vmatpush1.msra.mxu0 %v3168
        %3202 = vmatprep.subr.mxu0 0.0
        %3203 = vmatpush2.msra.mxu0 0.0
        %3204 = vmatprep.subr.mxu0 0.0
        %3205 = vmatpush2.msra.mxu0 0.0
        %3206 = vmatprep.subr.mxu0 0.0
        %3207 = vmatpush2.msra.mxu0 0.0
        %3208 = vmatprep.subr.mxu0 0.0
        %3209 = vmatpush2.msra.mxu0 0.0
        %3210 = vmatprep.subr.mxu0 0.0
        %3211 = vmatpush2.msra.mxu0 0.0
        %3212 = vmatprep.subr.mxu0 0.0
        %3213 = vmatpush2.msra.mxu0 0.0
        %3214 = vmatprep.subr.mxu0 0.0
        %3215 = vmatpush2.msra.mxu0 0.0
        %3216 = vmatprep.subr.mxu0 0.0
        %3217 = vmatpush2.msra.mxu0 0.0
        %3218 = vmatprep.subr.mxu0 0.0
        %3219 = vmatpush2.msra.mxu0 0.0
        %3220 = vmatprep.subr.mxu0 0.0
        %3221 = vmatpush2.msra.mxu0 0.0
        %3222 = vmatprep.subr.mxu0 0.0
        %3223 = vmatpush2.msra.mxu0 0.0
        %3224 = vmatprep.subr.mxu0 0.0
        %3225 = vmatpush2.msra.mxu0 0.0
        %3226 = vmatprep.subr.mxu0 0.0
        %3227 = vmatpush2.msra.mxu0 0.0
        %3228 = vmatprep.subr.mxu0 0.0
        %3229 = vmatpush2.msra.mxu0 0.0
        %3230 = vmatprep.subr.mxu0 0.0
        %3231 = vmatpush2.msra.mxu0 0.0
        %3232 = vmatprep.subr.mxu0 0.0
        %3233 = vmatpush2.msra.mxu0 0.0
        %3234 = vmatprep.mubr.f32.mxu0 0.0
        %3235 = vmatmul.mubr.f32.gmra.mxu0 %v2930
        %v3236 = vpop.f32.mrf.mxu0
        %v3237 = vadd.f32 0.0, %v3236
        %v3238 = vpop.f32.mrf.mxu0
        %3239 = vmatprep.mubr.f32.mxu0 0.0
        %3240 = vmatmul.mubr.f32.gmra.mxu0 %v2933
        %v3241 = vpop.f32.mrf.mxu0
        %v3242 = vadd.f32 0.0, %v3241
        %v3243 = vpop.f32.mrf.mxu0
        %3244 = vmatprep.mubr.f32.mxu0 0.0
        %3245 = vmatmul.mubr.f32.gmra.mxu0 %v2936
        %v3246 = vpop.f32.mrf.mxu0
        %v3247 = vadd.f32 0.0, %v3246
        %v3248 = vpop.f32.mrf.mxu0
        %3249 = vmatprep.mubr.f32.mxu0 0.0
        %3250 = vmatmul.mubr.f32.gmra.mxu0 %v2939
        %v3251 = vpop.f32.mrf.mxu0
        %v3252 = vadd.f32 0.0, %v3251
        %v3253 = vpop.f32.mrf.mxu0
        %3254 = vmatprep.mubr.f32.mxu0 0.0
        %3255 = vmatmul.mubr.f32.gmra.mxu0 %v2942
        %v3256 = vpop.f32.mrf.mxu0
        %v3257 = vpop.f32.mrf.mxu0
        %3258 = vmatprep.mubr.f32.mxu0 0.0
        %3259 = vmatmul.mubr.f32.gmra.mxu0 %v2945
        %v3260 = vpop.f32.mrf.mxu0
        %v3261 = vadd.f32 0.0, %v3260
        %v3262 = vpop.f32.mrf.mxu0
        %3263 = vmatprep.mubr.f32.mxu0 0.0
        %3264 = vmatmul.mubr.f32.gmra.mxu0 %v2948
        %v3265 = vpop.f32.mrf.mxu0
        %v3266 = vadd.f32 0.0, %v3265
        %v3267 = vpop.f32.mrf.mxu0
        %3268 = vmatprep.mubr.f32.mxu0 0.0
        %3269 = vmatmul.mubr.f32.gmra.mxu0 %v2951
        %v3270 = vpop.f32.mrf.mxu0
        %v3271 = vadd.f32 0.0, %v3270
        %v3272 = vpop.f32.mrf.mxu0
        %3273 = vmatprep.mubr.f32.mxu0 0.0
        %3274 = vmatmul.mubr.f32.gmra.mxu0 %v2954
        %v3275 = vpop.f32.mrf.mxu0
        %v3276 = vadd.f32 0.0, %v3275
        %v3277 = vpop.f32.mrf.mxu0
        %3278 = vmatprep.mubr.f32.mxu0 0.0
        %3279 = vmatmul.mubr.f32.gmra.mxu0 %v2957
        %v3280 = vpop.f32.mrf.mxu0
        %v3281 = vpop.f32.mrf.mxu0
        %3282 = vmatprep.mubr.f32.mxu0 0.0
        %3283 = vmatmul.mubr.f32.gmra.mxu0 %v2960
        %v3284 = vpop.f32.mrf.mxu0
        %v3285 = vadd.f32 0.0, %v3284
        %v3286 = vpop.f32.mrf.mxu0
        %3287 = vmatprep.mubr.f32.mxu0 0.0
        %3288 = vmatmul.mubr.f32.gmra.mxu0 %v2963
        %v3289 = vpop.f32.mrf.mxu0
        %v3290 = vadd.f32 0.0, %v3289
        %v3291 = vpop.f32.mrf.mxu0
        %3292 = vmatprep.mubr.f32.mxu0 0.0
        %3293 = vmatmul.mubr.f32.gmra.mxu0 %v2966
        %v3294 = vpop.f32.mrf.mxu0
        %v3295 = vadd.f32 0.0, %v3294
        %v3296 = vpop.f32.mrf.mxu0
        %3297 = vmatprep.mubr.f32.mxu0 0.0
        %3298 = vmatmul.mubr.f32.gmra.mxu0 %v2969
        %v3299 = vpop.f32.mrf.mxu0
        %v3300 = vadd.f32 0.0, %v3299
        %v3301 = vpop.f32.mrf.mxu0
        %3302 = vmatprep.mubr.f32.mxu0 0.0
        %3303 = vmatmul.mubr.f32.gmra.mxu0 %v2972
        %v3304 = vpop.f32.mrf.mxu0
        %v3305 = vpop.f32.mrf.mxu0
        %3306 = vmatprep.mubr.f32.mxu0 0.0
        %3307 = vmatmul.mubr.f32.gmra.mxu0 %v2975
        %v3308 = vpop.f32.mrf.mxu0
        %v3309 = vadd.f32 0.0, %v3308
        %v3310 = vpop.f32.mrf.mxu0
        %3311 = vmatprep.mubr.f32.mxu0 0.0
        %3312 = vmatmul.mubr.f32.gmra.mxu0 %v2978
        %v3313 = vpop.f32.mrf.mxu0
        %v3314 = vadd.f32 0.0, %v3313
        %v3315 = vpop.f32.mrf.mxu0
        %3316 = vmatprep.mubr.f32.mxu0 0.0
        %3317 = vmatmul.mubr.f32.gmra.mxu0 %v2981
        %v3318 = vpop.f32.mrf.mxu0
        %v3319 = vadd.f32 0.0, %v3318
        %v3320 = vpop.f32.mrf.mxu0
        %3321 = vmatprep.mubr.f32.mxu0 0.0
        %3322 = vmatmul.mubr.f32.gmra.mxu0 %v2984
        %v3323 = vpop.f32.mrf.mxu0
        %v3324 = vadd.f32 0.0, %v3323
        %v3325 = vpop.f32.mrf.mxu0
        %3326 = vmatprep.mubr.f32.mxu0 0.0
        %3327 = vmatmul.mubr.f32.gmra.mxu0 %v2987
        %v3328 = vpop.f32.mrf.mxu0
        %v3329 = vpop.f32.mrf.mxu0
        %3330 = vmatprep.mubr.f32.mxu0 0.0
        %3331 = vmatmul.mubr.f32.gmra.mxu0 %v2990
        %v3332 = vpop.f32.mrf.mxu0
        %v3333 = vadd.f32 0.0, %v3332
        %v3334 = vpop.f32.mrf.mxu0
        %3335 = vmatprep.mubr.f32.mxu0 0.0
        %3336 = vmatmul.mubr.f32.gmra.mxu0 %v2993
        %v3337 = vpop.f32.mrf.mxu0
        %v3338 = vadd.f32 0.0, %v3337
        %v3339 = vpop.f32.mrf.mxu0
        %3340 = vmatprep.mubr.f32.mxu0 0.0
        %3341 = vmatmul.mubr.f32.gmra.mxu0 %v2996
        %v3342 = vpop.f32.mrf.mxu0
        %v3343 = vadd.f32 0.0, %v3342
        %v3344 = vpop.f32.mrf.mxu0
        %3345 = vmatprep.mubr.f32.mxu0 0.0
        %3346 = vmatmul.mubr.f32.gmra.mxu0 %v2999
        %v3347 = vpop.f32.mrf.mxu0
        %v3348 = vadd.f32 0.0, %v3347
        %v3349 = vpop.f32.mrf.mxu0
        %3350 = vmatprep.mubr.f32.mxu0 0.0
        %3351 = vmatmul.mubr.f32.gmra.mxu0 %v3002
        %v3352 = vpop.f32.mrf.mxu0
        %v3353 = vpop.f32.mrf.mxu0
        %3354 = vmatprep.mubr.f32.mxu0 0.0
        %3355 = vmatmul.mubr.f32.gmra.mxu0 %v3005
        %v3356 = vpop.f32.mrf.mxu0
        %v3357 = vadd.f32 0.0, %v3356
        %v3358 = vpop.f32.mrf.mxu0
        %3359 = vmatprep.mubr.f32.mxu0 0.0
        %3360 = vmatmul.mubr.f32.gmra.mxu0 %v3008
        %v3361 = vpop.f32.mrf.mxu0
        %v3362 = vadd.f32 0.0, %v3361
        %v3363 = vpop.f32.mrf.mxu0
        %3364 = vmatprep.mubr.f32.mxu0 0.0
        %3365 = vmatmul.mubr.f32.gmra.mxu0 %v3011
        %v3366 = vpop.f32.mrf.mxu0
        %v3367 = vadd.f32 0.0, %v3366
        %v3368 = vpop.f32.mrf.mxu0
        %3369 = vmatprep.mubr.f32.mxu0 0.0
        %3370 = vmatmul.mubr.f32.gmra.mxu0 %v3014
        %v3371 = vpop.f32.mrf.mxu0
        %v3372 = vadd.f32 0.0, %v3371
        %v3373 = vpop.f32.mrf.mxu0
        %3374 = vmatprep.mubr.f32.mxu0 0.0
        %3375 = vmatmul.mubr.f32.gmra.mxu0 %v3017
        %v3376 = vpop.f32.mrf.mxu0
        %v3377 = vpop.f32.mrf.mxu0
        %3378 = vmatprep.mubr.f32.mxu0 0.0
        %3379 = vmatmul.mubr.f32.gmra.mxu0 %v3020
        %v3380 = vpop.f32.mrf.mxu0
        %v3381 = vadd.f32 0.0, %v3380
        %v3382 = vpop.f32.mrf.mxu0
        %3383 = vmatprep.mubr.f32.mxu0 0.0
        %3384 = vmatmul.mubr.f32.gmra.mxu0 %v3023
        %v3385 = vpop.f32.mrf.mxu0
        %v3386 = vadd.f32 0.0, %v3385
        %v3387 = vpop.f32.mrf.mxu0
        %3388 = vmatprep.mubr.f32.mxu0 0.0
        %3389 = vmatmul.mubr.f32.gmra.mxu0 %v3026
        %v3390 = vpop.f32.mrf.mxu0
        %v3391 = vadd.f32 0.0, %v3390
        %v3392 = vpop.f32.mrf.mxu0
        %3393 = vmatprep.mubr.f32.mxu0 0.0
        %3394 = vmatmul.mubr.f32.gmra.mxu0 %v3029
        %v3395 = vpop.f32.mrf.mxu0
        %v3396 = vadd.f32 0.0, %v3395
        %v3397 = vpop.f32.mrf.mxu0
        %3398 = vmatprep.mubr.f32.mxu0 0.0
        %3399 = vmatmul.mubr.f32.gmra.mxu0 %v3032
        %v3400 = vpop.f32.mrf.mxu0
        %v3401 = vpop.f32.mrf.mxu0
        %3402 = vmatprep.mubr.f32.mxu0 0.0
        %3403 = vmatmul.mubr.f32.gmra.mxu0 %v3035
        %v3404 = vpop.f32.mrf.mxu0
        %v3405 = vadd.f32 0.0, %v3404
        %v3406 = vpop.f32.mrf.mxu0
        %3407 = vmatprep.mubr.f32.mxu0 0.0
        %3408 = vmatmul.mubr.f32.gmra.mxu0 %v3038
        %v3409 = vpop.f32.mrf.mxu0
        %v3410 = vadd.f32 0.0, %v3409
        %v3411 = vpop.f32.mrf.mxu0
        %3412 = vmatprep.mubr.f32.mxu0 0.0
        %3413 = vmatmul.mubr.f32.gmra.mxu0 %v3041
        %v3414 = vpop.f32.mrf.mxu0
        %v3415 = vadd.f32 0.0, %v3414
        %v3416 = vpop.f32.mrf.mxu0
        %3417 = vmatprep.mubr.f32.mxu0 0.0
        %3418 = vmatmul.mubr.f32.gmra.mxu0 %v3044
        %v3419 = vpop.f32.mrf.mxu0
        %v3420 = vadd.f32 0.0, %v3419
        %v3421 = vpop.f32.mrf.mxu0
        %3422 = vmatprep.mubr.f32.mxu0 0.0
        %3423 = vmatmul.mubr.f32.gmra.mxu0 %v3047
        %v3424 = vpop.f32.mrf.mxu0
        %v3425 = vpop.f32.mrf.mxu0
        %3426 = vmatprep.mubr.f32.mxu0 0.0
        %3427 = vmatmul.mubr.f32.gmra.mxu0 %v3050
        %v3428 = vpop.f32.mrf.mxu0
        %v3429 = vadd.f32 0.0, %v3428
        %v3430 = vpop.f32.mrf.mxu0
        %3431 = vmatprep.mubr.f32.mxu0 0.0
        %3432 = vmatmul.mubr.f32.gmra.mxu0 %v3053
        %v3433 = vpop.f32.mrf.mxu0
        %v3434 = vadd.f32 0.0, %v3433
        %v3435 = vpop.f32.mrf.mxu0
        %3436 = vmatprep.mubr.f32.mxu0 0.0
        %3437 = vmatmul.mubr.f32.gmra.mxu0 %v3056
        %v3438 = vpop.f32.mrf.mxu0
        %v3439 = vadd.f32 0.0, %v3438
        %v3440 = vpop.f32.mrf.mxu0
        %3441 = vmatprep.mubr.f32.mxu0 0.0
        %3442 = vmatmul.mubr.f32.gmra.mxu0 %v3059
        %v3443 = vpop.f32.mrf.mxu0
        %v3444 = vadd.f32 0.0, %v3443
        %v3445 = vpop.f32.mrf.mxu0
        %3446 = vmatprep.mubr.f32.mxu0 0.0
        %3447 = vmatmul.mubr.f32.gmra.mxu0 %v3062
        %v3448 = vpop.f32.mrf.mxu0
        %v3449 = vpop.f32.mrf.mxu0
        %3450 = vmatprep.mubr.f32.mxu0 0.0
        %3451 = vmatmul.mubr.f32.gmra.mxu0 %v3065
        %v3452 = vpop.f32.mrf.mxu0
        %v3453 = vadd.f32 0.0, %v3452
        %v3454 = vpop.f32.mrf.mxu0
        %3455 = vmatprep.mubr.f32.mxu0 0.0
        %3456 = vmatmul.mubr.f32.gmra.mxu0 %v3068
        %v3457 = vpop.f32.mrf.mxu0
        %v3458 = vadd.f32 0.0, %v3457
        %v3459 = vpop.f32.mrf.mxu0
        %3460 = vmatprep.mubr.f32.mxu0 0.0
        %3461 = vmatmul.mubr.f32.gmra.mxu0 %v3071
        %v3462 = vpop.f32.mrf.mxu0
        %v3463 = vadd.f32 0.0, %v3462
        %v3464 = vpop.f32.mrf.mxu0
        %3465 = vmatprep.mubr.f32.mxu0 0.0
        %3466 = vmatmul.mubr.f32.gmra.mxu0 %v3074
        %v3467 = vpop.f32.mrf.mxu0
        %v3468 = vadd.f32 0.0, %v3467
        %v3469 = vpop.f32.mrf.mxu0
        %3470 = vmatprep.mubr.f32.mxu0 0.0
        %3471 = vmatmul.mubr.f32.gmra.mxu0 %v3077
        %v3472 = vpop.f32.mrf.mxu0
        %v3473 = vpop.f32.mrf.mxu0
        %3474 = vmatprep.mubr.f32.mxu0 0.0
        %3475 = vmatmul.mubr.f32.gmra.mxu0 %v3080
        %v3476 = vpop.f32.mrf.mxu0
        %v3477 = vadd.f32 0.0, %v3476
        %v3478 = vpop.f32.mrf.mxu0
        %3479 = vmatprep.mubr.f32.mxu0 0.0
        %3480 = vmatmul.mubr.f32.gmra.mxu0 %v3083
        %v3481 = vpop.f32.mrf.mxu0
        %v3482 = vadd.f32 0.0, %v3481
        %v3483 = vpop.f32.mrf.mxu0
        %3484 = vmatprep.mubr.f32.mxu0 0.0
        %3485 = vmatmul.mubr.f32.gmra.mxu0 %v3086
        %v3486 = vpop.f32.mrf.mxu0
        %v3487 = vadd.f32 0.0, %v3486
        %v3488 = vpop.f32.mrf.mxu0
        %3489 = vmatprep.mubr.f32.mxu0 0.0
        %3490 = vmatmul.mubr.f32.gmra.mxu0 %v3089
        %v3491 = vpop.f32.mrf.mxu0
        %v3492 = vadd.f32 0.0, %v3491
        %v3493 = vpop.f32.mrf.mxu0
        %3494 = vmatprep.mubr.f32.mxu0 0.0
        %3495 = vmatmul.mubr.f32.gmra.mxu0 %v3092
        %v3496 = vpop.f32.mrf.mxu0
        %v3497 = vpop.f32.mrf.mxu0
        %3498 = vmatprep.mubr.f32.mxu0 0.0
        %3499 = vmatmul.mubr.f32.gmra.mxu0 %v3095
        %v3500 = vpop.f32.mrf.mxu0
        %v3501 = vadd.f32 0.0, %v3500
        %v3502 = vpop.f32.mrf.mxu0
        %3503 = vmatprep.mubr.f32.mxu0 0.0
        %3504 = vmatmul.mubr.f32.gmra.mxu0 %v3098
        %v3505 = vpop.f32.mrf.mxu0
        %v3506 = vadd.f32 0.0, %v3505
        %v3507 = vpop.f32.mrf.mxu0
        %3508 = vmatprep.mubr.f32.mxu0 0.0
        %3509 = vmatmul.mubr.f32.gmra.mxu0 %v3101
        %v3510 = vpop.f32.mrf.mxu0
        %v3511 = vadd.f32 0.0, %v3510
        %v3512 = vpop.f32.mrf.mxu0
        %3513 = vmatprep.mubr.f32.mxu0 0.0
        %3514 = vmatmul.mubr.f32.gmra.mxu0 %v3104
        %v3515 = vpop.f32.mrf.mxu0
        %v3516 = vadd.f32 0.0, %v3515
        %v3517 = vpop.f32.mrf.mxu0
        %3518 = vmatprep.mubr.f32.mxu0 0.0
        %3519 = vmatmul.mubr.f32.gmra.mxu0 %v3107
        %v3520 = vpop.f32.mrf.mxu0
        %v3521 = vpop.f32.mrf.mxu0
        %3522 = vmatprep.mubr.f32.mxu0 0.0
        %3523 = vmatmul.mubr.f32.gmra.mxu0 %v3110
        %v3524 = vpop.f32.mrf.mxu0
        %v3525 = vadd.f32 0.0, %v3524
        %v3526 = vpop.f32.mrf.mxu0
        %3527 = vmatprep.mubr.f32.mxu0 0.0
        %3528 = vmatmul.mubr.f32.gmra.mxu0 %v3113
        %v3529 = vpop.f32.mrf.mxu0
        %v3530 = vadd.f32 0.0, %v3529
        %v3531 = vpop.f32.mrf.mxu0
        %3532 = vmatprep.mubr.f32.mxu0 0.0
        %3533 = vmatmul.mubr.f32.gmra.mxu0 %v3116
        %v3534 = vpop.f32.mrf.mxu0
        %v3535 = vadd.f32 0.0, %v3534
        %v3536 = vpop.f32.mrf.mxu0
        %3537 = vmatprep.mubr.f32.mxu0 0.0
        %3538 = vmatmul.mubr.f32.gmra.mxu0 %v3119
        %v3539 = vpop.f32.mrf.mxu0
        %v3540 = vadd.f32 0.0, %v3539
        %v3541 = vpop.f32.mrf.mxu0
        %3542 = vmatprep.mubr.f32.mxu0 0.0
        %3543 = vmatmul.mubr.f32.gmra.mxu0 %v3122
        %v3544 = vpop.f32.mrf.mxu0
        %v3545 = vpop.f32.mrf.mxu0
        %3546 = vmatprep.mubr.f32.mxu0 0.0
        %3547 = vmatmul.mubr.f32.gmra.mxu0 %v3125
        %v3548 = vpop.f32.mrf.mxu0
        %v3549 = vadd.f32 0.0, %v3548
        %v3550 = vpop.f32.mrf.mxu0
        %3551 = vmatprep.mubr.f32.mxu0 0.0
        %3552 = vmatmul.mubr.f32.gmra.mxu0 %v3128
        %v3553 = vpop.f32.mrf.mxu0
        %v3554 = vadd.f32 0.0, %v3553
        %v3555 = vpop.f32.mrf.mxu0
        %3556 = vmatprep.mubr.f32.mxu0 0.0
        %3557 = vmatmul.mubr.f32.gmra.mxu0 %v3131
        %v3558 = vpop.f32.mrf.mxu0
        %v3559 = vadd.f32 0.0, %v3558
        %v3560 = vpop.f32.mrf.mxu0
        %3561 = vmatprep.mubr.f32.mxu0 0.0
        %3562 = vmatmul.mubr.f32.gmra.mxu0 %v3134
        %v3563 = vpop.f32.mrf.mxu0
        %v3564 = vadd.f32 0.0, %v3563
        %v3565 = vpop.f32.mrf.mxu0
        %3566 = vmatprep.mubr.f32.mxu0 0.0
        %3567 = vmatmul.mubr.f32.gmra.mxu0 %v3137
        %v3568 = vpop.f32.mrf.mxu0
        %v3569 = vpop.f32.mrf.mxu0
        %3570 = vmatprep.mubr.f32.mxu0 0.0
        %3571 = vmatmul.mubr.f32.gmra.mxu0 %v3140
        %v3572 = vpop.f32.mrf.mxu0
        %v3573 = vadd.f32 0.0, %v3572
        %v3574 = vpop.f32.mrf.mxu0
        %3575 = vmatprep.mubr.f32.mxu0 0.0
        %3576 = vmatmul.mubr.f32.gmra.mxu0 %v3143
        %v3577 = vpop.f32.mrf.mxu0
        %v3578 = vadd.f32 0.0, %v3577
        %v3579 = vpop.f32.mrf.mxu0
        %3580 = vmatprep.mubr.f32.mxu0 0.0
        %3581 = vmatmul.mubr.f32.gmra.mxu0 %v3146
        %v3582 = vpop.f32.mrf.mxu0
        %v3583 = vadd.f32 0.0, %v3582
        %v3584 = vpop.f32.mrf.mxu0
        %3585 = vmatprep.mubr.f32.mxu0 0.0
        %3586 = vmatmul.mubr.f32.gmra.mxu0 %v3149
        %v3587 = vpop.f32.mrf.mxu0
        %v3588 = vadd.f32 0.0, %v3587
        %v3589 = vpop.f32.mrf.mxu0
        %3590 = vmatprep.mubr.f32.mxu0 0.0
        %3591 = vmatmul.mubr.f32.gmra.mxu0 %v3152
        %v3592 = vpop.f32.mrf.mxu0
        %v3593 = vpop.f32.mrf.mxu0
        %3594 = vmatprep.mubr.f32.mxu0 0.0
        %3595 = vmatmul.mubr.f32.gmra.mxu0 %v3155
        %v3596 = vpop.f32.mrf.mxu0
        %v3597 = vadd.f32 0.0, %v3596
        %v3598 = vpop.f32.mrf.mxu0
        %3599 = vmatprep.mubr.f32.mxu0 0.0
        %3600 = vmatmul.mubr.f32.gmra.mxu0 %v3158
        %v3601 = vpop.f32.mrf.mxu0
        %v3602 = vadd.f32 0.0, %v3601
        %v3603 = vpop.f32.mrf.mxu0
        %3604 = vmatprep.mubr.f32.mxu0 0.0
        %3605 = vmatmul.mubr.f32.gmra.mxu0 %v3161
        %v3606 = vpop.f32.mrf.mxu0
        %v3607 = vadd.f32 0.0, %v3606
        %v3608 = vpop.f32.mrf.mxu0
        %3609 = vmatprep.mubr.f32.mxu0 0.0
        %3610 = vmatmul.mubr.f32.gmra.mxu0 %v3164
        %v3611 = vpop.f32.mrf.mxu0
        %v3612 = vadd.f32 0.0, %v3611
        %v3613 = vpop.f32.mrf.mxu0
        %3614 = vdwg.mxu0
        %v3616 = vsel %vm519, %v2768, 0
        %v3619 = vsel %vm519, %v2769, 0
        %v3622 = vsel %vm519, %v2770, 0
        %v3625 = vsel %vm519, %v2771, 0
        %v3628 = vsel %vm519, %v2772, 0
        %v3631 = vsel %vm519, %v2773, 0
        %v3634 = vsel %vm519, %v2774, 0
        %v3637 = vsel %vm519, %v2775, 0
        %v3640 = vsel %vm519, %v2776, 0
        %v3643 = vsel %vm519, %v2777, 0
        %v3646 = vsel %vm519, %v2778, 0
        %v3649 = vsel %vm519, %v2779, 0
        %v3652 = vsel %vm519, %v2780, 0
        %v3655 = vsel %vm519, %v2781, 0
        %v3658 = vsel %vm519, %v2782, 0
        %v3661 = vsel %vm519, %v2783, 0
        %v3664 = vsel %vm519, %v2784, 0
        %v3667 = vsel %vm519, %v2785, 0
        %v3670 = vsel %vm519, %v2786, 0
        %v3673 = vsel %vm519, %v2787, 0
        %v3676 = vsel %vm519, %v2788, 0
        %v3679 = vsel %vm519, %v2789, 0
        %v3682 = vsel %vm519, %v2790, 0
        %v3685 = vsel %vm519, %v2791, 0
        %v3688 = vsel %vm519, %v2792, 0
        %v3691 = vsel %vm519, %v2793, 0
        %v3694 = vsel %vm519, %v2794, 0
        %v3697 = vsel %vm519, %v2795, 0
        %v3700 = vsel %vm519, %v2796, 0
        %v3703 = vsel %vm519, %v2797, 0
        %v3706 = vsel %vm519, %v2798, 0
        %v3709 = vsel %vm519, %v2799, 0
        %v3712 = vsel %vm519, %v2800, 0
        %v3715 = vsel %vm519, %v2801, 0
        %v3718 = vsel %vm519, %v2802, 0
        %v3721 = vsel %vm519, %v2803, 0
        %v3724 = vsel %vm519, %v2804, 0
        %v3727 = vsel %vm519, %v2805, 0
        %v3730 = vsel %vm519, %v2806, 0
        %v3733 = vsel %vm519, %v2807, 0
        %v3736 = vsel %vm519, %v2808, 0
        %v3739 = vsel %vm519, %v2809, 0
        %v3742 = vsel %vm519, %v2810, 0
        %v3745 = vsel %vm519, %v2811, 0
        %v3748 = vsel %vm519, %v2812, 0
        %v3751 = vsel %vm519, %v2813, 0
        %v3754 = vsel %vm519, %v2814, 0
        %v3757 = vsel %vm519, %v2815, 0
        %v3760 = vsel %vm519, %v2816, 0
        %v3763 = vsel %vm519, %v2817, 0
        %v3766 = vsel %vm519, %v2818, 0
        %v3769 = vsel %vm519, %v2819, 0
        %v3772 = vsel %vm519, %v2820, 0
        %v3775 = vsel %vm519, %v2821, 0
        %v3778 = vsel %vm519, %v2822, 0
        %v3781 = vsel %vm519, %v2823, 0
        %v3784 = vsel %vm519, %v2824, 0
        %v3787 = vsel %vm519, %v2825, 0
        %v3790 = vsel %vm519, %v2826, 0
        %v3793 = vsel %vm519, %v2827, 0
        %v3796 = vsel %vm519, %v2828, 0
        %v3799 = vsel %vm519, %v2829, 0
        %v3802 = vsel %vm519, %v2830, 0
        %v3805 = vsel %vm519, %v2831, 0
        %v3808 = vsel %vm519, %v2832, 0
        %v3811 = vsel %vm519, %v2833, 0
        %v3814 = vsel %vm519, %v2834, 0
        %v3817 = vsel %vm519, %v2835, 0
        %v3820 = vsel %vm519, %v2836, 0
        %v3823 = vsel %vm519, %v2837, 0
        %v3826 = vsel %vm519, %v2838, 0
        %v3829 = vsel %vm519, %v2839, 0
        %v3832 = vsel %vm519, %v2840, 0
        %v3835 = vsel %vm519, %v2841, 0
        %v3838 = vsel %vm519, %v2842, 0
        %v3841 = vsel %vm519, %v2843, 0
        %v3844 = vsel %vm519, %v2844, 0
        %v3847 = vsel %vm519, %v2845, 0
        %v3850 = vsel %vm519, %v2846, 0
        %v3853 = vsel %vm3166, %v2847, 0
        %3855 = vmatprep.subr.mxu0 0.0
        %3856 = vmatpush1.msra.mxu0 0.0
        %3857 = vmatprep.subr.mxu0 0.0
        %3858 = vmatpush1.msra.mxu0 0.0
        %3859 = vmatprep.subr.mxu0 0.0
        %3860 = vmatpush1.msra.mxu0 0.0
        %3861 = vmatprep.subr.mxu0 0.0
        %3862 = vmatpush1.msra.mxu0 0.0
        %3863 = vmatprep.subr.mxu0 0.0
        %3864 = vmatpush1.msra.mxu0 0.0
        %3865 = vmatprep.subr.mxu0 0.0
        %3866 = vmatpush1.msra.mxu0 0.0
        %3867 = vmatprep.subr.mxu0 0.0
        %3868 = vmatpush1.msra.mxu0 0.0
        %3869 = vmatprep.subr.mxu0 0.0
        %3870 = vmatpush1.msra.mxu0 0.0
        %3871 = vmatprep.subr.mxu0 0.0
        %3872 = vmatpush1.msra.mxu0 0.0
        %3873 = vmatprep.subr.mxu0 0.0
        %3874 = vmatpush1.msra.mxu0 0.0
        %3875 = vmatprep.subr.mxu0 0.0
        %3876 = vmatpush1.msra.mxu0 0.0
        %3877 = vmatprep.subr.mxu0 0.0
        %3878 = vmatpush1.msra.mxu0 0.0
        %3879 = vmatprep.subr.mxu0 0.0
        %3880 = vmatpush1.msra.mxu0 0.0
        %3881 = vmatprep.subr.mxu0 0.0
        %3882 = vmatpush1.msra.mxu0 0.0
        %3883 = vmatprep.subr.mxu0 0.0
        %3884 = vmatpush1.msra.mxu0 0.0
        %3885 = vmatprep.subr.mxu0 0.0
        %3886 = vmatpush1.msra.mxu0 %v3853
        %3887 = vmatprep.subr.mxu0 0.0
        %3888 = vmatpush2.msra.mxu0 0.0
        %3889 = vmatprep.subr.mxu0 0.0
        %3890 = vmatpush2.msra.mxu0 0.0
        %3891 = vmatprep.subr.mxu0 0.0
        %3892 = vmatpush2.msra.mxu0 0.0
        %3893 = vmatprep.subr.mxu0 0.0
        %3894 = vmatpush2.msra.mxu0 0.0
        %3895 = vmatprep.subr.mxu0 0.0
        %3896 = vmatpush2.msra.mxu0 0.0
        %3897 = vmatprep.subr.mxu0 0.0
        %3898 = vmatpush2.msra.mxu0 0.0
        %3899 = vmatprep.subr.mxu0 0.0
        %3900 = vmatpush2.msra.mxu0 0.0
        %3901 = vmatprep.subr.mxu0 0.0
        %3902 = vmatpush2.msra.mxu0 0.0
        %3903 = vmatprep.subr.mxu0 0.0
        %3904 = vmatpush2.msra.mxu0 0.0
        %3905 = vmatprep.subr.mxu0 0.0
        %3906 = vmatpush2.msra.mxu0 0.0
        %3907 = vmatprep.subr.mxu0 0.0
        %3908 = vmatpush2.msra.mxu0 0.0
        %3909 = vmatprep.subr.mxu0 0.0
        %3910 = vmatpush2.msra.mxu0 0.0
        %3911 = vmatprep.subr.mxu0 0.0
        %3912 = vmatpush2.msra.mxu0 0.0
        %3913 = vmatprep.subr.mxu0 0.0
        %3914 = vmatpush2.msra.mxu0 0.0
        %3915 = vmatprep.subr.mxu0 0.0
        %3916 = vmatpush2.msra.mxu0 0.0
        %3917 = vmatprep.subr.mxu0 0.0
        %3918 = vmatpush2.msra.mxu0 0.0
        %3919 = vmatprep.mubr.f32.mxu0 0.0
        %3920 = vmatmul.mubr.f32.gmra.mxu0 %v3616
        %v3921 = vpop.f32.mrf.mxu0
        %v3922 = vadd.f32 %v3237, %v3921
        %v3923 = vpop.f32.mrf.mxu0
        %3924 = vmatprep.mubr.f32.mxu0 0.0
        %3925 = vmatmul.mubr.f32.gmra.mxu0 %v3619
        %v3926 = vpop.f32.mrf.mxu0
        %v3927 = vadd.f32 %v3242, %v3926
        %v3928 = vpop.f32.mrf.mxu0
        %3929 = vmatprep.mubr.f32.mxu0 0.0
        %3930 = vmatmul.mubr.f32.gmra.mxu0 %v3622
        %v3931 = vpop.f32.mrf.mxu0
        %v3932 = vadd.f32 %v3247, %v3931
        %v3933 = vpop.f32.mrf.mxu0
        %3934 = vmatprep.mubr.f32.mxu0 0.0
        %3935 = vmatmul.mubr.f32.gmra.mxu0 %v3625
        %v3936 = vpop.f32.mrf.mxu0
        %v3937 = vadd.f32 %v3252, %v3936
        %v3938 = vpop.f32.mrf.mxu0
        %3939 = vmatprep.mubr.f32.mxu0 0.0
        %3940 = vmatmul.mubr.f32.gmra.mxu0 %v3628
        %v3941 = vpop.f32.mrf.mxu0
        %v3942 = vpop.f32.mrf.mxu0
        %3943 = vmatprep.mubr.f32.mxu0 0.0
        %3944 = vmatmul.mubr.f32.gmra.mxu0 %v3631
        %v3945 = vpop.f32.mrf.mxu0
        %v3946 = vadd.f32 %v3261, %v3945
        %v3947 = vpop.f32.mrf.mxu0
        %3948 = vmatprep.mubr.f32.mxu0 0.0
        %3949 = vmatmul.mubr.f32.gmra.mxu0 %v3634
        %v3950 = vpop.f32.mrf.mxu0
        %v3951 = vadd.f32 %v3266, %v3950
        %v3952 = vpop.f32.mrf.mxu0
        %3953 = vmatprep.mubr.f32.mxu0 0.0
        %3954 = vmatmul.mubr.f32.gmra.mxu0 %v3637
        %v3955 = vpop.f32.mrf.mxu0
        %v3956 = vadd.f32 %v3271, %v3955
        %v3957 = vpop.f32.mrf.mxu0
        %3958 = vmatprep.mubr.f32.mxu0 0.0
        %3959 = vmatmul.mubr.f32.gmra.mxu0 %v3640
        %v3960 = vpop.f32.mrf.mxu0
        %v3961 = vadd.f32 %v3276, %v3960
        %v3962 = vpop.f32.mrf.mxu0
        %3963 = vmatprep.mubr.f32.mxu0 0.0
        %3964 = vmatmul.mubr.f32.gmra.mxu0 %v3643
        %v3965 = vpop.f32.mrf.mxu0
        %v3966 = vpop.f32.mrf.mxu0
        %3967 = vmatprep.mubr.f32.mxu0 0.0
        %3968 = vmatmul.mubr.f32.gmra.mxu0 %v3646
        %v3969 = vpop.f32.mrf.mxu0
        %v3970 = vadd.f32 %v3285, %v3969
        %v3971 = vpop.f32.mrf.mxu0
        %3972 = vmatprep.mubr.f32.mxu0 0.0
        %3973 = vmatmul.mubr.f32.gmra.mxu0 %v3649
        %v3974 = vpop.f32.mrf.mxu0
        %v3975 = vadd.f32 %v3290, %v3974
        %v3976 = vpop.f32.mrf.mxu0
        %3977 = vmatprep.mubr.f32.mxu0 0.0
        %3978 = vmatmul.mubr.f32.gmra.mxu0 %v3652
        %v3979 = vpop.f32.mrf.mxu0
        %v3980 = vadd.f32 %v3295, %v3979
        %v3981 = vpop.f32.mrf.mxu0
        %3982 = vmatprep.mubr.f32.mxu0 0.0
        %3983 = vmatmul.mubr.f32.gmra.mxu0 %v3655
        %v3984 = vpop.f32.mrf.mxu0
        %v3985 = vadd.f32 %v3300, %v3984
        %v3986 = vpop.f32.mrf.mxu0
        %3987 = vmatprep.mubr.f32.mxu0 0.0
        %3988 = vmatmul.mubr.f32.gmra.mxu0 %v3658
        %v3989 = vpop.f32.mrf.mxu0
        %v3990 = vpop.f32.mrf.mxu0
        %3991 = vmatprep.mubr.f32.mxu0 0.0
        %3992 = vmatmul.mubr.f32.gmra.mxu0 %v3661
        %v3993 = vpop.f32.mrf.mxu0
        %v3994 = vadd.f32 %v3309, %v3993
        %v3995 = vpop.f32.mrf.mxu0
        %3996 = vmatprep.mubr.f32.mxu0 0.0
        %3997 = vmatmul.mubr.f32.gmra.mxu0 %v3664
        %v3998 = vpop.f32.mrf.mxu0
        %v3999 = vadd.f32 %v3314, %v3998
        %v4000 = vpop.f32.mrf.mxu0
        %4001 = vmatprep.mubr.f32.mxu0 0.0
        %4002 = vmatmul.mubr.f32.gmra.mxu0 %v3667
        %v4003 = vpop.f32.mrf.mxu0
        %v4004 = vadd.f32 %v3319, %v4003
        %v4005 = vpop.f32.mrf.mxu0
        %4006 = vmatprep.mubr.f32.mxu0 0.0
        %4007 = vmatmul.mubr.f32.gmra.mxu0 %v3670
        %v4008 = vpop.f32.mrf.mxu0
        %v4009 = vadd.f32 %v3324, %v4008
        %v4010 = vpop.f32.mrf.mxu0
        %4011 = vmatprep.mubr.f32.mxu0 0.0
        %4012 = vmatmul.mubr.f32.gmra.mxu0 %v3673
        %v4013 = vpop.f32.mrf.mxu0
        %v4014 = vpop.f32.mrf.mxu0
        %4015 = vmatprep.mubr.f32.mxu0 0.0
        %4016 = vmatmul.mubr.f32.gmra.mxu0 %v3676
        %v4017 = vpop.f32.mrf.mxu0
        %v4018 = vadd.f32 %v3333, %v4017
        %v4019 = vpop.f32.mrf.mxu0
        %4020 = vmatprep.mubr.f32.mxu0 0.0
        %4021 = vmatmul.mubr.f32.gmra.mxu0 %v3679
        %v4022 = vpop.f32.mrf.mxu0
        %v4023 = vadd.f32 %v3338, %v4022
        %v4024 = vpop.f32.mrf.mxu0
        %4025 = vmatprep.mubr.f32.mxu0 0.0
        %4026 = vmatmul.mubr.f32.gmra.mxu0 %v3682
        %v4027 = vpop.f32.mrf.mxu0
        %v4028 = vadd.f32 %v3343, %v4027
        %v4029 = vpop.f32.mrf.mxu0
        %4030 = vmatprep.mubr.f32.mxu0 0.0
        %4031 = vmatmul.mubr.f32.gmra.mxu0 %v3685
        %v4032 = vpop.f32.mrf.mxu0
        %v4033 = vadd.f32 %v3348, %v4032
        %v4034 = vpop.f32.mrf.mxu0
        %4035 = vmatprep.mubr.f32.mxu0 0.0
        %4036 = vmatmul.mubr.f32.gmra.mxu0 %v3688
        %v4037 = vpop.f32.mrf.mxu0
        %v4038 = vpop.f32.mrf.mxu0
        %4039 = vmatprep.mubr.f32.mxu0 0.0
        %4040 = vmatmul.mubr.f32.gmra.mxu0 %v3691
        %v4041 = vpop.f32.mrf.mxu0
        %v4042 = vadd.f32 %v3357, %v4041
        %v4043 = vpop.f32.mrf.mxu0
        %4044 = vmatprep.mubr.f32.mxu0 0.0
        %4045 = vmatmul.mubr.f32.gmra.mxu0 %v3694
        %v4046 = vpop.f32.mrf.mxu0
        %v4047 = vadd.f32 %v3362, %v4046
        %v4048 = vpop.f32.mrf.mxu0
        %4049 = vmatprep.mubr.f32.mxu0 0.0
        %4050 = vmatmul.mubr.f32.gmra.mxu0 %v3697
        %v4051 = vpop.f32.mrf.mxu0
        %v4052 = vadd.f32 %v3367, %v4051
        %v4053 = vpop.f32.mrf.mxu0
        %4054 = vmatprep.mubr.f32.mxu0 0.0
        %4055 = vmatmul.mubr.f32.gmra.mxu0 %v3700
        %v4056 = vpop.f32.mrf.mxu0
        %v4057 = vadd.f32 %v3372, %v4056
        %v4058 = vpop.f32.mrf.mxu0
        %4059 = vmatprep.mubr.f32.mxu0 0.0
        %4060 = vmatmul.mubr.f32.gmra.mxu0 %v3703
        %v4061 = vpop.f32.mrf.mxu0
        %v4062 = vpop.f32.mrf.mxu0
        %4063 = vmatprep.mubr.f32.mxu0 0.0
        %4064 = vmatmul.mubr.f32.gmra.mxu0 %v3706
        %v4065 = vpop.f32.mrf.mxu0
        %v4066 = vadd.f32 %v3381, %v4065
        %v4067 = vpop.f32.mrf.mxu0
        %4068 = vmatprep.mubr.f32.mxu0 0.0
        %4069 = vmatmul.mubr.f32.gmra.mxu0 %v3709
        %v4070 = vpop.f32.mrf.mxu0
        %v4071 = vadd.f32 %v3386, %v4070
        %v4072 = vpop.f32.mrf.mxu0
        %4073 = vmatprep.mubr.f32.mxu0 0.0
        %4074 = vmatmul.mubr.f32.gmra.mxu0 %v3712
        %v4075 = vpop.f32.mrf.mxu0
        %v4076 = vadd.f32 %v3391, %v4075
        %v4077 = vpop.f32.mrf.mxu0
        %4078 = vmatprep.mubr.f32.mxu0 0.0
        %4079 = vmatmul.mubr.f32.gmra.mxu0 %v3715
        %v4080 = vpop.f32.mrf.mxu0
        %v4081 = vadd.f32 %v3396, %v4080
        %v4082 = vpop.f32.mrf.mxu0
        %4083 = vmatprep.mubr.f32.mxu0 0.0
        %4084 = vmatmul.mubr.f32.gmra.mxu0 %v3718
        %v4085 = vpop.f32.mrf.mxu0
        %v4086 = vpop.f32.mrf.mxu0
        %4087 = vmatprep.mubr.f32.mxu0 0.0
        %4088 = vmatmul.mubr.f32.gmra.mxu0 %v3721
        %v4089 = vpop.f32.mrf.mxu0
        %v4090 = vadd.f32 %v3405, %v4089
        %v4091 = vpop.f32.mrf.mxu0
        %4092 = vmatprep.mubr.f32.mxu0 0.0
        %4093 = vmatmul.mubr.f32.gmra.mxu0 %v3724
        %v4094 = vpop.f32.mrf.mxu0
        %v4095 = vadd.f32 %v3410, %v4094
        %v4096 = vpop.f32.mrf.mxu0
        %4097 = vmatprep.mubr.f32.mxu0 0.0
        %4098 = vmatmul.mubr.f32.gmra.mxu0 %v3727
        %v4099 = vpop.f32.mrf.mxu0
        %v4100 = vadd.f32 %v3415, %v4099
        %v4101 = vpop.f32.mrf.mxu0
        %4102 = vmatprep.mubr.f32.mxu0 0.0
        %4103 = vmatmul.mubr.f32.gmra.mxu0 %v3730
        %v4104 = vpop.f32.mrf.mxu0
        %v4105 = vadd.f32 %v3420, %v4104
        %v4106 = vpop.f32.mrf.mxu0
        %4107 = vmatprep.mubr.f32.mxu0 0.0
        %4108 = vmatmul.mubr.f32.gmra.mxu0 %v3733
        %v4109 = vpop.f32.mrf.mxu0
        %v4110 = vpop.f32.mrf.mxu0
        %4111 = vmatprep.mubr.f32.mxu0 0.0
        %4112 = vmatmul.mubr.f32.gmra.mxu0 %v3736
        %v4113 = vpop.f32.mrf.mxu0
        %v4114 = vadd.f32 %v3429, %v4113
        %v4115 = vpop.f32.mrf.mxu0
        %4116 = vmatprep.mubr.f32.mxu0 0.0
        %4117 = vmatmul.mubr.f32.gmra.mxu0 %v3739
        %v4118 = vpop.f32.mrf.mxu0
        %v4119 = vadd.f32 %v3434, %v4118
        %v4120 = vpop.f32.mrf.mxu0
        %4121 = vmatprep.mubr.f32.mxu0 0.0
        %4122 = vmatmul.mubr.f32.gmra.mxu0 %v3742
        %v4123 = vpop.f32.mrf.mxu0
        %v4124 = vadd.f32 %v3439, %v4123
        %v4125 = vpop.f32.mrf.mxu0
        %4126 = vmatprep.mubr.f32.mxu0 0.0
        %4127 = vmatmul.mubr.f32.gmra.mxu0 %v3745
        %v4128 = vpop.f32.mrf.mxu0
        %v4129 = vadd.f32 %v3444, %v4128
        %v4130 = vpop.f32.mrf.mxu0
        %4131 = vmatprep.mubr.f32.mxu0 0.0
        %4132 = vmatmul.mubr.f32.gmra.mxu0 %v3748
        %v4133 = vpop.f32.mrf.mxu0
        %v4134 = vpop.f32.mrf.mxu0
        %4135 = vmatprep.mubr.f32.mxu0 0.0
        %4136 = vmatmul.mubr.f32.gmra.mxu0 %v3751
        %v4137 = vpop.f32.mrf.mxu0
        %v4138 = vadd.f32 %v3453, %v4137
        %v4139 = vpop.f32.mrf.mxu0
        %4140 = vmatprep.mubr.f32.mxu0 0.0
        %4141 = vmatmul.mubr.f32.gmra.mxu0 %v3754
        %v4142 = vpop.f32.mrf.mxu0
        %v4143 = vadd.f32 %v3458, %v4142
        %v4144 = vpop.f32.mrf.mxu0
        %4145 = vmatprep.mubr.f32.mxu0 0.0
        %4146 = vmatmul.mubr.f32.gmra.mxu0 %v3757
        %v4147 = vpop.f32.mrf.mxu0
        %v4148 = vadd.f32 %v3463, %v4147
        %v4149 = vpop.f32.mrf.mxu0
        %4150 = vmatprep.mubr.f32.mxu0 0.0
        %4151 = vmatmul.mubr.f32.gmra.mxu0 %v3760
        %v4152 = vpop.f32.mrf.mxu0
        %v4153 = vadd.f32 %v3468, %v4152
        %v4154 = vpop.f32.mrf.mxu0
        %4155 = vmatprep.mubr.f32.mxu0 0.0
        %4156 = vmatmul.mubr.f32.gmra.mxu0 %v3763
        %v4157 = vpop.f32.mrf.mxu0
        %v4158 = vpop.f32.mrf.mxu0
        %4159 = vmatprep.mubr.f32.mxu0 0.0
        %4160 = vmatmul.mubr.f32.gmra.mxu0 %v3766
        %v4161 = vpop.f32.mrf.mxu0
        %v4162 = vadd.f32 %v3477, %v4161
        %v4163 = vpop.f32.mrf.mxu0
        %4164 = vmatprep.mubr.f32.mxu0 0.0
        %4165 = vmatmul.mubr.f32.gmra.mxu0 %v3769
        %v4166 = vpop.f32.mrf.mxu0
        %v4167 = vadd.f32 %v3482, %v4166
        %v4168 = vpop.f32.mrf.mxu0
        %4169 = vmatprep.mubr.f32.mxu0 0.0
        %4170 = vmatmul.mubr.f32.gmra.mxu0 %v3772
        %v4171 = vpop.f32.mrf.mxu0
        %v4172 = vadd.f32 %v3487, %v4171
        %v4173 = vpop.f32.mrf.mxu0
        %4174 = vmatprep.mubr.f32.mxu0 0.0
        %4175 = vmatmul.mubr.f32.gmra.mxu0 %v3775
        %v4176 = vpop.f32.mrf.mxu0
        %v4177 = vadd.f32 %v3492, %v4176
        %v4178 = vpop.f32.mrf.mxu0
        %4179 = vmatprep.mubr.f32.mxu0 0.0
        %4180 = vmatmul.mubr.f32.gmra.mxu0 %v3778
        %v4181 = vpop.f32.mrf.mxu0
        %v4182 = vpop.f32.mrf.mxu0
        %4183 = vmatprep.mubr.f32.mxu0 0.0
        %4184 = vmatmul.mubr.f32.gmra.mxu0 %v3781
        %v4185 = vpop.f32.mrf.mxu0
        %v4186 = vadd.f32 %v3501, %v4185
        %v4187 = vpop.f32.mrf.mxu0
        %4188 = vmatprep.mubr.f32.mxu0 0.0
        %4189 = vmatmul.mubr.f32.gmra.mxu0 %v3784
        %v4190 = vpop.f32.mrf.mxu0
        %v4191 = vadd.f32 %v3506, %v4190
        %v4192 = vpop.f32.mrf.mxu0
        %4193 = vmatprep.mubr.f32.mxu0 0.0
        %4194 = vmatmul.mubr.f32.gmra.mxu0 %v3787
        %v4195 = vpop.f32.mrf.mxu0
        %v4196 = vadd.f32 %v3511, %v4195
        %v4197 = vpop.f32.mrf.mxu0
        %4198 = vmatprep.mubr.f32.mxu0 0.0
        %4199 = vmatmul.mubr.f32.gmra.mxu0 %v3790
        %v4200 = vpop.f32.mrf.mxu0
        %v4201 = vadd.f32 %v3516, %v4200
        %v4202 = vpop.f32.mrf.mxu0
        %4203 = vmatprep.mubr.f32.mxu0 0.0
        %4204 = vmatmul.mubr.f32.gmra.mxu0 %v3793
        %v4205 = vpop.f32.mrf.mxu0
        %v4206 = vpop.f32.mrf.mxu0
        %4207 = vmatprep.mubr.f32.mxu0 0.0
        %4208 = vmatmul.mubr.f32.gmra.mxu0 %v3796
        %v4209 = vpop.f32.mrf.mxu0
        %v4210 = vadd.f32 %v3525, %v4209
        %v4211 = vpop.f32.mrf.mxu0
        %4212 = vmatprep.mubr.f32.mxu0 0.0
        %4213 = vmatmul.mubr.f32.gmra.mxu0 %v3799
        %v4214 = vpop.f32.mrf.mxu0
        %v4215 = vadd.f32 %v3530, %v4214
        %v4216 = vpop.f32.mrf.mxu0
        %4217 = vmatprep.mubr.f32.mxu0 0.0
        %4218 = vmatmul.mubr.f32.gmra.mxu0 %v3802
        %v4219 = vpop.f32.mrf.mxu0
        %v4220 = vadd.f32 %v3535, %v4219
        %v4221 = vpop.f32.mrf.mxu0
        %4222 = vmatprep.mubr.f32.mxu0 0.0
        %4223 = vmatmul.mubr.f32.gmra.mxu0 %v3805
        %v4224 = vpop.f32.mrf.mxu0
        %v4225 = vadd.f32 %v3540, %v4224
        %v4226 = vpop.f32.mrf.mxu0
        %4227 = vmatprep.mubr.f32.mxu0 0.0
        %4228 = vmatmul.mubr.f32.gmra.mxu0 %v3808
        %v4229 = vpop.f32.mrf.mxu0
        %v4230 = vpop.f32.mrf.mxu0
        %4231 = vmatprep.mubr.f32.mxu0 0.0
        %4232 = vmatmul.mubr.f32.gmra.mxu0 %v3811
        %v4233 = vpop.f32.mrf.mxu0
        %v4234 = vadd.f32 %v3549, %v4233
        %v4235 = vpop.f32.mrf.mxu0
        %4236 = vmatprep.mubr.f32.mxu0 0.0
        %4237 = vmatmul.mubr.f32.gmra.mxu0 %v3814
        %v4238 = vpop.f32.mrf.mxu0
        %v4239 = vadd.f32 %v3554, %v4238
        %v4240 = vpop.f32.mrf.mxu0
        %4241 = vmatprep.mubr.f32.mxu0 0.0
        %4242 = vmatmul.mubr.f32.gmra.mxu0 %v3817
        %v4243 = vpop.f32.mrf.mxu0
        %v4244 = vadd.f32 %v3559, %v4243
        %v4245 = vpop.f32.mrf.mxu0
        %4246 = vmatprep.mubr.f32.mxu0 0.0
        %4247 = vmatmul.mubr.f32.gmra.mxu0 %v3820
        %v4248 = vpop.f32.mrf.mxu0
        %v4249 = vadd.f32 %v3564, %v4248
        %v4250 = vpop.f32.mrf.mxu0
        %4251 = vmatprep.mubr.f32.mxu0 0.0
        %4252 = vmatmul.mubr.f32.gmra.mxu0 %v3823
        %v4253 = vpop.f32.mrf.mxu0
        %v4254 = vpop.f32.mrf.mxu0
        %4255 = vmatprep.mubr.f32.mxu0 0.0
        %4256 = vmatmul.mubr.f32.gmra.mxu0 %v3826
        %v4257 = vpop.f32.mrf.mxu0
        %v4258 = vadd.f32 %v3573, %v4257
        %v4259 = vpop.f32.mrf.mxu0
        %4260 = vmatprep.mubr.f32.mxu0 0.0
        %4261 = vmatmul.mubr.f32.gmra.mxu0 %v3829
        %v4262 = vpop.f32.mrf.mxu0
        %v4263 = vadd.f32 %v3578, %v4262
        %v4264 = vpop.f32.mrf.mxu0
        %4265 = vmatprep.mubr.f32.mxu0 0.0
        %4266 = vmatmul.mubr.f32.gmra.mxu0 %v3832
        %v4267 = vpop.f32.mrf.mxu0
        %v4268 = vadd.f32 %v3583, %v4267
        %v4269 = vpop.f32.mrf.mxu0
        %4270 = vmatprep.mubr.f32.mxu0 0.0
        %4271 = vmatmul.mubr.f32.gmra.mxu0 %v3835
        %v4272 = vpop.f32.mrf.mxu0
        %v4273 = vadd.f32 %v3588, %v4272
        %v4274 = vpop.f32.mrf.mxu0
        %4275 = vmatprep.mubr.f32.mxu0 0.0
        %4276 = vmatmul.mubr.f32.gmra.mxu0 %v3838
        %v4277 = vpop.f32.mrf.mxu0
        %v4278 = vpop.f32.mrf.mxu0
        %4279 = vmatprep.mubr.f32.mxu0 0.0
        %4280 = vmatmul.mubr.f32.gmra.mxu0 %v3841
        %v4281 = vpop.f32.mrf.mxu0
        %v4282 = vadd.f32 %v3597, %v4281
        %v4283 = vpop.f32.mrf.mxu0
        %4284 = vmatprep.mubr.f32.mxu0 0.0
        %4285 = vmatmul.mubr.f32.gmra.mxu0 %v3844
        %v4286 = vpop.f32.mrf.mxu0
        %v4287 = vadd.f32 %v3602, %v4286
        %v4288 = vpop.f32.mrf.mxu0
        %4289 = vmatprep.mubr.f32.mxu0 0.0
        %4290 = vmatmul.mubr.f32.gmra.mxu0 %v3847
        %v4291 = vpop.f32.mrf.mxu0
        %v4292 = vadd.f32 %v3607, %v4291
        %v4293 = vpop.f32.mrf.mxu0
        %4294 = vmatprep.mubr.f32.mxu0 0.0
        %4295 = vmatmul.mubr.f32.gmra.mxu0 %v3850
        %v4296 = vpop.f32.mrf.mxu0
        %v4297 = vadd.f32 %v3612, %v4296
        %v4298 = vpop.f32.mrf.mxu0
        %4299 = vdwg.mxu0
        %v4300 = vld [vmem:[#allocation2 + $0x2] sm:$0xff]
        %v4301 = vld [vmem:[#allocation2 + $0xa] sm:$0xff]
        %v4302 = vld [vmem:[#allocation2 + $0x12] sm:$0xff]
        %v4303 = vld [vmem:[#allocation2 + $0x1a] sm:$0xff]
        %v4304 = vld [vmem:[#allocation2 + $0x22] sm:$0xff]
        %v4305 = vld [vmem:[#allocation2 + $0x2a] sm:$0xff]
        %v4306 = vld [vmem:[#allocation2 + $0x32] sm:$0xff]
        %v4307 = vld [vmem:[#allocation2 + $0x3a] sm:$0xff]
        %v4308 = vld [vmem:[#allocation2 + $0x42] sm:$0xff]
        %v4309 = vld [vmem:[#allocation2 + $0x4a] sm:$0xff]
        %v4310 = vld [vmem:[#allocation2 + $0x52] sm:$0xff]
        %v4311 = vld [vmem:[#allocation2 + $0x5a] sm:$0xff]
        %v4312 = vld [vmem:[#allocation2 + $0x62] sm:$0xff]
        %v4313 = vld [vmem:[#allocation2 + $0x6a] sm:$0xff]
        %v4314 = vld [vmem:[#allocation2 + $0x72] sm:$0xff]
        %v4315 = vld [vmem:[#allocation2 + $0x7a] sm:$0xff]
        %v4316 = vld [vmem:[#allocation2 + $0x82] sm:$0xff]
        %v4317 = vld [vmem:[#allocation2 + $0x8a] sm:$0xff]
        %v4318 = vld [vmem:[#allocation2 + $0x92] sm:$0xff]
        %v4319 = vld [vmem:[#allocation2 + $0x9a] sm:$0xff]
        %v4320 = vld [vmem:[#allocation2 + $0xa2] sm:$0xff]
        %v4321 = vld [vmem:[#allocation2 + $0xaa] sm:$0xff]
        %v4322 = vld [vmem:[#allocation2 + $0xb2] sm:$0xff]
        %v4323 = vld [vmem:[#allocation2 + $0xba] sm:$0xff]
        %v4324 = vld [vmem:[#allocation2 + $0xc2] sm:$0xff]
        %v4325 = vld [vmem:[#allocation2 + $0xca] sm:$0xff]
        %v4326 = vld [vmem:[#allocation2 + $0xd2] sm:$0xff]
        %v4327 = vld [vmem:[#allocation2 + $0xda] sm:$0xff]
        %v4328 = vld [vmem:[#allocation2 + $0xe2] sm:$0xff]
        %v4329 = vld [vmem:[#allocation2 + $0xea] sm:$0xff]
        %v4330 = vld [vmem:[#allocation2 + $0xf2] sm:$0xff]
        %v4331 = vld [vmem:[#allocation2 + $0xfa] sm:$0xff]
        %v4332 = vld [vmem:[#allocation2 + $0x102] sm:$0xff]
        %v4333 = vld [vmem:[#allocation2 + $0x10a] sm:$0xff]
        %v4334 = vld [vmem:[#allocation2 + $0x112] sm:$0xff]
        %v4335 = vld [vmem:[#allocation2 + $0x11a] sm:$0xff]
        %v4336 = vld [vmem:[#allocation2 + $0x122] sm:$0xff]
        %v4337 = vld [vmem:[#allocation2 + $0x12a] sm:$0xff]
        %v4338 = vld [vmem:[#allocation2 + $0x132] sm:$0xff]
        %v4339 = vld [vmem:[#allocation2 + $0x13a] sm:$0xff]
        %v4340 = vld [vmem:[#allocation2 + $0x142] sm:$0xff]
        %v4341 = vld [vmem:[#allocation2 + $0x14a] sm:$0xff]
        %v4342 = vld [vmem:[#allocation2 + $0x152] sm:$0xff]
        %v4343 = vld [vmem:[#allocation2 + $0x15a] sm:$0xff]
        %v4344 = vld [vmem:[#allocation2 + $0x162] sm:$0xff]
        %v4345 = vld [vmem:[#allocation2 + $0x16a] sm:$0xff]
        %v4346 = vld [vmem:[#allocation2 + $0x172] sm:$0xff]
        %v4347 = vld [vmem:[#allocation2 + $0x17a] sm:$0xff]
        %v4348 = vld [vmem:[#allocation2 + $0x182] sm:$0xff]
        %v4349 = vld [vmem:[#allocation2 + $0x18a] sm:$0xff]
        %v4350 = vld [vmem:[#allocation2 + $0x192] sm:$0xff]
        %v4351 = vld [vmem:[#allocation2 + $0x19a] sm:$0xff]
        %v4352 = vld [vmem:[#allocation2 + $0x1a2] sm:$0xff]
        %v4353 = vld [vmem:[#allocation2 + $0x1aa] sm:$0xff]
        %v4354 = vld [vmem:[#allocation2 + $0x1b2] sm:$0xff]
        %v4355 = vld [vmem:[#allocation2 + $0x1ba] sm:$0xff]
        %v4356 = vld [vmem:[#allocation2 + $0x1c2] sm:$0xff]
        %v4357 = vld [vmem:[#allocation2 + $0x1ca] sm:$0xff]
        %v4358 = vld [vmem:[#allocation2 + $0x1d2] sm:$0xff]
        %v4359 = vld [vmem:[#allocation2 + $0x1da] sm:$0xff]
        %v4360 = vld [vmem:[#allocation2 + $0x1e2] sm:$0xff]
        %v4361 = vld [vmem:[#allocation2 + $0x1ea] sm:$0xff]
        %v4362 = vld [vmem:[#allocation2 + $0x1f2] sm:$0xff]
        %v4363 = vld [vmem:[#allocation2 + $0x1fa] sm:$0xff]
        %v4364 = vld [vmem:[#allocation2 + $0x202] sm:$0xff]
        %v4365 = vld [vmem:[#allocation2 + $0x20a] sm:$0xff]
        %v4366 = vld [vmem:[#allocation2 + $0x212] sm:$0xff]
        %v4367 = vld [vmem:[#allocation2 + $0x21a] sm:$0xff]
        %v4368 = vld [vmem:[#allocation2 + $0x222] sm:$0xff]
        %v4369 = vld [vmem:[#allocation2 + $0x22a] sm:$0xff]
        %v4370 = vld [vmem:[#allocation2 + $0x232] sm:$0xff]
        %v4371 = vld [vmem:[#allocation2 + $0x23a] sm:$0xff]
        %v4372 = vld [vmem:[#allocation2 + $0x242] sm:$0xff]
        %v4373 = vld [vmem:[#allocation2 + $0x24a] sm:$0xff]
        %v4374 = vld [vmem:[#allocation2 + $0x252] sm:$0xff]
        %v4375 = vld [vmem:[#allocation2 + $0x25a] sm:$0xff]
        %v4376 = vld [vmem:[#allocation2 + $0x262] sm:$0xff]
        %v4377 = vld [vmem:[#allocation2 + $0x26a] sm:$0xff]
        %v4378 = vld [vmem:[#allocation2 + $0x272] sm:$0xff]
        %s4379 = scalar_lea.vmem %s5, 8
        %v4380 = vld [vmem:[%s4379] sm:$0xf]
        %v4382 = vsel %vm519, %v4300, 0
        %v4385 = vsel %vm519, %v4301, 0
        %v4388 = vsel %vm519, %v4302, 0
        %v4391 = vsel %vm519, %v4303, 0
        %v4394 = vsel %vm519, %v4304, 0
        %v4397 = vsel %vm519, %v4305, 0
        %v4400 = vsel %vm519, %v4306, 0
        %v4403 = vsel %vm519, %v4307, 0
        %v4406 = vsel %vm519, %v4308, 0
        %v4409 = vsel %vm519, %v4309, 0
        %v4412 = vsel %vm519, %v4310, 0
        %v4415 = vsel %vm519, %v4311, 0
        %v4418 = vsel %vm519, %v4312, 0
        %v4421 = vsel %vm519, %v4313, 0
        %v4424 = vsel %vm519, %v4314, 0
        %v4427 = vsel %vm519, %v4315, 0
        %v4430 = vsel %vm519, %v4316, 0
        %v4433 = vsel %vm519, %v4317, 0
        %v4436 = vsel %vm519, %v4318, 0
        %v4439 = vsel %vm519, %v4319, 0
        %v4442 = vsel %vm519, %v4320, 0
        %v4445 = vsel %vm519, %v4321, 0
        %v4448 = vsel %vm519, %v4322, 0
        %v4451 = vsel %vm519, %v4323, 0
        %v4454 = vsel %vm519, %v4324, 0
        %v4457 = vsel %vm519, %v4325, 0
        %v4460 = vsel %vm519, %v4326, 0
        %v4463 = vsel %vm519, %v4327, 0
        %v4466 = vsel %vm519, %v4328, 0
        %v4469 = vsel %vm519, %v4329, 0
        %v4472 = vsel %vm519, %v4330, 0
        %v4475 = vsel %vm519, %v4331, 0
        %v4478 = vsel %vm519, %v4332, 0
        %v4481 = vsel %vm519, %v4333, 0
        %v4484 = vsel %vm519, %v4334, 0
        %v4487 = vsel %vm519, %v4335, 0
        %v4490 = vsel %vm519, %v4336, 0
        %v4493 = vsel %vm519, %v4337, 0
        %v4496 = vsel %vm519, %v4338, 0
        %v4499 = vsel %vm519, %v4339, 0
        %v4502 = vsel %vm519, %v4340, 0
        %v4505 = vsel %vm519, %v4341, 0
        %v4508 = vsel %vm519, %v4342, 0
        %v4511 = vsel %vm519, %v4343, 0
        %v4514 = vsel %vm519, %v4344, 0
        %v4517 = vsel %vm519, %v4345, 0
        %v4520 = vsel %vm519, %v4346, 0
        %v4523 = vsel %vm519, %v4347, 0
        %v4526 = vsel %vm519, %v4348, 0
        %v4529 = vsel %vm519, %v4349, 0
        %v4532 = vsel %vm519, %v4350, 0
        %v4535 = vsel %vm519, %v4351, 0
        %v4538 = vsel %vm519, %v4352, 0
        %v4541 = vsel %vm519, %v4353, 0
        %v4544 = vsel %vm519, %v4354, 0
        %v4547 = vsel %vm519, %v4355, 0
        %v4550 = vsel %vm519, %v4356, 0
        %v4553 = vsel %vm519, %v4357, 0
        %v4556 = vsel %vm519, %v4358, 0
        %v4559 = vsel %vm519, %v4359, 0
        %v4562 = vsel %vm519, %v4360, 0
        %v4565 = vsel %vm519, %v4361, 0
        %v4568 = vsel %vm519, %v4362, 0
        %v4571 = vsel %vm519, %v4363, 0
        %v4574 = vsel %vm519, %v4364, 0
        %v4577 = vsel %vm519, %v4365, 0
        %v4580 = vsel %vm519, %v4366, 0
        %v4583 = vsel %vm519, %v4367, 0
        %v4586 = vsel %vm519, %v4368, 0
        %v4589 = vsel %vm519, %v4369, 0
        %v4592 = vsel %vm519, %v4370, 0
        %v4595 = vsel %vm519, %v4371, 0
        %v4598 = vsel %vm519, %v4372, 0
        %v4601 = vsel %vm519, %v4373, 0
        %v4604 = vsel %vm519, %v4374, 0
        %v4607 = vsel %vm519, %v4375, 0
        %v4610 = vsel %vm519, %v4376, 0
        %v4613 = vsel %vm519, %v4377, 0
        %v4616 = vsel %vm519, %v4378, 0
        %v4619 = vsel %vm3166, %v4380, 0
        %4621 = vmatprep.subr.mxu0 0.0
        %4622 = vmatpush1.msra.mxu0 0.0
        %4623 = vmatprep.subr.mxu0 0.0
        %4624 = vmatpush1.msra.mxu0 0.0
        %4625 = vmatprep.subr.mxu0 0.0
        %4626 = vmatpush1.msra.mxu0 0.0
        %4627 = vmatprep.subr.mxu0 0.0
        %4628 = vmatpush1.msra.mxu0 0.0
        %4629 = vmatprep.subr.mxu0 0.0
        %4630 = vmatpush1.msra.mxu0 0.0
        %4631 = vmatprep.subr.mxu0 0.0
        %4632 = vmatpush1.msra.mxu0 0.0
        %4633 = vmatprep.subr.mxu0 0.0
        %4634 = vmatpush1.msra.mxu0 0.0
        %4635 = vmatprep.subr.mxu0 0.0
        %4636 = vmatpush1.msra.mxu0 0.0
        %4637 = vmatprep.subr.mxu0 0.0
        %4638 = vmatpush1.msra.mxu0 0.0
        %4639 = vmatprep.subr.mxu0 0.0
        %4640 = vmatpush1.msra.mxu0 0.0
        %4641 = vmatprep.subr.mxu0 0.0
        %4642 = vmatpush1.msra.mxu0 0.0
        %4643 = vmatprep.subr.mxu0 0.0
        %4644 = vmatpush1.msra.mxu0 0.0
        %4645 = vmatprep.subr.mxu0 0.0
        %4646 = vmatpush1.msra.mxu0 0.0
        %4647 = vmatprep.subr.mxu0 0.0
        %4648 = vmatpush1.msra.mxu0 0.0
        %4649 = vmatprep.subr.mxu0 0.0
        %4650 = vmatpush1.msra.mxu0 0.0
        %4651 = vmatprep.subr.mxu0 0.0
        %4652 = vmatpush1.msra.mxu0 %v4619
        %4653 = vmatprep.subr.mxu0 0.0
        %4654 = vmatpush2.msra.mxu0 0.0
        %4655 = vmatprep.subr.mxu0 0.0
        %4656 = vmatpush2.msra.mxu0 0.0
        %4657 = vmatprep.subr.mxu0 0.0
        %4658 = vmatpush2.msra.mxu0 0.0
        %4659 = vmatprep.subr.mxu0 0.0
        %4660 = vmatpush2.msra.mxu0 0.0
        %4661 = vmatprep.subr.mxu0 0.0
        %4662 = vmatpush2.msra.mxu0 0.0
        %4663 = vmatprep.subr.mxu0 0.0
        %4664 = vmatpush2.msra.mxu0 0.0
        %4665 = vmatprep.subr.mxu0 0.0
        %4666 = vmatpush2.msra.mxu0 0.0
        %4667 = vmatprep.subr.mxu0 0.0
        %4668 = vmatpush2.msra.mxu0 0.0
        %4669 = vmatprep.subr.mxu0 0.0
        %4670 = vmatpush2.msra.mxu0 0.0
        %4671 = vmatprep.subr.mxu0 0.0
        %4672 = vmatpush2.msra.mxu0 0.0
        %4673 = vmatprep.subr.mxu0 0.0
        %4674 = vmatpush2.msra.mxu0 0.0
        %4675 = vmatprep.subr.mxu0 0.0
        %4676 = vmatpush2.msra.mxu0 0.0
        %4677 = vmatprep.subr.mxu0 0.0
        %4678 = vmatpush2.msra.mxu0 0.0
        %4679 = vmatprep.subr.mxu0 0.0
        %4680 = vmatpush2.msra.mxu0 0.0
        %4681 = vmatprep.subr.mxu0 0.0
        %4682 = vmatpush2.msra.mxu0 0.0
        %4683 = vmatprep.subr.mxu0 0.0
        %4684 = vmatpush2.msra.mxu0 0.0
        %4685 = vmatprep.mubr.f32.mxu0 0.0
        %4686 = vmatmul.mubr.f32.gmra.mxu0 %v4382
        %v4687 = vpop.f32.mrf.mxu0
        %v4688 = vadd.f32 0.0, %v4687
        %v4689 = vpop.f32.mrf.mxu0
        %4690 = vmatprep.mubr.f32.mxu0 0.0
        %4691 = vmatmul.mubr.f32.gmra.mxu0 %v4385
        %v4692 = vpop.f32.mrf.mxu0
        %v4693 = vadd.f32 0.0, %v4692
        %v4694 = vpop.f32.mrf.mxu0
        %4695 = vmatprep.mubr.f32.mxu0 0.0
        %4696 = vmatmul.mubr.f32.gmra.mxu0 %v4388
        %v4697 = vpop.f32.mrf.mxu0
        %v4698 = vadd.f32 0.0, %v4697
        %v4699 = vpop.f32.mrf.mxu0
        %4700 = vmatprep.mubr.f32.mxu0 0.0
        %4701 = vmatmul.mubr.f32.gmra.mxu0 %v4391
        %v4702 = vpop.f32.mrf.mxu0
        %v4703 = vadd.f32 0.0, %v4702
        %v4704 = vpop.f32.mrf.mxu0
        %4705 = vmatprep.mubr.f32.mxu0 0.0
        %4706 = vmatmul.mubr.f32.gmra.mxu0 %v4394
        %v4707 = vpop.f32.mrf.mxu0
        %v4708 = vpop.f32.mrf.mxu0
        %4709 = vmatprep.mubr.f32.mxu0 0.0
        %4710 = vmatmul.mubr.f32.gmra.mxu0 %v4397
        %v4711 = vpop.f32.mrf.mxu0
        %v4712 = vadd.f32 0.0, %v4711
        %v4713 = vpop.f32.mrf.mxu0
        %4714 = vmatprep.mubr.f32.mxu0 0.0
        %4715 = vmatmul.mubr.f32.gmra.mxu0 %v4400
        %v4716 = vpop.f32.mrf.mxu0
        %v4717 = vadd.f32 0.0, %v4716
        %v4718 = vpop.f32.mrf.mxu0
        %4719 = vmatprep.mubr.f32.mxu0 0.0
        %4720 = vmatmul.mubr.f32.gmra.mxu0 %v4403
        %v4721 = vpop.f32.mrf.mxu0
        %v4722 = vadd.f32 0.0, %v4721
        %v4723 = vpop.f32.mrf.mxu0
        %4724 = vmatprep.mubr.f32.mxu0 0.0
        %4725 = vmatmul.mubr.f32.gmra.mxu0 %v4406
        %v4726 = vpop.f32.mrf.mxu0
        %v4727 = vadd.f32 0.0, %v4726
        %v4728 = vpop.f32.mrf.mxu0
        %4729 = vmatprep.mubr.f32.mxu0 0.0
        %4730 = vmatmul.mubr.f32.gmra.mxu0 %v4409
        %v4731 = vpop.f32.mrf.mxu0
        %v4732 = vpop.f32.mrf.mxu0
        %4733 = vmatprep.mubr.f32.mxu0 0.0
        %4734 = vmatmul.mubr.f32.gmra.mxu0 %v4412
        %v4735 = vpop.f32.mrf.mxu0
        %v4736 = vadd.f32 0.0, %v4735
        %v4737 = vpop.f32.mrf.mxu0
        %4738 = vmatprep.mubr.f32.mxu0 0.0
        %4739 = vmatmul.mubr.f32.gmra.mxu0 %v4415
        %v4740 = vpop.f32.mrf.mxu0
        %v4741 = vadd.f32 0.0, %v4740
        %v4742 = vpop.f32.mrf.mxu0
        %4743 = vmatprep.mubr.f32.mxu0 0.0
        %4744 = vmatmul.mubr.f32.gmra.mxu0 %v4418
        %v4745 = vpop.f32.mrf.mxu0
        %v4746 = vadd.f32 0.0, %v4745
        %v4747 = vpop.f32.mrf.mxu0
        %4748 = vmatprep.mubr.f32.mxu0 0.0
        %4749 = vmatmul.mubr.f32.gmra.mxu0 %v4421
        %v4750 = vpop.f32.mrf.mxu0
        %v4751 = vadd.f32 0.0, %v4750
        %v4752 = vpop.f32.mrf.mxu0
        %4753 = vmatprep.mubr.f32.mxu0 0.0
        %4754 = vmatmul.mubr.f32.gmra.mxu0 %v4424
        %v4755 = vpop.f32.mrf.mxu0
        %v4756 = vpop.f32.mrf.mxu0
        %4757 = vmatprep.mubr.f32.mxu0 0.0
        %4758 = vmatmul.mubr.f32.gmra.mxu0 %v4427
        %v4759 = vpop.f32.mrf.mxu0
        %v4760 = vadd.f32 0.0, %v4759
        %v4761 = vpop.f32.mrf.mxu0
        %4762 = vmatprep.mubr.f32.mxu0 0.0
        %4763 = vmatmul.mubr.f32.gmra.mxu0 %v4430
        %v4764 = vpop.f32.mrf.mxu0
        %v4765 = vadd.f32 0.0, %v4764
        %v4766 = vpop.f32.mrf.mxu0
        %4767 = vmatprep.mubr.f32.mxu0 0.0
        %4768 = vmatmul.mubr.f32.gmra.mxu0 %v4433
        %v4769 = vpop.f32.mrf.mxu0
        %v4770 = vadd.f32 0.0, %v4769
        %v4771 = vpop.f32.mrf.mxu0
        %4772 = vmatprep.mubr.f32.mxu0 0.0
        %4773 = vmatmul.mubr.f32.gmra.mxu0 %v4436
        %v4774 = vpop.f32.mrf.mxu0
        %v4775 = vadd.f32 0.0, %v4774
        %v4776 = vpop.f32.mrf.mxu0
        %4777 = vmatprep.mubr.f32.mxu0 0.0
        %4778 = vmatmul.mubr.f32.gmra.mxu0 %v4439
        %v4779 = vpop.f32.mrf.mxu0
        %v4780 = vpop.f32.mrf.mxu0
        %4781 = vmatprep.mubr.f32.mxu0 0.0
        %4782 = vmatmul.mubr.f32.gmra.mxu0 %v4442
        %v4783 = vpop.f32.mrf.mxu0
        %v4784 = vadd.f32 0.0, %v4783
        %v4785 = vpop.f32.mrf.mxu0
        %4786 = vmatprep.mubr.f32.mxu0 0.0
        %4787 = vmatmul.mubr.f32.gmra.mxu0 %v4445
        %v4788 = vpop.f32.mrf.mxu0
        %v4789 = vadd.f32 0.0, %v4788
        %v4790 = vpop.f32.mrf.mxu0
        %4791 = vmatprep.mubr.f32.mxu0 0.0
        %4792 = vmatmul.mubr.f32.gmra.mxu0 %v4448
        %v4793 = vpop.f32.mrf.mxu0
        %v4794 = vadd.f32 0.0, %v4793
        %v4795 = vpop.f32.mrf.mxu0
        %4796 = vmatprep.mubr.f32.mxu0 0.0
        %4797 = vmatmul.mubr.f32.gmra.mxu0 %v4451
        %v4798 = vpop.f32.mrf.mxu0
        %v4799 = vadd.f32 0.0, %v4798
        %v4800 = vpop.f32.mrf.mxu0
        %4801 = vmatprep.mubr.f32.mxu0 0.0
        %4802 = vmatmul.mubr.f32.gmra.mxu0 %v4454
        %v4803 = vpop.f32.mrf.mxu0
        %v4804 = vpop.f32.mrf.mxu0
        %4805 = vmatprep.mubr.f32.mxu0 0.0
        %4806 = vmatmul.mubr.f32.gmra.mxu0 %v4457
        %v4807 = vpop.f32.mrf.mxu0
        %v4808 = vadd.f32 0.0, %v4807
        %v4809 = vpop.f32.mrf.mxu0
        %4810 = vmatprep.mubr.f32.mxu0 0.0
        %4811 = vmatmul.mubr.f32.gmra.mxu0 %v4460
        %v4812 = vpop.f32.mrf.mxu0
        %v4813 = vadd.f32 0.0, %v4812
        %v4814 = vpop.f32.mrf.mxu0
        %4815 = vmatprep.mubr.f32.mxu0 0.0
        %4816 = vmatmul.mubr.f32.gmra.mxu0 %v4463
        %v4817 = vpop.f32.mrf.mxu0
        %v4818 = vadd.f32 0.0, %v4817
        %v4819 = vpop.f32.mrf.mxu0
        %4820 = vmatprep.mubr.f32.mxu0 0.0
        %4821 = vmatmul.mubr.f32.gmra.mxu0 %v4466
        %v4822 = vpop.f32.mrf.mxu0
        %v4823 = vadd.f32 0.0, %v4822
        %v4824 = vpop.f32.mrf.mxu0
        %4825 = vmatprep.mubr.f32.mxu0 0.0
        %4826 = vmatmul.mubr.f32.gmra.mxu0 %v4469
        %v4827 = vpop.f32.mrf.mxu0
        %v4828 = vpop.f32.mrf.mxu0
        %4829 = vmatprep.mubr.f32.mxu0 0.0
        %4830 = vmatmul.mubr.f32.gmra.mxu0 %v4472
        %v4831 = vpop.f32.mrf.mxu0
        %v4832 = vadd.f32 0.0, %v4831
        %v4833 = vpop.f32.mrf.mxu0
        %4834 = vmatprep.mubr.f32.mxu0 0.0
        %4835 = vmatmul.mubr.f32.gmra.mxu0 %v4475
        %v4836 = vpop.f32.mrf.mxu0
        %v4837 = vadd.f32 0.0, %v4836
        %v4838 = vpop.f32.mrf.mxu0
        %4839 = vmatprep.mubr.f32.mxu0 0.0
        %4840 = vmatmul.mubr.f32.gmra.mxu0 %v4478
        %v4841 = vpop.f32.mrf.mxu0
        %v4842 = vadd.f32 0.0, %v4841
        %v4843 = vpop.f32.mrf.mxu0
        %4844 = vmatprep.mubr.f32.mxu0 0.0
        %4845 = vmatmul.mubr.f32.gmra.mxu0 %v4481
        %v4846 = vpop.f32.mrf.mxu0
        %v4847 = vadd.f32 0.0, %v4846
        %v4848 = vpop.f32.mrf.mxu0
        %4849 = vmatprep.mubr.f32.mxu0 0.0
        %4850 = vmatmul.mubr.f32.gmra.mxu0 %v4484
        %v4851 = vpop.f32.mrf.mxu0
        %v4852 = vpop.f32.mrf.mxu0
        %4853 = vmatprep.mubr.f32.mxu0 0.0
        %4854 = vmatmul.mubr.f32.gmra.mxu0 %v4487
        %v4855 = vpop.f32.mrf.mxu0
        %v4856 = vadd.f32 0.0, %v4855
        %v4857 = vpop.f32.mrf.mxu0
        %4858 = vmatprep.mubr.f32.mxu0 0.0
        %4859 = vmatmul.mubr.f32.gmra.mxu0 %v4490
        %v4860 = vpop.f32.mrf.mxu0
        %v4861 = vadd.f32 0.0, %v4860
        %v4862 = vpop.f32.mrf.mxu0
        %4863 = vmatprep.mubr.f32.mxu0 0.0
        %4864 = vmatmul.mubr.f32.gmra.mxu0 %v4493
        %v4865 = vpop.f32.mrf.mxu0
        %v4866 = vadd.f32 0.0, %v4865
        %v4867 = vpop.f32.mrf.mxu0
        %4868 = vmatprep.mubr.f32.mxu0 0.0
        %4869 = vmatmul.mubr.f32.gmra.mxu0 %v4496
        %v4870 = vpop.f32.mrf.mxu0
        %v4871 = vadd.f32 0.0, %v4870
        %v4872 = vpop.f32.mrf.mxu0
        %4873 = vmatprep.mubr.f32.mxu0 0.0
        %4874 = vmatmul.mubr.f32.gmra.mxu0 %v4499
        %v4875 = vpop.f32.mrf.mxu0
        %v4876 = vpop.f32.mrf.mxu0
        %4877 = vmatprep.mubr.f32.mxu0 0.0
        %4878 = vmatmul.mubr.f32.gmra.mxu0 %v4502
        %v4879 = vpop.f32.mrf.mxu0
        %v4880 = vadd.f32 0.0, %v4879
        %v4881 = vpop.f32.mrf.mxu0
        %4882 = vmatprep.mubr.f32.mxu0 0.0
        %4883 = vmatmul.mubr.f32.gmra.mxu0 %v4505
        %v4884 = vpop.f32.mrf.mxu0
        %v4885 = vadd.f32 0.0, %v4884
        %v4886 = vpop.f32.mrf.mxu0
        %4887 = vmatprep.mubr.f32.mxu0 0.0
        %4888 = vmatmul.mubr.f32.gmra.mxu0 %v4508
        %v4889 = vpop.f32.mrf.mxu0
        %v4890 = vadd.f32 0.0, %v4889
        %v4891 = vpop.f32.mrf.mxu0
        %4892 = vmatprep.mubr.f32.mxu0 0.0
        %4893 = vmatmul.mubr.f32.gmra.mxu0 %v4511
        %v4894 = vpop.f32.mrf.mxu0
        %v4895 = vadd.f32 0.0, %v4894
        %v4896 = vpop.f32.mrf.mxu0
        %4897 = vmatprep.mubr.f32.mxu0 0.0
        %4898 = vmatmul.mubr.f32.gmra.mxu0 %v4514
        %v4899 = vpop.f32.mrf.mxu0
        %v4900 = vpop.f32.mrf.mxu0
        %4901 = vmatprep.mubr.f32.mxu0 0.0
        %4902 = vmatmul.mubr.f32.gmra.mxu0 %v4517
        %v4903 = vpop.f32.mrf.mxu0
        %v4904 = vadd.f32 0.0, %v4903
        %v4905 = vpop.f32.mrf.mxu0
        %4906 = vmatprep.mubr.f32.mxu0 0.0
        %4907 = vmatmul.mubr.f32.gmra.mxu0 %v4520
        %v4908 = vpop.f32.mrf.mxu0
        %v4909 = vadd.f32 0.0, %v4908
        %v4910 = vpop.f32.mrf.mxu0
        %4911 = vmatprep.mubr.f32.mxu0 0.0
        %4912 = vmatmul.mubr.f32.gmra.mxu0 %v4523
        %v4913 = vpop.f32.mrf.mxu0
        %v4914 = vadd.f32 0.0, %v4913
        %v4915 = vpop.f32.mrf.mxu0
        %4916 = vmatprep.mubr.f32.mxu0 0.0
        %4917 = vmatmul.mubr.f32.gmra.mxu0 %v4526
        %v4918 = vpop.f32.mrf.mxu0
        %v4919 = vadd.f32 0.0, %v4918
        %v4920 = vpop.f32.mrf.mxu0
        %4921 = vmatprep.mubr.f32.mxu0 0.0
        %4922 = vmatmul.mubr.f32.gmra.mxu0 %v4529
        %v4923 = vpop.f32.mrf.mxu0
        %v4924 = vpop.f32.mrf.mxu0
        %4925 = vmatprep.mubr.f32.mxu0 0.0
        %4926 = vmatmul.mubr.f32.gmra.mxu0 %v4532
        %v4927 = vpop.f32.mrf.mxu0
        %v4928 = vadd.f32 0.0, %v4927
        %v4929 = vpop.f32.mrf.mxu0
        %4930 = vmatprep.mubr.f32.mxu0 0.0
        %4931 = vmatmul.mubr.f32.gmra.mxu0 %v4535
        %v4932 = vpop.f32.mrf.mxu0
        %v4933 = vadd.f32 0.0, %v4932
        %v4934 = vpop.f32.mrf.mxu0
        %4935 = vmatprep.mubr.f32.mxu0 0.0
        %4936 = vmatmul.mubr.f32.gmra.mxu0 %v4538
        %v4937 = vpop.f32.mrf.mxu0
        %v4938 = vadd.f32 0.0, %v4937
        %v4939 = vpop.f32.mrf.mxu0
        %4940 = vmatprep.mubr.f32.mxu0 0.0
        %4941 = vmatmul.mubr.f32.gmra.mxu0 %v4541
        %v4942 = vpop.f32.mrf.mxu0
        %v4943 = vadd.f32 0.0, %v4942
        %v4944 = vpop.f32.mrf.mxu0
        %4945 = vmatprep.mubr.f32.mxu0 0.0
        %4946 = vmatmul.mubr.f32.gmra.mxu0 %v4544
        %v4947 = vpop.f32.mrf.mxu0
        %v4948 = vpop.f32.mrf.mxu0
        %4949 = vmatprep.mubr.f32.mxu0 0.0
        %4950 = vmatmul.mubr.f32.gmra.mxu0 %v4547
        %v4951 = vpop.f32.mrf.mxu0
        %v4952 = vadd.f32 0.0, %v4951
        %v4953 = vpop.f32.mrf.mxu0
        %4954 = vmatprep.mubr.f32.mxu0 0.0
        %4955 = vmatmul.mubr.f32.gmra.mxu0 %v4550
        %v4956 = vpop.f32.mrf.mxu0
        %v4957 = vadd.f32 0.0, %v4956
        %v4958 = vpop.f32.mrf.mxu0
        %4959 = vmatprep.mubr.f32.mxu0 0.0
        %4960 = vmatmul.mubr.f32.gmra.mxu0 %v4553
        %v4961 = vpop.f32.mrf.mxu0
        %v4962 = vadd.f32 0.0, %v4961
        %v4963 = vpop.f32.mrf.mxu0
        %4964 = vmatprep.mubr.f32.mxu0 0.0
        %4965 = vmatmul.mubr.f32.gmra.mxu0 %v4556
        %v4966 = vpop.f32.mrf.mxu0
        %v4967 = vadd.f32 0.0, %v4966
        %v4968 = vpop.f32.mrf.mxu0
        %4969 = vmatprep.mubr.f32.mxu0 0.0
        %4970 = vmatmul.mubr.f32.gmra.mxu0 %v4559
        %v4971 = vpop.f32.mrf.mxu0
        %v4972 = vpop.f32.mrf.mxu0
        %4973 = vmatprep.mubr.f32.mxu0 0.0
        %4974 = vmatmul.mubr.f32.gmra.mxu0 %v4562
        %v4975 = vpop.f32.mrf.mxu0
        %v4976 = vadd.f32 0.0, %v4975
        %v4977 = vpop.f32.mrf.mxu0
        %4978 = vmatprep.mubr.f32.mxu0 0.0
        %4979 = vmatmul.mubr.f32.gmra.mxu0 %v4565
        %v4980 = vpop.f32.mrf.mxu0
        %v4981 = vadd.f32 0.0, %v4980
        %v4982 = vpop.f32.mrf.mxu0
        %4983 = vmatprep.mubr.f32.mxu0 0.0
        %4984 = vmatmul.mubr.f32.gmra.mxu0 %v4568
        %v4985 = vpop.f32.mrf.mxu0
        %v4986 = vadd.f32 0.0, %v4985
        %v4987 = vpop.f32.mrf.mxu0
        %4988 = vmatprep.mubr.f32.mxu0 0.0
        %4989 = vmatmul.mubr.f32.gmra.mxu0 %v4571
        %v4990 = vpop.f32.mrf.mxu0
        %v4991 = vadd.f32 0.0, %v4990
        %v4992 = vpop.f32.mrf.mxu0
        %4993 = vmatprep.mubr.f32.mxu0 0.0
        %4994 = vmatmul.mubr.f32.gmra.mxu0 %v4574
        %v4995 = vpop.f32.mrf.mxu0
        %v4996 = vpop.f32.mrf.mxu0
        %4997 = vmatprep.mubr.f32.mxu0 0.0
        %4998 = vmatmul.mubr.f32.gmra.mxu0 %v4577
        %v4999 = vpop.f32.mrf.mxu0
        %v5000 = vadd.f32 0.0, %v4999
        %v5001 = vpop.f32.mrf.mxu0
        %5002 = vmatprep.mubr.f32.mxu0 0.0
        %5003 = vmatmul.mubr.f32.gmra.mxu0 %v4580
        %v5004 = vpop.f32.mrf.mxu0
        %v5005 = vadd.f32 0.0, %v5004
        %v5006 = vpop.f32.mrf.mxu0
        %5007 = vmatprep.mubr.f32.mxu0 0.0
        %5008 = vmatmul.mubr.f32.gmra.mxu0 %v4583
        %v5009 = vpop.f32.mrf.mxu0
        %v5010 = vadd.f32 0.0, %v5009
        %v5011 = vpop.f32.mrf.mxu0
        %5012 = vmatprep.mubr.f32.mxu0 0.0
        %5013 = vmatmul.mubr.f32.gmra.mxu0 %v4586
        %v5014 = vpop.f32.mrf.mxu0
        %v5015 = vadd.f32 0.0, %v5014
        %v5016 = vpop.f32.mrf.mxu0
        %5017 = vmatprep.mubr.f32.mxu0 0.0
        %5018 = vmatmul.mubr.f32.gmra.mxu0 %v4589
        %v5019 = vpop.f32.mrf.mxu0
        %v5020 = vpop.f32.mrf.mxu0
        %5021 = vmatprep.mubr.f32.mxu0 0.0
        %5022 = vmatmul.mubr.f32.gmra.mxu0 %v4592
        %v5023 = vpop.f32.mrf.mxu0
        %v5024 = vadd.f32 0.0, %v5023
        %v5025 = vpop.f32.mrf.mxu0
        %5026 = vmatprep.mubr.f32.mxu0 0.0
        %5027 = vmatmul.mubr.f32.gmra.mxu0 %v4595
        %v5028 = vpop.f32.mrf.mxu0
        %v5029 = vadd.f32 0.0, %v5028
        %v5030 = vpop.f32.mrf.mxu0
        %5031 = vmatprep.mubr.f32.mxu0 0.0
        %5032 = vmatmul.mubr.f32.gmra.mxu0 %v4598
        %v5033 = vpop.f32.mrf.mxu0
        %v5034 = vadd.f32 0.0, %v5033
        %v5035 = vpop.f32.mrf.mxu0
        %5036 = vmatprep.mubr.f32.mxu0 0.0
        %5037 = vmatmul.mubr.f32.gmra.mxu0 %v4601
        %v5038 = vpop.f32.mrf.mxu0
        %v5039 = vadd.f32 0.0, %v5038
        %v5040 = vpop.f32.mrf.mxu0
        %5041 = vmatprep.mubr.f32.mxu0 0.0
        %5042 = vmatmul.mubr.f32.gmra.mxu0 %v4604
        %v5043 = vpop.f32.mrf.mxu0
        %v5044 = vpop.f32.mrf.mxu0
        %5045 = vmatprep.mubr.f32.mxu0 0.0
        %5046 = vmatmul.mubr.f32.gmra.mxu0 %v4607
        %v5047 = vpop.f32.mrf.mxu0
        %v5048 = vadd.f32 0.0, %v5047
        %v5049 = vpop.f32.mrf.mxu0
        %5050 = vmatprep.mubr.f32.mxu0 0.0
        %5051 = vmatmul.mubr.f32.gmra.mxu0 %v4610
        %v5052 = vpop.f32.mrf.mxu0
        %v5053 = vadd.f32 0.0, %v5052
        %v5054 = vpop.f32.mrf.mxu0
        %5055 = vmatprep.mubr.f32.mxu0 0.0
        %5056 = vmatmul.mubr.f32.gmra.mxu0 %v4613
        %v5057 = vpop.f32.mrf.mxu0
        %v5058 = vadd.f32 0.0, %v5057
        %v5059 = vpop.f32.mrf.mxu0
        %5060 = vmatprep.mubr.f32.mxu0 0.0
        %5061 = vmatmul.mubr.f32.gmra.mxu0 %v4616
        %v5062 = vpop.f32.mrf.mxu0
        %v5063 = vadd.f32 0.0, %v5062
        %v5064 = vpop.f32.mrf.mxu0
        %5065 = vdwg.mxu0
        %v5066 = vadd.f32 %v3922, %v4688
        %v5067 = vadd.f32 %v3927, %v4693
        %v5068 = vadd.f32 %v3932, %v4698
        %v5069 = vadd.f32 %v3937, %v4703
        %v5070 = vadd.f32 %v3946, %v4712
        %v5071 = vadd.f32 %v3951, %v4717
        %v5072 = vadd.f32 %v3956, %v4722
        %v5073 = vadd.f32 %v3961, %v4727
        %v5074 = vadd.f32 %v3970, %v4736
        %v5075 = vadd.f32 %v3975, %v4741
        %v5076 = vadd.f32 %v3980, %v4746
        %v5077 = vadd.f32 %v3985, %v4751
        %v5078 = vadd.f32 %v3994, %v4760
        %v5079 = vadd.f32 %v3999, %v4765
        %v5080 = vadd.f32 %v4004, %v4770
        %v5081 = vadd.f32 %v4009, %v4775
        %v5082 = vadd.f32 %v4018, %v4784
        %v5083 = vadd.f32 %v4023, %v4789
        %v5084 = vadd.f32 %v4028, %v4794
        %v5085 = vadd.f32 %v4033, %v4799
        %v5086 = vadd.f32 %v4042, %v4808
        %v5087 = vadd.f32 %v4047, %v4813
        %v5088 = vadd.f32 %v4052, %v4818
        %v5089 = vadd.f32 %v4057, %v4823
        %v5090 = vadd.f32 %v4066, %v4832
        %v5091 = vadd.f32 %v4071, %v4837
        %v5092 = vadd.f32 %v4076, %v4842
        %v5093 = vadd.f32 %v4081, %v4847
        %v5094 = vadd.f32 %v4090, %v4856
        %v5095 = vadd.f32 %v4095, %v4861
        %v5096 = vadd.f32 %v4100, %v4866
        %v5097 = vadd.f32 %v4105, %v4871
        %v5098 = vadd.f32 %v4114, %v4880
        %v5099 = vadd.f32 %v4119, %v4885
        %v5100 = vadd.f32 %v4124, %v4890
        %v5101 = vadd.f32 %v4129, %v4895
        %v5102 = vadd.f32 %v4138, %v4904
        %v5103 = vadd.f32 %v4143, %v4909
        %v5104 = vadd.f32 %v4148, %v4914
        %v5105 = vadd.f32 %v4153, %v4919
        %v5106 = vadd.f32 %v4162, %v4928
        %v5107 = vadd.f32 %v4167, %v4933
        %v5108 = vadd.f32 %v4172, %v4938
        %v5109 = vadd.f32 %v4177, %v4943
        %v5110 = vadd.f32 %v4186, %v4952
        %v5111 = vadd.f32 %v4191, %v4957
        %v5112 = vadd.f32 %v4196, %v4962
        %v5113 = vadd.f32 %v4201, %v4967
        %v5114 = vadd.f32 %v4210, %v4976
        %v5115 = vadd.f32 %v4215, %v4981
        %v5116 = vadd.f32 %v4220, %v4986
        %v5117 = vadd.f32 %v4225, %v4991
        %v5118 = vadd.f32 %v4234, %v5000
        %v5119 = vadd.f32 %v4239, %v5005
        %v5120 = vadd.f32 %v4244, %v5010
        %v5121 = vadd.f32 %v4249, %v5015
        %v5122 = vadd.f32 %v4258, %v5024
        %v5123 = vadd.f32 %v4263, %v5029
        %v5124 = vadd.f32 %v4268, %v5034
        %v5125 = vadd.f32 %v4273, %v5039
        %v5126 = vadd.f32 %v4282, %v5048
        %v5127 = vadd.f32 %v4287, %v5053
        %v5128 = vadd.f32 %v4292, %v5058
        %v5129 = vadd.f32 %v4297, %v5063
        %v5130 = vld [vmem:[#allocation2 + $0x28] sm:$0xff]
        %v5131 = vld [vmem:[#allocation2 + $0x30] sm:$0xff]
        %v5132 = vld [vmem:[#allocation2 + $0x38] sm:$0xff]
        %v5133 = vld [vmem:[#allocation2 + $0x40] sm:$0xff]
        %v5134 = vld [vmem:[#allocation2 + $0x48] sm:$0xff]
        %v5135 = vld [vmem:[#allocation2 + $0x50] sm:$0xff]
        %v5136 = vld [vmem:[#allocation2 + $0x58] sm:$0xff]
        %v5137 = vld [vmem:[#allocation2 + $0x60] sm:$0xff]
        %v5138 = vld [vmem:[#allocation2 + $0x68] sm:$0xff]
        %v5139 = vld [vmem:[#allocation2 + $0x70] sm:$0xff]
        %v5140 = vld [vmem:[#allocation2 + $0x78] sm:$0xff]
        %v5141 = vld [vmem:[#allocation2 + $0x80] sm:$0xff]
        %v5142 = vld [vmem:[#allocation2 + $0x88] sm:$0xff]
        %v5143 = vld [vmem:[#allocation2 + $0x90] sm:$0xff]
        %v5144 = vld [vmem:[#allocation2 + $0x98] sm:$0xff]
        %v5145 = vld [vmem:[#allocation2 + $0xa0] sm:$0xff]
        %v5146 = vld [vmem:[#allocation2 + $0xa8] sm:$0xff]
        %v5147 = vld [vmem:[#allocation2 + $0xb0] sm:$0xff]
        %v5148 = vld [vmem:[#allocation2 + $0xb8] sm:$0xff]
        %v5149 = vld [vmem:[#allocation2 + $0xc0] sm:$0xff]
        %v5150 = vld [vmem:[#allocation2 + $0xc8] sm:$0xff]
        %v5151 = vld [vmem:[#allocation2 + $0xd0] sm:$0xff]
        %v5152 = vld [vmem:[#allocation2 + $0xd8] sm:$0xff]
        %v5153 = vld [vmem:[#allocation2 + $0xe0] sm:$0xff]
        %v5154 = vld [vmem:[#allocation2 + $0xe8] sm:$0xff]
        %v5155 = vld [vmem:[#allocation2 + $0xf0] sm:$0xff]
        %v5156 = vld [vmem:[#allocation2 + $0xf8] sm:$0xff]
        %v5157 = vld [vmem:[#allocation2 + $0x100] sm:$0xff]
        %v5158 = vld [vmem:[#allocation2 + $0x108] sm:$0xff]
        %v5159 = vld [vmem:[#allocation2 + $0x110] sm:$0xff]
        %v5160 = vld [vmem:[#allocation2 + $0x118] sm:$0xff]
        %v5161 = vld [vmem:[#allocation2 + $0x120] sm:$0xff]
        %v5162 = vld [vmem:[#allocation2 + $0x128] sm:$0xff]
        %v5163 = vld [vmem:[#allocation2 + $0x130] sm:$0xff]
        %v5164 = vld [vmem:[#allocation2 + $0x138] sm:$0xff]
        %v5165 = vld [vmem:[#allocation2 + $0x140] sm:$0xff]
        %v5166 = vld [vmem:[#allocation2 + $0x148] sm:$0xff]
        %v5167 = vld [vmem:[#allocation2 + $0x150] sm:$0xff]
        %v5168 = vld [vmem:[#allocation2 + $0x158] sm:$0xff]
        %v5169 = vld [vmem:[#allocation2 + $0x160] sm:$0xff]
        %v5170 = vld [vmem:[#allocation2 + $0x168] sm:$0xff]
        %v5171 = vld [vmem:[#allocation2 + $0x170] sm:$0xff]
        %v5172 = vld [vmem:[#allocation2 + $0x178] sm:$0xff]
        %v5173 = vld [vmem:[#allocation2 + $0x180] sm:$0xff]
        %v5174 = vld [vmem:[#allocation2 + $0x188] sm:$0xff]
        %v5175 = vld [vmem:[#allocation2 + $0x190] sm:$0xff]
        %v5176 = vld [vmem:[#allocation2 + $0x198] sm:$0xff]
        %v5177 = vld [vmem:[#allocation2 + $0x1a0] sm:$0xff]
        %v5178 = vld [vmem:[#allocation2 + $0x1a8] sm:$0xff]
        %v5179 = vld [vmem:[#allocation2 + $0x1b0] sm:$0xff]
        %v5180 = vld [vmem:[#allocation2 + $0x1b8] sm:$0xff]
        %v5181 = vld [vmem:[#allocation2 + $0x1c0] sm:$0xff]
        %v5182 = vld [vmem:[#allocation2 + $0x1c8] sm:$0xff]
        %v5183 = vld [vmem:[#allocation2 + $0x1d0] sm:$0xff]
        %v5184 = vld [vmem:[#allocation2 + $0x1d8] sm:$0xff]
        %v5185 = vld [vmem:[#allocation2 + $0x1e0] sm:$0xff]
        %v5186 = vld [vmem:[#allocation2 + $0x1e8] sm:$0xff]
        %v5187 = vld [vmem:[#allocation2 + $0x1f0] sm:$0xff]
        %v5188 = vld [vmem:[#allocation2 + $0x1f8] sm:$0xff]
        %v5189 = vld [vmem:[#allocation2 + $0x200] sm:$0xff]
        %v5190 = vld [vmem:[#allocation2 + $0x208] sm:$0xff]
        %v5191 = vld [vmem:[#allocation2 + $0x210] sm:$0xff]
        %v5192 = vld [vmem:[#allocation2 + $0x218] sm:$0xff]
        %v5193 = vld [vmem:[#allocation2 + $0x220] sm:$0xff]
        %v5194 = vld [vmem:[#allocation2 + $0x228] sm:$0xff]
        %v5195 = vld [vmem:[#allocation2 + $0x230] sm:$0xff]
        %v5196 = vld [vmem:[#allocation2 + $0x238] sm:$0xff]
        %v5197 = vld [vmem:[#allocation2 + $0x240] sm:$0xff]
        %v5198 = vld [vmem:[#allocation2 + $0x248] sm:$0xff]
        %v5199 = vld [vmem:[#allocation2 + $0x250] sm:$0xff]
        %v5200 = vld [vmem:[#allocation2 + $0x258] sm:$0xff]
        %v5201 = vld [vmem:[#allocation2 + $0x260] sm:$0xff]
        %v5202 = vld [vmem:[#allocation2 + $0x268] sm:$0xff]
        %v5203 = vld [vmem:[#allocation2 + $0x270] sm:$0xff]
        %v5204 = vld [vmem:[#allocation2 + $0x278] sm:$0xff]
        %v5205 = vld [vmem:[#allocation2 + $0x280] sm:$0xff]
        %v5206 = vld [vmem:[#allocation2 + $0x288] sm:$0xff]
        %v5207 = vld [vmem:[#allocation2 + $0x290] sm:$0xff]
        %v5208 = vld [vmem:[#allocation2 + $0x298] sm:$0xff]
        %s5209 = scalar_lea.vmem %s5, 12
        %v5210 = vld [vmem:[%s5209] sm:$0xf]
        %v5212 = vsel %vm519, %v5130, 0
        %v5215 = vsel %vm519, %v5131, 0
        %v5218 = vsel %vm519, %v5132, 0
        %v5221 = vsel %vm519, %v5133, 0
        %v5224 = vsel %vm519, %v5134, 0
        %v5227 = vsel %vm519, %v5135, 0
        %v5230 = vsel %vm519, %v5136, 0
        %v5233 = vsel %vm519, %v5137, 0
        %v5236 = vsel %vm519, %v5138, 0
        %v5239 = vsel %vm519, %v5139, 0
        %v5242 = vsel %vm519, %v5140, 0
        %v5245 = vsel %vm519, %v5141, 0
        %v5248 = vsel %vm519, %v5142, 0
        %v5251 = vsel %vm519, %v5143, 0
        %v5254 = vsel %vm519, %v5144, 0
        %v5257 = vsel %vm519, %v5145, 0
        %v5260 = vsel %vm519, %v5146, 0
        %v5263 = vsel %vm519, %v5147, 0
        %v5266 = vsel %vm519, %v5148, 0
        %v5269 = vsel %vm519, %v5149, 0
        %v5272 = vsel %vm519, %v5150, 0
        %v5275 = vsel %vm519, %v5151, 0
        %v5278 = vsel %vm519, %v5152, 0
        %v5281 = vsel %vm519, %v5153, 0
        %v5284 = vsel %vm519, %v5154, 0
        %v5287 = vsel %vm519, %v5155, 0
        %v5290 = vsel %vm519, %v5156, 0
        %v5293 = vsel %vm519, %v5157, 0
        %v5296 = vsel %vm519, %v5158, 0
        %v5299 = vsel %vm519, %v5159, 0
        %v5302 = vsel %vm519, %v5160, 0
        %v5305 = vsel %vm519, %v5161, 0
        %v5308 = vsel %vm519, %v5162, 0
        %v5311 = vsel %vm519, %v5163, 0
        %v5314 = vsel %vm519, %v5164, 0
        %v5317 = vsel %vm519, %v5165, 0
        %v5320 = vsel %vm519, %v5166, 0
        %v5323 = vsel %vm519, %v5167, 0
        %v5326 = vsel %vm519, %v5168, 0
        %v5329 = vsel %vm519, %v5169, 0
        %v5332 = vsel %vm519, %v5170, 0
        %v5335 = vsel %vm519, %v5171, 0
        %v5338 = vsel %vm519, %v5172, 0
        %v5341 = vsel %vm519, %v5173, 0
        %v5344 = vsel %vm519, %v5174, 0
        %v5347 = vsel %vm519, %v5175, 0
        %v5350 = vsel %vm519, %v5176, 0
        %v5353 = vsel %vm519, %v5177, 0
        %v5356 = vsel %vm519, %v5178, 0
        %v5359 = vsel %vm519, %v5179, 0
        %v5362 = vsel %vm519, %v5180, 0
        %v5365 = vsel %vm519, %v5181, 0
        %v5368 = vsel %vm519, %v5182, 0
        %v5371 = vsel %vm519, %v5183, 0
        %v5374 = vsel %vm519, %v5184, 0
        %v5377 = vsel %vm519, %v5185, 0
        %v5380 = vsel %vm519, %v5186, 0
        %v5383 = vsel %vm519, %v5187, 0
        %v5386 = vsel %vm519, %v5188, 0
        %v5389 = vsel %vm519, %v5189, 0
        %v5392 = vsel %vm519, %v5190, 0
        %v5395 = vsel %vm519, %v5191, 0
        %v5398 = vsel %vm519, %v5192, 0
        %v5401 = vsel %vm519, %v5193, 0
        %v5404 = vsel %vm519, %v5194, 0
        %v5407 = vsel %vm519, %v5195, 0
        %v5410 = vsel %vm519, %v5196, 0
        %v5413 = vsel %vm519, %v5197, 0
        %v5416 = vsel %vm519, %v5198, 0
        %v5419 = vsel %vm519, %v5199, 0
        %v5422 = vsel %vm519, %v5200, 0
        %v5425 = vsel %vm519, %v5201, 0
        %v5428 = vsel %vm519, %v5202, 0
        %v5431 = vsel %vm519, %v5203, 0
        %v5434 = vsel %vm519, %v5204, 0
        %v5437 = vsel %vm519, %v5205, 0
        %v5440 = vsel %vm519, %v5206, 0
        %v5443 = vsel %vm519, %v5207, 0
        %v5446 = vsel %vm519, %v5208, 0
        %v5449 = vsel %vm3166, %v5210, 0
        %5451 = vmatprep.subr.mxu0 0.0
        %5452 = vmatpush1.msra.mxu0 0.0
        %5453 = vmatprep.subr.mxu0 0.0
        %5454 = vmatpush1.msra.mxu0 0.0
        %5455 = vmatprep.subr.mxu0 0.0
        %5456 = vmatpush1.msra.mxu0 0.0
        %5457 = vmatprep.subr.mxu0 0.0
        %5458 = vmatpush1.msra.mxu0 0.0
        %5459 = vmatprep.subr.mxu0 0.0
        %5460 = vmatpush1.msra.mxu0 0.0
        %5461 = vmatprep.subr.mxu0 0.0
        %5462 = vmatpush1.msra.mxu0 0.0
        %5463 = vmatprep.subr.mxu0 0.0
        %5464 = vmatpush1.msra.mxu0 0.0
        %5465 = vmatprep.subr.mxu0 0.0
        %5466 = vmatpush1.msra.mxu0 0.0
        %5467 = vmatprep.subr.mxu0 0.0
        %5468 = vmatpush1.msra.mxu0 0.0
        %5469 = vmatprep.subr.mxu0 0.0
        %5470 = vmatpush1.msra.mxu0 0.0
        %5471 = vmatprep.subr.mxu0 0.0
        %5472 = vmatpush1.msra.mxu0 0.0
        %5473 = vmatprep.subr.mxu0 0.0
        %5474 = vmatpush1.msra.mxu0 0.0
        %5475 = vmatprep.subr.mxu0 0.0
        %5476 = vmatpush1.msra.mxu0 0.0
        %5477 = vmatprep.subr.mxu0 0.0
        %5478 = vmatpush1.msra.mxu0 0.0
        %5479 = vmatprep.subr.mxu0 0.0
        %5480 = vmatpush1.msra.mxu0 0.0
        %5481 = vmatprep.subr.mxu0 0.0
        %5482 = vmatpush1.msra.mxu0 %v5449
        %5483 = vmatprep.subr.mxu0 0.0
        %5484 = vmatpush2.msra.mxu0 0.0
        %5485 = vmatprep.subr.mxu0 0.0
        %5486 = vmatpush2.msra.mxu0 0.0
        %5487 = vmatprep.subr.mxu0 0.0
        %5488 = vmatpush2.msra.mxu0 0.0
        %5489 = vmatprep.subr.mxu0 0.0
        %5490 = vmatpush2.msra.mxu0 0.0
        %5491 = vmatprep.subr.mxu0 0.0
        %5492 = vmatpush2.msra.mxu0 0.0
        %5493 = vmatprep.subr.mxu0 0.0
        %5494 = vmatpush2.msra.mxu0 0.0
        %5495 = vmatprep.subr.mxu0 0.0
        %5496 = vmatpush2.msra.mxu0 0.0
        %5497 = vmatprep.subr.mxu0 0.0
        %5498 = vmatpush2.msra.mxu0 0.0
        %5499 = vmatprep.subr.mxu0 0.0
        %5500 = vmatpush2.msra.mxu0 0.0
        %5501 = vmatprep.subr.mxu0 0.0
        %5502 = vmatpush2.msra.mxu0 0.0
        %5503 = vmatprep.subr.mxu0 0.0
        %5504 = vmatpush2.msra.mxu0 0.0
        %5505 = vmatprep.subr.mxu0 0.0
        %5506 = vmatpush2.msra.mxu0 0.0
        %5507 = vmatprep.subr.mxu0 0.0
        %5508 = vmatpush2.msra.mxu0 0.0
        %5509 = vmatprep.subr.mxu0 0.0
        %5510 = vmatpush2.msra.mxu0 0.0
        %5511 = vmatprep.subr.mxu0 0.0
        %5512 = vmatpush2.msra.mxu0 0.0
        %5513 = vmatprep.subr.mxu0 0.0
        %5514 = vmatpush2.msra.mxu0 0.0
        %5515 = vmatprep.mubr.f32.mxu0 0.0
        %5516 = vmatmul.mubr.f32.gmra.mxu0 %v5212
        %v5517 = vpop.f32.mrf.mxu0
        %v5518 = vadd.f32 0.0, %v5517
        %v5519 = vpop.f32.mrf.mxu0
        %5520 = vmatprep.mubr.f32.mxu0 0.0
        %5521 = vmatmul.mubr.f32.gmra.mxu0 %v5215
        %v5522 = vpop.f32.mrf.mxu0
        %v5523 = vadd.f32 0.0, %v5522
        %v5524 = vpop.f32.mrf.mxu0
        %5525 = vmatprep.mubr.f32.mxu0 0.0
        %5526 = vmatmul.mubr.f32.gmra.mxu0 %v5218
        %v5527 = vpop.f32.mrf.mxu0
        %v5528 = vadd.f32 0.0, %v5527
        %v5529 = vpop.f32.mrf.mxu0
        %5530 = vmatprep.mubr.f32.mxu0 0.0
        %5531 = vmatmul.mubr.f32.gmra.mxu0 %v5221
        %v5532 = vpop.f32.mrf.mxu0
        %v5533 = vadd.f32 0.0, %v5532
        %v5534 = vpop.f32.mrf.mxu0
        %5535 = vmatprep.mubr.f32.mxu0 0.0
        %5536 = vmatmul.mubr.f32.gmra.mxu0 %v5224
        %v5537 = vpop.f32.mrf.mxu0
        %v5538 = vpop.f32.mrf.mxu0
        %5539 = vmatprep.mubr.f32.mxu0 0.0
        %5540 = vmatmul.mubr.f32.gmra.mxu0 %v5227
        %v5541 = vpop.f32.mrf.mxu0
        %v5542 = vadd.f32 0.0, %v5541
        %v5543 = vpop.f32.mrf.mxu0
        %5544 = vmatprep.mubr.f32.mxu0 0.0
        %5545 = vmatmul.mubr.f32.gmra.mxu0 %v5230
        %v5546 = vpop.f32.mrf.mxu0
        %v5547 = vadd.f32 0.0, %v5546
        %v5548 = vpop.f32.mrf.mxu0
        %5549 = vmatprep.mubr.f32.mxu0 0.0
        %5550 = vmatmul.mubr.f32.gmra.mxu0 %v5233
        %v5551 = vpop.f32.mrf.mxu0
        %v5552 = vadd.f32 0.0, %v5551
        %v5553 = vpop.f32.mrf.mxu0
        %5554 = vmatprep.mubr.f32.mxu0 0.0
        %5555 = vmatmul.mubr.f32.gmra.mxu0 %v5236
        %v5556 = vpop.f32.mrf.mxu0
        %v5557 = vadd.f32 0.0, %v5556
        %v5558 = vpop.f32.mrf.mxu0
        %5559 = vmatprep.mubr.f32.mxu0 0.0
        %5560 = vmatmul.mubr.f32.gmra.mxu0 %v5239
        %v5561 = vpop.f32.mrf.mxu0
        %v5562 = vpop.f32.mrf.mxu0
        %5563 = vmatprep.mubr.f32.mxu0 0.0
        %5564 = vmatmul.mubr.f32.gmra.mxu0 %v5242
        %v5565 = vpop.f32.mrf.mxu0
        %v5566 = vadd.f32 0.0, %v5565
        %v5567 = vpop.f32.mrf.mxu0
        %5568 = vmatprep.mubr.f32.mxu0 0.0
        %5569 = vmatmul.mubr.f32.gmra.mxu0 %v5245
        %v5570 = vpop.f32.mrf.mxu0
        %v5571 = vadd.f32 0.0, %v5570
        %v5572 = vpop.f32.mrf.mxu0
        %5573 = vmatprep.mubr.f32.mxu0 0.0
        %5574 = vmatmul.mubr.f32.gmra.mxu0 %v5248
        %v5575 = vpop.f32.mrf.mxu0
        %v5576 = vadd.f32 0.0, %v5575
        %v5577 = vpop.f32.mrf.mxu0
        %5578 = vmatprep.mubr.f32.mxu0 0.0
        %5579 = vmatmul.mubr.f32.gmra.mxu0 %v5251
        %v5580 = vpop.f32.mrf.mxu0
        %v5581 = vadd.f32 0.0, %v5580
        %v5582 = vpop.f32.mrf.mxu0
        %5583 = vmatprep.mubr.f32.mxu0 0.0
        %5584 = vmatmul.mubr.f32.gmra.mxu0 %v5254
        %v5585 = vpop.f32.mrf.mxu0
        %v5586 = vpop.f32.mrf.mxu0
        %5587 = vmatprep.mubr.f32.mxu0 0.0
        %5588 = vmatmul.mubr.f32.gmra.mxu0 %v5257
        %v5589 = vpop.f32.mrf.mxu0
        %v5590 = vadd.f32 0.0, %v5589
        %v5591 = vpop.f32.mrf.mxu0
        %5592 = vmatprep.mubr.f32.mxu0 0.0
        %5593 = vmatmul.mubr.f32.gmra.mxu0 %v5260
        %v5594 = vpop.f32.mrf.mxu0
        %v5595 = vadd.f32 0.0, %v5594
        %v5596 = vpop.f32.mrf.mxu0
        %5597 = vmatprep.mubr.f32.mxu0 0.0
        %5598 = vmatmul.mubr.f32.gmra.mxu0 %v5263
        %v5599 = vpop.f32.mrf.mxu0
        %v5600 = vadd.f32 0.0, %v5599
        %v5601 = vpop.f32.mrf.mxu0
        %5602 = vmatprep.mubr.f32.mxu0 0.0
        %5603 = vmatmul.mubr.f32.gmra.mxu0 %v5266
        %v5604 = vpop.f32.mrf.mxu0
        %v5605 = vadd.f32 0.0, %v5604
        %v5606 = vpop.f32.mrf.mxu0
        %5607 = vmatprep.mubr.f32.mxu0 0.0
        %5608 = vmatmul.mubr.f32.gmra.mxu0 %v5269
        %v5609 = vpop.f32.mrf.mxu0
        %v5610 = vpop.f32.mrf.mxu0
        %5611 = vmatprep.mubr.f32.mxu0 0.0
        %5612 = vmatmul.mubr.f32.gmra.mxu0 %v5272
        %v5613 = vpop.f32.mrf.mxu0
        %v5614 = vadd.f32 0.0, %v5613
        %v5615 = vpop.f32.mrf.mxu0
        %5616 = vmatprep.mubr.f32.mxu0 0.0
        %5617 = vmatmul.mubr.f32.gmra.mxu0 %v5275
        %v5618 = vpop.f32.mrf.mxu0
        %v5619 = vadd.f32 0.0, %v5618
        %v5620 = vpop.f32.mrf.mxu0
        %5621 = vmatprep.mubr.f32.mxu0 0.0
        %5622 = vmatmul.mubr.f32.gmra.mxu0 %v5278
        %v5623 = vpop.f32.mrf.mxu0
        %v5624 = vadd.f32 0.0, %v5623
        %v5625 = vpop.f32.mrf.mxu0
        %5626 = vmatprep.mubr.f32.mxu0 0.0
        %5627 = vmatmul.mubr.f32.gmra.mxu0 %v5281
        %v5628 = vpop.f32.mrf.mxu0
        %v5629 = vadd.f32 0.0, %v5628
        %v5630 = vpop.f32.mrf.mxu0
        %5631 = vmatprep.mubr.f32.mxu0 0.0
        %5632 = vmatmul.mubr.f32.gmra.mxu0 %v5284
        %v5633 = vpop.f32.mrf.mxu0
        %v5634 = vpop.f32.mrf.mxu0
        %5635 = vmatprep.mubr.f32.mxu0 0.0
        %5636 = vmatmul.mubr.f32.gmra.mxu0 %v5287
        %v5637 = vpop.f32.mrf.mxu0
        %v5638 = vadd.f32 0.0, %v5637
        %v5639 = vpop.f32.mrf.mxu0
        %5640 = vmatprep.mubr.f32.mxu0 0.0
        %5641 = vmatmul.mubr.f32.gmra.mxu0 %v5290
        %v5642 = vpop.f32.mrf.mxu0
        %v5643 = vadd.f32 0.0, %v5642
        %v5644 = vpop.f32.mrf.mxu0
        %5645 = vmatprep.mubr.f32.mxu0 0.0
        %5646 = vmatmul.mubr.f32.gmra.mxu0 %v5293
        %v5647 = vpop.f32.mrf.mxu0
        %v5648 = vadd.f32 0.0, %v5647
        %v5649 = vpop.f32.mrf.mxu0
        %5650 = vmatprep.mubr.f32.mxu0 0.0
        %5651 = vmatmul.mubr.f32.gmra.mxu0 %v5296
        %v5652 = vpop.f32.mrf.mxu0
        %v5653 = vadd.f32 0.0, %v5652
        %v5654 = vpop.f32.mrf.mxu0
        %5655 = vmatprep.mubr.f32.mxu0 0.0
        %5656 = vmatmul.mubr.f32.gmra.mxu0 %v5299
        %v5657 = vpop.f32.mrf.mxu0
        %v5658 = vpop.f32.mrf.mxu0
        %5659 = vmatprep.mubr.f32.mxu0 0.0
        %5660 = vmatmul.mubr.f32.gmra.mxu0 %v5302
        %v5661 = vpop.f32.mrf.mxu0
        %v5662 = vadd.f32 0.0, %v5661
        %v5663 = vpop.f32.mrf.mxu0
        %5664 = vmatprep.mubr.f32.mxu0 0.0
        %5665 = vmatmul.mubr.f32.gmra.mxu0 %v5305
        %v5666 = vpop.f32.mrf.mxu0
        %v5667 = vadd.f32 0.0, %v5666
        %v5668 = vpop.f32.mrf.mxu0
        %5669 = vmatprep.mubr.f32.mxu0 0.0
        %5670 = vmatmul.mubr.f32.gmra.mxu0 %v5308
        %v5671 = vpop.f32.mrf.mxu0
        %v5672 = vadd.f32 0.0, %v5671
        %v5673 = vpop.f32.mrf.mxu0
        %5674 = vmatprep.mubr.f32.mxu0 0.0
        %5675 = vmatmul.mubr.f32.gmra.mxu0 %v5311
        %v5676 = vpop.f32.mrf.mxu0
        %v5677 = vadd.f32 0.0, %v5676
        %v5678 = vpop.f32.mrf.mxu0
        %5679 = vmatprep.mubr.f32.mxu0 0.0
        %5680 = vmatmul.mubr.f32.gmra.mxu0 %v5314
        %v5681 = vpop.f32.mrf.mxu0
        %v5682 = vpop.f32.mrf.mxu0
        %5683 = vmatprep.mubr.f32.mxu0 0.0
        %5684 = vmatmul.mubr.f32.gmra.mxu0 %v5317
        %v5685 = vpop.f32.mrf.mxu0
        %v5686 = vadd.f32 0.0, %v5685
        %v5687 = vpop.f32.mrf.mxu0
        %5688 = vmatprep.mubr.f32.mxu0 0.0
        %5689 = vmatmul.mubr.f32.gmra.mxu0 %v5320
        %v5690 = vpop.f32.mrf.mxu0
        %v5691 = vadd.f32 0.0, %v5690
        %v5692 = vpop.f32.mrf.mxu0
        %5693 = vmatprep.mubr.f32.mxu0 0.0
        %5694 = vmatmul.mubr.f32.gmra.mxu0 %v5323
        %v5695 = vpop.f32.mrf.mxu0
        %v5696 = vadd.f32 0.0, %v5695
        %v5697 = vpop.f32.mrf.mxu0
        %5698 = vmatprep.mubr.f32.mxu0 0.0
        %5699 = vmatmul.mubr.f32.gmra.mxu0 %v5326
        %v5700 = vpop.f32.mrf.mxu0
        %v5701 = vadd.f32 0.0, %v5700
        %v5702 = vpop.f32.mrf.mxu0
        %5703 = vmatprep.mubr.f32.mxu0 0.0
        %5704 = vmatmul.mubr.f32.gmra.mxu0 %v5329
        %v5705 = vpop.f32.mrf.mxu0
        %v5706 = vpop.f32.mrf.mxu0
        %5707 = vmatprep.mubr.f32.mxu0 0.0
        %5708 = vmatmul.mubr.f32.gmra.mxu0 %v5332
        %v5709 = vpop.f32.mrf.mxu0
        %v5710 = vadd.f32 0.0, %v5709
        %v5711 = vpop.f32.mrf.mxu0
        %5712 = vmatprep.mubr.f32.mxu0 0.0
        %5713 = vmatmul.mubr.f32.gmra.mxu0 %v5335
        %v5714 = vpop.f32.mrf.mxu0
        %v5715 = vadd.f32 0.0, %v5714
        %v5716 = vpop.f32.mrf.mxu0
        %5717 = vmatprep.mubr.f32.mxu0 0.0
        %5718 = vmatmul.mubr.f32.gmra.mxu0 %v5338
        %v5719 = vpop.f32.mrf.mxu0
        %v5720 = vadd.f32 0.0, %v5719
        %v5721 = vpop.f32.mrf.mxu0
        %5722 = vmatprep.mubr.f32.mxu0 0.0
        %5723 = vmatmul.mubr.f32.gmra.mxu0 %v5341
        %v5724 = vpop.f32.mrf.mxu0
        %v5725 = vadd.f32 0.0, %v5724
        %v5726 = vpop.f32.mrf.mxu0
        %5727 = vmatprep.mubr.f32.mxu0 0.0
        %5728 = vmatmul.mubr.f32.gmra.mxu0 %v5344
        %v5729 = vpop.f32.mrf.mxu0
        %v5730 = vpop.f32.mrf.mxu0
        %5731 = vmatprep.mubr.f32.mxu0 0.0
        %5732 = vmatmul.mubr.f32.gmra.mxu0 %v5347
        %v5733 = vpop.f32.mrf.mxu0
        %v5734 = vadd.f32 0.0, %v5733
        %v5735 = vpop.f32.mrf.mxu0
        %5736 = vmatprep.mubr.f32.mxu0 0.0
        %5737 = vmatmul.mubr.f32.gmra.mxu0 %v5350
        %v5738 = vpop.f32.mrf.mxu0
        %v5739 = vadd.f32 0.0, %v5738
        %v5740 = vpop.f32.mrf.mxu0
        %5741 = vmatprep.mubr.f32.mxu0 0.0
        %5742 = vmatmul.mubr.f32.gmra.mxu0 %v5353
        %v5743 = vpop.f32.mrf.mxu0
        %v5744 = vadd.f32 0.0, %v5743
        %v5745 = vpop.f32.mrf.mxu0
        %5746 = vmatprep.mubr.f32.mxu0 0.0
        %5747 = vmatmul.mubr.f32.gmra.mxu0 %v5356
        %v5748 = vpop.f32.mrf.mxu0
        %v5749 = vadd.f32 0.0, %v5748
        %v5750 = vpop.f32.mrf.mxu0
        %5751 = vmatprep.mubr.f32.mxu0 0.0
        %5752 = vmatmul.mubr.f32.gmra.mxu0 %v5359
        %v5753 = vpop.f32.mrf.mxu0
        %v5754 = vpop.f32.mrf.mxu0
        %5755 = vmatprep.mubr.f32.mxu0 0.0
        %5756 = vmatmul.mubr.f32.gmra.mxu0 %v5362
        %v5757 = vpop.f32.mrf.mxu0
        %v5758 = vadd.f32 0.0, %v5757
        %v5759 = vpop.f32.mrf.mxu0
        %5760 = vmatprep.mubr.f32.mxu0 0.0
        %5761 = vmatmul.mubr.f32.gmra.mxu0 %v5365
        %v5762 = vpop.f32.mrf.mxu0
        %v5763 = vadd.f32 0.0, %v5762
        %v5764 = vpop.f32.mrf.mxu0
        %5765 = vmatprep.mubr.f32.mxu0 0.0
        %5766 = vmatmul.mubr.f32.gmra.mxu0 %v5368
        %v5767 = vpop.f32.mrf.mxu0
        %v5768 = vadd.f32 0.0, %v5767
        %v5769 = vpop.f32.mrf.mxu0
        %5770 = vmatprep.mubr.f32.mxu0 0.0
        %5771 = vmatmul.mubr.f32.gmra.mxu0 %v5371
        %v5772 = vpop.f32.mrf.mxu0
        %v5773 = vadd.f32 0.0, %v5772
        %v5774 = vpop.f32.mrf.mxu0
        %5775 = vmatprep.mubr.f32.mxu0 0.0
        %5776 = vmatmul.mubr.f32.gmra.mxu0 %v5374
        %v5777 = vpop.f32.mrf.mxu0
        %v5778 = vpop.f32.mrf.mxu0
        %5779 = vmatprep.mubr.f32.mxu0 0.0
        %5780 = vmatmul.mubr.f32.gmra.mxu0 %v5377
        %v5781 = vpop.f32.mrf.mxu0
        %v5782 = vadd.f32 0.0, %v5781
        %v5783 = vpop.f32.mrf.mxu0
        %5784 = vmatprep.mubr.f32.mxu0 0.0
        %5785 = vmatmul.mubr.f32.gmra.mxu0 %v5380
        %v5786 = vpop.f32.mrf.mxu0
        %v5787 = vadd.f32 0.0, %v5786
        %v5788 = vpop.f32.mrf.mxu0
        %5789 = vmatprep.mubr.f32.mxu0 0.0
        %5790 = vmatmul.mubr.f32.gmra.mxu0 %v5383
        %v5791 = vpop.f32.mrf.mxu0
        %v5792 = vadd.f32 0.0, %v5791
        %v5793 = vpop.f32.mrf.mxu0
        %5794 = vmatprep.mubr.f32.mxu0 0.0
        %5795 = vmatmul.mubr.f32.gmra.mxu0 %v5386
        %v5796 = vpop.f32.mrf.mxu0
        %v5797 = vadd.f32 0.0, %v5796
        %v5798 = vpop.f32.mrf.mxu0
        %5799 = vmatprep.mubr.f32.mxu0 0.0
        %5800 = vmatmul.mubr.f32.gmra.mxu0 %v5389
        %v5801 = vpop.f32.mrf.mxu0
        %v5802 = vpop.f32.mrf.mxu0
        %5803 = vmatprep.mubr.f32.mxu0 0.0
        %5804 = vmatmul.mubr.f32.gmra.mxu0 %v5392
        %v5805 = vpop.f32.mrf.mxu0
        %v5806 = vadd.f32 0.0, %v5805
        %v5807 = vpop.f32.mrf.mxu0
        %5808 = vmatprep.mubr.f32.mxu0 0.0
        %5809 = vmatmul.mubr.f32.gmra.mxu0 %v5395
        %v5810 = vpop.f32.mrf.mxu0
        %v5811 = vadd.f32 0.0, %v5810
        %v5812 = vpop.f32.mrf.mxu0
        %5813 = vmatprep.mubr.f32.mxu0 0.0
        %5814 = vmatmul.mubr.f32.gmra.mxu0 %v5398
        %v5815 = vpop.f32.mrf.mxu0
        %v5816 = vadd.f32 0.0, %v5815
        %v5817 = vpop.f32.mrf.mxu0
        %5818 = vmatprep.mubr.f32.mxu0 0.0
        %5819 = vmatmul.mubr.f32.gmra.mxu0 %v5401
        %v5820 = vpop.f32.mrf.mxu0
        %v5821 = vadd.f32 0.0, %v5820
        %v5822 = vpop.f32.mrf.mxu0
        %5823 = vmatprep.mubr.f32.mxu0 0.0
        %5824 = vmatmul.mubr.f32.gmra.mxu0 %v5404
        %v5825 = vpop.f32.mrf.mxu0
        %v5826 = vpop.f32.mrf.mxu0
        %5827 = vmatprep.mubr.f32.mxu0 0.0
        %5828 = vmatmul.mubr.f32.gmra.mxu0 %v5407
        %v5829 = vpop.f32.mrf.mxu0
        %v5830 = vadd.f32 0.0, %v5829
        %v5831 = vpop.f32.mrf.mxu0
        %5832 = vmatprep.mubr.f32.mxu0 0.0
        %5833 = vmatmul.mubr.f32.gmra.mxu0 %v5410
        %v5834 = vpop.f32.mrf.mxu0
        %v5835 = vadd.f32 0.0, %v5834
        %v5836 = vpop.f32.mrf.mxu0
        %5837 = vmatprep.mubr.f32.mxu0 0.0
        %5838 = vmatmul.mubr.f32.gmra.mxu0 %v5413
        %v5839 = vpop.f32.mrf.mxu0
        %v5840 = vadd.f32 0.0, %v5839
        %v5841 = vpop.f32.mrf.mxu0
        %5842 = vmatprep.mubr.f32.mxu0 0.0
        %5843 = vmatmul.mubr.f32.gmra.mxu0 %v5416
        %v5844 = vpop.f32.mrf.mxu0
        %v5845 = vadd.f32 0.0, %v5844
        %v5846 = vpop.f32.mrf.mxu0
        %5847 = vmatprep.mubr.f32.mxu0 0.0
        %5848 = vmatmul.mubr.f32.gmra.mxu0 %v5419
        %v5849 = vpop.f32.mrf.mxu0
        %v5850 = vpop.f32.mrf.mxu0
        %5851 = vmatprep.mubr.f32.mxu0 0.0
        %5852 = vmatmul.mubr.f32.gmra.mxu0 %v5422
        %v5853 = vpop.f32.mrf.mxu0
        %v5854 = vadd.f32 0.0, %v5853
        %v5855 = vpop.f32.mrf.mxu0
        %5856 = vmatprep.mubr.f32.mxu0 0.0
        %5857 = vmatmul.mubr.f32.gmra.mxu0 %v5425
        %v5858 = vpop.f32.mrf.mxu0
        %v5859 = vadd.f32 0.0, %v5858
        %v5860 = vpop.f32.mrf.mxu0
        %5861 = vmatprep.mubr.f32.mxu0 0.0
        %5862 = vmatmul.mubr.f32.gmra.mxu0 %v5428
        %v5863 = vpop.f32.mrf.mxu0
        %v5864 = vadd.f32 0.0, %v5863
        %v5865 = vpop.f32.mrf.mxu0
        %5866 = vmatprep.mubr.f32.mxu0 0.0
        %5867 = vmatmul.mubr.f32.gmra.mxu0 %v5431
        %v5868 = vpop.f32.mrf.mxu0
        %v5869 = vadd.f32 0.0, %v5868
        %v5870 = vpop.f32.mrf.mxu0
        %5871 = vmatprep.mubr.f32.mxu0 0.0
        %5872 = vmatmul.mubr.f32.gmra.mxu0 %v5434
        %v5873 = vpop.f32.mrf.mxu0
        %v5874 = vpop.f32.mrf.mxu0
        %5875 = vmatprep.mubr.f32.mxu0 0.0
        %5876 = vmatmul.mubr.f32.gmra.mxu0 %v5437
        %v5877 = vpop.f32.mrf.mxu0
        %v5878 = vadd.f32 0.0, %v5877
        %v5879 = vpop.f32.mrf.mxu0
        %5880 = vmatprep.mubr.f32.mxu0 0.0
        %5881 = vmatmul.mubr.f32.gmra.mxu0 %v5440
        %v5882 = vpop.f32.mrf.mxu0
        %v5883 = vadd.f32 0.0, %v5882
        %v5884 = vpop.f32.mrf.mxu0
        %5885 = vmatprep.mubr.f32.mxu0 0.0
        %5886 = vmatmul.mubr.f32.gmra.mxu0 %v5443
        %v5887 = vpop.f32.mrf.mxu0
        %v5888 = vadd.f32 0.0, %v5887
        %v5889 = vpop.f32.mrf.mxu0
        %5890 = vmatprep.mubr.f32.mxu0 0.0
        %5891 = vmatmul.mubr.f32.gmra.mxu0 %v5446
        %v5892 = vpop.f32.mrf.mxu0
        %v5893 = vadd.f32 0.0, %v5892
        %v5894 = vpop.f32.mrf.mxu0
        %5895 = vdwg.mxu0
        %v5896 = vadd.f32 %v5066, %v5518
        %v5897 = vadd.f32 %v5067, %v5523
        %v5898 = vadd.f32 %v5068, %v5528
        %v5899 = vadd.f32 %v5069, %v5533
        %v5900 = vadd.f32 %v5070, %v5542
        %v5901 = vadd.f32 %v5071, %v5547
        %v5902 = vadd.f32 %v5072, %v5552
        %v5903 = vadd.f32 %v5073, %v5557
        %v5904 = vadd.f32 %v5074, %v5566
        %v5905 = vadd.f32 %v5075, %v5571
        %v5906 = vadd.f32 %v5076, %v5576
        %v5907 = vadd.f32 %v5077, %v5581
        %v5908 = vadd.f32 %v5078, %v5590
        %v5909 = vadd.f32 %v5079, %v5595
        %v5910 = vadd.f32 %v5080, %v5600
        %v5911 = vadd.f32 %v5081, %v5605
        %v5912 = vadd.f32 %v5082, %v5614
        %v5913 = vadd.f32 %v5083, %v5619
        %v5914 = vadd.f32 %v5084, %v5624
        %v5915 = vadd.f32 %v5085, %v5629
        %v5916 = vadd.f32 %v5086, %v5638
        %v5917 = vadd.f32 %v5087, %v5643
        %v5918 = vadd.f32 %v5088, %v5648
        %v5919 = vadd.f32 %v5089, %v5653
        %v5920 = vadd.f32 %v5090, %v5662
        %v5921 = vadd.f32 %v5091, %v5667
        %v5922 = vadd.f32 %v5092, %v5672
        %v5923 = vadd.f32 %v5093, %v5677
        %v5924 = vadd.f32 %v5094, %v5686
        %v5925 = vadd.f32 %v5095, %v5691
        %v5926 = vadd.f32 %v5096, %v5696
        %v5927 = vadd.f32 %v5097, %v5701
        %v5928 = vadd.f32 %v5098, %v5710
        %v5929 = vadd.f32 %v5099, %v5715
        %v5930 = vadd.f32 %v5100, %v5720
        %v5931 = vadd.f32 %v5101, %v5725
        %v5932 = vadd.f32 %v5102, %v5734
        %v5933 = vadd.f32 %v5103, %v5739
        %v5934 = vadd.f32 %v5104, %v5744
        %v5935 = vadd.f32 %v5105, %v5749
        %v5936 = vadd.f32 %v5106, %v5758
        %v5937 = vadd.f32 %v5107, %v5763
        %v5938 = vadd.f32 %v5108, %v5768
        %v5939 = vadd.f32 %v5109, %v5773
        %v5940 = vadd.f32 %v5110, %v5782
        %v5941 = vadd.f32 %v5111, %v5787
        %v5942 = vadd.f32 %v5112, %v5792
        %v5943 = vadd.f32 %v5113, %v5797
        %v5944 = vadd.f32 %v5114, %v5806
        %v5945 = vadd.f32 %v5115, %v5811
        %v5946 = vadd.f32 %v5116, %v5816
        %v5947 = vadd.f32 %v5117, %v5821
        %v5948 = vadd.f32 %v5118, %v5830
        %v5949 = vadd.f32 %v5119, %v5835
        %v5950 = vadd.f32 %v5120, %v5840
        %v5951 = vadd.f32 %v5121, %v5845
        %v5952 = vadd.f32 %v5122, %v5854
        %v5953 = vadd.f32 %v5123, %v5859
        %v5954 = vadd.f32 %v5124, %v5864
        %v5955 = vadd.f32 %v5125, %v5869
        %v5956 = vadd.f32 %v5126, %v5878
        %v5957 = vadd.f32 %v5127, %v5883
        %v5958 = vadd.f32 %v5128, %v5888
        %v5959 = vadd.f32 %v5129, %v5893
        %v5960 = vld [vmem:[#allocation2 + $0x29] sm:$0xff]
        %v5961 = vld [vmem:[#allocation2 + $0x31] sm:$0xff]
        %v5962 = vld [vmem:[#allocation2 + $0x39] sm:$0xff]
        %v5963 = vld [vmem:[#allocation2 + $0x41] sm:$0xff]
        %v5964 = vld [vmem:[#allocation2 + $0x49] sm:$0xff]
        %v5965 = vld [vmem:[#allocation2 + $0x51] sm:$0xff]
        %v5966 = vld [vmem:[#allocation2 + $0x59] sm:$0xff]
        %v5967 = vld [vmem:[#allocation2 + $0x61] sm:$0xff]
        %v5968 = vld [vmem:[#allocation2 + $0x69] sm:$0xff]
        %v5969 = vld [vmem:[#allocation2 + $0x71] sm:$0xff]
        %v5970 = vld [vmem:[#allocation2 + $0x79] sm:$0xff]
        %v5971 = vld [vmem:[#allocation2 + $0x81] sm:$0xff]
        %v5972 = vld [vmem:[#allocation2 + $0x89] sm:$0xff]
        %v5973 = vld [vmem:[#allocation2 + $0x91] sm:$0xff]
        %v5974 = vld [vmem:[#allocation2 + $0x99] sm:$0xff]
        %v5975 = vld [vmem:[#allocation2 + $0xa1] sm:$0xff]
        %v5976 = vld [vmem:[#allocation2 + $0xa9] sm:$0xff]
        %v5977 = vld [vmem:[#allocation2 + $0xb1] sm:$0xff]
        %v5978 = vld [vmem:[#allocation2 + $0xb9] sm:$0xff]
        %v5979 = vld [vmem:[#allocation2 + $0xc1] sm:$0xff]
        %v5980 = vld [vmem:[#allocation2 + $0xc9] sm:$0xff]
        %v5981 = vld [vmem:[#allocation2 + $0xd1] sm:$0xff]
        %v5982 = vld [vmem:[#allocation2 + $0xd9] sm:$0xff]
        %v5983 = vld [vmem:[#allocation2 + $0xe1] sm:$0xff]
        %v5984 = vld [vmem:[#allocation2 + $0xe9] sm:$0xff]
        %v5985 = vld [vmem:[#allocation2 + $0xf1] sm:$0xff]
        %v5986 = vld [vmem:[#allocation2 + $0xf9] sm:$0xff]
        %v5987 = vld [vmem:[#allocation2 + $0x101] sm:$0xff]
        %v5988 = vld [vmem:[#allocation2 + $0x109] sm:$0xff]
        %v5989 = vld [vmem:[#allocation2 + $0x111] sm:$0xff]
        %v5990 = vld [vmem:[#allocation2 + $0x119] sm:$0xff]
        %v5991 = vld [vmem:[#allocation2 + $0x121] sm:$0xff]
        %v5992 = vld [vmem:[#allocation2 + $0x129] sm:$0xff]
        %v5993 = vld [vmem:[#allocation2 + $0x131] sm:$0xff]
        %v5994 = vld [vmem:[#allocation2 + $0x139] sm:$0xff]
        %v5995 = vld [vmem:[#allocation2 + $0x141] sm:$0xff]
        %v5996 = vld [vmem:[#allocation2 + $0x149] sm:$0xff]
        %v5997 = vld [vmem:[#allocation2 + $0x151] sm:$0xff]
        %v5998 = vld [vmem:[#allocation2 + $0x159] sm:$0xff]
        %v5999 = vld [vmem:[#allocation2 + $0x161] sm:$0xff]
        %v6000 = vld [vmem:[#allocation2 + $0x169] sm:$0xff]
        %v6001 = vld [vmem:[#allocation2 + $0x171] sm:$0xff]
        %v6002 = vld [vmem:[#allocation2 + $0x179] sm:$0xff]
        %v6003 = vld [vmem:[#allocation2 + $0x181] sm:$0xff]
        %v6004 = vld [vmem:[#allocation2 + $0x189] sm:$0xff]
        %v6005 = vld [vmem:[#allocation2 + $0x191] sm:$0xff]
        %v6006 = vld [vmem:[#allocation2 + $0x199] sm:$0xff]
        %v6007 = vld [vmem:[#allocation2 + $0x1a1] sm:$0xff]
        %v6008 = vld [vmem:[#allocation2 + $0x1a9] sm:$0xff]
        %v6009 = vld [vmem:[#allocation2 + $0x1b1] sm:$0xff]
        %v6010 = vld [vmem:[#allocation2 + $0x1b9] sm:$0xff]
        %v6011 = vld [vmem:[#allocation2 + $0x1c1] sm:$0xff]
        %v6012 = vld [vmem:[#allocation2 + $0x1c9] sm:$0xff]
        %v6013 = vld [vmem:[#allocation2 + $0x1d1] sm:$0xff]
        %v6014 = vld [vmem:[#allocation2 + $0x1d9] sm:$0xff]
        %v6015 = vld [vmem:[#allocation2 + $0x1e1] sm:$0xff]
        %v6016 = vld [vmem:[#allocation2 + $0x1e9] sm:$0xff]
        %v6017 = vld [vmem:[#allocation2 + $0x1f1] sm:$0xff]
        %v6018 = vld [vmem:[#allocation2 + $0x1f9] sm:$0xff]
        %v6019 = vld [vmem:[#allocation2 + $0x201] sm:$0xff]
        %v6020 = vld [vmem:[#allocation2 + $0x209] sm:$0xff]
        %v6021 = vld [vmem:[#allocation2 + $0x211] sm:$0xff]
        %v6022 = vld [vmem:[#allocation2 + $0x219] sm:$0xff]
        %v6023 = vld [vmem:[#allocation2 + $0x221] sm:$0xff]
        %v6024 = vld [vmem:[#allocation2 + $0x229] sm:$0xff]
        %v6025 = vld [vmem:[#allocation2 + $0x231] sm:$0xff]
        %v6026 = vld [vmem:[#allocation2 + $0x239] sm:$0xff]
        %v6027 = vld [vmem:[#allocation2 + $0x241] sm:$0xff]
        %v6028 = vld [vmem:[#allocation2 + $0x249] sm:$0xff]
        %v6029 = vld [vmem:[#allocation2 + $0x251] sm:$0xff]
        %v6030 = vld [vmem:[#allocation2 + $0x259] sm:$0xff]
        %v6031 = vld [vmem:[#allocation2 + $0x261] sm:$0xff]
        %v6032 = vld [vmem:[#allocation2 + $0x269] sm:$0xff]
        %v6033 = vld [vmem:[#allocation2 + $0x271] sm:$0xff]
        %v6034 = vld [vmem:[#allocation2 + $0x279] sm:$0xff]
        %v6035 = vld [vmem:[#allocation2 + $0x281] sm:$0xff]
        %v6036 = vld [vmem:[#allocation2 + $0x289] sm:$0xff]
        %v6037 = vld [vmem:[#allocation2 + $0x291] sm:$0xff]
        %v6038 = vld [vmem:[#allocation2 + $0x299] sm:$0xff]
        %s6039 = scalar_lea.vmem %s5, 16
        %v6040 = vld [vmem:[%s6039] sm:$0xf]
        %v6042 = vsel %vm519, %v5960, 0
        %v6045 = vsel %vm519, %v5961, 0
        %v6048 = vsel %vm519, %v5962, 0
        %v6051 = vsel %vm519, %v5963, 0
        %v6054 = vsel %vm519, %v5964, 0
        %v6057 = vsel %vm519, %v5965, 0
        %v6060 = vsel %vm519, %v5966, 0
        %v6063 = vsel %vm519, %v5967, 0
        %v6066 = vsel %vm519, %v5968, 0
        %v6069 = vsel %vm519, %v5969, 0
        %v6072 = vsel %vm519, %v5970, 0
        %v6075 = vsel %vm519, %v5971, 0
        %v6078 = vsel %vm519, %v5972, 0
        %v6081 = vsel %vm519, %v5973, 0
        %v6084 = vsel %vm519, %v5974, 0
        %v6087 = vsel %vm519, %v5975, 0
        %v6090 = vsel %vm519, %v5976, 0
        %v6093 = vsel %vm519, %v5977, 0
        %v6096 = vsel %vm519, %v5978, 0
        %v6099 = vsel %vm519, %v5979, 0
        %v6102 = vsel %vm519, %v5980, 0
        %v6105 = vsel %vm519, %v5981, 0
        %v6108 = vsel %vm519, %v5982, 0
        %v6111 = vsel %vm519, %v5983, 0
        %v6114 = vsel %vm519, %v5984, 0
        %v6117 = vsel %vm519, %v5985, 0
        %v6120 = vsel %vm519, %v5986, 0
        %v6123 = vsel %vm519, %v5987, 0
        %v6126 = vsel %vm519, %v5988, 0
        %v6129 = vsel %vm519, %v5989, 0
        %v6132 = vsel %vm519, %v5990, 0
        %v6135 = vsel %vm519, %v5991, 0
        %v6138 = vsel %vm519, %v5992, 0
        %v6141 = vsel %vm519, %v5993, 0
        %v6144 = vsel %vm519, %v5994, 0
        %v6147 = vsel %vm519, %v5995, 0
        %v6150 = vsel %vm519, %v5996, 0
        %v6153 = vsel %vm519, %v5997, 0
        %v6156 = vsel %vm519, %v5998, 0
        %v6159 = vsel %vm519, %v5999, 0
        %v6162 = vsel %vm519, %v6000, 0
        %v6165 = vsel %vm519, %v6001, 0
        %v6168 = vsel %vm519, %v6002, 0
        %v6171 = vsel %vm519, %v6003, 0
        %v6174 = vsel %vm519, %v6004, 0
        %v6177 = vsel %vm519, %v6005, 0
        %v6180 = vsel %vm519, %v6006, 0
        %v6183 = vsel %vm519, %v6007, 0
        %v6186 = vsel %vm519, %v6008, 0
        %v6189 = vsel %vm519, %v6009, 0
        %v6192 = vsel %vm519, %v6010, 0
        %v6195 = vsel %vm519, %v6011, 0
        %v6198 = vsel %vm519, %v6012, 0
        %v6201 = vsel %vm519, %v6013, 0
        %v6204 = vsel %vm519, %v6014, 0
        %v6207 = vsel %vm519, %v6015, 0
        %v6210 = vsel %vm519, %v6016, 0
        %v6213 = vsel %vm519, %v6017, 0
        %v6216 = vsel %vm519, %v6018, 0
        %v6219 = vsel %vm519, %v6019, 0
        %v6222 = vsel %vm519, %v6020, 0
        %v6225 = vsel %vm519, %v6021, 0
        %v6228 = vsel %vm519, %v6022, 0
        %v6231 = vsel %vm519, %v6023, 0
        %v6234 = vsel %vm519, %v6024, 0
        %v6237 = vsel %vm519, %v6025, 0
        %v6240 = vsel %vm519, %v6026, 0
        %v6243 = vsel %vm519, %v6027, 0
        %v6246 = vsel %vm519, %v6028, 0
        %v6249 = vsel %vm519, %v6029, 0
        %v6252 = vsel %vm519, %v6030, 0
        %v6255 = vsel %vm519, %v6031, 0
        %v6258 = vsel %vm519, %v6032, 0
        %v6261 = vsel %vm519, %v6033, 0
        %v6264 = vsel %vm519, %v6034, 0
        %v6267 = vsel %vm519, %v6035, 0
        %v6270 = vsel %vm519, %v6036, 0
        %v6273 = vsel %vm519, %v6037, 0
        %v6276 = vsel %vm519, %v6038, 0
        %v6279 = vsel %vm3166, %v6040, 0
        %6281 = vmatprep.subr.mxu0 0.0
        %6282 = vmatpush1.msra.mxu0 0.0
        %6283 = vmatprep.subr.mxu0 0.0
        %6284 = vmatpush1.msra.mxu0 0.0
        %6285 = vmatprep.subr.mxu0 0.0
        %6286 = vmatpush1.msra.mxu0 0.0
        %6287 = vmatprep.subr.mxu0 0.0
        %6288 = vmatpush1.msra.mxu0 0.0
        %6289 = vmatprep.subr.mxu0 0.0
        %6290 = vmatpush1.msra.mxu0 0.0
        %6291 = vmatprep.subr.mxu0 0.0
        %6292 = vmatpush1.msra.mxu0 0.0
        %6293 = vmatprep.subr.mxu0 0.0
        %6294 = vmatpush1.msra.mxu0 0.0
        %6295 = vmatprep.subr.mxu0 0.0
        %6296 = vmatpush1.msra.mxu0 0.0
        %6297 = vmatprep.subr.mxu0 0.0
        %6298 = vmatpush1.msra.mxu0 0.0
        %6299 = vmatprep.subr.mxu0 0.0
        %6300 = vmatpush1.msra.mxu0 0.0
        %6301 = vmatprep.subr.mxu0 0.0
        %6302 = vmatpush1.msra.mxu0 0.0
        %6303 = vmatprep.subr.mxu0 0.0
        %6304 = vmatpush1.msra.mxu0 0.0
        %6305 = vmatprep.subr.mxu0 0.0
        %6306 = vmatpush1.msra.mxu0 0.0
        %6307 = vmatprep.subr.mxu0 0.0
        %6308 = vmatpush1.msra.mxu0 0.0
        %6309 = vmatprep.subr.mxu0 0.0
        %6310 = vmatpush1.msra.mxu0 0.0
        %6311 = vmatprep.subr.mxu0 0.0
        %6312 = vmatpush1.msra.mxu0 %v6279
        %6313 = vmatprep.subr.mxu0 0.0
        %6314 = vmatpush2.msra.mxu0 0.0
        %6315 = vmatprep.subr.mxu0 0.0
        %6316 = vmatpush2.msra.mxu0 0.0
        %6317 = vmatprep.subr.mxu0 0.0
        %6318 = vmatpush2.msra.mxu0 0.0
        %6319 = vmatprep.subr.mxu0 0.0
        %6320 = vmatpush2.msra.mxu0 0.0
        %6321 = vmatprep.subr.mxu0 0.0
        %6322 = vmatpush2.msra.mxu0 0.0
        %6323 = vmatprep.subr.mxu0 0.0
        %6324 = vmatpush2.msra.mxu0 0.0
        %6325 = vmatprep.subr.mxu0 0.0
        %6326 = vmatpush2.msra.mxu0 0.0
        %6327 = vmatprep.subr.mxu0 0.0
        %6328 = vmatpush2.msra.mxu0 0.0
        %6329 = vmatprep.subr.mxu0 0.0
        %6330 = vmatpush2.msra.mxu0 0.0
        %6331 = vmatprep.subr.mxu0 0.0
        %6332 = vmatpush2.msra.mxu0 0.0
        %6333 = vmatprep.subr.mxu0 0.0
        %6334 = vmatpush2.msra.mxu0 0.0
        %6335 = vmatprep.subr.mxu0 0.0
        %6336 = vmatpush2.msra.mxu0 0.0
        %6337 = vmatprep.subr.mxu0 0.0
        %6338 = vmatpush2.msra.mxu0 0.0
        %6339 = vmatprep.subr.mxu0 0.0
        %6340 = vmatpush2.msra.mxu0 0.0
        %6341 = vmatprep.subr.mxu0 0.0
        %6342 = vmatpush2.msra.mxu0 0.0
        %6343 = vmatprep.subr.mxu0 0.0
        %6344 = vmatpush2.msra.mxu0 0.0
        %6345 = vmatprep.mubr.f32.mxu0 0.0
        %6346 = vmatmul.mubr.f32.gmra.mxu0 %v6042
        %v6347 = vpop.f32.mrf.mxu0
        %v6348 = vadd.f32 0.0, %v6347
        %v6349 = vpop.f32.mrf.mxu0
        %6350 = vmatprep.mubr.f32.mxu0 0.0
        %6351 = vmatmul.mubr.f32.gmra.mxu0 %v6045
        %v6352 = vpop.f32.mrf.mxu0
        %v6353 = vadd.f32 0.0, %v6352
        %v6354 = vpop.f32.mrf.mxu0
        %6355 = vmatprep.mubr.f32.mxu0 0.0
        %6356 = vmatmul.mubr.f32.gmra.mxu0 %v6048
        %v6357 = vpop.f32.mrf.mxu0
        %v6358 = vadd.f32 0.0, %v6357
        %v6359 = vpop.f32.mrf.mxu0
        %6360 = vmatprep.mubr.f32.mxu0 0.0
        %6361 = vmatmul.mubr.f32.gmra.mxu0 %v6051
        %v6362 = vpop.f32.mrf.mxu0
        %v6363 = vadd.f32 0.0, %v6362
        %v6364 = vpop.f32.mrf.mxu0
        %6365 = vmatprep.mubr.f32.mxu0 0.0
        %6366 = vmatmul.mubr.f32.gmra.mxu0 %v6054
        %v6367 = vpop.f32.mrf.mxu0
        %v6368 = vpop.f32.mrf.mxu0
        %6369 = vmatprep.mubr.f32.mxu0 0.0
        %6370 = vmatmul.mubr.f32.gmra.mxu0 %v6057
        %v6371 = vpop.f32.mrf.mxu0
        %v6372 = vadd.f32 0.0, %v6371
        %v6373 = vpop.f32.mrf.mxu0
        %6374 = vmatprep.mubr.f32.mxu0 0.0
        %6375 = vmatmul.mubr.f32.gmra.mxu0 %v6060
        %v6376 = vpop.f32.mrf.mxu0
        %v6377 = vadd.f32 0.0, %v6376
        %v6378 = vpop.f32.mrf.mxu0
        %6379 = vmatprep.mubr.f32.mxu0 0.0
        %6380 = vmatmul.mubr.f32.gmra.mxu0 %v6063
        %v6381 = vpop.f32.mrf.mxu0
        %v6382 = vadd.f32 0.0, %v6381
        %v6383 = vpop.f32.mrf.mxu0
        %6384 = vmatprep.mubr.f32.mxu0 0.0
        %6385 = vmatmul.mubr.f32.gmra.mxu0 %v6066
        %v6386 = vpop.f32.mrf.mxu0
        %v6387 = vadd.f32 0.0, %v6386
        %v6388 = vpop.f32.mrf.mxu0
        %6389 = vmatprep.mubr.f32.mxu0 0.0
        %6390 = vmatmul.mubr.f32.gmra.mxu0 %v6069
        %v6391 = vpop.f32.mrf.mxu0
        %v6392 = vpop.f32.mrf.mxu0
        %6393 = vmatprep.mubr.f32.mxu0 0.0
        %6394 = vmatmul.mubr.f32.gmra.mxu0 %v6072
        %v6395 = vpop.f32.mrf.mxu0
        %v6396 = vadd.f32 0.0, %v6395
        %v6397 = vpop.f32.mrf.mxu0
        %6398 = vmatprep.mubr.f32.mxu0 0.0
        %6399 = vmatmul.mubr.f32.gmra.mxu0 %v6075
        %v6400 = vpop.f32.mrf.mxu0
        %v6401 = vadd.f32 0.0, %v6400
        %v6402 = vpop.f32.mrf.mxu0
        %6403 = vmatprep.mubr.f32.mxu0 0.0
        %6404 = vmatmul.mubr.f32.gmra.mxu0 %v6078
        %v6405 = vpop.f32.mrf.mxu0
        %v6406 = vadd.f32 0.0, %v6405
        %v6407 = vpop.f32.mrf.mxu0
        %6408 = vmatprep.mubr.f32.mxu0 0.0
        %6409 = vmatmul.mubr.f32.gmra.mxu0 %v6081
        %v6410 = vpop.f32.mrf.mxu0
        %v6411 = vadd.f32 0.0, %v6410
        %v6412 = vpop.f32.mrf.mxu0
        %6413 = vmatprep.mubr.f32.mxu0 0.0
        %6414 = vmatmul.mubr.f32.gmra.mxu0 %v6084
        %v6415 = vpop.f32.mrf.mxu0
        %v6416 = vpop.f32.mrf.mxu0
        %6417 = vmatprep.mubr.f32.mxu0 0.0
        %6418 = vmatmul.mubr.f32.gmra.mxu0 %v6087
        %v6419 = vpop.f32.mrf.mxu0
        %v6420 = vadd.f32 0.0, %v6419
        %v6421 = vpop.f32.mrf.mxu0
        %6422 = vmatprep.mubr.f32.mxu0 0.0
        %6423 = vmatmul.mubr.f32.gmra.mxu0 %v6090
        %v6424 = vpop.f32.mrf.mxu0
        %v6425 = vadd.f32 0.0, %v6424
        %v6426 = vpop.f32.mrf.mxu0
        %6427 = vmatprep.mubr.f32.mxu0 0.0
        %6428 = vmatmul.mubr.f32.gmra.mxu0 %v6093
        %v6429 = vpop.f32.mrf.mxu0
        %v6430 = vadd.f32 0.0, %v6429
        %v6431 = vpop.f32.mrf.mxu0
        %6432 = vmatprep.mubr.f32.mxu0 0.0
        %6433 = vmatmul.mubr.f32.gmra.mxu0 %v6096
        %v6434 = vpop.f32.mrf.mxu0
        %v6435 = vadd.f32 0.0, %v6434
        %v6436 = vpop.f32.mrf.mxu0
        %6437 = vmatprep.mubr.f32.mxu0 0.0
        %6438 = vmatmul.mubr.f32.gmra.mxu0 %v6099
        %v6439 = vpop.f32.mrf.mxu0
        %v6440 = vpop.f32.mrf.mxu0
        %6441 = vmatprep.mubr.f32.mxu0 0.0
        %6442 = vmatmul.mubr.f32.gmra.mxu0 %v6102
        %v6443 = vpop.f32.mrf.mxu0
        %v6444 = vadd.f32 0.0, %v6443
        %v6445 = vpop.f32.mrf.mxu0
        %6446 = vmatprep.mubr.f32.mxu0 0.0
        %6447 = vmatmul.mubr.f32.gmra.mxu0 %v6105
        %v6448 = vpop.f32.mrf.mxu0
        %v6449 = vadd.f32 0.0, %v6448
        %v6450 = vpop.f32.mrf.mxu0
        %6451 = vmatprep.mubr.f32.mxu0 0.0
        %6452 = vmatmul.mubr.f32.gmra.mxu0 %v6108
        %v6453 = vpop.f32.mrf.mxu0
        %v6454 = vadd.f32 0.0, %v6453
        %v6455 = vpop.f32.mrf.mxu0
        %6456 = vmatprep.mubr.f32.mxu0 0.0
        %6457 = vmatmul.mubr.f32.gmra.mxu0 %v6111
        %v6458 = vpop.f32.mrf.mxu0
        %v6459 = vadd.f32 0.0, %v6458
        %v6460 = vpop.f32.mrf.mxu0
        %6461 = vmatprep.mubr.f32.mxu0 0.0
        %6462 = vmatmul.mubr.f32.gmra.mxu0 %v6114
        %v6463 = vpop.f32.mrf.mxu0
        %v6464 = vpop.f32.mrf.mxu0
        %6465 = vmatprep.mubr.f32.mxu0 0.0
        %6466 = vmatmul.mubr.f32.gmra.mxu0 %v6117
        %v6467 = vpop.f32.mrf.mxu0
        %v6468 = vadd.f32 0.0, %v6467
        %v6469 = vpop.f32.mrf.mxu0
        %6470 = vmatprep.mubr.f32.mxu0 0.0
        %6471 = vmatmul.mubr.f32.gmra.mxu0 %v6120
        %v6472 = vpop.f32.mrf.mxu0
        %v6473 = vadd.f32 0.0, %v6472
        %v6474 = vpop.f32.mrf.mxu0
        %6475 = vmatprep.mubr.f32.mxu0 0.0
        %6476 = vmatmul.mubr.f32.gmra.mxu0 %v6123
        %v6477 = vpop.f32.mrf.mxu0
        %v6478 = vadd.f32 0.0, %v6477
        %v6479 = vpop.f32.mrf.mxu0
        %6480 = vmatprep.mubr.f32.mxu0 0.0
        %6481 = vmatmul.mubr.f32.gmra.mxu0 %v6126
        %v6482 = vpop.f32.mrf.mxu0
        %v6483 = vadd.f32 0.0, %v6482
        %v6484 = vpop.f32.mrf.mxu0
        %6485 = vmatprep.mubr.f32.mxu0 0.0
        %6486 = vmatmul.mubr.f32.gmra.mxu0 %v6129
        %v6487 = vpop.f32.mrf.mxu0
        %v6488 = vpop.f32.mrf.mxu0
        %6489 = vmatprep.mubr.f32.mxu0 0.0
        %6490 = vmatmul.mubr.f32.gmra.mxu0 %v6132
        %v6491 = vpop.f32.mrf.mxu0
        %v6492 = vadd.f32 0.0, %v6491
        %v6493 = vpop.f32.mrf.mxu0
        %6494 = vmatprep.mubr.f32.mxu0 0.0
        %6495 = vmatmul.mubr.f32.gmra.mxu0 %v6135
        %v6496 = vpop.f32.mrf.mxu0
        %v6497 = vadd.f32 0.0, %v6496
        %v6498 = vpop.f32.mrf.mxu0
        %6499 = vmatprep.mubr.f32.mxu0 0.0
        %6500 = vmatmul.mubr.f32.gmra.mxu0 %v6138
        %v6501 = vpop.f32.mrf.mxu0
        %v6502 = vadd.f32 0.0, %v6501
        %v6503 = vpop.f32.mrf.mxu0
        %6504 = vmatprep.mubr.f32.mxu0 0.0
        %6505 = vmatmul.mubr.f32.gmra.mxu0 %v6141
        %v6506 = vpop.f32.mrf.mxu0
        %v6507 = vadd.f32 0.0, %v6506
        %v6508 = vpop.f32.mrf.mxu0
        %6509 = vmatprep.mubr.f32.mxu0 0.0
        %6510 = vmatmul.mubr.f32.gmra.mxu0 %v6144
        %v6511 = vpop.f32.mrf.mxu0
        %v6512 = vpop.f32.mrf.mxu0
        %6513 = vmatprep.mubr.f32.mxu0 0.0
        %6514 = vmatmul.mubr.f32.gmra.mxu0 %v6147
        %v6515 = vpop.f32.mrf.mxu0
        %v6516 = vadd.f32 0.0, %v6515
        %v6517 = vpop.f32.mrf.mxu0
        %6518 = vmatprep.mubr.f32.mxu0 0.0
        %6519 = vmatmul.mubr.f32.gmra.mxu0 %v6150
        %v6520 = vpop.f32.mrf.mxu0
        %v6521 = vadd.f32 0.0, %v6520
        %v6522 = vpop.f32.mrf.mxu0
        %6523 = vmatprep.mubr.f32.mxu0 0.0
        %6524 = vmatmul.mubr.f32.gmra.mxu0 %v6153
        %v6525 = vpop.f32.mrf.mxu0
        %v6526 = vadd.f32 0.0, %v6525
        %v6527 = vpop.f32.mrf.mxu0
        %6528 = vmatprep.mubr.f32.mxu0 0.0
        %6529 = vmatmul.mubr.f32.gmra.mxu0 %v6156
        %v6530 = vpop.f32.mrf.mxu0
        %v6531 = vadd.f32 0.0, %v6530
        %v6532 = vpop.f32.mrf.mxu0
        %6533 = vmatprep.mubr.f32.mxu0 0.0
        %6534 = vmatmul.mubr.f32.gmra.mxu0 %v6159
        %v6535 = vpop.f32.mrf.mxu0
        %v6536 = vpop.f32.mrf.mxu0
        %6537 = vmatprep.mubr.f32.mxu0 0.0
        %6538 = vmatmul.mubr.f32.gmra.mxu0 %v6162
        %v6539 = vpop.f32.mrf.mxu0
        %v6540 = vadd.f32 0.0, %v6539
        %v6541 = vpop.f32.mrf.mxu0
        %6542 = vmatprep.mubr.f32.mxu0 0.0
        %6543 = vmatmul.mubr.f32.gmra.mxu0 %v6165
        %v6544 = vpop.f32.mrf.mxu0
        %v6545 = vadd.f32 0.0, %v6544
        %v6546 = vpop.f32.mrf.mxu0
        %6547 = vmatprep.mubr.f32.mxu0 0.0
        %6548 = vmatmul.mubr.f32.gmra.mxu0 %v6168
        %v6549 = vpop.f32.mrf.mxu0
        %v6550 = vadd.f32 0.0, %v6549
        %v6551 = vpop.f32.mrf.mxu0
        %6552 = vmatprep.mubr.f32.mxu0 0.0
        %6553 = vmatmul.mubr.f32.gmra.mxu0 %v6171
        %v6554 = vpop.f32.mrf.mxu0
        %v6555 = vadd.f32 0.0, %v6554
        %v6556 = vpop.f32.mrf.mxu0
        %6557 = vmatprep.mubr.f32.mxu0 0.0
        %6558 = vmatmul.mubr.f32.gmra.mxu0 %v6174
        %v6559 = vpop.f32.mrf.mxu0
        %v6560 = vpop.f32.mrf.mxu0
        %6561 = vmatprep.mubr.f32.mxu0 0.0
        %6562 = vmatmul.mubr.f32.gmra.mxu0 %v6177
        %v6563 = vpop.f32.mrf.mxu0
        %v6564 = vadd.f32 0.0, %v6563
        %v6565 = vpop.f32.mrf.mxu0
        %6566 = vmatprep.mubr.f32.mxu0 0.0
        %6567 = vmatmul.mubr.f32.gmra.mxu0 %v6180
        %v6568 = vpop.f32.mrf.mxu0
        %v6569 = vadd.f32 0.0, %v6568
        %v6570 = vpop.f32.mrf.mxu0
        %6571 = vmatprep.mubr.f32.mxu0 0.0
        %6572 = vmatmul.mubr.f32.gmra.mxu0 %v6183
        %v6573 = vpop.f32.mrf.mxu0
        %v6574 = vadd.f32 0.0, %v6573
        %v6575 = vpop.f32.mrf.mxu0
        %6576 = vmatprep.mubr.f32.mxu0 0.0
        %6577 = vmatmul.mubr.f32.gmra.mxu0 %v6186
        %v6578 = vpop.f32.mrf.mxu0
        %v6579 = vadd.f32 0.0, %v6578
        %v6580 = vpop.f32.mrf.mxu0
        %6581 = vmatprep.mubr.f32.mxu0 0.0
        %6582 = vmatmul.mubr.f32.gmra.mxu0 %v6189
        %v6583 = vpop.f32.mrf.mxu0
        %v6584 = vpop.f32.mrf.mxu0
        %6585 = vmatprep.mubr.f32.mxu0 0.0
        %6586 = vmatmul.mubr.f32.gmra.mxu0 %v6192
        %v6587 = vpop.f32.mrf.mxu0
        %v6588 = vadd.f32 0.0, %v6587
        %v6589 = vpop.f32.mrf.mxu0
        %6590 = vmatprep.mubr.f32.mxu0 0.0
        %6591 = vmatmul.mubr.f32.gmra.mxu0 %v6195
        %v6592 = vpop.f32.mrf.mxu0
        %v6593 = vadd.f32 0.0, %v6592
        %v6594 = vpop.f32.mrf.mxu0
        %6595 = vmatprep.mubr.f32.mxu0 0.0
        %6596 = vmatmul.mubr.f32.gmra.mxu0 %v6198
        %v6597 = vpop.f32.mrf.mxu0
        %v6598 = vadd.f32 0.0, %v6597
        %v6599 = vpop.f32.mrf.mxu0
        %6600 = vmatprep.mubr.f32.mxu0 0.0
        %6601 = vmatmul.mubr.f32.gmra.mxu0 %v6201
        %v6602 = vpop.f32.mrf.mxu0
        %v6603 = vadd.f32 0.0, %v6602
        %v6604 = vpop.f32.mrf.mxu0
        %6605 = vmatprep.mubr.f32.mxu0 0.0
        %6606 = vmatmul.mubr.f32.gmra.mxu0 %v6204
        %v6607 = vpop.f32.mrf.mxu0
        %v6608 = vpop.f32.mrf.mxu0
        %6609 = vmatprep.mubr.f32.mxu0 0.0
        %6610 = vmatmul.mubr.f32.gmra.mxu0 %v6207
        %v6611 = vpop.f32.mrf.mxu0
        %v6612 = vadd.f32 0.0, %v6611
        %v6613 = vpop.f32.mrf.mxu0
        %6614 = vmatprep.mubr.f32.mxu0 0.0
        %6615 = vmatmul.mubr.f32.gmra.mxu0 %v6210
        %v6616 = vpop.f32.mrf.mxu0
        %v6617 = vadd.f32 0.0, %v6616
        %v6618 = vpop.f32.mrf.mxu0
        %6619 = vmatprep.mubr.f32.mxu0 0.0
        %6620 = vmatmul.mubr.f32.gmra.mxu0 %v6213
        %v6621 = vpop.f32.mrf.mxu0
        %v6622 = vadd.f32 0.0, %v6621
        %v6623 = vpop.f32.mrf.mxu0
        %6624 = vmatprep.mubr.f32.mxu0 0.0
        %6625 = vmatmul.mubr.f32.gmra.mxu0 %v6216
        %v6626 = vpop.f32.mrf.mxu0
        %v6627 = vadd.f32 0.0, %v6626
        %v6628 = vpop.f32.mrf.mxu0
        %6629 = vmatprep.mubr.f32.mxu0 0.0
        %6630 = vmatmul.mubr.f32.gmra.mxu0 %v6219
        %v6631 = vpop.f32.mrf.mxu0
        %v6632 = vpop.f32.mrf.mxu0
        %6633 = vmatprep.mubr.f32.mxu0 0.0
        %6634 = vmatmul.mubr.f32.gmra.mxu0 %v6222
        %v6635 = vpop.f32.mrf.mxu0
        %v6636 = vadd.f32 0.0, %v6635
        %v6637 = vpop.f32.mrf.mxu0
        %6638 = vmatprep.mubr.f32.mxu0 0.0
        %6639 = vmatmul.mubr.f32.gmra.mxu0 %v6225
        %v6640 = vpop.f32.mrf.mxu0
        %v6641 = vadd.f32 0.0, %v6640
        %v6642 = vpop.f32.mrf.mxu0
        %6643 = vmatprep.mubr.f32.mxu0 0.0
        %6644 = vmatmul.mubr.f32.gmra.mxu0 %v6228
        %v6645 = vpop.f32.mrf.mxu0
        %v6646 = vadd.f32 0.0, %v6645
        %v6647 = vpop.f32.mrf.mxu0
        %6648 = vmatprep.mubr.f32.mxu0 0.0
        %6649 = vmatmul.mubr.f32.gmra.mxu0 %v6231
        %v6650 = vpop.f32.mrf.mxu0
        %v6651 = vadd.f32 0.0, %v6650
        %v6652 = vpop.f32.mrf.mxu0
        %6653 = vmatprep.mubr.f32.mxu0 0.0
        %6654 = vmatmul.mubr.f32.gmra.mxu0 %v6234
        %v6655 = vpop.f32.mrf.mxu0
        %v6656 = vpop.f32.mrf.mxu0
        %6657 = vmatprep.mubr.f32.mxu0 0.0
        %6658 = vmatmul.mubr.f32.gmra.mxu0 %v6237
        %v6659 = vpop.f32.mrf.mxu0
        %v6660 = vadd.f32 0.0, %v6659
        %v6661 = vpop.f32.mrf.mxu0
        %6662 = vmatprep.mubr.f32.mxu0 0.0
        %6663 = vmatmul.mubr.f32.gmra.mxu0 %v6240
        %v6664 = vpop.f32.mrf.mxu0
        %v6665 = vadd.f32 0.0, %v6664
        %v6666 = vpop.f32.mrf.mxu0
        %6667 = vmatprep.mubr.f32.mxu0 0.0
        %6668 = vmatmul.mubr.f32.gmra.mxu0 %v6243
        %v6669 = vpop.f32.mrf.mxu0
        %v6670 = vadd.f32 0.0, %v6669
        %v6671 = vpop.f32.mrf.mxu0
        %6672 = vmatprep.mubr.f32.mxu0 0.0
        %6673 = vmatmul.mubr.f32.gmra.mxu0 %v6246
        %v6674 = vpop.f32.mrf.mxu0
        %v6675 = vadd.f32 0.0, %v6674
        %v6676 = vpop.f32.mrf.mxu0
        %6677 = vmatprep.mubr.f32.mxu0 0.0
        %6678 = vmatmul.mubr.f32.gmra.mxu0 %v6249
        %v6679 = vpop.f32.mrf.mxu0
        %v6680 = vpop.f32.mrf.mxu0
        %6681 = vmatprep.mubr.f32.mxu0 0.0
        %6682 = vmatmul.mubr.f32.gmra.mxu0 %v6252
        %v6683 = vpop.f32.mrf.mxu0
        %v6684 = vadd.f32 0.0, %v6683
        %v6685 = vpop.f32.mrf.mxu0
        %6686 = vmatprep.mubr.f32.mxu0 0.0
        %6687 = vmatmul.mubr.f32.gmra.mxu0 %v6255
        %v6688 = vpop.f32.mrf.mxu0
        %v6689 = vadd.f32 0.0, %v6688
        %v6690 = vpop.f32.mrf.mxu0
        %6691 = vmatprep.mubr.f32.mxu0 0.0
        %6692 = vmatmul.mubr.f32.gmra.mxu0 %v6258
        %v6693 = vpop.f32.mrf.mxu0
        %v6694 = vadd.f32 0.0, %v6693
        %v6695 = vpop.f32.mrf.mxu0
        %6696 = vmatprep.mubr.f32.mxu0 0.0
        %6697 = vmatmul.mubr.f32.gmra.mxu0 %v6261
        %v6698 = vpop.f32.mrf.mxu0
        %v6699 = vadd.f32 0.0, %v6698
        %v6700 = vpop.f32.mrf.mxu0
        %6701 = vmatprep.mubr.f32.mxu0 0.0
        %6702 = vmatmul.mubr.f32.gmra.mxu0 %v6264
        %v6703 = vpop.f32.mrf.mxu0
        %v6704 = vpop.f32.mrf.mxu0
        %6705 = vmatprep.mubr.f32.mxu0 0.0
        %6706 = vmatmul.mubr.f32.gmra.mxu0 %v6267
        %v6707 = vpop.f32.mrf.mxu0
        %v6708 = vadd.f32 0.0, %v6707
        %v6709 = vpop.f32.mrf.mxu0
        %6710 = vmatprep.mubr.f32.mxu0 0.0
        %6711 = vmatmul.mubr.f32.gmra.mxu0 %v6270
        %v6712 = vpop.f32.mrf.mxu0
        %v6713 = vadd.f32 0.0, %v6712
        %v6714 = vpop.f32.mrf.mxu0
        %6715 = vmatprep.mubr.f32.mxu0 0.0
        %6716 = vmatmul.mubr.f32.gmra.mxu0 %v6273
        %v6717 = vpop.f32.mrf.mxu0
        %v6718 = vadd.f32 0.0, %v6717
        %v6719 = vpop.f32.mrf.mxu0
        %6720 = vmatprep.mubr.f32.mxu0 0.0
        %6721 = vmatmul.mubr.f32.gmra.mxu0 %v6276
        %v6722 = vpop.f32.mrf.mxu0
        %v6723 = vadd.f32 0.0, %v6722
        %v6724 = vpop.f32.mrf.mxu0
        %6725 = vdwg.mxu0
        %v6726 = vadd.f32 %v5896, %v6348
        %v6727 = vadd.f32 %v5897, %v6353
        %v6728 = vadd.f32 %v5898, %v6358
        %v6729 = vadd.f32 %v5899, %v6363
        %v6730 = vadd.f32 %v5900, %v6372
        %v6731 = vadd.f32 %v5901, %v6377
        %v6732 = vadd.f32 %v5902, %v6382
        %v6733 = vadd.f32 %v5903, %v6387
        %v6734 = vadd.f32 %v5904, %v6396
        %v6735 = vadd.f32 %v5905, %v6401
        %v6736 = vadd.f32 %v5906, %v6406
        %v6737 = vadd.f32 %v5907, %v6411
        %v6738 = vadd.f32 %v5908, %v6420
        %v6739 = vadd.f32 %v5909, %v6425
        %v6740 = vadd.f32 %v5910, %v6430
        %v6741 = vadd.f32 %v5911, %v6435
        %v6742 = vadd.f32 %v5912, %v6444
        %v6743 = vadd.f32 %v5913, %v6449
        %v6744 = vadd.f32 %v5914, %v6454
        %v6745 = vadd.f32 %v5915, %v6459
        %v6746 = vadd.f32 %v5916, %v6468
        %v6747 = vadd.f32 %v5917, %v6473
        %v6748 = vadd.f32 %v5918, %v6478
        %v6749 = vadd.f32 %v5919, %v6483
        %v6750 = vadd.f32 %v5920, %v6492
        %v6751 = vadd.f32 %v5921, %v6497
        %v6752 = vadd.f32 %v5922, %v6502
        %v6753 = vadd.f32 %v5923, %v6507
        %v6754 = vadd.f32 %v5924, %v6516
        %v6755 = vadd.f32 %v5925, %v6521
        %v6756 = vadd.f32 %v5926, %v6526
        %v6757 = vadd.f32 %v5927, %v6531
        %v6758 = vadd.f32 %v5928, %v6540
        %v6759 = vadd.f32 %v5929, %v6545
        %v6760 = vadd.f32 %v5930, %v6550
        %v6761 = vadd.f32 %v5931, %v6555
        %v6762 = vadd.f32 %v5932, %v6564
        %v6763 = vadd.f32 %v5933, %v6569
        %v6764 = vadd.f32 %v5934, %v6574
        %v6765 = vadd.f32 %v5935, %v6579
        %v6766 = vadd.f32 %v5936, %v6588
        %v6767 = vadd.f32 %v5937, %v6593
        %v6768 = vadd.f32 %v5938, %v6598
        %v6769 = vadd.f32 %v5939, %v6603
        %v6770 = vadd.f32 %v5940, %v6612
        %v6771 = vadd.f32 %v5941, %v6617
        %v6772 = vadd.f32 %v5942, %v6622
        %v6773 = vadd.f32 %v5943, %v6627
        %v6774 = vadd.f32 %v5944, %v6636
        %v6775 = vadd.f32 %v5945, %v6641
        %v6776 = vadd.f32 %v5946, %v6646
        %v6777 = vadd.f32 %v5947, %v6651
        %v6778 = vadd.f32 %v5948, %v6660
        %v6779 = vadd.f32 %v5949, %v6665
        %v6780 = vadd.f32 %v5950, %v6670
        %v6781 = vadd.f32 %v5951, %v6675
        %v6782 = vadd.f32 %v5952, %v6684
        %v6783 = vadd.f32 %v5953, %v6689
        %v6784 = vadd.f32 %v5954, %v6694
        %v6785 = vadd.f32 %v5955, %v6699
        %v6786 = vadd.f32 %v5956, %v6708
        %v6787 = vadd.f32 %v5957, %v6713
        %v6788 = vadd.f32 %v5958, %v6718
        %v6789 = vadd.f32 %v5959, %v6723
        %v6790 = vld [vmem:[#allocation2 + $0x2a] sm:$0xff]
        %v6791 = vld [vmem:[#allocation2 + $0x32] sm:$0xff]
        %v6792 = vld [vmem:[#allocation2 + $0x3a] sm:$0xff]
        %v6793 = vld [vmem:[#allocation2 + $0x42] sm:$0xff]
        %v6794 = vld [vmem:[#allocation2 + $0x4a] sm:$0xff]
        %v6795 = vld [vmem:[#allocation2 + $0x52] sm:$0xff]
        %v6796 = vld [vmem:[#allocation2 + $0x5a] sm:$0xff]
        %v6797 = vld [vmem:[#allocation2 + $0x62] sm:$0xff]
        %v6798 = vld [vmem:[#allocation2 + $0x6a] sm:$0xff]
        %v6799 = vld [vmem:[#allocation2 + $0x72] sm:$0xff]
        %v6800 = vld [vmem:[#allocation2 + $0x7a] sm:$0xff]
        %v6801 = vld [vmem:[#allocation2 + $0x82] sm:$0xff]
        %v6802 = vld [vmem:[#allocation2 + $0x8a] sm:$0xff]
        %v6803 = vld [vmem:[#allocation2 + $0x92] sm:$0xff]
        %v6804 = vld [vmem:[#allocation2 + $0x9a] sm:$0xff]
        %v6805 = vld [vmem:[#allocation2 + $0xa2] sm:$0xff]
        %v6806 = vld [vmem:[#allocation2 + $0xaa] sm:$0xff]
        %v6807 = vld [vmem:[#allocation2 + $0xb2] sm:$0xff]
        %v6808 = vld [vmem:[#allocation2 + $0xba] sm:$0xff]
        %v6809 = vld [vmem:[#allocation2 + $0xc2] sm:$0xff]
        %v6810 = vld [vmem:[#allocation2 + $0xca] sm:$0xff]
        %v6811 = vld [vmem:[#allocation2 + $0xd2] sm:$0xff]
        %v6812 = vld [vmem:[#allocation2 + $0xda] sm:$0xff]
        %v6813 = vld [vmem:[#allocation2 + $0xe2] sm:$0xff]
        %v6814 = vld [vmem:[#allocation2 + $0xea] sm:$0xff]
        %v6815 = vld [vmem:[#allocation2 + $0xf2] sm:$0xff]
        %v6816 = vld [vmem:[#allocation2 + $0xfa] sm:$0xff]
        %v6817 = vld [vmem:[#allocation2 + $0x102] sm:$0xff]
        %v6818 = vld [vmem:[#allocation2 + $0x10a] sm:$0xff]
        %v6819 = vld [vmem:[#allocation2 + $0x112] sm:$0xff]
        %v6820 = vld [vmem:[#allocation2 + $0x11a] sm:$0xff]
        %v6821 = vld [vmem:[#allocation2 + $0x122] sm:$0xff]
        %v6822 = vld [vmem:[#allocation2 + $0x12a] sm:$0xff]
        %v6823 = vld [vmem:[#allocation2 + $0x132] sm:$0xff]
        %v6824 = vld [vmem:[#allocation2 + $0x13a] sm:$0xff]
        %v6825 = vld [vmem:[#allocation2 + $0x142] sm:$0xff]
        %v6826 = vld [vmem:[#allocation2 + $0x14a] sm:$0xff]
        %v6827 = vld [vmem:[#allocation2 + $0x152] sm:$0xff]
        %v6828 = vld [vmem:[#allocation2 + $0x15a] sm:$0xff]
        %v6829 = vld [vmem:[#allocation2 + $0x162] sm:$0xff]
        %v6830 = vld [vmem:[#allocation2 + $0x16a] sm:$0xff]
        %v6831 = vld [vmem:[#allocation2 + $0x172] sm:$0xff]
        %v6832 = vld [vmem:[#allocation2 + $0x17a] sm:$0xff]
        %v6833 = vld [vmem:[#allocation2 + $0x182] sm:$0xff]
        %v6834 = vld [vmem:[#allocation2 + $0x18a] sm:$0xff]
        %v6835 = vld [vmem:[#allocation2 + $0x192] sm:$0xff]
        %v6836 = vld [vmem:[#allocation2 + $0x19a] sm:$0xff]
        %v6837 = vld [vmem:[#allocation2 + $0x1a2] sm:$0xff]
        %v6838 = vld [vmem:[#allocation2 + $0x1aa] sm:$0xff]
        %v6839 = vld [vmem:[#allocation2 + $0x1b2] sm:$0xff]
        %v6840 = vld [vmem:[#allocation2 + $0x1ba] sm:$0xff]
        %v6841 = vld [vmem:[#allocation2 + $0x1c2] sm:$0xff]
        %v6842 = vld [vmem:[#allocation2 + $0x1ca] sm:$0xff]
        %v6843 = vld [vmem:[#allocation2 + $0x1d2] sm:$0xff]
        %v6844 = vld [vmem:[#allocation2 + $0x1da] sm:$0xff]
        %v6845 = vld [vmem:[#allocation2 + $0x1e2] sm:$0xff]
        %v6846 = vld [vmem:[#allocation2 + $0x1ea] sm:$0xff]
        %v6847 = vld [vmem:[#allocation2 + $0x1f2] sm:$0xff]
        %v6848 = vld [vmem:[#allocation2 + $0x1fa] sm:$0xff]
        %v6849 = vld [vmem:[#allocation2 + $0x202] sm:$0xff]
        %v6850 = vld [vmem:[#allocation2 + $0x20a] sm:$0xff]
        %v6851 = vld [vmem:[#allocation2 + $0x212] sm:$0xff]
        %v6852 = vld [vmem:[#allocation2 + $0x21a] sm:$0xff]
        %v6853 = vld [vmem:[#allocation2 + $0x222] sm:$0xff]
        %v6854 = vld [vmem:[#allocation2 + $0x22a] sm:$0xff]
        %v6855 = vld [vmem:[#allocation2 + $0x232] sm:$0xff]
        %v6856 = vld [vmem:[#allocation2 + $0x23a] sm:$0xff]
        %v6857 = vld [vmem:[#allocation2 + $0x242] sm:$0xff]
        %v6858 = vld [vmem:[#allocation2 + $0x24a] sm:$0xff]
        %v6859 = vld [vmem:[#allocation2 + $0x252] sm:$0xff]
        %v6860 = vld [vmem:[#allocation2 + $0x25a] sm:$0xff]
        %v6861 = vld [vmem:[#allocation2 + $0x262] sm:$0xff]
        %v6862 = vld [vmem:[#allocation2 + $0x26a] sm:$0xff]
        %v6863 = vld [vmem:[#allocation2 + $0x272] sm:$0xff]
        %v6864 = vld [vmem:[#allocation2 + $0x27a] sm:$0xff]
        %v6865 = vld [vmem:[#allocation2 + $0x282] sm:$0xff]
        %v6866 = vld [vmem:[#allocation2 + $0x28a] sm:$0xff]
        %v6867 = vld [vmem:[#allocation2 + $0x292] sm:$0xff]
        %v6868 = vld [vmem:[#allocation2 + $0x29a] sm:$0xff]
        %s6869 = scalar_lea.vmem %s5, 20
        %v6870 = vld [vmem:[%s6869] sm:$0xf]
        %v6872 = vsel %vm519, %v6790, 0
        %v6875 = vsel %vm519, %v6791, 0
        %v6878 = vsel %vm519, %v6792, 0
        %v6881 = vsel %vm519, %v6793, 0
        %v6884 = vsel %vm519, %v6794, 0
        %v6887 = vsel %vm519, %v6795, 0
        %v6890 = vsel %vm519, %v6796, 0
        %v6893 = vsel %vm519, %v6797, 0
        %v6896 = vsel %vm519, %v6798, 0
        %v6899 = vsel %vm519, %v6799, 0
        %v6902 = vsel %vm519, %v6800, 0
        %v6905 = vsel %vm519, %v6801, 0
        %v6908 = vsel %vm519, %v6802, 0
        %v6911 = vsel %vm519, %v6803, 0
        %v6914 = vsel %vm519, %v6804, 0
        %v6917 = vsel %vm519, %v6805, 0
        %v6920 = vsel %vm519, %v6806, 0
        %v6923 = vsel %vm519, %v6807, 0
        %v6926 = vsel %vm519, %v6808, 0
        %v6929 = vsel %vm519, %v6809, 0
        %v6932 = vsel %vm519, %v6810, 0
        %v6935 = vsel %vm519, %v6811, 0
        %v6938 = vsel %vm519, %v6812, 0
        %v6941 = vsel %vm519, %v6813, 0
        %v6944 = vsel %vm519, %v6814, 0
        %v6947 = vsel %vm519, %v6815, 0
        %v6950 = vsel %vm519, %v6816, 0
        %v6953 = vsel %vm519, %v6817, 0
        %v6956 = vsel %vm519, %v6818, 0
        %v6959 = vsel %vm519, %v6819, 0
        %v6962 = vsel %vm519, %v6820, 0
        %v6965 = vsel %vm519, %v6821, 0
        %v6968 = vsel %vm519, %v6822, 0
        %v6971 = vsel %vm519, %v6823, 0
        %v6974 = vsel %vm519, %v6824, 0
        %v6977 = vsel %vm519, %v6825, 0
        %v6980 = vsel %vm519, %v6826, 0
        %v6983 = vsel %vm519, %v6827, 0
        %v6986 = vsel %vm519, %v6828, 0
        %v6989 = vsel %vm519, %v6829, 0
        %v6992 = vsel %vm519, %v6830, 0
        %v6995 = vsel %vm519, %v6831, 0
        %v6998 = vsel %vm519, %v6832, 0
        %v7001 = vsel %vm519, %v6833, 0
        %v7004 = vsel %vm519, %v6834, 0
        %v7007 = vsel %vm519, %v6835, 0
        %v7010 = vsel %vm519, %v6836, 0
        %v7013 = vsel %vm519, %v6837, 0
        %v7016 = vsel %vm519, %v6838, 0
        %v7019 = vsel %vm519, %v6839, 0
        %v7022 = vsel %vm519, %v6840, 0
        %v7025 = vsel %vm519, %v6841, 0
        %v7028 = vsel %vm519, %v6842, 0
        %v7031 = vsel %vm519, %v6843, 0
        %v7034 = vsel %vm519, %v6844, 0
        %v7037 = vsel %vm519, %v6845, 0
        %v7040 = vsel %vm519, %v6846, 0
        %v7043 = vsel %vm519, %v6847, 0
        %v7046 = vsel %vm519, %v6848, 0
        %v7049 = vsel %vm519, %v6849, 0
        %v7052 = vsel %vm519, %v6850, 0
        %v7055 = vsel %vm519, %v6851, 0
        %v7058 = vsel %vm519, %v6852, 0
        %v7061 = vsel %vm519, %v6853, 0
        %v7064 = vsel %vm519, %v6854, 0
        %v7067 = vsel %vm519, %v6855, 0
        %v7070 = vsel %vm519, %v6856, 0
        %v7073 = vsel %vm519, %v6857, 0
        %v7076 = vsel %vm519, %v6858, 0
        %v7079 = vsel %vm519, %v6859, 0
        %v7082 = vsel %vm519, %v6860, 0
        %v7085 = vsel %vm519, %v6861, 0
        %v7088 = vsel %vm519, %v6862, 0
        %v7091 = vsel %vm519, %v6863, 0
        %v7094 = vsel %vm519, %v6864, 0
        %v7097 = vsel %vm519, %v6865, 0
        %v7100 = vsel %vm519, %v6866, 0
        %v7103 = vsel %vm519, %v6867, 0
        %v7106 = vsel %vm519, %v6868, 0
        %v7109 = vsel %vm3166, %v6870, 0
        %7111 = vmatprep.subr.mxu0 0.0
        %7112 = vmatpush1.msra.mxu0 0.0
        %7113 = vmatprep.subr.mxu0 0.0
        %7114 = vmatpush1.msra.mxu0 0.0
        %7115 = vmatprep.subr.mxu0 0.0
        %7116 = vmatpush1.msra.mxu0 0.0
        %7117 = vmatprep.subr.mxu0 0.0
        %7118 = vmatpush1.msra.mxu0 0.0
        %7119 = vmatprep.subr.mxu0 0.0
        %7120 = vmatpush1.msra.mxu0 0.0
        %7121 = vmatprep.subr.mxu0 0.0
        %7122 = vmatpush1.msra.mxu0 0.0
        %7123 = vmatprep.subr.mxu0 0.0
        %7124 = vmatpush1.msra.mxu0 0.0
        %7125 = vmatprep.subr.mxu0 0.0
        %7126 = vmatpush1.msra.mxu0 0.0
        %7127 = vmatprep.subr.mxu0 0.0
        %7128 = vmatpush1.msra.mxu0 0.0
        %7129 = vmatprep.subr.mxu0 0.0
        %7130 = vmatpush1.msra.mxu0 0.0
        %7131 = vmatprep.subr.mxu0 0.0
        %7132 = vmatpush1.msra.mxu0 0.0
        %7133 = vmatprep.subr.mxu0 0.0
        %7134 = vmatpush1.msra.mxu0 0.0
        %7135 = vmatprep.subr.mxu0 0.0
        %7136 = vmatpush1.msra.mxu0 0.0
        %7137 = vmatprep.subr.mxu0 0.0
        %7138 = vmatpush1.msra.mxu0 0.0
        %7139 = vmatprep.subr.mxu0 0.0
        %7140 = vmatpush1.msra.mxu0 0.0
        %7141 = vmatprep.subr.mxu0 0.0
        %7142 = vmatpush1.msra.mxu0 %v7109
        %7143 = vmatprep.subr.mxu0 0.0
        %7144 = vmatpush2.msra.mxu0 0.0
        %7145 = vmatprep.subr.mxu0 0.0
        %7146 = vmatpush2.msra.mxu0 0.0
        %7147 = vmatprep.subr.mxu0 0.0
        %7148 = vmatpush2.msra.mxu0 0.0
        %7149 = vmatprep.subr.mxu0 0.0
        %7150 = vmatpush2.msra.mxu0 0.0
        %7151 = vmatprep.subr.mxu0 0.0
        %7152 = vmatpush2.msra.mxu0 0.0
        %7153 = vmatprep.subr.mxu0 0.0
        %7154 = vmatpush2.msra.mxu0 0.0
        %7155 = vmatprep.subr.mxu0 0.0
        %7156 = vmatpush2.msra.mxu0 0.0
        %7157 = vmatprep.subr.mxu0 0.0
        %7158 = vmatpush2.msra.mxu0 0.0
        %7159 = vmatprep.subr.mxu0 0.0
        %7160 = vmatpush2.msra.mxu0 0.0
        %7161 = vmatprep.subr.mxu0 0.0
        %7162 = vmatpush2.msra.mxu0 0.0
        %7163 = vmatprep.subr.mxu0 0.0
        %7164 = vmatpush2.msra.mxu0 0.0
        %7165 = vmatprep.subr.mxu0 0.0
        %7166 = vmatpush2.msra.mxu0 0.0
        %7167 = vmatprep.subr.mxu0 0.0
        %7168 = vmatpush2.msra.mxu0 0.0
        %7169 = vmatprep.subr.mxu0 0.0
        %7170 = vmatpush2.msra.mxu0 0.0
        %7171 = vmatprep.subr.mxu0 0.0
        %7172 = vmatpush2.msra.mxu0 0.0
        %7173 = vmatprep.subr.mxu0 0.0
        %7174 = vmatpush2.msra.mxu0 0.0
        %7175 = vmatprep.mubr.f32.mxu0 0.0
        %7176 = vmatmul.mubr.f32.gmra.mxu0 %v6872
        %v7177 = vpop.f32.mrf.mxu0
        %v7178 = vadd.f32 0.0, %v7177
        %v7179 = vpop.f32.mrf.mxu0
        %7180 = vmatprep.mubr.f32.mxu0 0.0
        %7181 = vmatmul.mubr.f32.gmra.mxu0 %v6875
        %v7182 = vpop.f32.mrf.mxu0
        %v7183 = vadd.f32 0.0, %v7182
        %v7184 = vpop.f32.mrf.mxu0
        %7185 = vmatprep.mubr.f32.mxu0 0.0
        %7186 = vmatmul.mubr.f32.gmra.mxu0 %v6878
        %v7187 = vpop.f32.mrf.mxu0
        %v7188 = vadd.f32 0.0, %v7187
        %v7189 = vpop.f32.mrf.mxu0
        %7190 = vmatprep.mubr.f32.mxu0 0.0
        %7191 = vmatmul.mubr.f32.gmra.mxu0 %v6881
        %v7192 = vpop.f32.mrf.mxu0
        %v7193 = vadd.f32 0.0, %v7192
        %v7194 = vpop.f32.mrf.mxu0
        %7195 = vmatprep.mubr.f32.mxu0 0.0
        %7196 = vmatmul.mubr.f32.gmra.mxu0 %v6884
        %v7197 = vpop.f32.mrf.mxu0
        %v7198 = vpop.f32.mrf.mxu0
        %7199 = vmatprep.mubr.f32.mxu0 0.0
        %7200 = vmatmul.mubr.f32.gmra.mxu0 %v6887
        %v7201 = vpop.f32.mrf.mxu0
        %v7202 = vadd.f32 0.0, %v7201
        %v7203 = vpop.f32.mrf.mxu0
        %7204 = vmatprep.mubr.f32.mxu0 0.0
        %7205 = vmatmul.mubr.f32.gmra.mxu0 %v6890
        %v7206 = vpop.f32.mrf.mxu0
        %v7207 = vadd.f32 0.0, %v7206
        %v7208 = vpop.f32.mrf.mxu0
        %7209 = vmatprep.mubr.f32.mxu0 0.0
        %7210 = vmatmul.mubr.f32.gmra.mxu0 %v6893
        %v7211 = vpop.f32.mrf.mxu0
        %v7212 = vadd.f32 0.0, %v7211
        %v7213 = vpop.f32.mrf.mxu0
        %7214 = vmatprep.mubr.f32.mxu0 0.0
        %7215 = vmatmul.mubr.f32.gmra.mxu0 %v6896
        %v7216 = vpop.f32.mrf.mxu0
        %v7217 = vadd.f32 0.0, %v7216
        %v7218 = vpop.f32.mrf.mxu0
        %7219 = vmatprep.mubr.f32.mxu0 0.0
        %7220 = vmatmul.mubr.f32.gmra.mxu0 %v6899
        %v7221 = vpop.f32.mrf.mxu0
        %v7222 = vpop.f32.mrf.mxu0
        %7223 = vmatprep.mubr.f32.mxu0 0.0
        %7224 = vmatmul.mubr.f32.gmra.mxu0 %v6902
        %v7225 = vpop.f32.mrf.mxu0
        %v7226 = vadd.f32 0.0, %v7225
        %v7227 = vpop.f32.mrf.mxu0
        %7228 = vmatprep.mubr.f32.mxu0 0.0
        %7229 = vmatmul.mubr.f32.gmra.mxu0 %v6905
        %v7230 = vpop.f32.mrf.mxu0
        %v7231 = vadd.f32 0.0, %v7230
        %v7232 = vpop.f32.mrf.mxu0
        %7233 = vmatprep.mubr.f32.mxu0 0.0
        %7234 = vmatmul.mubr.f32.gmra.mxu0 %v6908
        %v7235 = vpop.f32.mrf.mxu0
        %v7236 = vadd.f32 0.0, %v7235
        %v7237 = vpop.f32.mrf.mxu0
        %7238 = vmatprep.mubr.f32.mxu0 0.0
        %7239 = vmatmul.mubr.f32.gmra.mxu0 %v6911
        %v7240 = vpop.f32.mrf.mxu0
        %v7241 = vadd.f32 0.0, %v7240
        %v7242 = vpop.f32.mrf.mxu0
        %7243 = vmatprep.mubr.f32.mxu0 0.0
        %7244 = vmatmul.mubr.f32.gmra.mxu0 %v6914
        %v7245 = vpop.f32.mrf.mxu0
        %v7246 = vpop.f32.mrf.mxu0
        %7247 = vmatprep.mubr.f32.mxu0 0.0
        %7248 = vmatmul.mubr.f32.gmra.mxu0 %v6917
        %v7249 = vpop.f32.mrf.mxu0
        %v7250 = vadd.f32 0.0, %v7249
        %v7251 = vpop.f32.mrf.mxu0
        %7252 = vmatprep.mubr.f32.mxu0 0.0
        %7253 = vmatmul.mubr.f32.gmra.mxu0 %v6920
        %v7254 = vpop.f32.mrf.mxu0
        %v7255 = vadd.f32 0.0, %v7254
        %v7256 = vpop.f32.mrf.mxu0
        %7257 = vmatprep.mubr.f32.mxu0 0.0
        %7258 = vmatmul.mubr.f32.gmra.mxu0 %v6923
        %v7259 = vpop.f32.mrf.mxu0
        %v7260 = vadd.f32 0.0, %v7259
        %v7261 = vpop.f32.mrf.mxu0
        %7262 = vmatprep.mubr.f32.mxu0 0.0
        %7263 = vmatmul.mubr.f32.gmra.mxu0 %v6926
        %v7264 = vpop.f32.mrf.mxu0
        %v7265 = vadd.f32 0.0, %v7264
        %v7266 = vpop.f32.mrf.mxu0
        %7267 = vmatprep.mubr.f32.mxu0 0.0
        %7268 = vmatmul.mubr.f32.gmra.mxu0 %v6929
        %v7269 = vpop.f32.mrf.mxu0
        %v7270 = vpop.f32.mrf.mxu0
        %7271 = vmatprep.mubr.f32.mxu0 0.0
        %7272 = vmatmul.mubr.f32.gmra.mxu0 %v6932
        %v7273 = vpop.f32.mrf.mxu0
        %v7274 = vadd.f32 0.0, %v7273
        %v7275 = vpop.f32.mrf.mxu0
        %7276 = vmatprep.mubr.f32.mxu0 0.0
        %7277 = vmatmul.mubr.f32.gmra.mxu0 %v6935
        %v7278 = vpop.f32.mrf.mxu0
        %v7279 = vadd.f32 0.0, %v7278
        %v7280 = vpop.f32.mrf.mxu0
        %7281 = vmatprep.mubr.f32.mxu0 0.0
        %7282 = vmatmul.mubr.f32.gmra.mxu0 %v6938
        %v7283 = vpop.f32.mrf.mxu0
        %v7284 = vadd.f32 0.0, %v7283
        %v7285 = vpop.f32.mrf.mxu0
        %7286 = vmatprep.mubr.f32.mxu0 0.0
        %7287 = vmatmul.mubr.f32.gmra.mxu0 %v6941
        %v7288 = vpop.f32.mrf.mxu0
        %v7289 = vadd.f32 0.0, %v7288
        %v7290 = vpop.f32.mrf.mxu0
        %7291 = vmatprep.mubr.f32.mxu0 0.0
        %7292 = vmatmul.mubr.f32.gmra.mxu0 %v6944
        %v7293 = vpop.f32.mrf.mxu0
        %v7294 = vpop.f32.mrf.mxu0
        %7295 = vmatprep.mubr.f32.mxu0 0.0
        %7296 = vmatmul.mubr.f32.gmra.mxu0 %v6947
        %v7297 = vpop.f32.mrf.mxu0
        %v7298 = vadd.f32 0.0, %v7297
        %v7299 = vpop.f32.mrf.mxu0
        %7300 = vmatprep.mubr.f32.mxu0 0.0
        %7301 = vmatmul.mubr.f32.gmra.mxu0 %v6950
        %v7302 = vpop.f32.mrf.mxu0
        %v7303 = vadd.f32 0.0, %v7302
        %v7304 = vpop.f32.mrf.mxu0
        %7305 = vmatprep.mubr.f32.mxu0 0.0
        %7306 = vmatmul.mubr.f32.gmra.mxu0 %v6953
        %v7307 = vpop.f32.mrf.mxu0
        %v7308 = vadd.f32 0.0, %v7307
        %v7309 = vpop.f32.mrf.mxu0
        %7310 = vmatprep.mubr.f32.mxu0 0.0
        %7311 = vmatmul.mubr.f32.gmra.mxu0 %v6956
        %v7312 = vpop.f32.mrf.mxu0
        %v7313 = vadd.f32 0.0, %v7312
        %v7314 = vpop.f32.mrf.mxu0
        %7315 = vmatprep.mubr.f32.mxu0 0.0
        %7316 = vmatmul.mubr.f32.gmra.mxu0 %v6959
        %v7317 = vpop.f32.mrf.mxu0
        %v7318 = vpop.f32.mrf.mxu0
        %7319 = vmatprep.mubr.f32.mxu0 0.0
        %7320 = vmatmul.mubr.f32.gmra.mxu0 %v6962
        %v7321 = vpop.f32.mrf.mxu0
        %v7322 = vadd.f32 0.0, %v7321
        %v7323 = vpop.f32.mrf.mxu0
        %7324 = vmatprep.mubr.f32.mxu0 0.0
        %7325 = vmatmul.mubr.f32.gmra.mxu0 %v6965
        %v7326 = vpop.f32.mrf.mxu0
        %v7327 = vadd.f32 0.0, %v7326
        %v7328 = vpop.f32.mrf.mxu0
        %7329 = vmatprep.mubr.f32.mxu0 0.0
        %7330 = vmatmul.mubr.f32.gmra.mxu0 %v6968
        %v7331 = vpop.f32.mrf.mxu0
        %v7332 = vadd.f32 0.0, %v7331
        %v7333 = vpop.f32.mrf.mxu0
        %7334 = vmatprep.mubr.f32.mxu0 0.0
        %7335 = vmatmul.mubr.f32.gmra.mxu0 %v6971
        %v7336 = vpop.f32.mrf.mxu0
        %v7337 = vadd.f32 0.0, %v7336
        %v7338 = vpop.f32.mrf.mxu0
        %7339 = vmatprep.mubr.f32.mxu0 0.0
        %7340 = vmatmul.mubr.f32.gmra.mxu0 %v6974
        %v7341 = vpop.f32.mrf.mxu0
        %v7342 = vpop.f32.mrf.mxu0
        %7343 = vmatprep.mubr.f32.mxu0 0.0
        %7344 = vmatmul.mubr.f32.gmra.mxu0 %v6977
        %v7345 = vpop.f32.mrf.mxu0
        %v7346 = vadd.f32 0.0, %v7345
        %v7347 = vpop.f32.mrf.mxu0
        %7348 = vmatprep.mubr.f32.mxu0 0.0
        %7349 = vmatmul.mubr.f32.gmra.mxu0 %v6980
        %v7350 = vpop.f32.mrf.mxu0
        %v7351 = vadd.f32 0.0, %v7350
        %v7352 = vpop.f32.mrf.mxu0
        %7353 = vmatprep.mubr.f32.mxu0 0.0
        %7354 = vmatmul.mubr.f32.gmra.mxu0 %v6983
        %v7355 = vpop.f32.mrf.mxu0
        %v7356 = vadd.f32 0.0, %v7355
        %v7357 = vpop.f32.mrf.mxu0
        %7358 = vmatprep.mubr.f32.mxu0 0.0
        %7359 = vmatmul.mubr.f32.gmra.mxu0 %v6986
        %v7360 = vpop.f32.mrf.mxu0
        %v7361 = vadd.f32 0.0, %v7360
        %v7362 = vpop.f32.mrf.mxu0
        %7363 = vmatprep.mubr.f32.mxu0 0.0
        %7364 = vmatmul.mubr.f32.gmra.mxu0 %v6989
        %v7365 = vpop.f32.mrf.mxu0
        %v7366 = vpop.f32.mrf.mxu0
        %7367 = vmatprep.mubr.f32.mxu0 0.0
        %7368 = vmatmul.mubr.f32.gmra.mxu0 %v6992
        %v7369 = vpop.f32.mrf.mxu0
        %v7370 = vadd.f32 0.0, %v7369
        %v7371 = vpop.f32.mrf.mxu0
        %7372 = vmatprep.mubr.f32.mxu0 0.0
        %7373 = vmatmul.mubr.f32.gmra.mxu0 %v6995
        %v7374 = vpop.f32.mrf.mxu0
        %v7375 = vadd.f32 0.0, %v7374
        %v7376 = vpop.f32.mrf.mxu0
        %7377 = vmatprep.mubr.f32.mxu0 0.0
        %7378 = vmatmul.mubr.f32.gmra.mxu0 %v6998
        %v7379 = vpop.f32.mrf.mxu0
        %v7380 = vadd.f32 0.0, %v7379
        %v7381 = vpop.f32.mrf.mxu0
        %7382 = vmatprep.mubr.f32.mxu0 0.0
        %7383 = vmatmul.mubr.f32.gmra.mxu0 %v7001
        %v7384 = vpop.f32.mrf.mxu0
        %v7385 = vadd.f32 0.0, %v7384
        %v7386 = vpop.f32.mrf.mxu0
        %7387 = vmatprep.mubr.f32.mxu0 0.0
        %7388 = vmatmul.mubr.f32.gmra.mxu0 %v7004
        %v7389 = vpop.f32.mrf.mxu0
        %v7390 = vpop.f32.mrf.mxu0
        %7391 = vmatprep.mubr.f32.mxu0 0.0
        %7392 = vmatmul.mubr.f32.gmra.mxu0 %v7007
        %v7393 = vpop.f32.mrf.mxu0
        %v7394 = vadd.f32 0.0, %v7393
        %v7395 = vpop.f32.mrf.mxu0
        %7396 = vmatprep.mubr.f32.mxu0 0.0
        %7397 = vmatmul.mubr.f32.gmra.mxu0 %v7010
        %v7398 = vpop.f32.mrf.mxu0
        %v7399 = vadd.f32 0.0, %v7398
        %v7400 = vpop.f32.mrf.mxu0
        %7401 = vmatprep.mubr.f32.mxu0 0.0
        %7402 = vmatmul.mubr.f32.gmra.mxu0 %v7013
        %v7403 = vpop.f32.mrf.mxu0
        %v7404 = vadd.f32 0.0, %v7403
        %v7405 = vpop.f32.mrf.mxu0
        %7406 = vmatprep.mubr.f32.mxu0 0.0
        %7407 = vmatmul.mubr.f32.gmra.mxu0 %v7016
        %v7408 = vpop.f32.mrf.mxu0
        %v7409 = vadd.f32 0.0, %v7408
        %v7410 = vpop.f32.mrf.mxu0
        %7411 = vmatprep.mubr.f32.mxu0 0.0
        %7412 = vmatmul.mubr.f32.gmra.mxu0 %v7019
        %v7413 = vpop.f32.mrf.mxu0
        %v7414 = vpop.f32.mrf.mxu0
        %7415 = vmatprep.mubr.f32.mxu0 0.0
        %7416 = vmatmul.mubr.f32.gmra.mxu0 %v7022
        %v7417 = vpop.f32.mrf.mxu0
        %v7418 = vadd.f32 0.0, %v7417
        %v7419 = vpop.f32.mrf.mxu0
        %7420 = vmatprep.mubr.f32.mxu0 0.0
        %7421 = vmatmul.mubr.f32.gmra.mxu0 %v7025
        %v7422 = vpop.f32.mrf.mxu0
        %v7423 = vadd.f32 0.0, %v7422
        %v7424 = vpop.f32.mrf.mxu0
        %7425 = vmatprep.mubr.f32.mxu0 0.0
        %7426 = vmatmul.mubr.f32.gmra.mxu0 %v7028
        %v7427 = vpop.f32.mrf.mxu0
        %v7428 = vadd.f32 0.0, %v7427
        %v7429 = vpop.f32.mrf.mxu0
        %7430 = vmatprep.mubr.f32.mxu0 0.0
        %7431 = vmatmul.mubr.f32.gmra.mxu0 %v7031
        %v7432 = vpop.f32.mrf.mxu0
        %v7433 = vadd.f32 0.0, %v7432
        %v7434 = vpop.f32.mrf.mxu0
        %7435 = vmatprep.mubr.f32.mxu0 0.0
        %7436 = vmatmul.mubr.f32.gmra.mxu0 %v7034
        %v7437 = vpop.f32.mrf.mxu0
        %v7438 = vpop.f32.mrf.mxu0
        %7439 = vmatprep.mubr.f32.mxu0 0.0
        %7440 = vmatmul.mubr.f32.gmra.mxu0 %v7037
        %v7441 = vpop.f32.mrf.mxu0
        %v7442 = vadd.f32 0.0, %v7441
        %v7443 = vpop.f32.mrf.mxu0
        %7444 = vmatprep.mubr.f32.mxu0 0.0
        %7445 = vmatmul.mubr.f32.gmra.mxu0 %v7040
        %v7446 = vpop.f32.mrf.mxu0
        %v7447 = vadd.f32 0.0, %v7446
        %v7448 = vpop.f32.mrf.mxu0
        %7449 = vmatprep.mubr.f32.mxu0 0.0
        %7450 = vmatmul.mubr.f32.gmra.mxu0 %v7043
        %v7451 = vpop.f32.mrf.mxu0
        %v7452 = vadd.f32 0.0, %v7451
        %v7453 = vpop.f32.mrf.mxu0
        %7454 = vmatprep.mubr.f32.mxu0 0.0
        %7455 = vmatmul.mubr.f32.gmra.mxu0 %v7046
        %v7456 = vpop.f32.mrf.mxu0
        %v7457 = vadd.f32 0.0, %v7456
        %v7458 = vpop.f32.mrf.mxu0
        %7459 = vmatprep.mubr.f32.mxu0 0.0
        %7460 = vmatmul.mubr.f32.gmra.mxu0 %v7049
        %v7461 = vpop.f32.mrf.mxu0
        %v7462 = vpop.f32.mrf.mxu0
        %7463 = vmatprep.mubr.f32.mxu0 0.0
        %7464 = vmatmul.mubr.f32.gmra.mxu0 %v7052
        %v7465 = vpop.f32.mrf.mxu0
        %v7466 = vadd.f32 0.0, %v7465
        %v7467 = vpop.f32.mrf.mxu0
        %7468 = vmatprep.mubr.f32.mxu0 0.0
        %7469 = vmatmul.mubr.f32.gmra.mxu0 %v7055
        %v7470 = vpop.f32.mrf.mxu0
        %v7471 = vadd.f32 0.0, %v7470
        %v7472 = vpop.f32.mrf.mxu0
        %7473 = vmatprep.mubr.f32.mxu0 0.0
        %7474 = vmatmul.mubr.f32.gmra.mxu0 %v7058
        %v7475 = vpop.f32.mrf.mxu0
        %v7476 = vadd.f32 0.0, %v7475
        %v7477 = vpop.f32.mrf.mxu0
        %7478 = vmatprep.mubr.f32.mxu0 0.0
        %7479 = vmatmul.mubr.f32.gmra.mxu0 %v7061
        %v7480 = vpop.f32.mrf.mxu0
        %v7481 = vadd.f32 0.0, %v7480
        %v7482 = vpop.f32.mrf.mxu0
        %7483 = vmatprep.mubr.f32.mxu0 0.0
        %7484 = vmatmul.mubr.f32.gmra.mxu0 %v7064
        %v7485 = vpop.f32.mrf.mxu0
        %v7486 = vpop.f32.mrf.mxu0
        %7487 = vmatprep.mubr.f32.mxu0 0.0
        %7488 = vmatmul.mubr.f32.gmra.mxu0 %v7067
        %v7489 = vpop.f32.mrf.mxu0
        %v7490 = vadd.f32 0.0, %v7489
        %v7491 = vpop.f32.mrf.mxu0
        %7492 = vmatprep.mubr.f32.mxu0 0.0
        %7493 = vmatmul.mubr.f32.gmra.mxu0 %v7070
        %v7494 = vpop.f32.mrf.mxu0
        %v7495 = vadd.f32 0.0, %v7494
        %v7496 = vpop.f32.mrf.mxu0
        %7497 = vmatprep.mubr.f32.mxu0 0.0
        %7498 = vmatmul.mubr.f32.gmra.mxu0 %v7073
        %v7499 = vpop.f32.mrf.mxu0
        %v7500 = vadd.f32 0.0, %v7499
        %v7501 = vpop.f32.mrf.mxu0
        %7502 = vmatprep.mubr.f32.mxu0 0.0
        %7503 = vmatmul.mubr.f32.gmra.mxu0 %v7076
        %v7504 = vpop.f32.mrf.mxu0
        %v7505 = vadd.f32 0.0, %v7504
        %v7506 = vpop.f32.mrf.mxu0
        %7507 = vmatprep.mubr.f32.mxu0 0.0
        %7508 = vmatmul.mubr.f32.gmra.mxu0 %v7079
        %v7509 = vpop.f32.mrf.mxu0
        %v7510 = vpop.f32.mrf.mxu0
        %7511 = vmatprep.mubr.f32.mxu0 0.0
        %7512 = vmatmul.mubr.f32.gmra.mxu0 %v7082
        %v7513 = vpop.f32.mrf.mxu0
        %v7514 = vadd.f32 0.0, %v7513
        %v7515 = vpop.f32.mrf.mxu0
        %7516 = vmatprep.mubr.f32.mxu0 0.0
        %7517 = vmatmul.mubr.f32.gmra.mxu0 %v7085
        %v7518 = vpop.f32.mrf.mxu0
        %v7519 = vadd.f32 0.0, %v7518
        %v7520 = vpop.f32.mrf.mxu0
        %7521 = vmatprep.mubr.f32.mxu0 0.0
        %7522 = vmatmul.mubr.f32.gmra.mxu0 %v7088
        %v7523 = vpop.f32.mrf.mxu0
        %v7524 = vadd.f32 0.0, %v7523
        %v7525 = vpop.f32.mrf.mxu0
        %7526 = vmatprep.mubr.f32.mxu0 0.0
        %7527 = vmatmul.mubr.f32.gmra.mxu0 %v7091
        %v7528 = vpop.f32.mrf.mxu0
        %v7529 = vadd.f32 0.0, %v7528
        %v7530 = vpop.f32.mrf.mxu0
        %7531 = vmatprep.mubr.f32.mxu0 0.0
        %7532 = vmatmul.mubr.f32.gmra.mxu0 %v7094
        %v7533 = vpop.f32.mrf.mxu0
        %v7534 = vpop.f32.mrf.mxu0
        %7535 = vmatprep.mubr.f32.mxu0 0.0
        %7536 = vmatmul.mubr.f32.gmra.mxu0 %v7097
        %v7537 = vpop.f32.mrf.mxu0
        %v7538 = vadd.f32 0.0, %v7537
        %v7539 = vpop.f32.mrf.mxu0
        %7540 = vmatprep.mubr.f32.mxu0 0.0
        %7541 = vmatmul.mubr.f32.gmra.mxu0 %v7100
        %v7542 = vpop.f32.mrf.mxu0
        %v7543 = vadd.f32 0.0, %v7542
        %v7544 = vpop.f32.mrf.mxu0
        %7545 = vmatprep.mubr.f32.mxu0 0.0
        %7546 = vmatmul.mubr.f32.gmra.mxu0 %v7103
        %v7547 = vpop.f32.mrf.mxu0
        %v7548 = vadd.f32 0.0, %v7547
        %v7549 = vpop.f32.mrf.mxu0
        %7550 = vmatprep.mubr.f32.mxu0 0.0
        %7551 = vmatmul.mubr.f32.gmra.mxu0 %v7106
        %v7552 = vpop.f32.mrf.mxu0
        %v7553 = vadd.f32 0.0, %v7552
        %v7554 = vpop.f32.mrf.mxu0
        %7555 = vdwg.mxu0
        %v7556 = vadd.f32 %v6726, %v7178
        %v7557 = vadd.f32 %v6727, %v7183
        %v7558 = vadd.f32 %v6728, %v7188
        %v7559 = vadd.f32 %v6729, %v7193
        %v7560 = vadd.f32 %v6730, %v7202
        %v7561 = vadd.f32 %v6731, %v7207
        %v7562 = vadd.f32 %v6732, %v7212
        %v7563 = vadd.f32 %v6733, %v7217
        %v7564 = vadd.f32 %v6734, %v7226
        %v7565 = vadd.f32 %v6735, %v7231
        %v7566 = vadd.f32 %v6736, %v7236
        %v7567 = vadd.f32 %v6737, %v7241
        %v7568 = vadd.f32 %v6738, %v7250
        %v7569 = vadd.f32 %v6739, %v7255
        %v7570 = vadd.f32 %v6740, %v7260
        %v7571 = vadd.f32 %v6741, %v7265
        %v7572 = vadd.f32 %v6742, %v7274
        %v7573 = vadd.f32 %v6743, %v7279
        %v7574 = vadd.f32 %v6744, %v7284
        %v7575 = vadd.f32 %v6745, %v7289
        %v7576 = vadd.f32 %v6746, %v7298
        %v7577 = vadd.f32 %v6747, %v7303
        %v7578 = vadd.f32 %v6748, %v7308
        %v7579 = vadd.f32 %v6749, %v7313
        %v7580 = vadd.f32 %v6750, %v7322
        %v7581 = vadd.f32 %v6751, %v7327
        %v7582 = vadd.f32 %v6752, %v7332
        %v7583 = vadd.f32 %v6753, %v7337
        %v7584 = vadd.f32 %v6754, %v7346
        %v7585 = vadd.f32 %v6755, %v7351
        %v7586 = vadd.f32 %v6756, %v7356
        %v7587 = vadd.f32 %v6757, %v7361
        %v7588 = vadd.f32 %v6758, %v7370
        %v7589 = vadd.f32 %v6759, %v7375
        %v7590 = vadd.f32 %v6760, %v7380
        %v7591 = vadd.f32 %v6761, %v7385
        %v7592 = vadd.f32 %v6762, %v7394
        %v7593 = vadd.f32 %v6763, %v7399
        %v7594 = vadd.f32 %v6764, %v7404
        %v7595 = vadd.f32 %v6765, %v7409
        %v7596 = vadd.f32 %v6766, %v7418
        %v7597 = vadd.f32 %v6767, %v7423
        %v7598 = vadd.f32 %v6768, %v7428
        %v7599 = vadd.f32 %v6769, %v7433
        %v7600 = vadd.f32 %v6770, %v7442
        %v7601 = vadd.f32 %v6771, %v7447
        %v7602 = vadd.f32 %v6772, %v7452
        %v7603 = vadd.f32 %v6773, %v7457
        %v7604 = vadd.f32 %v6774, %v7466
        %v7605 = vadd.f32 %v6775, %v7471
        %v7606 = vadd.f32 %v6776, %v7476
        %v7607 = vadd.f32 %v6777, %v7481
        %v7608 = vadd.f32 %v6778, %v7490
        %v7609 = vadd.f32 %v6779, %v7495
        %v7610 = vadd.f32 %v6780, %v7500
        %v7611 = vadd.f32 %v6781, %v7505
        %v7612 = vadd.f32 %v6782, %v7514
        %v7613 = vadd.f32 %v6783, %v7519
        %v7614 = vadd.f32 %v6784, %v7524
        %v7615 = vadd.f32 %v6785, %v7529
        %v7616 = vadd.f32 %v6786, %v7538
        %v7617 = vadd.f32 %v6787, %v7543
        %v7618 = vadd.f32 %v6788, %v7548
        %v7619 = vadd.f32 %v6789, %v7553
        %v7620 = vld [vmem:[#allocation2 + $0x50] sm:$0xff]
        %v7621 = vld [vmem:[#allocation2 + $0x58] sm:$0xff]
        %v7622 = vld [vmem:[#allocation2 + $0x60] sm:$0xff]
        %v7623 = vld [vmem:[#allocation2 + $0x68] sm:$0xff]
        %v7624 = vld [vmem:[#allocation2 + $0x70] sm:$0xff]
        %v7625 = vld [vmem:[#allocation2 + $0x78] sm:$0xff]
        %v7626 = vld [vmem:[#allocation2 + $0x80] sm:$0xff]
        %v7627 = vld [vmem:[#allocation2 + $0x88] sm:$0xff]
        %v7628 = vld [vmem:[#allocation2 + $0x90] sm:$0xff]
        %v7629 = vld [vmem:[#allocation2 + $0x98] sm:$0xff]
        %v7630 = vld [vmem:[#allocation2 + $0xa0] sm:$0xff]
        %v7631 = vld [vmem:[#allocation2 + $0xa8] sm:$0xff]
        %v7632 = vld [vmem:[#allocation2 + $0xb0] sm:$0xff]
        %v7633 = vld [vmem:[#allocation2 + $0xb8] sm:$0xff]
        %v7634 = vld [vmem:[#allocation2 + $0xc0] sm:$0xff]
        %v7635 = vld [vmem:[#allocation2 + $0xc8] sm:$0xff]
        %v7636 = vld [vmem:[#allocation2 + $0xd0] sm:$0xff]
        %v7637 = vld [vmem:[#allocation2 + $0xd8] sm:$0xff]
        %v7638 = vld [vmem:[#allocation2 + $0xe0] sm:$0xff]
        %v7639 = vld [vmem:[#allocation2 + $0xe8] sm:$0xff]
        %v7640 = vld [vmem:[#allocation2 + $0xf0] sm:$0xff]
        %v7641 = vld [vmem:[#allocation2 + $0xf8] sm:$0xff]
        %v7642 = vld [vmem:[#allocation2 + $0x100] sm:$0xff]
        %v7643 = vld [vmem:[#allocation2 + $0x108] sm:$0xff]
        %v7644 = vld [vmem:[#allocation2 + $0x110] sm:$0xff]
        %v7645 = vld [vmem:[#allocation2 + $0x118] sm:$0xff]
        %v7646 = vld [vmem:[#allocation2 + $0x120] sm:$0xff]
        %v7647 = vld [vmem:[#allocation2 + $0x128] sm:$0xff]
        %v7648 = vld [vmem:[#allocation2 + $0x130] sm:$0xff]
        %v7649 = vld [vmem:[#allocation2 + $0x138] sm:$0xff]
        %v7650 = vld [vmem:[#allocation2 + $0x140] sm:$0xff]
        %v7651 = vld [vmem:[#allocation2 + $0x148] sm:$0xff]
        %v7652 = vld [vmem:[#allocation2 + $0x150] sm:$0xff]
        %v7653 = vld [vmem:[#allocation2 + $0x158] sm:$0xff]
        %v7654 = vld [vmem:[#allocation2 + $0x160] sm:$0xff]
        %v7655 = vld [vmem:[#allocation2 + $0x168] sm:$0xff]
        %v7656 = vld [vmem:[#allocation2 + $0x170] sm:$0xff]
        %v7657 = vld [vmem:[#allocation2 + $0x178] sm:$0xff]
        %v7658 = vld [vmem:[#allocation2 + $0x180] sm:$0xff]
        %v7659 = vld [vmem:[#allocation2 + $0x188] sm:$0xff]
        %v7660 = vld [vmem:[#allocation2 + $0x190] sm:$0xff]
        %v7661 = vld [vmem:[#allocation2 + $0x198] sm:$0xff]
        %v7662 = vld [vmem:[#allocation2 + $0x1a0] sm:$0xff]
        %v7663 = vld [vmem:[#allocation2 + $0x1a8] sm:$0xff]
        %v7664 = vld [vmem:[#allocation2 + $0x1b0] sm:$0xff]
        %v7665 = vld [vmem:[#allocation2 + $0x1b8] sm:$0xff]
        %v7666 = vld [vmem:[#allocation2 + $0x1c0] sm:$0xff]
        %v7667 = vld [vmem:[#allocation2 + $0x1c8] sm:$0xff]
        %v7668 = vld [vmem:[#allocation2 + $0x1d0] sm:$0xff]
        %v7669 = vld [vmem:[#allocation2 + $0x1d8] sm:$0xff]
        %v7670 = vld [vmem:[#allocation2 + $0x1e0] sm:$0xff]
        %v7671 = vld [vmem:[#allocation2 + $0x1e8] sm:$0xff]
        %v7672 = vld [vmem:[#allocation2 + $0x1f0] sm:$0xff]
        %v7673 = vld [vmem:[#allocation2 + $0x1f8] sm:$0xff]
        %v7674 = vld [vmem:[#allocation2 + $0x200] sm:$0xff]
        %v7675 = vld [vmem:[#allocation2 + $0x208] sm:$0xff]
        %v7676 = vld [vmem:[#allocation2 + $0x210] sm:$0xff]
        %v7677 = vld [vmem:[#allocation2 + $0x218] sm:$0xff]
        %v7678 = vld [vmem:[#allocation2 + $0x220] sm:$0xff]
        %v7679 = vld [vmem:[#allocation2 + $0x228] sm:$0xff]
        %v7680 = vld [vmem:[#allocation2 + $0x230] sm:$0xff]
        %v7681 = vld [vmem:[#allocation2 + $0x238] sm:$0xff]
        %v7682 = vld [vmem:[#allocation2 + $0x240] sm:$0xff]
        %v7683 = vld [vmem:[#allocation2 + $0x248] sm:$0xff]
        %v7684 = vld [vmem:[#allocation2 + $0x250] sm:$0xff]
        %v7685 = vld [vmem:[#allocation2 + $0x258] sm:$0xff]
        %v7686 = vld [vmem:[#allocation2 + $0x260] sm:$0xff]
        %v7687 = vld [vmem:[#allocation2 + $0x268] sm:$0xff]
        %v7688 = vld [vmem:[#allocation2 + $0x270] sm:$0xff]
        %v7689 = vld [vmem:[#allocation2 + $0x278] sm:$0xff]
        %v7690 = vld [vmem:[#allocation2 + $0x280] sm:$0xff]
        %v7691 = vld [vmem:[#allocation2 + $0x288] sm:$0xff]
        %v7692 = vld [vmem:[#allocation2 + $0x290] sm:$0xff]
        %v7693 = vld [vmem:[#allocation2 + $0x298] sm:$0xff]
        %v7694 = vld [vmem:[#allocation2 + $0x2a0] sm:$0xff]
        %v7695 = vld [vmem:[#allocation2 + $0x2a8] sm:$0xff]
        %v7696 = vld [vmem:[#allocation2 + $0x2b0] sm:$0xff]
        %v7697 = vld [vmem:[#allocation2 + $0x2b8] sm:$0xff]
        %v7698 = vld [vmem:[#allocation2 + $0x2c0] sm:$0xff]
        %s7699 = scalar_lea.vmem %s5, 24
        %v7700 = vld [vmem:[%s7699] sm:$0xf]
        %v7702 = vsel %vm519, %v7620, 0
        %v7705 = vsel %vm519, %v7621, 0
        %v7708 = vsel %vm519, %v7622, 0
        %v7711 = vsel %vm519, %v7623, 0
        %v7714 = vsel %vm519, %v7624, 0
        %v7717 = vsel %vm519, %v7625, 0
        %v7720 = vsel %vm519, %v7626, 0
        %v7723 = vsel %vm519, %v7627, 0
        %v7726 = vsel %vm519, %v7628, 0
        %v7729 = vsel %vm519, %v7629, 0
        %v7732 = vsel %vm519, %v7630, 0
        %v7735 = vsel %vm519, %v7631, 0
        %v7738 = vsel %vm519, %v7632, 0
        %v7741 = vsel %vm519, %v7633, 0
        %v7744 = vsel %vm519, %v7634, 0
        %v7747 = vsel %vm519, %v7635, 0
        %v7750 = vsel %vm519, %v7636, 0
        %v7753 = vsel %vm519, %v7637, 0
        %v7756 = vsel %vm519, %v7638, 0
        %v7759 = vsel %vm519, %v7639, 0
        %v7762 = vsel %vm519, %v7640, 0
        %v7765 = vsel %vm519, %v7641, 0
        %v7768 = vsel %vm519, %v7642, 0
        %v7771 = vsel %vm519, %v7643, 0
        %v7774 = vsel %vm519, %v7644, 0
        %v7777 = vsel %vm519, %v7645, 0
        %v7780 = vsel %vm519, %v7646, 0
        %v7783 = vsel %vm519, %v7647, 0
        %v7786 = vsel %vm519, %v7648, 0
        %v7789 = vsel %vm519, %v7649, 0
        %v7792 = vsel %vm519, %v7650, 0
        %v7795 = vsel %vm519, %v7651, 0
        %v7798 = vsel %vm519, %v7652, 0
        %v7801 = vsel %vm519, %v7653, 0
        %v7804 = vsel %vm519, %v7654, 0
        %v7807 = vsel %vm519, %v7655, 0
        %v7810 = vsel %vm519, %v7656, 0
        %v7813 = vsel %vm519, %v7657, 0
        %v7816 = vsel %vm519, %v7658, 0
        %v7819 = vsel %vm519, %v7659, 0
        %v7822 = vsel %vm519, %v7660, 0
        %v7825 = vsel %vm519, %v7661, 0
        %v7828 = vsel %vm519, %v7662, 0
        %v7831 = vsel %vm519, %v7663, 0
        %v7834 = vsel %vm519, %v7664, 0
        %v7837 = vsel %vm519, %v7665, 0
        %v7840 = vsel %vm519, %v7666, 0
        %v7843 = vsel %vm519, %v7667, 0
        %v7846 = vsel %vm519, %v7668, 0
        %v7849 = vsel %vm519, %v7669, 0
        %v7852 = vsel %vm519, %v7670, 0
        %v7855 = vsel %vm519, %v7671, 0
        %v7858 = vsel %vm519, %v7672, 0
        %v7861 = vsel %vm519, %v7673, 0
        %v7864 = vsel %vm519, %v7674, 0
        %v7867 = vsel %vm519, %v7675, 0
        %v7870 = vsel %vm519, %v7676, 0
        %v7873 = vsel %vm519, %v7677, 0
        %v7876 = vsel %vm519, %v7678, 0
        %v7879 = vsel %vm519, %v7679, 0
        %v7882 = vsel %vm519, %v7680, 0
        %v7885 = vsel %vm519, %v7681, 0
        %v7888 = vsel %vm519, %v7682, 0
        %v7891 = vsel %vm519, %v7683, 0
        %v7894 = vsel %vm519, %v7684, 0
        %v7897 = vsel %vm519, %v7685, 0
        %v7900 = vsel %vm519, %v7686, 0
        %v7903 = vsel %vm519, %v7687, 0
        %v7906 = vsel %vm519, %v7688, 0
        %v7909 = vsel %vm519, %v7689, 0
        %v7912 = vsel %vm519, %v7690, 0
        %v7915 = vsel %vm519, %v7691, 0
        %v7918 = vsel %vm519, %v7692, 0
        %v7921 = vsel %vm519, %v7693, 0
        %v7924 = vsel %vm519, %v7694, 0
        %v7927 = vsel %vm519, %v7695, 0
        %v7930 = vsel %vm519, %v7696, 0
        %v7933 = vsel %vm519, %v7697, 0
        %v7936 = vsel %vm519, %v7698, 0
        %v7939 = vsel %vm3166, %v7700, 0
        %7941 = vmatprep.subr.mxu0 0.0
        %7942 = vmatpush1.msra.mxu0 0.0
        %7943 = vmatprep.subr.mxu0 0.0
        %7944 = vmatpush1.msra.mxu0 0.0
        %7945 = vmatprep.subr.mxu0 0.0
        %7946 = vmatpush1.msra.mxu0 0.0
        %7947 = vmatprep.subr.mxu0 0.0
        %7948 = vmatpush1.msra.mxu0 0.0
        %7949 = vmatprep.subr.mxu0 0.0
        %7950 = vmatpush1.msra.mxu0 0.0
        %7951 = vmatprep.subr.mxu0 0.0
        %7952 = vmatpush1.msra.mxu0 0.0
        %7953 = vmatprep.subr.mxu0 0.0
        %7954 = vmatpush1.msra.mxu0 0.0
        %7955 = vmatprep.subr.mxu0 0.0
        %7956 = vmatpush1.msra.mxu0 0.0
        %7957 = vmatprep.subr.mxu0 0.0
        %7958 = vmatpush1.msra.mxu0 0.0
        %7959 = vmatprep.subr.mxu0 0.0
        %7960 = vmatpush1.msra.mxu0 0.0
        %7961 = vmatprep.subr.mxu0 0.0
        %7962 = vmatpush1.msra.mxu0 0.0
        %7963 = vmatprep.subr.mxu0 0.0
        %7964 = vmatpush1.msra.mxu0 0.0
        %7965 = vmatprep.subr.mxu0 0.0
        %7966 = vmatpush1.msra.mxu0 0.0
        %7967 = vmatprep.subr.mxu0 0.0
        %7968 = vmatpush1.msra.mxu0 0.0
        %7969 = vmatprep.subr.mxu0 0.0
        %7970 = vmatpush1.msra.mxu0 0.0
        %7971 = vmatprep.subr.mxu0 0.0
        %7972 = vmatpush1.msra.mxu0 %v7939
        %7973 = vmatprep.subr.mxu0 0.0
        %7974 = vmatpush2.msra.mxu0 0.0
        %7975 = vmatprep.subr.mxu0 0.0
        %7976 = vmatpush2.msra.mxu0 0.0
        %7977 = vmatprep.subr.mxu0 0.0
        %7978 = vmatpush2.msra.mxu0 0.0
        %7979 = vmatprep.subr.mxu0 0.0
        %7980 = vmatpush2.msra.mxu0 0.0
        %7981 = vmatprep.subr.mxu0 0.0
        %7982 = vmatpush2.msra.mxu0 0.0
        %7983 = vmatprep.subr.mxu0 0.0
        %7984 = vmatpush2.msra.mxu0 0.0
        %7985 = vmatprep.subr.mxu0 0.0
        %7986 = vmatpush2.msra.mxu0 0.0
        %7987 = vmatprep.subr.mxu0 0.0
        %7988 = vmatpush2.msra.mxu0 0.0
        %7989 = vmatprep.subr.mxu0 0.0
        %7990 = vmatpush2.msra.mxu0 0.0
        %7991 = vmatprep.subr.mxu0 0.0
        %7992 = vmatpush2.msra.mxu0 0.0
        %7993 = vmatprep.subr.mxu0 0.0
        %7994 = vmatpush2.msra.mxu0 0.0
        %7995 = vmatprep.subr.mxu0 0.0
        %7996 = vmatpush2.msra.mxu0 0.0
        %7997 = vmatprep.subr.mxu0 0.0
        %7998 = vmatpush2.msra.mxu0 0.0
        %7999 = vmatprep.subr.mxu0 0.0
        %8000 = vmatpush2.msra.mxu0 0.0
        %8001 = vmatprep.subr.mxu0 0.0
        %8002 = vmatpush2.msra.mxu0 0.0
        %8003 = vmatprep.subr.mxu0 0.0
        %8004 = vmatpush2.msra.mxu0 0.0
        %8005 = vmatprep.mubr.f32.mxu0 0.0
        %8006 = vmatmul.mubr.f32.gmra.mxu0 %v7702
        %v8007 = vpop.f32.mrf.mxu0
        %v8008 = vadd.f32 0.0, %v8007
        %v8009 = vpop.f32.mrf.mxu0
        %8010 = vmatprep.mubr.f32.mxu0 0.0
        %8011 = vmatmul.mubr.f32.gmra.mxu0 %v7705
        %v8012 = vpop.f32.mrf.mxu0
        %v8013 = vadd.f32 0.0, %v8012
        %v8014 = vpop.f32.mrf.mxu0
        %8015 = vmatprep.mubr.f32.mxu0 0.0
        %8016 = vmatmul.mubr.f32.gmra.mxu0 %v7708
        %v8017 = vpop.f32.mrf.mxu0
        %v8018 = vadd.f32 0.0, %v8017
        %v8019 = vpop.f32.mrf.mxu0
        %8020 = vmatprep.mubr.f32.mxu0 0.0
        %8021 = vmatmul.mubr.f32.gmra.mxu0 %v7711
        %v8022 = vpop.f32.mrf.mxu0
        %v8023 = vadd.f32 0.0, %v8022
        %v8024 = vpop.f32.mrf.mxu0
        %8025 = vmatprep.mubr.f32.mxu0 0.0
        %8026 = vmatmul.mubr.f32.gmra.mxu0 %v7714
        %v8027 = vpop.f32.mrf.mxu0
        %v8028 = vpop.f32.mrf.mxu0
        %8029 = vmatprep.mubr.f32.mxu0 0.0
        %8030 = vmatmul.mubr.f32.gmra.mxu0 %v7717
        %v8031 = vpop.f32.mrf.mxu0
        %v8032 = vadd.f32 0.0, %v8031
        %v8033 = vpop.f32.mrf.mxu0
        %8034 = vmatprep.mubr.f32.mxu0 0.0
        %8035 = vmatmul.mubr.f32.gmra.mxu0 %v7720
        %v8036 = vpop.f32.mrf.mxu0
        %v8037 = vadd.f32 0.0, %v8036
        %v8038 = vpop.f32.mrf.mxu0
        %8039 = vmatprep.mubr.f32.mxu0 0.0
        %8040 = vmatmul.mubr.f32.gmra.mxu0 %v7723
        %v8041 = vpop.f32.mrf.mxu0
        %v8042 = vadd.f32 0.0, %v8041
        %v8043 = vpop.f32.mrf.mxu0
        %8044 = vmatprep.mubr.f32.mxu0 0.0
        %8045 = vmatmul.mubr.f32.gmra.mxu0 %v7726
        %v8046 = vpop.f32.mrf.mxu0
        %v8047 = vadd.f32 0.0, %v8046
        %v8048 = vpop.f32.mrf.mxu0
        %8049 = vmatprep.mubr.f32.mxu0 0.0
        %8050 = vmatmul.mubr.f32.gmra.mxu0 %v7729
        %v8051 = vpop.f32.mrf.mxu0
        %v8052 = vpop.f32.mrf.mxu0
        %8053 = vmatprep.mubr.f32.mxu0 0.0
        %8054 = vmatmul.mubr.f32.gmra.mxu0 %v7732
        %v8055 = vpop.f32.mrf.mxu0
        %v8056 = vadd.f32 0.0, %v8055
        %v8057 = vpop.f32.mrf.mxu0
        %8058 = vmatprep.mubr.f32.mxu0 0.0
        %8059 = vmatmul.mubr.f32.gmra.mxu0 %v7735
        %v8060 = vpop.f32.mrf.mxu0
        %v8061 = vadd.f32 0.0, %v8060
        %v8062 = vpop.f32.mrf.mxu0
        %8063 = vmatprep.mubr.f32.mxu0 0.0
        %8064 = vmatmul.mubr.f32.gmra.mxu0 %v7738
        %v8065 = vpop.f32.mrf.mxu0
        %v8066 = vadd.f32 0.0, %v8065
        %v8067 = vpop.f32.mrf.mxu0
        %8068 = vmatprep.mubr.f32.mxu0 0.0
        %8069 = vmatmul.mubr.f32.gmra.mxu0 %v7741
        %v8070 = vpop.f32.mrf.mxu0
        %v8071 = vadd.f32 0.0, %v8070
        %v8072 = vpop.f32.mrf.mxu0
        %8073 = vmatprep.mubr.f32.mxu0 0.0
        %8074 = vmatmul.mubr.f32.gmra.mxu0 %v7744
        %v8075 = vpop.f32.mrf.mxu0
        %v8076 = vpop.f32.mrf.mxu0
        %8077 = vmatprep.mubr.f32.mxu0 0.0
        %8078 = vmatmul.mubr.f32.gmra.mxu0 %v7747
        %v8079 = vpop.f32.mrf.mxu0
        %v8080 = vadd.f32 0.0, %v8079
        %v8081 = vpop.f32.mrf.mxu0
        %8082 = vmatprep.mubr.f32.mxu0 0.0
        %8083 = vmatmul.mubr.f32.gmra.mxu0 %v7750
        %v8084 = vpop.f32.mrf.mxu0
        %v8085 = vadd.f32 0.0, %v8084
        %v8086 = vpop.f32.mrf.mxu0
        %8087 = vmatprep.mubr.f32.mxu0 0.0
        %8088 = vmatmul.mubr.f32.gmra.mxu0 %v7753
        %v8089 = vpop.f32.mrf.mxu0
        %v8090 = vadd.f32 0.0, %v8089
        %v8091 = vpop.f32.mrf.mxu0
        %8092 = vmatprep.mubr.f32.mxu0 0.0
        %8093 = vmatmul.mubr.f32.gmra.mxu0 %v7756
        %v8094 = vpop.f32.mrf.mxu0
        %v8095 = vadd.f32 0.0, %v8094
        %v8096 = vpop.f32.mrf.mxu0
        %8097 = vmatprep.mubr.f32.mxu0 0.0
        %8098 = vmatmul.mubr.f32.gmra.mxu0 %v7759
        %v8099 = vpop.f32.mrf.mxu0
        %v8100 = vpop.f32.mrf.mxu0
        %8101 = vmatprep.mubr.f32.mxu0 0.0
        %8102 = vmatmul.mubr.f32.gmra.mxu0 %v7762
        %v8103 = vpop.f32.mrf.mxu0
        %v8104 = vadd.f32 0.0, %v8103
        %v8105 = vpop.f32.mrf.mxu0
        %8106 = vmatprep.mubr.f32.mxu0 0.0
        %8107 = vmatmul.mubr.f32.gmra.mxu0 %v7765
        %v8108 = vpop.f32.mrf.mxu0
        %v8109 = vadd.f32 0.0, %v8108
        %v8110 = vpop.f32.mrf.mxu0
        %8111 = vmatprep.mubr.f32.mxu0 0.0
        %8112 = vmatmul.mubr.f32.gmra.mxu0 %v7768
        %v8113 = vpop.f32.mrf.mxu0
        %v8114 = vadd.f32 0.0, %v8113
        %v8115 = vpop.f32.mrf.mxu0
        %8116 = vmatprep.mubr.f32.mxu0 0.0
        %8117 = vmatmul.mubr.f32.gmra.mxu0 %v7771
        %v8118 = vpop.f32.mrf.mxu0
        %v8119 = vadd.f32 0.0, %v8118
        %v8120 = vpop.f32.mrf.mxu0
        %8121 = vmatprep.mubr.f32.mxu0 0.0
        %8122 = vmatmul.mubr.f32.gmra.mxu0 %v7774
        %v8123 = vpop.f32.mrf.mxu0
        %v8124 = vpop.f32.mrf.mxu0
        %8125 = vmatprep.mubr.f32.mxu0 0.0
        %8126 = vmatmul.mubr.f32.gmra.mxu0 %v7777
        %v8127 = vpop.f32.mrf.mxu0
        %v8128 = vadd.f32 0.0, %v8127
        %v8129 = vpop.f32.mrf.mxu0
        %8130 = vmatprep.mubr.f32.mxu0 0.0
        %8131 = vmatmul.mubr.f32.gmra.mxu0 %v7780
        %v8132 = vpop.f32.mrf.mxu0
        %v8133 = vadd.f32 0.0, %v8132
        %v8134 = vpop.f32.mrf.mxu0
        %8135 = vmatprep.mubr.f32.mxu0 0.0
        %8136 = vmatmul.mubr.f32.gmra.mxu0 %v7783
        %v8137 = vpop.f32.mrf.mxu0
        %v8138 = vadd.f32 0.0, %v8137
        %v8139 = vpop.f32.mrf.mxu0
        %8140 = vmatprep.mubr.f32.mxu0 0.0
        %8141 = vmatmul.mubr.f32.gmra.mxu0 %v7786
        %v8142 = vpop.f32.mrf.mxu0
        %v8143 = vadd.f32 0.0, %v8142
        %v8144 = vpop.f32.mrf.mxu0
        %8145 = vmatprep.mubr.f32.mxu0 0.0
        %8146 = vmatmul.mubr.f32.gmra.mxu0 %v7789
        %v8147 = vpop.f32.mrf.mxu0
        %v8148 = vpop.f32.mrf.mxu0
        %8149 = vmatprep.mubr.f32.mxu0 0.0
        %8150 = vmatmul.mubr.f32.gmra.mxu0 %v7792
        %v8151 = vpop.f32.mrf.mxu0
        %v8152 = vadd.f32 0.0, %v8151
        %v8153 = vpop.f32.mrf.mxu0
        %8154 = vmatprep.mubr.f32.mxu0 0.0
        %8155 = vmatmul.mubr.f32.gmra.mxu0 %v7795
        %v8156 = vpop.f32.mrf.mxu0
        %v8157 = vadd.f32 0.0, %v8156
        %v8158 = vpop.f32.mrf.mxu0
        %8159 = vmatprep.mubr.f32.mxu0 0.0
        %8160 = vmatmul.mubr.f32.gmra.mxu0 %v7798
        %v8161 = vpop.f32.mrf.mxu0
        %v8162 = vadd.f32 0.0, %v8161
        %v8163 = vpop.f32.mrf.mxu0
        %8164 = vmatprep.mubr.f32.mxu0 0.0
        %8165 = vmatmul.mubr.f32.gmra.mxu0 %v7801
        %v8166 = vpop.f32.mrf.mxu0
        %v8167 = vadd.f32 0.0, %v8166
        %v8168 = vpop.f32.mrf.mxu0
        %8169 = vmatprep.mubr.f32.mxu0 0.0
        %8170 = vmatmul.mubr.f32.gmra.mxu0 %v7804
        %v8171 = vpop.f32.mrf.mxu0
        %v8172 = vpop.f32.mrf.mxu0
        %8173 = vmatprep.mubr.f32.mxu0 0.0
        %8174 = vmatmul.mubr.f32.gmra.mxu0 %v7807
        %v8175 = vpop.f32.mrf.mxu0
        %v8176 = vadd.f32 0.0, %v8175
        %v8177 = vpop.f32.mrf.mxu0
        %8178 = vmatprep.mubr.f32.mxu0 0.0
        %8179 = vmatmul.mubr.f32.gmra.mxu0 %v7810
        %v8180 = vpop.f32.mrf.mxu0
        %v8181 = vadd.f32 0.0, %v8180
        %v8182 = vpop.f32.mrf.mxu0
        %8183 = vmatprep.mubr.f32.mxu0 0.0
        %8184 = vmatmul.mubr.f32.gmra.mxu0 %v7813
        %v8185 = vpop.f32.mrf.mxu0
        %v8186 = vadd.f32 0.0, %v8185
        %v8187 = vpop.f32.mrf.mxu0
        %8188 = vmatprep.mubr.f32.mxu0 0.0
        %8189 = vmatmul.mubr.f32.gmra.mxu0 %v7816
        %v8190 = vpop.f32.mrf.mxu0
        %v8191 = vadd.f32 0.0, %v8190
        %v8192 = vpop.f32.mrf.mxu0
        %8193 = vmatprep.mubr.f32.mxu0 0.0
        %8194 = vmatmul.mubr.f32.gmra.mxu0 %v7819
        %v8195 = vpop.f32.mrf.mxu0
        %v8196 = vpop.f32.mrf.mxu0
        %8197 = vmatprep.mubr.f32.mxu0 0.0
        %8198 = vmatmul.mubr.f32.gmra.mxu0 %v7822
        %v8199 = vpop.f32.mrf.mxu0
        %v8200 = vadd.f32 0.0, %v8199
        %v8201 = vpop.f32.mrf.mxu0
        %8202 = vmatprep.mubr.f32.mxu0 0.0
        %8203 = vmatmul.mubr.f32.gmra.mxu0 %v7825
        %v8204 = vpop.f32.mrf.mxu0
        %v8205 = vadd.f32 0.0, %v8204
        %v8206 = vpop.f32.mrf.mxu0
        %8207 = vmatprep.mubr.f32.mxu0 0.0
        %8208 = vmatmul.mubr.f32.gmra.mxu0 %v7828
        %v8209 = vpop.f32.mrf.mxu0
        %v8210 = vadd.f32 0.0, %v8209
        %v8211 = vpop.f32.mrf.mxu0
        %8212 = vmatprep.mubr.f32.mxu0 0.0
        %8213 = vmatmul.mubr.f32.gmra.mxu0 %v7831
        %v8214 = vpop.f32.mrf.mxu0
        %v8215 = vadd.f32 0.0, %v8214
        %v8216 = vpop.f32.mrf.mxu0
        %8217 = vmatprep.mubr.f32.mxu0 0.0
        %8218 = vmatmul.mubr.f32.gmra.mxu0 %v7834
        %v8219 = vpop.f32.mrf.mxu0
        %v8220 = vpop.f32.mrf.mxu0
        %8221 = vmatprep.mubr.f32.mxu0 0.0
        %8222 = vmatmul.mubr.f32.gmra.mxu0 %v7837
        %v8223 = vpop.f32.mrf.mxu0
        %v8224 = vadd.f32 0.0, %v8223
        %v8225 = vpop.f32.mrf.mxu0
        %8226 = vmatprep.mubr.f32.mxu0 0.0
        %8227 = vmatmul.mubr.f32.gmra.mxu0 %v7840
        %v8228 = vpop.f32.mrf.mxu0
        %v8229 = vadd.f32 0.0, %v8228
        %v8230 = vpop.f32.mrf.mxu0
        %8231 = vmatprep.mubr.f32.mxu0 0.0
        %8232 = vmatmul.mubr.f32.gmra.mxu0 %v7843
        %v8233 = vpop.f32.mrf.mxu0
        %v8234 = vadd.f32 0.0, %v8233
        %v8235 = vpop.f32.mrf.mxu0
        %8236 = vmatprep.mubr.f32.mxu0 0.0
        %8237 = vmatmul.mubr.f32.gmra.mxu0 %v7846
        %v8238 = vpop.f32.mrf.mxu0
        %v8239 = vadd.f32 0.0, %v8238
        %v8240 = vpop.f32.mrf.mxu0
        %8241 = vmatprep.mubr.f32.mxu0 0.0
        %8242 = vmatmul.mubr.f32.gmra.mxu0 %v7849
        %v8243 = vpop.f32.mrf.mxu0
        %v8244 = vpop.f32.mrf.mxu0
        %8245 = vmatprep.mubr.f32.mxu0 0.0
        %8246 = vmatmul.mubr.f32.gmra.mxu0 %v7852
        %v8247 = vpop.f32.mrf.mxu0
        %v8248 = vadd.f32 0.0, %v8247
        %v8249 = vpop.f32.mrf.mxu0
        %8250 = vmatprep.mubr.f32.mxu0 0.0
        %8251 = vmatmul.mubr.f32.gmra.mxu0 %v7855
        %v8252 = vpop.f32.mrf.mxu0
        %v8253 = vadd.f32 0.0, %v8252
        %v8254 = vpop.f32.mrf.mxu0
        %8255 = vmatprep.mubr.f32.mxu0 0.0
        %8256 = vmatmul.mubr.f32.gmra.mxu0 %v7858
        %v8257 = vpop.f32.mrf.mxu0
        %v8258 = vadd.f32 0.0, %v8257
        %v8259 = vpop.f32.mrf.mxu0
        %8260 = vmatprep.mubr.f32.mxu0 0.0
        %8261 = vmatmul.mubr.f32.gmra.mxu0 %v7861
        %v8262 = vpop.f32.mrf.mxu0
        %v8263 = vadd.f32 0.0, %v8262
        %v8264 = vpop.f32.mrf.mxu0
        %8265 = vmatprep.mubr.f32.mxu0 0.0
        %8266 = vmatmul.mubr.f32.gmra.mxu0 %v7864
        %v8267 = vpop.f32.mrf.mxu0
        %v8268 = vpop.f32.mrf.mxu0
        %8269 = vmatprep.mubr.f32.mxu0 0.0
        %8270 = vmatmul.mubr.f32.gmra.mxu0 %v7867
        %v8271 = vpop.f32.mrf.mxu0
        %v8272 = vadd.f32 0.0, %v8271
        %v8273 = vpop.f32.mrf.mxu0
        %8274 = vmatprep.mubr.f32.mxu0 0.0
        %8275 = vmatmul.mubr.f32.gmra.mxu0 %v7870
        %v8276 = vpop.f32.mrf.mxu0
        %v8277 = vadd.f32 0.0, %v8276
        %v8278 = vpop.f32.mrf.mxu0
        %8279 = vmatprep.mubr.f32.mxu0 0.0
        %8280 = vmatmul.mubr.f32.gmra.mxu0 %v7873
        %v8281 = vpop.f32.mrf.mxu0
        %v8282 = vadd.f32 0.0, %v8281
        %v8283 = vpop.f32.mrf.mxu0
        %8284 = vmatprep.mubr.f32.mxu0 0.0
        %8285 = vmatmul.mubr.f32.gmra.mxu0 %v7876
        %v8286 = vpop.f32.mrf.mxu0
        %v8287 = vadd.f32 0.0, %v8286
        %v8288 = vpop.f32.mrf.mxu0
        %8289 = vmatprep.mubr.f32.mxu0 0.0
        %8290 = vmatmul.mubr.f32.gmra.mxu0 %v7879
        %v8291 = vpop.f32.mrf.mxu0
        %v8292 = vpop.f32.mrf.mxu0
        %8293 = vmatprep.mubr.f32.mxu0 0.0
        %8294 = vmatmul.mubr.f32.gmra.mxu0 %v7882
        %v8295 = vpop.f32.mrf.mxu0
        %v8296 = vadd.f32 0.0, %v8295
        %v8297 = vpop.f32.mrf.mxu0
        %8298 = vmatprep.mubr.f32.mxu0 0.0
        %8299 = vmatmul.mubr.f32.gmra.mxu0 %v7885
        %v8300 = vpop.f32.mrf.mxu0
        %v8301 = vadd.f32 0.0, %v8300
        %v8302 = vpop.f32.mrf.mxu0
        %8303 = vmatprep.mubr.f32.mxu0 0.0
        %8304 = vmatmul.mubr.f32.gmra.mxu0 %v7888
        %v8305 = vpop.f32.mrf.mxu0
        %v8306 = vadd.f32 0.0, %v8305
        %v8307 = vpop.f32.mrf.mxu0
        %8308 = vmatprep.mubr.f32.mxu0 0.0
        %8309 = vmatmul.mubr.f32.gmra.mxu0 %v7891
        %v8310 = vpop.f32.mrf.mxu0
        %v8311 = vadd.f32 0.0, %v8310
        %v8312 = vpop.f32.mrf.mxu0
        %8313 = vmatprep.mubr.f32.mxu0 0.0
        %8314 = vmatmul.mubr.f32.gmra.mxu0 %v7894
        %v8315 = vpop.f32.mrf.mxu0
        %v8316 = vpop.f32.mrf.mxu0
        %8317 = vmatprep.mubr.f32.mxu0 0.0
        %8318 = vmatmul.mubr.f32.gmra.mxu0 %v7897
        %v8319 = vpop.f32.mrf.mxu0
        %v8320 = vadd.f32 0.0, %v8319
        %v8321 = vpop.f32.mrf.mxu0
        %8322 = vmatprep.mubr.f32.mxu0 0.0
        %8323 = vmatmul.mubr.f32.gmra.mxu0 %v7900
        %v8324 = vpop.f32.mrf.mxu0
        %v8325 = vadd.f32 0.0, %v8324
        %v8326 = vpop.f32.mrf.mxu0
        %8327 = vmatprep.mubr.f32.mxu0 0.0
        %8328 = vmatmul.mubr.f32.gmra.mxu0 %v7903
        %v8329 = vpop.f32.mrf.mxu0
        %v8330 = vadd.f32 0.0, %v8329
        %v8331 = vpop.f32.mrf.mxu0
        %8332 = vmatprep.mubr.f32.mxu0 0.0
        %8333 = vmatmul.mubr.f32.gmra.mxu0 %v7906
        %v8334 = vpop.f32.mrf.mxu0
        %v8335 = vadd.f32 0.0, %v8334
        %v8336 = vpop.f32.mrf.mxu0
        %8337 = vmatprep.mubr.f32.mxu0 0.0
        %8338 = vmatmul.mubr.f32.gmra.mxu0 %v7909
        %v8339 = vpop.f32.mrf.mxu0
        %v8340 = vpop.f32.mrf.mxu0
        %8341 = vmatprep.mubr.f32.mxu0 0.0
        %8342 = vmatmul.mubr.f32.gmra.mxu0 %v7912
        %v8343 = vpop.f32.mrf.mxu0
        %v8344 = vadd.f32 0.0, %v8343
        %v8345 = vpop.f32.mrf.mxu0
        %8346 = vmatprep.mubr.f32.mxu0 0.0
        %8347 = vmatmul.mubr.f32.gmra.mxu0 %v7915
        %v8348 = vpop.f32.mrf.mxu0
        %v8349 = vadd.f32 0.0, %v8348
        %v8350 = vpop.f32.mrf.mxu0
        %8351 = vmatprep.mubr.f32.mxu0 0.0
        %8352 = vmatmul.mubr.f32.gmra.mxu0 %v7918
        %v8353 = vpop.f32.mrf.mxu0
        %v8354 = vadd.f32 0.0, %v8353
        %v8355 = vpop.f32.mrf.mxu0
        %8356 = vmatprep.mubr.f32.mxu0 0.0
        %8357 = vmatmul.mubr.f32.gmra.mxu0 %v7921
        %v8358 = vpop.f32.mrf.mxu0
        %v8359 = vadd.f32 0.0, %v8358
        %v8360 = vpop.f32.mrf.mxu0
        %8361 = vmatprep.mubr.f32.mxu0 0.0
        %8362 = vmatmul.mubr.f32.gmra.mxu0 %v7924
        %v8363 = vpop.f32.mrf.mxu0
        %v8364 = vpop.f32.mrf.mxu0
        %8365 = vmatprep.mubr.f32.mxu0 0.0
        %8366 = vmatmul.mubr.f32.gmra.mxu0 %v7927
        %v8367 = vpop.f32.mrf.mxu0
        %v8368 = vadd.f32 0.0, %v8367
        %v8369 = vpop.f32.mrf.mxu0
        %8370 = vmatprep.mubr.f32.mxu0 0.0
        %8371 = vmatmul.mubr.f32.gmra.mxu0 %v7930
        %v8372 = vpop.f32.mrf.mxu0
        %v8373 = vadd.f32 0.0, %v8372
        %v8374 = vpop.f32.mrf.mxu0
        %8375 = vmatprep.mubr.f32.mxu0 0.0
        %8376 = vmatmul.mubr.f32.gmra.mxu0 %v7933
        %v8377 = vpop.f32.mrf.mxu0
        %v8378 = vadd.f32 0.0, %v8377
        %v8379 = vpop.f32.mrf.mxu0
        %8380 = vmatprep.mubr.f32.mxu0 0.0
        %8381 = vmatmul.mubr.f32.gmra.mxu0 %v7936
        %v8382 = vpop.f32.mrf.mxu0
        %v8383 = vadd.f32 0.0, %v8382
        %v8384 = vpop.f32.mrf.mxu0
        %8385 = vdwg.mxu0
        %v8386 = vadd.f32 %v7556, %v8008
        %v8387 = vadd.f32 %v7557, %v8013
        %v8388 = vadd.f32 %v7558, %v8018
        %v8389 = vadd.f32 %v7559, %v8023
        %v8390 = vadd.f32 %v7560, %v8032
        %v8391 = vadd.f32 %v7561, %v8037
        %v8392 = vadd.f32 %v7562, %v8042
        %v8393 = vadd.f32 %v7563, %v8047
        %v8394 = vadd.f32 %v7564, %v8056
        %v8395 = vadd.f32 %v7565, %v8061
        %v8396 = vadd.f32 %v7566, %v8066
        %v8397 = vadd.f32 %v7567, %v8071
        %v8398 = vadd.f32 %v7568, %v8080
        %v8399 = vadd.f32 %v7569, %v8085
        %v8400 = vadd.f32 %v7570, %v8090
        %v8401 = vadd.f32 %v7571, %v8095
        %v8402 = vadd.f32 %v7572, %v8104
        %v8403 = vadd.f32 %v7573, %v8109
        %v8404 = vadd.f32 %v7574, %v8114
        %v8405 = vadd.f32 %v7575, %v8119
        %v8406 = vadd.f32 %v7576, %v8128
        %v8407 = vadd.f32 %v7577, %v8133
        %v8408 = vadd.f32 %v7578, %v8138
        %v8409 = vadd.f32 %v7579, %v8143
        %v8410 = vadd.f32 %v7580, %v8152
        %v8411 = vadd.f32 %v7581, %v8157
        %v8412 = vadd.f32 %v7582, %v8162
        %v8413 = vadd.f32 %v7583, %v8167
        %v8414 = vadd.f32 %v7584, %v8176
        %v8415 = vadd.f32 %v7585, %v8181
        %v8416 = vadd.f32 %v7586, %v8186
        %v8417 = vadd.f32 %v7587, %v8191
        %v8418 = vadd.f32 %v7588, %v8200
        %v8419 = vadd.f32 %v7589, %v8205
        %v8420 = vadd.f32 %v7590, %v8210
        %v8421 = vadd.f32 %v7591, %v8215
        %v8422 = vadd.f32 %v7592, %v8224
        %v8423 = vadd.f32 %v7593, %v8229
        %v8424 = vadd.f32 %v7594, %v8234
        %v8425 = vadd.f32 %v7595, %v8239
        %v8426 = vadd.f32 %v7596, %v8248
        %v8427 = vadd.f32 %v7597, %v8253
        %v8428 = vadd.f32 %v7598, %v8258
        %v8429 = vadd.f32 %v7599, %v8263
        %v8430 = vadd.f32 %v7600, %v8272
        %v8431 = vadd.f32 %v7601, %v8277
        %v8432 = vadd.f32 %v7602, %v8282
        %v8433 = vadd.f32 %v7603, %v8287
        %v8434 = vadd.f32 %v7604, %v8296
        %v8435 = vadd.f32 %v7605, %v8301
        %v8436 = vadd.f32 %v7606, %v8306
        %v8437 = vadd.f32 %v7607, %v8311
        %v8438 = vadd.f32 %v7608, %v8320
        %v8439 = vadd.f32 %v7609, %v8325
        %v8440 = vadd.f32 %v7610, %v8330
        %v8441 = vadd.f32 %v7611, %v8335
        %v8442 = vadd.f32 %v7612, %v8344
        %v8443 = vadd.f32 %v7613, %v8349
        %v8444 = vadd.f32 %v7614, %v8354
        %v8445 = vadd.f32 %v7615, %v8359
        %v8446 = vadd.f32 %v7616, %v8368
        %v8447 = vadd.f32 %v7617, %v8373
        %v8448 = vadd.f32 %v7618, %v8378
        %v8449 = vadd.f32 %v7619, %v8383
        %v8450 = vld [vmem:[#allocation2 + $0x51] sm:$0xff]
        %v8451 = vld [vmem:[#allocation2 + $0x59] sm:$0xff]
        %v8452 = vld [vmem:[#allocation2 + $0x61] sm:$0xff]
        %v8453 = vld [vmem:[#allocation2 + $0x69] sm:$0xff]
        %v8454 = vld [vmem:[#allocation2 + $0x71] sm:$0xff]
        %v8455 = vld [vmem:[#allocation2 + $0x79] sm:$0xff]
        %v8456 = vld [vmem:[#allocation2 + $0x81] sm:$0xff]
        %v8457 = vld [vmem:[#allocation2 + $0x89] sm:$0xff]
        %v8458 = vld [vmem:[#allocation2 + $0x91] sm:$0xff]
        %v8459 = vld [vmem:[#allocation2 + $0x99] sm:$0xff]
        %v8460 = vld [vmem:[#allocation2 + $0xa1] sm:$0xff]
        %v8461 = vld [vmem:[#allocation2 + $0xa9] sm:$0xff]
        %v8462 = vld [vmem:[#allocation2 + $0xb1] sm:$0xff]
        %v8463 = vld [vmem:[#allocation2 + $0xb9] sm:$0xff]
        %v8464 = vld [vmem:[#allocation2 + $0xc1] sm:$0xff]
        %v8465 = vld [vmem:[#allocation2 + $0xc9] sm:$0xff]
        %v8466 = vld [vmem:[#allocation2 + $0xd1] sm:$0xff]
        %v8467 = vld [vmem:[#allocation2 + $0xd9] sm:$0xff]
        %v8468 = vld [vmem:[#allocation2 + $0xe1] sm:$0xff]
        %v8469 = vld [vmem:[#allocation2 + $0xe9] sm:$0xff]
        %v8470 = vld [vmem:[#allocation2 + $0xf1] sm:$0xff]
        %v8471 = vld [vmem:[#allocation2 + $0xf9] sm:$0xff]
        %v8472 = vld [vmem:[#allocation2 + $0x101] sm:$0xff]
        %v8473 = vld [vmem:[#allocation2 + $0x109] sm:$0xff]
        %v8474 = vld [vmem:[#allocation2 + $0x111] sm:$0xff]
        %v8475 = vld [vmem:[#allocation2 + $0x119] sm:$0xff]
        %v8476 = vld [vmem:[#allocation2 + $0x121] sm:$0xff]
        %v8477 = vld [vmem:[#allocation2 + $0x129] sm:$0xff]
        %v8478 = vld [vmem:[#allocation2 + $0x131] sm:$0xff]
        %v8479 = vld [vmem:[#allocation2 + $0x139] sm:$0xff]
        %v8480 = vld [vmem:[#allocation2 + $0x141] sm:$0xff]
        %v8481 = vld [vmem:[#allocation2 + $0x149] sm:$0xff]
        %v8482 = vld [vmem:[#allocation2 + $0x151] sm:$0xff]
        %v8483 = vld [vmem:[#allocation2 + $0x159] sm:$0xff]
        %v8484 = vld [vmem:[#allocation2 + $0x161] sm:$0xff]
        %v8485 = vld [vmem:[#allocation2 + $0x169] sm:$0xff]
        %v8486 = vld [vmem:[#allocation2 + $0x171] sm:$0xff]
        %v8487 = vld [vmem:[#allocation2 + $0x179] sm:$0xff]
        %v8488 = vld [vmem:[#allocation2 + $0x181] sm:$0xff]
        %v8489 = vld [vmem:[#allocation2 + $0x189] sm:$0xff]
        %v8490 = vld [vmem:[#allocation2 + $0x191] sm:$0xff]
        %v8491 = vld [vmem:[#allocation2 + $0x199] sm:$0xff]
        %v8492 = vld [vmem:[#allocation2 + $0x1a1] sm:$0xff]
        %v8493 = vld [vmem:[#allocation2 + $0x1a9] sm:$0xff]
        %v8494 = vld [vmem:[#allocation2 + $0x1b1] sm:$0xff]
        %v8495 = vld [vmem:[#allocation2 + $0x1b9] sm:$0xff]
        %v8496 = vld [vmem:[#allocation2 + $0x1c1] sm:$0xff]
        %v8497 = vld [vmem:[#allocation2 + $0x1c9] sm:$0xff]
        %v8498 = vld [vmem:[#allocation2 + $0x1d1] sm:$0xff]
        %v8499 = vld [vmem:[#allocation2 + $0x1d9] sm:$0xff]
        %v8500 = vld [vmem:[#allocation2 + $0x1e1] sm:$0xff]
        %v8501 = vld [vmem:[#allocation2 + $0x1e9] sm:$0xff]
        %v8502 = vld [vmem:[#allocation2 + $0x1f1] sm:$0xff]
        %v8503 = vld [vmem:[#allocation2 + $0x1f9] sm:$0xff]
        %v8504 = vld [vmem:[#allocation2 + $0x201] sm:$0xff]
        %v8505 = vld [vmem:[#allocation2 + $0x209] sm:$0xff]
        %v8506 = vld [vmem:[#allocation2 + $0x211] sm:$0xff]
        %v8507 = vld [vmem:[#allocation2 + $0x219] sm:$0xff]
        %v8508 = vld [vmem:[#allocation2 + $0x221] sm:$0xff]
        %v8509 = vld [vmem:[#allocation2 + $0x229] sm:$0xff]
        %v8510 = vld [vmem:[#allocation2 + $0x231] sm:$0xff]
        %v8511 = vld [vmem:[#allocation2 + $0x239] sm:$0xff]
        %v8512 = vld [vmem:[#allocation2 + $0x241] sm:$0xff]
        %v8513 = vld [vmem:[#allocation2 + $0x249] sm:$0xff]
        %v8514 = vld [vmem:[#allocation2 + $0x251] sm:$0xff]
        %v8515 = vld [vmem:[#allocation2 + $0x259] sm:$0xff]
        %v8516 = vld [vmem:[#allocation2 + $0x261] sm:$0xff]
        %v8517 = vld [vmem:[#allocation2 + $0x269] sm:$0xff]
        %v8518 = vld [vmem:[#allocation2 + $0x271] sm:$0xff]
        %v8519 = vld [vmem:[#allocation2 + $0x279] sm:$0xff]
        %v8520 = vld [vmem:[#allocation2 + $0x281] sm:$0xff]
        %v8521 = vld [vmem:[#allocation2 + $0x289] sm:$0xff]
        %v8522 = vld [vmem:[#allocation2 + $0x291] sm:$0xff]
        %v8523 = vld [vmem:[#allocation2 + $0x299] sm:$0xff]
        %v8524 = vld [vmem:[#allocation2 + $0x2a1] sm:$0xff]
        %v8525 = vld [vmem:[#allocation2 + $0x2a9] sm:$0xff]
        %v8526 = vld [vmem:[#allocation2 + $0x2b1] sm:$0xff]
        %v8527 = vld [vmem:[#allocation2 + $0x2b9] sm:$0xff]
        %v8528 = vld [vmem:[#allocation2 + $0x2c1] sm:$0xff]
        %s8529 = scalar_lea.vmem %s5, 28
        %v8530 = vld [vmem:[%s8529] sm:$0xf]
        %v8532 = vsel %vm519, %v8450, 0
        %v8535 = vsel %vm519, %v8451, 0
        %v8538 = vsel %vm519, %v8452, 0
        %v8541 = vsel %vm519, %v8453, 0
        %v8544 = vsel %vm519, %v8454, 0
        %v8547 = vsel %vm519, %v8455, 0
        %v8550 = vsel %vm519, %v8456, 0
        %v8553 = vsel %vm519, %v8457, 0
        %v8556 = vsel %vm519, %v8458, 0
        %v8559 = vsel %vm519, %v8459, 0
        %v8562 = vsel %vm519, %v8460, 0
        %v8565 = vsel %vm519, %v8461, 0
        %v8568 = vsel %vm519, %v8462, 0
        %v8571 = vsel %vm519, %v8463, 0
        %v8574 = vsel %vm519, %v8464, 0
        %v8577 = vsel %vm519, %v8465, 0
        %v8580 = vsel %vm519, %v8466, 0
        %v8583 = vsel %vm519, %v8467, 0
        %v8586 = vsel %vm519, %v8468, 0
        %v8589 = vsel %vm519, %v8469, 0
        %v8592 = vsel %vm519, %v8470, 0
        %v8595 = vsel %vm519, %v8471, 0
        %v8598 = vsel %vm519, %v8472, 0
        %v8601 = vsel %vm519, %v8473, 0
        %v8604 = vsel %vm519, %v8474, 0
        %v8607 = vsel %vm519, %v8475, 0
        %v8610 = vsel %vm519, %v8476, 0
        %v8613 = vsel %vm519, %v8477, 0
        %v8616 = vsel %vm519, %v8478, 0
        %v8619 = vsel %vm519, %v8479, 0
        %v8622 = vsel %vm519, %v8480, 0
        %v8625 = vsel %vm519, %v8481, 0
        %v8628 = vsel %vm519, %v8482, 0
        %v8631 = vsel %vm519, %v8483, 0
        %v8634 = vsel %vm519, %v8484, 0
        %v8637 = vsel %vm519, %v8485, 0
        %v8640 = vsel %vm519, %v8486, 0
        %v8643 = vsel %vm519, %v8487, 0
        %v8646 = vsel %vm519, %v8488, 0
        %v8649 = vsel %vm519, %v8489, 0
        %v8652 = vsel %vm519, %v8490, 0
        %v8655 = vsel %vm519, %v8491, 0
        %v8658 = vsel %vm519, %v8492, 0
        %v8661 = vsel %vm519, %v8493, 0
        %v8664 = vsel %vm519, %v8494, 0
        %v8667 = vsel %vm519, %v8495, 0
        %v8670 = vsel %vm519, %v8496, 0
        %v8673 = vsel %vm519, %v8497, 0
        %v8676 = vsel %vm519, %v8498, 0
        %v8679 = vsel %vm519, %v8499, 0
        %v8682 = vsel %vm519, %v8500, 0
        %v8685 = vsel %vm519, %v8501, 0
        %v8688 = vsel %vm519, %v8502, 0
        %v8691 = vsel %vm519, %v8503, 0
        %v8694 = vsel %vm519, %v8504, 0
        %v8697 = vsel %vm519, %v8505, 0
        %v8700 = vsel %vm519, %v8506, 0
        %v8703 = vsel %vm519, %v8507, 0
        %v8706 = vsel %vm519, %v8508, 0
        %v8709 = vsel %vm519, %v8509, 0
        %v8712 = vsel %vm519, %v8510, 0
        %v8715 = vsel %vm519, %v8511, 0
        %v8718 = vsel %vm519, %v8512, 0
        %v8721 = vsel %vm519, %v8513, 0
        %v8724 = vsel %vm519, %v8514, 0
        %v8727 = vsel %vm519, %v8515, 0
        %v8730 = vsel %vm519, %v8516, 0
        %v8733 = vsel %vm519, %v8517, 0
        %v8736 = vsel %vm519, %v8518, 0
        %v8739 = vsel %vm519, %v8519, 0
        %v8742 = vsel %vm519, %v8520, 0
        %v8745 = vsel %vm519, %v8521, 0
        %v8748 = vsel %vm519, %v8522, 0
        %v8751 = vsel %vm519, %v8523, 0
        %v8754 = vsel %vm519, %v8524, 0
        %v8757 = vsel %vm519, %v8525, 0
        %v8760 = vsel %vm519, %v8526, 0
        %v8763 = vsel %vm519, %v8527, 0
        %v8766 = vsel %vm519, %v8528, 0
        %v8769 = vsel %vm3166, %v8530, 0
        %8771 = vmatprep.subr.mxu0 0.0
        %8772 = vmatpush1.msra.mxu0 0.0
        %8773 = vmatprep.subr.mxu0 0.0
        %8774 = vmatpush1.msra.mxu0 0.0
        %8775 = vmatprep.subr.mxu0 0.0
        %8776 = vmatpush1.msra.mxu0 0.0
        %8777 = vmatprep.subr.mxu0 0.0
        %8778 = vmatpush1.msra.mxu0 0.0
        %8779 = vmatprep.subr.mxu0 0.0
        %8780 = vmatpush1.msra.mxu0 0.0
        %8781 = vmatprep.subr.mxu0 0.0
        %8782 = vmatpush1.msra.mxu0 0.0
        %8783 = vmatprep.subr.mxu0 0.0
        %8784 = vmatpush1.msra.mxu0 0.0
        %8785 = vmatprep.subr.mxu0 0.0
        %8786 = vmatpush1.msra.mxu0 0.0
        %8787 = vmatprep.subr.mxu0 0.0
        %8788 = vmatpush1.msra.mxu0 0.0
        %8789 = vmatprep.subr.mxu0 0.0
        %8790 = vmatpush1.msra.mxu0 0.0
        %8791 = vmatprep.subr.mxu0 0.0
        %8792 = vmatpush1.msra.mxu0 0.0
        %8793 = vmatprep.subr.mxu0 0.0
        %8794 = vmatpush1.msra.mxu0 0.0
        %8795 = vmatprep.subr.mxu0 0.0
        %8796 = vmatpush1.msra.mxu0 0.0
        %8797 = vmatprep.subr.mxu0 0.0
        %8798 = vmatpush1.msra.mxu0 0.0
        %8799 = vmatprep.subr.mxu0 0.0
        %8800 = vmatpush1.msra.mxu0 0.0
        %8801 = vmatprep.subr.mxu0 0.0
        %8802 = vmatpush1.msra.mxu0 %v8769
        %8803 = vmatprep.subr.mxu0 0.0
        %8804 = vmatpush2.msra.mxu0 0.0
        %8805 = vmatprep.subr.mxu0 0.0
        %8806 = vmatpush2.msra.mxu0 0.0
        %8807 = vmatprep.subr.mxu0 0.0
        %8808 = vmatpush2.msra.mxu0 0.0
        %8809 = vmatprep.subr.mxu0 0.0
        %8810 = vmatpush2.msra.mxu0 0.0
        %8811 = vmatprep.subr.mxu0 0.0
        %8812 = vmatpush2.msra.mxu0 0.0
        %8813 = vmatprep.subr.mxu0 0.0
        %8814 = vmatpush2.msra.mxu0 0.0
        %8815 = vmatprep.subr.mxu0 0.0
        %8816 = vmatpush2.msra.mxu0 0.0
        %8817 = vmatprep.subr.mxu0 0.0
        %8818 = vmatpush2.msra.mxu0 0.0
        %8819 = vmatprep.subr.mxu0 0.0
        %8820 = vmatpush2.msra.mxu0 0.0
        %8821 = vmatprep.subr.mxu0 0.0
        %8822 = vmatpush2.msra.mxu0 0.0
        %8823 = vmatprep.subr.mxu0 0.0
        %8824 = vmatpush2.msra.mxu0 0.0
        %8825 = vmatprep.subr.mxu0 0.0
        %8826 = vmatpush2.msra.mxu0 0.0
        %8827 = vmatprep.subr.mxu0 0.0
        %8828 = vmatpush2.msra.mxu0 0.0
        %8829 = vmatprep.subr.mxu0 0.0
        %8830 = vmatpush2.msra.mxu0 0.0
        %8831 = vmatprep.subr.mxu0 0.0
        %8832 = vmatpush2.msra.mxu0 0.0
        %8833 = vmatprep.subr.mxu0 0.0
        %8834 = vmatpush2.msra.mxu0 0.0
        %8835 = vmatprep.mubr.f32.mxu0 0.0
        %8836 = vmatmul.mubr.f32.gmra.mxu0 %v8532
        %v8837 = vpop.f32.mrf.mxu0
        %v8838 = vadd.f32 0.0, %v8837
        %v8839 = vpop.f32.mrf.mxu0
        %8840 = vmatprep.mubr.f32.mxu0 0.0
        %8841 = vmatmul.mubr.f32.gmra.mxu0 %v8535
        %v8842 = vpop.f32.mrf.mxu0
        %v8843 = vadd.f32 0.0, %v8842
        %v8844 = vpop.f32.mrf.mxu0
        %8845 = vmatprep.mubr.f32.mxu0 0.0
        %8846 = vmatmul.mubr.f32.gmra.mxu0 %v8538
        %v8847 = vpop.f32.mrf.mxu0
        %v8848 = vadd.f32 0.0, %v8847
        %v8849 = vpop.f32.mrf.mxu0
        %8850 = vmatprep.mubr.f32.mxu0 0.0
        %8851 = vmatmul.mubr.f32.gmra.mxu0 %v8541
        %v8852 = vpop.f32.mrf.mxu0
        %v8853 = vadd.f32 0.0, %v8852
        %v8854 = vpop.f32.mrf.mxu0
        %8855 = vmatprep.mubr.f32.mxu0 0.0
        %8856 = vmatmul.mubr.f32.gmra.mxu0 %v8544
        %v8857 = vpop.f32.mrf.mxu0
        %v8858 = vpop.f32.mrf.mxu0
        %8859 = vmatprep.mubr.f32.mxu0 0.0
        %8860 = vmatmul.mubr.f32.gmra.mxu0 %v8547
        %v8861 = vpop.f32.mrf.mxu0
        %v8862 = vadd.f32 0.0, %v8861
        %v8863 = vpop.f32.mrf.mxu0
        %8864 = vmatprep.mubr.f32.mxu0 0.0
        %8865 = vmatmul.mubr.f32.gmra.mxu0 %v8550
        %v8866 = vpop.f32.mrf.mxu0
        %v8867 = vadd.f32 0.0, %v8866
        %v8868 = vpop.f32.mrf.mxu0
        %8869 = vmatprep.mubr.f32.mxu0 0.0
        %8870 = vmatmul.mubr.f32.gmra.mxu0 %v8553
        %v8871 = vpop.f32.mrf.mxu0
        %v8872 = vadd.f32 0.0, %v8871
        %v8873 = vpop.f32.mrf.mxu0
        %8874 = vmatprep.mubr.f32.mxu0 0.0
        %8875 = vmatmul.mubr.f32.gmra.mxu0 %v8556
        %v8876 = vpop.f32.mrf.mxu0
        %v8877 = vadd.f32 0.0, %v8876
        %v8878 = vpop.f32.mrf.mxu0
        %8879 = vmatprep.mubr.f32.mxu0 0.0
        %8880 = vmatmul.mubr.f32.gmra.mxu0 %v8559
        %v8881 = vpop.f32.mrf.mxu0
        %v8882 = vpop.f32.mrf.mxu0
        %8883 = vmatprep.mubr.f32.mxu0 0.0
        %8884 = vmatmul.mubr.f32.gmra.mxu0 %v8562
        %v8885 = vpop.f32.mrf.mxu0
        %v8886 = vadd.f32 0.0, %v8885
        %v8887 = vpop.f32.mrf.mxu0
        %8888 = vmatprep.mubr.f32.mxu0 0.0
        %8889 = vmatmul.mubr.f32.gmra.mxu0 %v8565
        %v8890 = vpop.f32.mrf.mxu0
        %v8891 = vadd.f32 0.0, %v8890
        %v8892 = vpop.f32.mrf.mxu0
        %8893 = vmatprep.mubr.f32.mxu0 0.0
        %8894 = vmatmul.mubr.f32.gmra.mxu0 %v8568
        %v8895 = vpop.f32.mrf.mxu0
        %v8896 = vadd.f32 0.0, %v8895
        %v8897 = vpop.f32.mrf.mxu0
        %8898 = vmatprep.mubr.f32.mxu0 0.0
        %8899 = vmatmul.mubr.f32.gmra.mxu0 %v8571
        %v8900 = vpop.f32.mrf.mxu0
        %v8901 = vadd.f32 0.0, %v8900
        %v8902 = vpop.f32.mrf.mxu0
        %8903 = vmatprep.mubr.f32.mxu0 0.0
        %8904 = vmatmul.mubr.f32.gmra.mxu0 %v8574
        %v8905 = vpop.f32.mrf.mxu0
        %v8906 = vpop.f32.mrf.mxu0
        %8907 = vmatprep.mubr.f32.mxu0 0.0
        %8908 = vmatmul.mubr.f32.gmra.mxu0 %v8577
        %v8909 = vpop.f32.mrf.mxu0
        %v8910 = vadd.f32 0.0, %v8909
        %v8911 = vpop.f32.mrf.mxu0
        %8912 = vmatprep.mubr.f32.mxu0 0.0
        %8913 = vmatmul.mubr.f32.gmra.mxu0 %v8580
        %v8914 = vpop.f32.mrf.mxu0
        %v8915 = vadd.f32 0.0, %v8914
        %v8916 = vpop.f32.mrf.mxu0
        %8917 = vmatprep.mubr.f32.mxu0 0.0
        %8918 = vmatmul.mubr.f32.gmra.mxu0 %v8583
        %v8919 = vpop.f32.mrf.mxu0
        %v8920 = vadd.f32 0.0, %v8919
        %v8921 = vpop.f32.mrf.mxu0
        %8922 = vmatprep.mubr.f32.mxu0 0.0
        %8923 = vmatmul.mubr.f32.gmra.mxu0 %v8586
        %v8924 = vpop.f32.mrf.mxu0
        %v8925 = vadd.f32 0.0, %v8924
        %v8926 = vpop.f32.mrf.mxu0
        %8927 = vmatprep.mubr.f32.mxu0 0.0
        %8928 = vmatmul.mubr.f32.gmra.mxu0 %v8589
        %v8929 = vpop.f32.mrf.mxu0
        %v8930 = vpop.f32.mrf.mxu0
        %8931 = vmatprep.mubr.f32.mxu0 0.0
        %8932 = vmatmul.mubr.f32.gmra.mxu0 %v8592
        %v8933 = vpop.f32.mrf.mxu0
        %v8934 = vadd.f32 0.0, %v8933
        %v8935 = vpop.f32.mrf.mxu0
        %8936 = vmatprep.mubr.f32.mxu0 0.0
        %8937 = vmatmul.mubr.f32.gmra.mxu0 %v8595
        %v8938 = vpop.f32.mrf.mxu0
        %v8939 = vadd.f32 0.0, %v8938
        %v8940 = vpop.f32.mrf.mxu0
        %8941 = vmatprep.mubr.f32.mxu0 0.0
        %8942 = vmatmul.mubr.f32.gmra.mxu0 %v8598
        %v8943 = vpop.f32.mrf.mxu0
        %v8944 = vadd.f32 0.0, %v8943
        %v8945 = vpop.f32.mrf.mxu0
        %8946 = vmatprep.mubr.f32.mxu0 0.0
        %8947 = vmatmul.mubr.f32.gmra.mxu0 %v8601
        %v8948 = vpop.f32.mrf.mxu0
        %v8949 = vadd.f32 0.0, %v8948
        %v8950 = vpop.f32.mrf.mxu0
        %8951 = vmatprep.mubr.f32.mxu0 0.0
        %8952 = vmatmul.mubr.f32.gmra.mxu0 %v8604
        %v8953 = vpop.f32.mrf.mxu0
        %v8954 = vpop.f32.mrf.mxu0
        %8955 = vmatprep.mubr.f32.mxu0 0.0
        %8956 = vmatmul.mubr.f32.gmra.mxu0 %v8607
        %v8957 = vpop.f32.mrf.mxu0
        %v8958 = vadd.f32 0.0, %v8957
        %v8959 = vpop.f32.mrf.mxu0
        %8960 = vmatprep.mubr.f32.mxu0 0.0
        %8961 = vmatmul.mubr.f32.gmra.mxu0 %v8610
        %v8962 = vpop.f32.mrf.mxu0
        %v8963 = vadd.f32 0.0, %v8962
        %v8964 = vpop.f32.mrf.mxu0
        %8965 = vmatprep.mubr.f32.mxu0 0.0
        %8966 = vmatmul.mubr.f32.gmra.mxu0 %v8613
        %v8967 = vpop.f32.mrf.mxu0
        %v8968 = vadd.f32 0.0, %v8967
        %v8969 = vpop.f32.mrf.mxu0
        %8970 = vmatprep.mubr.f32.mxu0 0.0
        %8971 = vmatmul.mubr.f32.gmra.mxu0 %v8616
        %v8972 = vpop.f32.mrf.mxu0
        %v8973 = vadd.f32 0.0, %v8972
        %v8974 = vpop.f32.mrf.mxu0
        %8975 = vmatprep.mubr.f32.mxu0 0.0
        %8976 = vmatmul.mubr.f32.gmra.mxu0 %v8619
        %v8977 = vpop.f32.mrf.mxu0
        %v8978 = vpop.f32.mrf.mxu0
        %8979 = vmatprep.mubr.f32.mxu0 0.0
        %8980 = vmatmul.mubr.f32.gmra.mxu0 %v8622
        %v8981 = vpop.f32.mrf.mxu0
        %v8982 = vadd.f32 0.0, %v8981
        %v8983 = vpop.f32.mrf.mxu0
        %8984 = vmatprep.mubr.f32.mxu0 0.0
        %8985 = vmatmul.mubr.f32.gmra.mxu0 %v8625
        %v8986 = vpop.f32.mrf.mxu0
        %v8987 = vadd.f32 0.0, %v8986
        %v8988 = vpop.f32.mrf.mxu0
        %8989 = vmatprep.mubr.f32.mxu0 0.0
        %8990 = vmatmul.mubr.f32.gmra.mxu0 %v8628
        %v8991 = vpop.f32.mrf.mxu0
        %v8992 = vadd.f32 0.0, %v8991
        %v8993 = vpop.f32.mrf.mxu0
        %8994 = vmatprep.mubr.f32.mxu0 0.0
        %8995 = vmatmul.mubr.f32.gmra.mxu0 %v8631
        %v8996 = vpop.f32.mrf.mxu0
        %v8997 = vadd.f32 0.0, %v8996
        %v8998 = vpop.f32.mrf.mxu0
        %8999 = vmatprep.mubr.f32.mxu0 0.0
        %9000 = vmatmul.mubr.f32.gmra.mxu0 %v8634
        %v9001 = vpop.f32.mrf.mxu0
        %v9002 = vpop.f32.mrf.mxu0
        %9003 = vmatprep.mubr.f32.mxu0 0.0
        %9004 = vmatmul.mubr.f32.gmra.mxu0 %v8637
        %v9005 = vpop.f32.mrf.mxu0
        %v9006 = vadd.f32 0.0, %v9005
        %v9007 = vpop.f32.mrf.mxu0
        %9008 = vmatprep.mubr.f32.mxu0 0.0
        %9009 = vmatmul.mubr.f32.gmra.mxu0 %v8640
        %v9010 = vpop.f32.mrf.mxu0
        %v9011 = vadd.f32 0.0, %v9010
        %v9012 = vpop.f32.mrf.mxu0
        %9013 = vmatprep.mubr.f32.mxu0 0.0
        %9014 = vmatmul.mubr.f32.gmra.mxu0 %v8643
        %v9015 = vpop.f32.mrf.mxu0
        %v9016 = vadd.f32 0.0, %v9015
        %v9017 = vpop.f32.mrf.mxu0
        %9018 = vmatprep.mubr.f32.mxu0 0.0
        %9019 = vmatmul.mubr.f32.gmra.mxu0 %v8646
        %v9020 = vpop.f32.mrf.mxu0
        %v9021 = vadd.f32 0.0, %v9020
        %v9022 = vpop.f32.mrf.mxu0
        %9023 = vmatprep.mubr.f32.mxu0 0.0
        %9024 = vmatmul.mubr.f32.gmra.mxu0 %v8649
        %v9025 = vpop.f32.mrf.mxu0
        %v9026 = vpop.f32.mrf.mxu0
        %9027 = vmatprep.mubr.f32.mxu0 0.0
        %9028 = vmatmul.mubr.f32.gmra.mxu0 %v8652
        %v9029 = vpop.f32.mrf.mxu0
        %v9030 = vadd.f32 0.0, %v9029
        %v9031 = vpop.f32.mrf.mxu0
        %9032 = vmatprep.mubr.f32.mxu0 0.0
        %9033 = vmatmul.mubr.f32.gmra.mxu0 %v8655
        %v9034 = vpop.f32.mrf.mxu0
        %v9035 = vadd.f32 0.0, %v9034
        %v9036 = vpop.f32.mrf.mxu0
        %9037 = vmatprep.mubr.f32.mxu0 0.0
        %9038 = vmatmul.mubr.f32.gmra.mxu0 %v8658
        %v9039 = vpop.f32.mrf.mxu0
        %v9040 = vadd.f32 0.0, %v9039
        %v9041 = vpop.f32.mrf.mxu0
        %9042 = vmatprep.mubr.f32.mxu0 0.0
        %9043 = vmatmul.mubr.f32.gmra.mxu0 %v8661
        %v9044 = vpop.f32.mrf.mxu0
        %v9045 = vadd.f32 0.0, %v9044
        %v9046 = vpop.f32.mrf.mxu0
        %9047 = vmatprep.mubr.f32.mxu0 0.0
        %9048 = vmatmul.mubr.f32.gmra.mxu0 %v8664
        %v9049 = vpop.f32.mrf.mxu0
        %v9050 = vpop.f32.mrf.mxu0
        %9051 = vmatprep.mubr.f32.mxu0 0.0
        %9052 = vmatmul.mubr.f32.gmra.mxu0 %v8667
        %v9053 = vpop.f32.mrf.mxu0
        %v9054 = vadd.f32 0.0, %v9053
        %v9055 = vpop.f32.mrf.mxu0
        %9056 = vmatprep.mubr.f32.mxu0 0.0
        %9057 = vmatmul.mubr.f32.gmra.mxu0 %v8670
        %v9058 = vpop.f32.mrf.mxu0
        %v9059 = vadd.f32 0.0, %v9058
        %v9060 = vpop.f32.mrf.mxu0
        %9061 = vmatprep.mubr.f32.mxu0 0.0
        %9062 = vmatmul.mubr.f32.gmra.mxu0 %v8673
        %v9063 = vpop.f32.mrf.mxu0
        %v9064 = vadd.f32 0.0, %v9063
        %v9065 = vpop.f32.mrf.mxu0
        %9066 = vmatprep.mubr.f32.mxu0 0.0
        %9067 = vmatmul.mubr.f32.gmra.mxu0 %v8676
        %v9068 = vpop.f32.mrf.mxu0
        %v9069 = vadd.f32 0.0, %v9068
        %v9070 = vpop.f32.mrf.mxu0
        %9071 = vmatprep.mubr.f32.mxu0 0.0
        %9072 = vmatmul.mubr.f32.gmra.mxu0 %v8679
        %v9073 = vpop.f32.mrf.mxu0
        %v9074 = vpop.f32.mrf.mxu0
        %9075 = vmatprep.mubr.f32.mxu0 0.0
        %9076 = vmatmul.mubr.f32.gmra.mxu0 %v8682
        %v9077 = vpop.f32.mrf.mxu0
        %v9078 = vadd.f32 0.0, %v9077
        %v9079 = vpop.f32.mrf.mxu0
        %9080 = vmatprep.mubr.f32.mxu0 0.0
        %9081 = vmatmul.mubr.f32.gmra.mxu0 %v8685
        %v9082 = vpop.f32.mrf.mxu0
        %v9083 = vadd.f32 0.0, %v9082
        %v9084 = vpop.f32.mrf.mxu0
        %9085 = vmatprep.mubr.f32.mxu0 0.0
        %9086 = vmatmul.mubr.f32.gmra.mxu0 %v8688
        %v9087 = vpop.f32.mrf.mxu0
        %v9088 = vadd.f32 0.0, %v9087
        %v9089 = vpop.f32.mrf.mxu0
        %9090 = vmatprep.mubr.f32.mxu0 0.0
        %9091 = vmatmul.mubr.f32.gmra.mxu0 %v8691
        %v9092 = vpop.f32.mrf.mxu0
        %v9093 = vadd.f32 0.0, %v9092
        %v9094 = vpop.f32.mrf.mxu0
        %9095 = vmatprep.mubr.f32.mxu0 0.0
        %9096 = vmatmul.mubr.f32.gmra.mxu0 %v8694
        %v9097 = vpop.f32.mrf.mxu0
        %v9098 = vpop.f32.mrf.mxu0
        %9099 = vmatprep.mubr.f32.mxu0 0.0
        %9100 = vmatmul.mubr.f32.gmra.mxu0 %v8697
        %v9101 = vpop.f32.mrf.mxu0
        %v9102 = vadd.f32 0.0, %v9101
        %v9103 = vpop.f32.mrf.mxu0
        %9104 = vmatprep.mubr.f32.mxu0 0.0
        %9105 = vmatmul.mubr.f32.gmra.mxu0 %v8700
        %v9106 = vpop.f32.mrf.mxu0
        %v9107 = vadd.f32 0.0, %v9106
        %v9108 = vpop.f32.mrf.mxu0
        %9109 = vmatprep.mubr.f32.mxu0 0.0
        %9110 = vmatmul.mubr.f32.gmra.mxu0 %v8703
        %v9111 = vpop.f32.mrf.mxu0
        %v9112 = vadd.f32 0.0, %v9111
        %v9113 = vpop.f32.mrf.mxu0
        %9114 = vmatprep.mubr.f32.mxu0 0.0
        %9115 = vmatmul.mubr.f32.gmra.mxu0 %v8706
        %v9116 = vpop.f32.mrf.mxu0
        %v9117 = vadd.f32 0.0, %v9116
        %v9118 = vpop.f32.mrf.mxu0
        %9119 = vmatprep.mubr.f32.mxu0 0.0
        %9120 = vmatmul.mubr.f32.gmra.mxu0 %v8709
        %v9121 = vpop.f32.mrf.mxu0
        %v9122 = vpop.f32.mrf.mxu0
        %9123 = vmatprep.mubr.f32.mxu0 0.0
        %9124 = vmatmul.mubr.f32.gmra.mxu0 %v8712
        %v9125 = vpop.f32.mrf.mxu0
        %v9126 = vadd.f32 0.0, %v9125
        %v9127 = vpop.f32.mrf.mxu0
        %9128 = vmatprep.mubr.f32.mxu0 0.0
        %9129 = vmatmul.mubr.f32.gmra.mxu0 %v8715
        %v9130 = vpop.f32.mrf.mxu0
        %v9131 = vadd.f32 0.0, %v9130
        %v9132 = vpop.f32.mrf.mxu0
        %9133 = vmatprep.mubr.f32.mxu0 0.0
        %9134 = vmatmul.mubr.f32.gmra.mxu0 %v8718
        %v9135 = vpop.f32.mrf.mxu0
        %v9136 = vadd.f32 0.0, %v9135
        %v9137 = vpop.f32.mrf.mxu0
        %9138 = vmatprep.mubr.f32.mxu0 0.0
        %9139 = vmatmul.mubr.f32.gmra.mxu0 %v8721
        %v9140 = vpop.f32.mrf.mxu0
        %v9141 = vadd.f32 0.0, %v9140
        %v9142 = vpop.f32.mrf.mxu0
        %9143 = vmatprep.mubr.f32.mxu0 0.0
        %9144 = vmatmul.mubr.f32.gmra.mxu0 %v8724
        %v9145 = vpop.f32.mrf.mxu0
        %v9146 = vpop.f32.mrf.mxu0
        %9147 = vmatprep.mubr.f32.mxu0 0.0
        %9148 = vmatmul.mubr.f32.gmra.mxu0 %v8727
        %v9149 = vpop.f32.mrf.mxu0
        %v9150 = vadd.f32 0.0, %v9149
        %v9151 = vpop.f32.mrf.mxu0
        %9152 = vmatprep.mubr.f32.mxu0 0.0
        %9153 = vmatmul.mubr.f32.gmra.mxu0 %v8730
        %v9154 = vpop.f32.mrf.mxu0
        %v9155 = vadd.f32 0.0, %v9154
        %v9156 = vpop.f32.mrf.mxu0
        %9157 = vmatprep.mubr.f32.mxu0 0.0
        %9158 = vmatmul.mubr.f32.gmra.mxu0 %v8733
        %v9159 = vpop.f32.mrf.mxu0
        %v9160 = vadd.f32 0.0, %v9159
        %v9161 = vpop.f32.mrf.mxu0
        %9162 = vmatprep.mubr.f32.mxu0 0.0
        %9163 = vmatmul.mubr.f32.gmra.mxu0 %v8736
        %v9164 = vpop.f32.mrf.mxu0
        %v9165 = vadd.f32 0.0, %v9164
        %v9166 = vpop.f32.mrf.mxu0
        %9167 = vmatprep.mubr.f32.mxu0 0.0
        %9168 = vmatmul.mubr.f32.gmra.mxu0 %v8739
        %v9169 = vpop.f32.mrf.mxu0
        %v9170 = vpop.f32.mrf.mxu0
        %9171 = vmatprep.mubr.f32.mxu0 0.0
        %9172 = vmatmul.mubr.f32.gmra.mxu0 %v8742
        %v9173 = vpop.f32.mrf.mxu0
        %v9174 = vadd.f32 0.0, %v9173
        %v9175 = vpop.f32.mrf.mxu0
        %9176 = vmatprep.mubr.f32.mxu0 0.0
        %9177 = vmatmul.mubr.f32.gmra.mxu0 %v8745
        %v9178 = vpop.f32.mrf.mxu0
        %v9179 = vadd.f32 0.0, %v9178
        %v9180 = vpop.f32.mrf.mxu0
        %9181 = vmatprep.mubr.f32.mxu0 0.0
        %9182 = vmatmul.mubr.f32.gmra.mxu0 %v8748
        %v9183 = vpop.f32.mrf.mxu0
        %v9184 = vadd.f32 0.0, %v9183
        %v9185 = vpop.f32.mrf.mxu0
        %9186 = vmatprep.mubr.f32.mxu0 0.0
        %9187 = vmatmul.mubr.f32.gmra.mxu0 %v8751
        %v9188 = vpop.f32.mrf.mxu0
        %v9189 = vadd.f32 0.0, %v9188
        %v9190 = vpop.f32.mrf.mxu0
        %9191 = vmatprep.mubr.f32.mxu0 0.0
        %9192 = vmatmul.mubr.f32.gmra.mxu0 %v8754
        %v9193 = vpop.f32.mrf.mxu0
        %v9194 = vpop.f32.mrf.mxu0
        %9195 = vmatprep.mubr.f32.mxu0 0.0
        %9196 = vmatmul.mubr.f32.gmra.mxu0 %v8757
        %v9197 = vpop.f32.mrf.mxu0
        %v9198 = vadd.f32 0.0, %v9197
        %v9199 = vpop.f32.mrf.mxu0
        %9200 = vmatprep.mubr.f32.mxu0 0.0
        %9201 = vmatmul.mubr.f32.gmra.mxu0 %v8760
        %v9202 = vpop.f32.mrf.mxu0
        %v9203 = vadd.f32 0.0, %v9202
        %v9204 = vpop.f32.mrf.mxu0
        %9205 = vmatprep.mubr.f32.mxu0 0.0
        %9206 = vmatmul.mubr.f32.gmra.mxu0 %v8763
        %v9207 = vpop.f32.mrf.mxu0
        %v9208 = vadd.f32 0.0, %v9207
        %v9209 = vpop.f32.mrf.mxu0
        %9210 = vmatprep.mubr.f32.mxu0 0.0
        %9211 = vmatmul.mubr.f32.gmra.mxu0 %v8766
        %v9212 = vpop.f32.mrf.mxu0
        %v9213 = vadd.f32 0.0, %v9212
        %v9214 = vpop.f32.mrf.mxu0
        %9215 = vdwg.mxu0
        %v9216 = vadd.f32 %v8386, %v8838
        %v9217 = vadd.f32 %v8387, %v8843
        %v9218 = vadd.f32 %v8388, %v8848
        %v9219 = vadd.f32 %v8389, %v8853
        %v9220 = vadd.f32 %v8390, %v8862
        %v9221 = vadd.f32 %v8391, %v8867
        %v9222 = vadd.f32 %v8392, %v8872
        %v9223 = vadd.f32 %v8393, %v8877
        %v9224 = vadd.f32 %v8394, %v8886
        %v9225 = vadd.f32 %v8395, %v8891
        %v9226 = vadd.f32 %v8396, %v8896
        %v9227 = vadd.f32 %v8397, %v8901
        %v9228 = vadd.f32 %v8398, %v8910
        %v9229 = vadd.f32 %v8399, %v8915
        %v9230 = vadd.f32 %v8400, %v8920
        %v9231 = vadd.f32 %v8401, %v8925
        %v9232 = vadd.f32 %v8402, %v8934
        %v9233 = vadd.f32 %v8403, %v8939
        %v9234 = vadd.f32 %v8404, %v8944
        %v9235 = vadd.f32 %v8405, %v8949
        %v9236 = vadd.f32 %v8406, %v8958
        %v9237 = vadd.f32 %v8407, %v8963
        %v9238 = vadd.f32 %v8408, %v8968
        %v9239 = vadd.f32 %v8409, %v8973
        %v9240 = vadd.f32 %v8410, %v8982
        %v9241 = vadd.f32 %v8411, %v8987
        %v9242 = vadd.f32 %v8412, %v8992
        %v9243 = vadd.f32 %v8413, %v8997
        %v9244 = vadd.f32 %v8414, %v9006
        %v9245 = vadd.f32 %v8415, %v9011
        %v9246 = vadd.f32 %v8416, %v9016
        %v9247 = vadd.f32 %v8417, %v9021
        %v9248 = vadd.f32 %v8418, %v9030
        %v9249 = vadd.f32 %v8419, %v9035
        %v9250 = vadd.f32 %v8420, %v9040
        %v9251 = vadd.f32 %v8421, %v9045
        %v9252 = vadd.f32 %v8422, %v9054
        %v9253 = vadd.f32 %v8423, %v9059
        %v9254 = vadd.f32 %v8424, %v9064
        %v9255 = vadd.f32 %v8425, %v9069
        %v9256 = vadd.f32 %v8426, %v9078
        %v9257 = vadd.f32 %v8427, %v9083
        %v9258 = vadd.f32 %v8428, %v9088
        %v9259 = vadd.f32 %v8429, %v9093
        %v9260 = vadd.f32 %v8430, %v9102
        %v9261 = vadd.f32 %v8431, %v9107
        %v9262 = vadd.f32 %v8432, %v9112
        %v9263 = vadd.f32 %v8433, %v9117
        %v9264 = vadd.f32 %v8434, %v9126
        %v9265 = vadd.f32 %v8435, %v9131
        %v9266 = vadd.f32 %v8436, %v9136
        %v9267 = vadd.f32 %v8437, %v9141
        %v9268 = vadd.f32 %v8438, %v9150
        %v9269 = vadd.f32 %v8439, %v9155
        %v9270 = vadd.f32 %v8440, %v9160
        %v9271 = vadd.f32 %v8441, %v9165
        %v9272 = vadd.f32 %v8442, %v9174
        %v9273 = vadd.f32 %v8443, %v9179
        %v9274 = vadd.f32 %v8444, %v9184
        %v9275 = vadd.f32 %v8445, %v9189
        %v9276 = vadd.f32 %v8446, %v9198
        %v9277 = vadd.f32 %v8447, %v9203
        %v9278 = vadd.f32 %v8448, %v9208
        %v9279 = vadd.f32 %v8449, %v9213
        %v9280 = vld [vmem:[#allocation2 + $0x52] sm:$0xff]
        %v9281 = vld [vmem:[#allocation2 + $0x5a] sm:$0xff]
        %v9282 = vld [vmem:[#allocation2 + $0x62] sm:$0xff]
        %v9283 = vld [vmem:[#allocation2 + $0x6a] sm:$0xff]
        %v9284 = vld [vmem:[#allocation2 + $0x72] sm:$0xff]
        %v9285 = vld [vmem:[#allocation2 + $0x7a] sm:$0xff]
        %v9286 = vld [vmem:[#allocation2 + $0x82] sm:$0xff]
        %v9287 = vld [vmem:[#allocation2 + $0x8a] sm:$0xff]
        %v9288 = vld [vmem:[#allocation2 + $0x92] sm:$0xff]
        %v9289 = vld [vmem:[#allocation2 + $0x9a] sm:$0xff]
        %v9290 = vld [vmem:[#allocation2 + $0xa2] sm:$0xff]
        %v9291 = vld [vmem:[#allocation2 + $0xaa] sm:$0xff]
        %v9292 = vld [vmem:[#allocation2 + $0xb2] sm:$0xff]
        %v9293 = vld [vmem:[#allocation2 + $0xba] sm:$0xff]
        %v9294 = vld [vmem:[#allocation2 + $0xc2] sm:$0xff]
        %v9295 = vld [vmem:[#allocation2 + $0xca] sm:$0xff]
        %v9296 = vld [vmem:[#allocation2 + $0xd2] sm:$0xff]
        %v9297 = vld [vmem:[#allocation2 + $0xda] sm:$0xff]
        %v9298 = vld [vmem:[#allocation2 + $0xe2] sm:$0xff]
        %v9299 = vld [vmem:[#allocation2 + $0xea] sm:$0xff]
        %v9300 = vld [vmem:[#allocation2 + $0xf2] sm:$0xff]
        %v9301 = vld [vmem:[#allocation2 + $0xfa] sm:$0xff]
        %v9302 = vld [vmem:[#allocation2 + $0x102] sm:$0xff]
        %v9303 = vld [vmem:[#allocation2 + $0x10a] sm:$0xff]
        %v9304 = vld [vmem:[#allocation2 + $0x112] sm:$0xff]
        %v9305 = vld [vmem:[#allocation2 + $0x11a] sm:$0xff]
        %v9306 = vld [vmem:[#allocation2 + $0x122] sm:$0xff]
        %v9307 = vld [vmem:[#allocation2 + $0x12a] sm:$0xff]
        %v9308 = vld [vmem:[#allocation2 + $0x132] sm:$0xff]
        %v9309 = vld [vmem:[#allocation2 + $0x13a] sm:$0xff]
        %v9310 = vld [vmem:[#allocation2 + $0x142] sm:$0xff]
        %v9311 = vld [vmem:[#allocation2 + $0x14a] sm:$0xff]
        %v9312 = vld [vmem:[#allocation2 + $0x152] sm:$0xff]
        %v9313 = vld [vmem:[#allocation2 + $0x15a] sm:$0xff]
        %v9314 = vld [vmem:[#allocation2 + $0x162] sm:$0xff]
        %v9315 = vld [vmem:[#allocation2 + $0x16a] sm:$0xff]
        %v9316 = vld [vmem:[#allocation2 + $0x172] sm:$0xff]
        %v9317 = vld [vmem:[#allocation2 + $0x17a] sm:$0xff]
        %v9318 = vld [vmem:[#allocation2 + $0x182] sm:$0xff]
        %v9319 = vld [vmem:[#allocation2 + $0x18a] sm:$0xff]
        %v9320 = vld [vmem:[#allocation2 + $0x192] sm:$0xff]
        %v9321 = vld [vmem:[#allocation2 + $0x19a] sm:$0xff]
        %v9322 = vld [vmem:[#allocation2 + $0x1a2] sm:$0xff]
        %v9323 = vld [vmem:[#allocation2 + $0x1aa] sm:$0xff]
        %v9324 = vld [vmem:[#allocation2 + $0x1b2] sm:$0xff]
        %v9325 = vld [vmem:[#allocation2 + $0x1ba] sm:$0xff]
        %v9326 = vld [vmem:[#allocation2 + $0x1c2] sm:$0xff]
        %v9327 = vld [vmem:[#allocation2 + $0x1ca] sm:$0xff]
        %v9328 = vld [vmem:[#allocation2 + $0x1d2] sm:$0xff]
        %v9329 = vld [vmem:[#allocation2 + $0x1da] sm:$0xff]
        %v9330 = vld [vmem:[#allocation2 + $0x1e2] sm:$0xff]
        %v9331 = vld [vmem:[#allocation2 + $0x1ea] sm:$0xff]
        %v9332 = vld [vmem:[#allocation2 + $0x1f2] sm:$0xff]
        %v9333 = vld [vmem:[#allocation2 + $0x1fa] sm:$0xff]
        %v9334 = vld [vmem:[#allocation2 + $0x202] sm:$0xff]
        %v9335 = vld [vmem:[#allocation2 + $0x20a] sm:$0xff]
        %v9336 = vld [vmem:[#allocation2 + $0x212] sm:$0xff]
        %v9337 = vld [vmem:[#allocation2 + $0x21a] sm:$0xff]
        %v9338 = vld [vmem:[#allocation2 + $0x222] sm:$0xff]
        %v9339 = vld [vmem:[#allocation2 + $0x22a] sm:$0xff]
        %v9340 = vld [vmem:[#allocation2 + $0x232] sm:$0xff]
        %v9341 = vld [vmem:[#allocation2 + $0x23a] sm:$0xff]
        %v9342 = vld [vmem:[#allocation2 + $0x242] sm:$0xff]
        %v9343 = vld [vmem:[#allocation2 + $0x24a] sm:$0xff]
        %v9344 = vld [vmem:[#allocation2 + $0x252] sm:$0xff]
        %v9345 = vld [vmem:[#allocation2 + $0x25a] sm:$0xff]
        %v9346 = vld [vmem:[#allocation2 + $0x262] sm:$0xff]
        %v9347 = vld [vmem:[#allocation2 + $0x26a] sm:$0xff]
        %v9348 = vld [vmem:[#allocation2 + $0x272] sm:$0xff]
        %v9349 = vld [vmem:[#allocation2 + $0x27a] sm:$0xff]
        %v9350 = vld [vmem:[#allocation2 + $0x282] sm:$0xff]
        %v9351 = vld [vmem:[#allocation2 + $0x28a] sm:$0xff]
        %v9352 = vld [vmem:[#allocation2 + $0x292] sm:$0xff]
        %v9353 = vld [vmem:[#allocation2 + $0x29a] sm:$0xff]
        %v9354 = vld [vmem:[#allocation2 + $0x2a2] sm:$0xff]
        %v9355 = vld [vmem:[#allocation2 + $0x2aa] sm:$0xff]
        %v9356 = vld [vmem:[#allocation2 + $0x2b2] sm:$0xff]
        %v9357 = vld [vmem:[#allocation2 + $0x2ba] sm:$0xff]
        %v9358 = vld [vmem:[#allocation2 + $0x2c2] sm:$0xff]
        %s9359 = scalar_lea.vmem %s5, 32
        %v9360 = vld [vmem:[%s9359] sm:$0xf]
        %v9362 = vsel %vm519, %v9280, 0
        %v9365 = vsel %vm519, %v9281, 0
        %v9368 = vsel %vm519, %v9282, 0
        %v9371 = vsel %vm519, %v9283, 0
        %v9374 = vsel %vm519, %v9284, 0
        %v9377 = vsel %vm519, %v9285, 0
        %v9380 = vsel %vm519, %v9286, 0
        %v9383 = vsel %vm519, %v9287, 0
        %v9386 = vsel %vm519, %v9288, 0
        %v9389 = vsel %vm519, %v9289, 0
        %v9392 = vsel %vm519, %v9290, 0
        %v9395 = vsel %vm519, %v9291, 0
        %v9398 = vsel %vm519, %v9292, 0
        %v9401 = vsel %vm519, %v9293, 0
        %v9404 = vsel %vm519, %v9294, 0
        %v9407 = vsel %vm519, %v9295, 0
        %v9410 = vsel %vm519, %v9296, 0
        %v9413 = vsel %vm519, %v9297, 0
        %v9416 = vsel %vm519, %v9298, 0
        %v9419 = vsel %vm519, %v9299, 0
        %v9422 = vsel %vm519, %v9300, 0
        %v9425 = vsel %vm519, %v9301, 0
        %v9428 = vsel %vm519, %v9302, 0
        %v9431 = vsel %vm519, %v9303, 0
        %v9434 = vsel %vm519, %v9304, 0
        %v9437 = vsel %vm519, %v9305, 0
        %v9440 = vsel %vm519, %v9306, 0
        %v9443 = vsel %vm519, %v9307, 0
        %v9446 = vsel %vm519, %v9308, 0
        %v9449 = vsel %vm519, %v9309, 0
        %v9452 = vsel %vm519, %v9310, 0
        %v9455 = vsel %vm519, %v9311, 0
        %v9458 = vsel %vm519, %v9312, 0
        %v9461 = vsel %vm519, %v9313, 0
        %v9464 = vsel %vm519, %v9314, 0
        %v9467 = vsel %vm519, %v9315, 0
        %v9470 = vsel %vm519, %v9316, 0
        %v9473 = vsel %vm519, %v9317, 0
        %v9476 = vsel %vm519, %v9318, 0
        %v9479 = vsel %vm519, %v9319, 0
        %v9482 = vsel %vm519, %v9320, 0
        %v9485 = vsel %vm519, %v9321, 0
        %v9488 = vsel %vm519, %v9322, 0
        %v9491 = vsel %vm519, %v9323, 0
        %v9494 = vsel %vm519, %v9324, 0
        %v9497 = vsel %vm519, %v9325, 0
        %v9500 = vsel %vm519, %v9326, 0
        %v9503 = vsel %vm519, %v9327, 0
        %v9506 = vsel %vm519, %v9328, 0
        %v9509 = vsel %vm519, %v9329, 0
        %v9512 = vsel %vm519, %v9330, 0
        %v9515 = vsel %vm519, %v9331, 0
        %v9518 = vsel %vm519, %v9332, 0
        %v9521 = vsel %vm519, %v9333, 0
        %v9524 = vsel %vm519, %v9334, 0
        %v9527 = vsel %vm519, %v9335, 0
        %v9530 = vsel %vm519, %v9336, 0
        %v9533 = vsel %vm519, %v9337, 0
        %v9536 = vsel %vm519, %v9338, 0
        %v9539 = vsel %vm519, %v9339, 0
        %v9542 = vsel %vm519, %v9340, 0
        %v9545 = vsel %vm519, %v9341, 0
        %v9548 = vsel %vm519, %v9342, 0
        %v9551 = vsel %vm519, %v9343, 0
        %v9554 = vsel %vm519, %v9344, 0
        %v9557 = vsel %vm519, %v9345, 0
        %v9560 = vsel %vm519, %v9346, 0
        %v9563 = vsel %vm519, %v9347, 0
        %v9566 = vsel %vm519, %v9348, 0
        %v9569 = vsel %vm519, %v9349, 0
        %v9572 = vsel %vm519, %v9350, 0
        %v9575 = vsel %vm519, %v9351, 0
        %v9578 = vsel %vm519, %v9352, 0
        %v9581 = vsel %vm519, %v9353, 0
        %v9584 = vsel %vm519, %v9354, 0
        %v9587 = vsel %vm519, %v9355, 0
        %v9590 = vsel %vm519, %v9356, 0
        %v9593 = vsel %vm519, %v9357, 0
        %v9596 = vsel %vm519, %v9358, 0
        %v9599 = vsel %vm3166, %v9360, 0
        %9601 = vmatprep.subr.mxu0 0.0
        %9602 = vmatpush1.msra.mxu0 0.0
        %9603 = vmatprep.subr.mxu0 0.0
        %9604 = vmatpush1.msra.mxu0 0.0
        %9605 = vmatprep.subr.mxu0 0.0
        %9606 = vmatpush1.msra.mxu0 0.0
        %9607 = vmatprep.subr.mxu0 0.0
        %9608 = vmatpush1.msra.mxu0 0.0
        %9609 = vmatprep.subr.mxu0 0.0
        %9610 = vmatpush1.msra.mxu0 0.0
        %9611 = vmatprep.subr.mxu0 0.0
        %9612 = vmatpush1.msra.mxu0 0.0
        %9613 = vmatprep.subr.mxu0 0.0
        %9614 = vmatpush1.msra.mxu0 0.0
        %9615 = vmatprep.subr.mxu0 0.0
        %9616 = vmatpush1.msra.mxu0 0.0
        %9617 = vmatprep.subr.mxu0 0.0
        %9618 = vmatpush1.msra.mxu0 0.0
        %9619 = vmatprep.subr.mxu0 0.0
        %9620 = vmatpush1.msra.mxu0 0.0
        %9621 = vmatprep.subr.mxu0 0.0
        %9622 = vmatpush1.msra.mxu0 0.0
        %9623 = vmatprep.subr.mxu0 0.0
        %9624 = vmatpush1.msra.mxu0 0.0
        %9625 = vmatprep.subr.mxu0 0.0
        %9626 = vmatpush1.msra.mxu0 0.0
        %9627 = vmatprep.subr.mxu0 0.0
        %9628 = vmatpush1.msra.mxu0 0.0
        %9629 = vmatprep.subr.mxu0 0.0
        %9630 = vmatpush1.msra.mxu0 0.0
        %9631 = vmatprep.subr.mxu0 0.0
        %9632 = vmatpush1.msra.mxu0 %v9599
        %9633 = vmatprep.subr.mxu0 0.0
        %9634 = vmatpush2.msra.mxu0 0.0
        %9635 = vmatprep.subr.mxu0 0.0
        %9636 = vmatpush2.msra.mxu0 0.0
        %9637 = vmatprep.subr.mxu0 0.0
        %9638 = vmatpush2.msra.mxu0 0.0
        %9639 = vmatprep.subr.mxu0 0.0
        %9640 = vmatpush2.msra.mxu0 0.0
        %9641 = vmatprep.subr.mxu0 0.0
        %9642 = vmatpush2.msra.mxu0 0.0
        %9643 = vmatprep.subr.mxu0 0.0
        %9644 = vmatpush2.msra.mxu0 0.0
        %9645 = vmatprep.subr.mxu0 0.0
        %9646 = vmatpush2.msra.mxu0 0.0
        %9647 = vmatprep.subr.mxu0 0.0
        %9648 = vmatpush2.msra.mxu0 0.0
        %9649 = vmatprep.subr.mxu0 0.0
        %9650 = vmatpush2.msra.mxu0 0.0
        %9651 = vmatprep.subr.mxu0 0.0
        %9652 = vmatpush2.msra.mxu0 0.0
        %9653 = vmatprep.subr.mxu0 0.0
        %9654 = vmatpush2.msra.mxu0 0.0
        %9655 = vmatprep.subr.mxu0 0.0
        %9656 = vmatpush2.msra.mxu0 0.0
        %9657 = vmatprep.subr.mxu0 0.0
        %9658 = vmatpush2.msra.mxu0 0.0
        %9659 = vmatprep.subr.mxu0 0.0
        %9660 = vmatpush2.msra.mxu0 0.0
        %9661 = vmatprep.subr.mxu0 0.0
        %9662 = vmatpush2.msra.mxu0 0.0
        %9663 = vmatprep.subr.mxu0 0.0
        %9664 = vmatpush2.msra.mxu0 0.0
        %9665 = vmatprep.mubr.f32.mxu0 0.0
        %9666 = vmatmul.mubr.f32.gmra.mxu0 %v9362
        %v9667 = vpop.f32.mrf.mxu0
        %v9668 = vadd.f32 0.0, %v9667
        %v9669 = vpop.f32.mrf.mxu0
        %9670 = vmatprep.mubr.f32.mxu0 0.0
        %9671 = vmatmul.mubr.f32.gmra.mxu0 %v9365
        %v9672 = vpop.f32.mrf.mxu0
        %v9673 = vadd.f32 0.0, %v9672
        %v9674 = vpop.f32.mrf.mxu0
        %9675 = vmatprep.mubr.f32.mxu0 0.0
        %9676 = vmatmul.mubr.f32.gmra.mxu0 %v9368
        %v9677 = vpop.f32.mrf.mxu0
        %v9678 = vadd.f32 0.0, %v9677
        %v9679 = vpop.f32.mrf.mxu0
        %9680 = vmatprep.mubr.f32.mxu0 0.0
        %9681 = vmatmul.mubr.f32.gmra.mxu0 %v9371
        %v9682 = vpop.f32.mrf.mxu0
        %v9683 = vadd.f32 0.0, %v9682
        %v9684 = vpop.f32.mrf.mxu0
        %9685 = vmatprep.mubr.f32.mxu0 0.0
        %9686 = vmatmul.mubr.f32.gmra.mxu0 %v9374
        %v9687 = vpop.f32.mrf.mxu0
        %v9688 = vpop.f32.mrf.mxu0
        %9689 = vmatprep.mubr.f32.mxu0 0.0
        %9690 = vmatmul.mubr.f32.gmra.mxu0 %v9377
        %v9691 = vpop.f32.mrf.mxu0
        %v9692 = vadd.f32 0.0, %v9691
        %v9693 = vpop.f32.mrf.mxu0
        %9694 = vmatprep.mubr.f32.mxu0 0.0
        %9695 = vmatmul.mubr.f32.gmra.mxu0 %v9380
        %v9696 = vpop.f32.mrf.mxu0
        %v9697 = vadd.f32 0.0, %v9696
        %v9698 = vpop.f32.mrf.mxu0
        %9699 = vmatprep.mubr.f32.mxu0 0.0
        %9700 = vmatmul.mubr.f32.gmra.mxu0 %v9383
        %v9701 = vpop.f32.mrf.mxu0
        %v9702 = vadd.f32 0.0, %v9701
        %v9703 = vpop.f32.mrf.mxu0
        %9704 = vmatprep.mubr.f32.mxu0 0.0
        %9705 = vmatmul.mubr.f32.gmra.mxu0 %v9386
        %v9706 = vpop.f32.mrf.mxu0
        %v9707 = vadd.f32 0.0, %v9706
        %v9708 = vpop.f32.mrf.mxu0
        %9709 = vmatprep.mubr.f32.mxu0 0.0
        %9710 = vmatmul.mubr.f32.gmra.mxu0 %v9389
        %v9711 = vpop.f32.mrf.mxu0
        %v9712 = vpop.f32.mrf.mxu0
        %9713 = vmatprep.mubr.f32.mxu0 0.0
        %9714 = vmatmul.mubr.f32.gmra.mxu0 %v9392
        %v9715 = vpop.f32.mrf.mxu0
        %v9716 = vadd.f32 0.0, %v9715
        %v9717 = vpop.f32.mrf.mxu0
        %9718 = vmatprep.mubr.f32.mxu0 0.0
        %9719 = vmatmul.mubr.f32.gmra.mxu0 %v9395
        %v9720 = vpop.f32.mrf.mxu0
        %v9721 = vadd.f32 0.0, %v9720
        %v9722 = vpop.f32.mrf.mxu0
        %9723 = vmatprep.mubr.f32.mxu0 0.0
        %9724 = vmatmul.mubr.f32.gmra.mxu0 %v9398
        %v9725 = vpop.f32.mrf.mxu0
        %v9726 = vadd.f32 0.0, %v9725
        %v9727 = vpop.f32.mrf.mxu0
        %9728 = vmatprep.mubr.f32.mxu0 0.0
        %9729 = vmatmul.mubr.f32.gmra.mxu0 %v9401
        %v9730 = vpop.f32.mrf.mxu0
        %v9731 = vadd.f32 0.0, %v9730
        %v9732 = vpop.f32.mrf.mxu0
        %9733 = vmatprep.mubr.f32.mxu0 0.0
        %9734 = vmatmul.mubr.f32.gmra.mxu0 %v9404
        %v9735 = vpop.f32.mrf.mxu0
        %v9736 = vpop.f32.mrf.mxu0
        %9737 = vmatprep.mubr.f32.mxu0 0.0
        %9738 = vmatmul.mubr.f32.gmra.mxu0 %v9407
        %v9739 = vpop.f32.mrf.mxu0
        %v9740 = vadd.f32 0.0, %v9739
        %v9741 = vpop.f32.mrf.mxu0
        %9742 = vmatprep.mubr.f32.mxu0 0.0
        %9743 = vmatmul.mubr.f32.gmra.mxu0 %v9410
        %v9744 = vpop.f32.mrf.mxu0
        %v9745 = vadd.f32 0.0, %v9744
        %v9746 = vpop.f32.mrf.mxu0
        %9747 = vmatprep.mubr.f32.mxu0 0.0
        %9748 = vmatmul.mubr.f32.gmra.mxu0 %v9413
        %v9749 = vpop.f32.mrf.mxu0
        %v9750 = vadd.f32 0.0, %v9749
        %v9751 = vpop.f32.mrf.mxu0
        %9752 = vmatprep.mubr.f32.mxu0 0.0
        %9753 = vmatmul.mubr.f32.gmra.mxu0 %v9416
        %v9754 = vpop.f32.mrf.mxu0
        %v9755 = vadd.f32 0.0, %v9754
        %v9756 = vpop.f32.mrf.mxu0
        %9757 = vmatprep.mubr.f32.mxu0 0.0
        %9758 = vmatmul.mubr.f32.gmra.mxu0 %v9419
        %v9759 = vpop.f32.mrf.mxu0
        %v9760 = vpop.f32.mrf.mxu0
        %9761 = vmatprep.mubr.f32.mxu0 0.0
        %9762 = vmatmul.mubr.f32.gmra.mxu0 %v9422
        %v9763 = vpop.f32.mrf.mxu0
        %v9764 = vadd.f32 0.0, %v9763
        %v9765 = vpop.f32.mrf.mxu0
        %9766 = vmatprep.mubr.f32.mxu0 0.0
        %9767 = vmatmul.mubr.f32.gmra.mxu0 %v9425
        %v9768 = vpop.f32.mrf.mxu0
        %v9769 = vadd.f32 0.0, %v9768
        %v9770 = vpop.f32.mrf.mxu0
        %9771 = vmatprep.mubr.f32.mxu0 0.0
        %9772 = vmatmul.mubr.f32.gmra.mxu0 %v9428
        %v9773 = vpop.f32.mrf.mxu0
        %v9774 = vadd.f32 0.0, %v9773
        %v9775 = vpop.f32.mrf.mxu0
        %9776 = vmatprep.mubr.f32.mxu0 0.0
        %9777 = vmatmul.mubr.f32.gmra.mxu0 %v9431
        %v9778 = vpop.f32.mrf.mxu0
        %v9779 = vadd.f32 0.0, %v9778
        %v9780 = vpop.f32.mrf.mxu0
        %9781 = vmatprep.mubr.f32.mxu0 0.0
        %9782 = vmatmul.mubr.f32.gmra.mxu0 %v9434
        %v9783 = vpop.f32.mrf.mxu0
        %v9784 = vpop.f32.mrf.mxu0
        %9785 = vmatprep.mubr.f32.mxu0 0.0
        %9786 = vmatmul.mubr.f32.gmra.mxu0 %v9437
        %v9787 = vpop.f32.mrf.mxu0
        %v9788 = vadd.f32 0.0, %v9787
        %v9789 = vpop.f32.mrf.mxu0
        %9790 = vmatprep.mubr.f32.mxu0 0.0
        %9791 = vmatmul.mubr.f32.gmra.mxu0 %v9440
        %v9792 = vpop.f32.mrf.mxu0
        %v9793 = vadd.f32 0.0, %v9792
        %v9794 = vpop.f32.mrf.mxu0
        %9795 = vmatprep.mubr.f32.mxu0 0.0
        %9796 = vmatmul.mubr.f32.gmra.mxu0 %v9443
        %v9797 = vpop.f32.mrf.mxu0
        %v9798 = vadd.f32 0.0, %v9797
        %v9799 = vpop.f32.mrf.mxu0
        %9800 = vmatprep.mubr.f32.mxu0 0.0
        %9801 = vmatmul.mubr.f32.gmra.mxu0 %v9446
        %v9802 = vpop.f32.mrf.mxu0
        %v9803 = vadd.f32 0.0, %v9802
        %v9804 = vpop.f32.mrf.mxu0
        %9805 = vmatprep.mubr.f32.mxu0 0.0
        %9806 = vmatmul.mubr.f32.gmra.mxu0 %v9449
        %v9807 = vpop.f32.mrf.mxu0
        %v9808 = vpop.f32.mrf.mxu0
        %9809 = vmatprep.mubr.f32.mxu0 0.0
        %9810 = vmatmul.mubr.f32.gmra.mxu0 %v9452
        %v9811 = vpop.f32.mrf.mxu0
        %v9812 = vadd.f32 0.0, %v9811
        %v9813 = vpop.f32.mrf.mxu0
        %9814 = vmatprep.mubr.f32.mxu0 0.0
        %9815 = vmatmul.mubr.f32.gmra.mxu0 %v9455
        %v9816 = vpop.f32.mrf.mxu0
        %v9817 = vadd.f32 0.0, %v9816
        %v9818 = vpop.f32.mrf.mxu0
        %9819 = vmatprep.mubr.f32.mxu0 0.0
        %9820 = vmatmul.mubr.f32.gmra.mxu0 %v9458
        %v9821 = vpop.f32.mrf.mxu0
        %v9822 = vadd.f32 0.0, %v9821
        %v9823 = vpop.f32.mrf.mxu0
        %9824 = vmatprep.mubr.f32.mxu0 0.0
        %9825 = vmatmul.mubr.f32.gmra.mxu0 %v9461
        %v9826 = vpop.f32.mrf.mxu0
        %v9827 = vadd.f32 0.0, %v9826
        %v9828 = vpop.f32.mrf.mxu0
        %9829 = vmatprep.mubr.f32.mxu0 0.0
        %9830 = vmatmul.mubr.f32.gmra.mxu0 %v9464
        %v9831 = vpop.f32.mrf.mxu0
        %v9832 = vpop.f32.mrf.mxu0
        %9833 = vmatprep.mubr.f32.mxu0 0.0
        %9834 = vmatmul.mubr.f32.gmra.mxu0 %v9467
        %v9835 = vpop.f32.mrf.mxu0
        %v9836 = vadd.f32 0.0, %v9835
        %v9837 = vpop.f32.mrf.mxu0
        %9838 = vmatprep.mubr.f32.mxu0 0.0
        %9839 = vmatmul.mubr.f32.gmra.mxu0 %v9470
        %v9840 = vpop.f32.mrf.mxu0
        %v9841 = vadd.f32 0.0, %v9840
        %v9842 = vpop.f32.mrf.mxu0
        %9843 = vmatprep.mubr.f32.mxu0 0.0
        %9844 = vmatmul.mubr.f32.gmra.mxu0 %v9473
        %v9845 = vpop.f32.mrf.mxu0
        %v9846 = vadd.f32 0.0, %v9845
        %v9847 = vpop.f32.mrf.mxu0
        %9848 = vmatprep.mubr.f32.mxu0 0.0
        %9849 = vmatmul.mubr.f32.gmra.mxu0 %v9476
        %v9850 = vpop.f32.mrf.mxu0
        %v9851 = vadd.f32 0.0, %v9850
        %v9852 = vpop.f32.mrf.mxu0
        %9853 = vmatprep.mubr.f32.mxu0 0.0
        %9854 = vmatmul.mubr.f32.gmra.mxu0 %v9479
        %v9855 = vpop.f32.mrf.mxu0
        %v9856 = vpop.f32.mrf.mxu0
        %9857 = vmatprep.mubr.f32.mxu0 0.0
        %9858 = vmatmul.mubr.f32.gmra.mxu0 %v9482
        %v9859 = vpop.f32.mrf.mxu0
        %v9860 = vadd.f32 0.0, %v9859
        %v9861 = vpop.f32.mrf.mxu0
        %9862 = vmatprep.mubr.f32.mxu0 0.0
        %9863 = vmatmul.mubr.f32.gmra.mxu0 %v9485
        %v9864 = vpop.f32.mrf.mxu0
        %v9865 = vadd.f32 0.0, %v9864
        %v9866 = vpop.f32.mrf.mxu0
        %9867 = vmatprep.mubr.f32.mxu0 0.0
        %9868 = vmatmul.mubr.f32.gmra.mxu0 %v9488
        %v9869 = vpop.f32.mrf.mxu0
        %v9870 = vadd.f32 0.0, %v9869
        %v9871 = vpop.f32.mrf.mxu0
        %9872 = vmatprep.mubr.f32.mxu0 0.0
        %9873 = vmatmul.mubr.f32.gmra.mxu0 %v9491
        %v9874 = vpop.f32.mrf.mxu0
        %v9875 = vadd.f32 0.0, %v9874
        %v9876 = vpop.f32.mrf.mxu0
        %9877 = vmatprep.mubr.f32.mxu0 0.0
        %9878 = vmatmul.mubr.f32.gmra.mxu0 %v9494
        %v9879 = vpop.f32.mrf.mxu0
        %v9880 = vpop.f32.mrf.mxu0
        %9881 = vmatprep.mubr.f32.mxu0 0.0
        %9882 = vmatmul.mubr.f32.gmra.mxu0 %v9497
        %v9883 = vpop.f32.mrf.mxu0
        %v9884 = vadd.f32 0.0, %v9883
        %v9885 = vpop.f32.mrf.mxu0
        %9886 = vmatprep.mubr.f32.mxu0 0.0
        %9887 = vmatmul.mubr.f32.gmra.mxu0 %v9500
        %v9888 = vpop.f32.mrf.mxu0
        %v9889 = vadd.f32 0.0, %v9888
        %v9890 = vpop.f32.mrf.mxu0
        %9891 = vmatprep.mubr.f32.mxu0 0.0
        %9892 = vmatmul.mubr.f32.gmra.mxu0 %v9503
        %v9893 = vpop.f32.mrf.mxu0
        %v9894 = vadd.f32 0.0, %v9893
        %v9895 = vpop.f32.mrf.mxu0
        %9896 = vmatprep.mubr.f32.mxu0 0.0
        %9897 = vmatmul.mubr.f32.gmra.mxu0 %v9506
        %v9898 = vpop.f32.mrf.mxu0
        %v9899 = vadd.f32 0.0, %v9898
        %v9900 = vpop.f32.mrf.mxu0
        %9901 = vmatprep.mubr.f32.mxu0 0.0
        %9902 = vmatmul.mubr.f32.gmra.mxu0 %v9509
        %v9903 = vpop.f32.mrf.mxu0
        %v9904 = vpop.f32.mrf.mxu0
        %9905 = vmatprep.mubr.f32.mxu0 0.0
        %9906 = vmatmul.mubr.f32.gmra.mxu0 %v9512
        %v9907 = vpop.f32.mrf.mxu0
        %v9908 = vadd.f32 0.0, %v9907
        %v9909 = vpop.f32.mrf.mxu0
        %9910 = vmatprep.mubr.f32.mxu0 0.0
        %9911 = vmatmul.mubr.f32.gmra.mxu0 %v9515
        %v9912 = vpop.f32.mrf.mxu0
        %v9913 = vadd.f32 0.0, %v9912
        %v9914 = vpop.f32.mrf.mxu0
        %9915 = vmatprep.mubr.f32.mxu0 0.0
        %9916 = vmatmul.mubr.f32.gmra.mxu0 %v9518
        %v9917 = vpop.f32.mrf.mxu0
        %v9918 = vadd.f32 0.0, %v9917
        %v9919 = vpop.f32.mrf.mxu0
        %9920 = vmatprep.mubr.f32.mxu0 0.0
        %9921 = vmatmul.mubr.f32.gmra.mxu0 %v9521
        %v9922 = vpop.f32.mrf.mxu0
        %v9923 = vadd.f32 0.0, %v9922
        %v9924 = vpop.f32.mrf.mxu0
        %9925 = vmatprep.mubr.f32.mxu0 0.0
        %9926 = vmatmul.mubr.f32.gmra.mxu0 %v9524
        %v9927 = vpop.f32.mrf.mxu0
        %v9928 = vpop.f32.mrf.mxu0
        %9929 = vmatprep.mubr.f32.mxu0 0.0
        %9930 = vmatmul.mubr.f32.gmra.mxu0 %v9527
        %v9931 = vpop.f32.mrf.mxu0
        %v9932 = vadd.f32 0.0, %v9931
        %v9933 = vpop.f32.mrf.mxu0
        %9934 = vmatprep.mubr.f32.mxu0 0.0
        %9935 = vmatmul.mubr.f32.gmra.mxu0 %v9530
        %v9936 = vpop.f32.mrf.mxu0
        %v9937 = vadd.f32 0.0, %v9936
        %v9938 = vpop.f32.mrf.mxu0
        %9939 = vmatprep.mubr.f32.mxu0 0.0
        %9940 = vmatmul.mubr.f32.gmra.mxu0 %v9533
        %v9941 = vpop.f32.mrf.mxu0
        %v9942 = vadd.f32 0.0, %v9941
        %v9943 = vpop.f32.mrf.mxu0
        %9944 = vmatprep.mubr.f32.mxu0 0.0
        %9945 = vmatmul.mubr.f32.gmra.mxu0 %v9536
        %v9946 = vpop.f32.mrf.mxu0
        %v9947 = vadd.f32 0.0, %v9946
        %v9948 = vpop.f32.mrf.mxu0
        %9949 = vmatprep.mubr.f32.mxu0 0.0
        %9950 = vmatmul.mubr.f32.gmra.mxu0 %v9539
        %v9951 = vpop.f32.mrf.mxu0
        %v9952 = vpop.f32.mrf.mxu0
        %9953 = vmatprep.mubr.f32.mxu0 0.0
        %9954 = vmatmul.mubr.f32.gmra.mxu0 %v9542
        %v9955 = vpop.f32.mrf.mxu0
        %v9956 = vadd.f32 0.0, %v9955
        %v9957 = vpop.f32.mrf.mxu0
        %9958 = vmatprep.mubr.f32.mxu0 0.0
        %9959 = vmatmul.mubr.f32.gmra.mxu0 %v9545
        %v9960 = vpop.f32.mrf.mxu0
        %v9961 = vadd.f32 0.0, %v9960
        %v9962 = vpop.f32.mrf.mxu0
        %9963 = vmatprep.mubr.f32.mxu0 0.0
        %9964 = vmatmul.mubr.f32.gmra.mxu0 %v9548
        %v9965 = vpop.f32.mrf.mxu0
        %v9966 = vadd.f32 0.0, %v9965
        %v9967 = vpop.f32.mrf.mxu0
        %9968 = vmatprep.mubr.f32.mxu0 0.0
        %9969 = vmatmul.mubr.f32.gmra.mxu0 %v9551
        %v9970 = vpop.f32.mrf.mxu0
        %v9971 = vadd.f32 0.0, %v9970
        %v9972 = vpop.f32.mrf.mxu0
        %9973 = vmatprep.mubr.f32.mxu0 0.0
        %9974 = vmatmul.mubr.f32.gmra.mxu0 %v9554
        %v9975 = vpop.f32.mrf.mxu0
        %v9976 = vpop.f32.mrf.mxu0
        %9977 = vmatprep.mubr.f32.mxu0 0.0
        %9978 = vmatmul.mubr.f32.gmra.mxu0 %v9557
        %v9979 = vpop.f32.mrf.mxu0
        %v9980 = vadd.f32 0.0, %v9979
        %v9981 = vpop.f32.mrf.mxu0
        %9982 = vmatprep.mubr.f32.mxu0 0.0
        %9983 = vmatmul.mubr.f32.gmra.mxu0 %v9560
        %v9984 = vpop.f32.mrf.mxu0
        %v9985 = vadd.f32 0.0, %v9984
        %v9986 = vpop.f32.mrf.mxu0
        %9987 = vmatprep.mubr.f32.mxu0 0.0
        %9988 = vmatmul.mubr.f32.gmra.mxu0 %v9563
        %v9989 = vpop.f32.mrf.mxu0
        %v9990 = vadd.f32 0.0, %v9989
        %v9991 = vpop.f32.mrf.mxu0
        %9992 = vmatprep.mubr.f32.mxu0 0.0
        %9993 = vmatmul.mubr.f32.gmra.mxu0 %v9566
        %v9994 = vpop.f32.mrf.mxu0
        %v9995 = vadd.f32 0.0, %v9994
        %v9996 = vpop.f32.mrf.mxu0
        %9997 = vmatprep.mubr.f32.mxu0 0.0
        %9998 = vmatmul.mubr.f32.gmra.mxu0 %v9569
        %v9999 = vpop.f32.mrf.mxu0
        %v10000 = vpop.f32.mrf.mxu0
        %10001 = vmatprep.mubr.f32.mxu0 0.0
        %10002 = vmatmul.mubr.f32.gmra.mxu0 %v9572
        %v10003 = vpop.f32.mrf.mxu0
        %v10004 = vadd.f32 0.0, %v10003
        %v10005 = vpop.f32.mrf.mxu0
        %10006 = vmatprep.mubr.f32.mxu0 0.0
        %10007 = vmatmul.mubr.f32.gmra.mxu0 %v9575
        %v10008 = vpop.f32.mrf.mxu0
        %v10009 = vadd.f32 0.0, %v10008
        %v10010 = vpop.f32.mrf.mxu0
        %10011 = vmatprep.mubr.f32.mxu0 0.0
        %10012 = vmatmul.mubr.f32.gmra.mxu0 %v9578
        %v10013 = vpop.f32.mrf.mxu0
        %v10014 = vadd.f32 0.0, %v10013
        %v10015 = vpop.f32.mrf.mxu0
        %10016 = vmatprep.mubr.f32.mxu0 0.0
        %10017 = vmatmul.mubr.f32.gmra.mxu0 %v9581
        %v10018 = vpop.f32.mrf.mxu0
        %v10019 = vadd.f32 0.0, %v10018
        %v10020 = vpop.f32.mrf.mxu0
        %10021 = vmatprep.mubr.f32.mxu0 0.0
        %10022 = vmatmul.mubr.f32.gmra.mxu0 %v9584
        %v10023 = vpop.f32.mrf.mxu0
        %v10024 = vpop.f32.mrf.mxu0
        %10025 = vmatprep.mubr.f32.mxu0 0.0
        %10026 = vmatmul.mubr.f32.gmra.mxu0 %v9587
        %v10027 = vpop.f32.mrf.mxu0
        %v10028 = vadd.f32 0.0, %v10027
        %v10029 = vpop.f32.mrf.mxu0
        %10030 = vmatprep.mubr.f32.mxu0 0.0
        %10031 = vmatmul.mubr.f32.gmra.mxu0 %v9590
        %v10032 = vpop.f32.mrf.mxu0
        %v10033 = vadd.f32 0.0, %v10032
        %v10034 = vpop.f32.mrf.mxu0
        %10035 = vmatprep.mubr.f32.mxu0 0.0
        %10036 = vmatmul.mubr.f32.gmra.mxu0 %v9593
        %v10037 = vpop.f32.mrf.mxu0
        %v10038 = vadd.f32 0.0, %v10037
        %v10039 = vpop.f32.mrf.mxu0
        %10040 = vmatprep.mubr.f32.mxu0 0.0
        %10041 = vmatmul.mubr.f32.gmra.mxu0 %v9596
        %v10042 = vpop.f32.mrf.mxu0
        %v10043 = vadd.f32 0.0, %v10042
        %v10044 = vpop.f32.mrf.mxu0
        %10045 = vdwg.mxu0
        %v10046 = vadd.f32 %v9216, %v9668
        %v10047 = vadd.f32 %v9217, %v9673
        %v10048 = vadd.f32 %v9218, %v9678
        %v10049 = vadd.f32 %v9219, %v9683
        %v10050 = vadd.f32 %v9220, %v9692
        %v10051 = vadd.f32 %v9221, %v9697
        %v10052 = vadd.f32 %v9222, %v9702
        %v10053 = vadd.f32 %v9223, %v9707
        %v10054 = vadd.f32 %v9224, %v9716
        %v10055 = vadd.f32 %v9225, %v9721
        %v10056 = vadd.f32 %v9226, %v9726
        %v10057 = vadd.f32 %v9227, %v9731
        %v10058 = vadd.f32 %v9228, %v9740
        %v10059 = vadd.f32 %v9229, %v9745
        %v10060 = vadd.f32 %v9230, %v9750
        %v10061 = vadd.f32 %v9231, %v9755
        %v10062 = vadd.f32 %v9232, %v9764
        %v10063 = vadd.f32 %v9233, %v9769
        %v10064 = vadd.f32 %v9234, %v9774
        %v10065 = vadd.f32 %v9235, %v9779
        %v10066 = vadd.f32 %v9236, %v9788
        %v10067 = vadd.f32 %v9237, %v9793
        %v10068 = vadd.f32 %v9238, %v9798
        %v10069 = vadd.f32 %v9239, %v9803
        %v10070 = vadd.f32 %v9240, %v9812
        %v10071 = vadd.f32 %v9241, %v9817
        %v10072 = vadd.f32 %v9242, %v9822
        %v10073 = vadd.f32 %v9243, %v9827
        %v10074 = vadd.f32 %v9244, %v9836
        %v10075 = vadd.f32 %v9245, %v9841
        %v10076 = vadd.f32 %v9246, %v9846
        %v10077 = vadd.f32 %v9247, %v9851
        %v10078 = vadd.f32 %v9248, %v9860
        %v10079 = vadd.f32 %v9249, %v9865
        %v10080 = vadd.f32 %v9250, %v9870
        %v10081 = vadd.f32 %v9251, %v9875
        %v10082 = vadd.f32 %v9252, %v9884
        %v10083 = vadd.f32 %v9253, %v9889
        %v10084 = vadd.f32 %v9254, %v9894
        %v10085 = vadd.f32 %v9255, %v9899
        %v10086 = vadd.f32 %v9256, %v9908
        %v10087 = vadd.f32 %v9257, %v9913
        %v10088 = vadd.f32 %v9258, %v9918
        %v10089 = vadd.f32 %v9259, %v9923
        %v10090 = vadd.f32 %v9260, %v9932
        %v10091 = vadd.f32 %v9261, %v9937
        %v10092 = vadd.f32 %v9262, %v9942
        %v10093 = vadd.f32 %v9263, %v9947
        %v10094 = vadd.f32 %v9264, %v9956
        %v10095 = vadd.f32 %v9265, %v9961
        %v10096 = vadd.f32 %v9266, %v9966
        %v10097 = vadd.f32 %v9267, %v9971
        %v10098 = vadd.f32 %v9268, %v9980
        %v10099 = vadd.f32 %v9269, %v9985
        %v10100 = vadd.f32 %v9270, %v9990
        %v10101 = vadd.f32 %v9271, %v9995
        %v10102 = vadd.f32 %v9272, %v10004
        %v10103 = vadd.f32 %v9273, %v10009
        %v10104 = vadd.f32 %v9274, %v10014
        %v10105 = vadd.f32 %v9275, %v10019
        %v10106 = vadd.f32 %v9276, %v10028
        %v10107 = vadd.f32 %v9277, %v10033
        %v10108 = vadd.f32 %v9278, %v10038
        %v10109 = vadd.f32 %v9279, %v10043
        %v10110 = vld [vmem:[%s6] sm:$0x1]
        %v10112 = vlaneseq
        %v10113 = vshrl.u32 %v10112, 7
        %v10114 = vsub.s32 0, %v10113
        %v10115 = vrot.slane %v10110, %v10114
        %v10117 = vmul.f32 %v10046, %v10115
        %v10118 = vmul.f32 %v10047, %v10115
        %v10119 = vmul.f32 %v10048, %v10115
        %v10120 = vmul.f32 %v10049, %v10115
        %v10121 = vmul.f32 %v10050, %v10115
        %v10122 = vmul.f32 %v10051, %v10115
        %v10123 = vmul.f32 %v10052, %v10115
        %v10124 = vmul.f32 %v10053, %v10115
        %v10125 = vmul.f32 %v10054, %v10115
        %v10126 = vmul.f32 %v10055, %v10115
        %v10127 = vmul.f32 %v10056, %v10115
        %v10128 = vmul.f32 %v10057, %v10115
        %v10129 = vmul.f32 %v10058, %v10115
        %v10130 = vmul.f32 %v10059, %v10115
        %v10131 = vmul.f32 %v10060, %v10115
        %v10132 = vmul.f32 %v10061, %v10115
        %v10133 = vmul.f32 %v10062, %v10115
        %v10134 = vmul.f32 %v10063, %v10115
        %v10135 = vmul.f32 %v10064, %v10115
        %v10136 = vmul.f32 %v10065, %v10115
        %v10137 = vmul.f32 %v10066, %v10115
        %v10138 = vmul.f32 %v10067, %v10115
        %v10139 = vmul.f32 %v10068, %v10115
        %v10140 = vmul.f32 %v10069, %v10115
        %v10141 = vmul.f32 %v10070, %v10115
        %v10142 = vmul.f32 %v10071, %v10115
        %v10143 = vmul.f32 %v10072, %v10115
        %v10144 = vmul.f32 %v10073, %v10115
        %v10145 = vmul.f32 %v10074, %v10115
        %v10146 = vmul.f32 %v10075, %v10115
        %v10147 = vmul.f32 %v10076, %v10115
        %v10148 = vmul.f32 %v10077, %v10115
        %v10149 = vmul.f32 %v10078, %v10115
        %v10150 = vmul.f32 %v10079, %v10115
        %v10151 = vmul.f32 %v10080, %v10115
        %v10152 = vmul.f32 %v10081, %v10115
        %v10153 = vmul.f32 %v10082, %v10115
        %v10154 = vmul.f32 %v10083, %v10115
        %v10155 = vmul.f32 %v10084, %v10115
        %v10156 = vmul.f32 %v10085, %v10115
        %v10157 = vmul.f32 %v10086, %v10115
        %v10158 = vmul.f32 %v10087, %v10115
        %v10159 = vmul.f32 %v10088, %v10115
        %v10160 = vmul.f32 %v10089, %v10115
        %v10161 = vmul.f32 %v10090, %v10115
        %v10162 = vmul.f32 %v10091, %v10115
        %v10163 = vmul.f32 %v10092, %v10115
        %v10164 = vmul.f32 %v10093, %v10115
        %v10165 = vmul.f32 %v10094, %v10115
        %v10166 = vmul.f32 %v10095, %v10115
        %v10167 = vmul.f32 %v10096, %v10115
        %v10168 = vmul.f32 %v10097, %v10115
        %v10169 = vmul.f32 %v10098, %v10115
        %v10170 = vmul.f32 %v10099, %v10115
        %v10171 = vmul.f32 %v10100, %v10115
        %v10172 = vmul.f32 %v10101, %v10115
        %v10173 = vmul.f32 %v10102, %v10115
        %v10174 = vmul.f32 %v10103, %v10115
        %v10175 = vmul.f32 %v10104, %v10115
        %v10176 = vmul.f32 %v10105, %v10115
        %v10177 = vmul.f32 %v10106, %v10115
        %v10178 = vmul.f32 %v10107, %v10115
        %v10179 = vmul.f32 %v10108, %v10115
        %v10180 = vmul.f32 %v10109, %v10115
        %v10181 = vld [vmem:[%s7] sm:$0x1]
        %v10183 = vlaneseq
        %v10184 = vshrl.u32 %v10183, 7
        %v10185 = vsub.s32 0, %v10184
        %v10186 = vrot.slane %v10181, %v10185
        %v10188 = vadd.f32 %v10117, %v10186
        %v10189 = vadd.f32 %v10118, %v10186
        %v10190 = vadd.f32 %v10119, %v10186
        %v10191 = vadd.f32 %v10120, %v10186
        %v10192 = vadd.f32 %v10121, %v10186
        %v10193 = vadd.f32 %v10122, %v10186
        %v10194 = vadd.f32 %v10123, %v10186
        %v10195 = vadd.f32 %v10124, %v10186
        %v10196 = vadd.f32 %v10125, %v10186
        %v10197 = vadd.f32 %v10126, %v10186
        %v10198 = vadd.f32 %v10127, %v10186
        %v10199 = vadd.f32 %v10128, %v10186
        %v10200 = vadd.f32 %v10129, %v10186
        %v10201 = vadd.f32 %v10130, %v10186
        %v10202 = vadd.f32 %v10131, %v10186
        %v10203 = vadd.f32 %v10132, %v10186
        %v10204 = vadd.f32 %v10133, %v10186
        %v10205 = vadd.f32 %v10134, %v10186
        %v10206 = vadd.f32 %v10135, %v10186
        %v10207 = vadd.f32 %v10136, %v10186
        %v10208 = vadd.f32 %v10137, %v10186
        %v10209 = vadd.f32 %v10138, %v10186
        %v10210 = vadd.f32 %v10139, %v10186
        %v10211 = vadd.f32 %v10140, %v10186
        %v10212 = vadd.f32 %v10141, %v10186
        %v10213 = vadd.f32 %v10142, %v10186
        %v10214 = vadd.f32 %v10143, %v10186
        %v10215 = vadd.f32 %v10144, %v10186
        %v10216 = vadd.f32 %v10145, %v10186
        %v10217 = vadd.f32 %v10146, %v10186
        %v10218 = vadd.f32 %v10147, %v10186
        %v10219 = vadd.f32 %v10148, %v10186
        %v10220 = vadd.f32 %v10149, %v10186
        %v10221 = vadd.f32 %v10150, %v10186
        %v10222 = vadd.f32 %v10151, %v10186
        %v10223 = vadd.f32 %v10152, %v10186
        %v10224 = vadd.f32 %v10153, %v10186
        %v10225 = vadd.f32 %v10154, %v10186
        %v10226 = vadd.f32 %v10155, %v10186
        %v10227 = vadd.f32 %v10156, %v10186
        %v10228 = vadd.f32 %v10157, %v10186
        %v10229 = vadd.f32 %v10158, %v10186
        %v10230 = vadd.f32 %v10159, %v10186
        %v10231 = vadd.f32 %v10160, %v10186
        %v10232 = vadd.f32 %v10161, %v10186
        %v10233 = vadd.f32 %v10162, %v10186
        %v10234 = vadd.f32 %v10163, %v10186
        %v10235 = vadd.f32 %v10164, %v10186
        %v10236 = vadd.f32 %v10165, %v10186
        %v10237 = vadd.f32 %v10166, %v10186
        %v10238 = vadd.f32 %v10167, %v10186
        %v10239 = vadd.f32 %v10168, %v10186
        %v10240 = vadd.f32 %v10169, %v10186
        %v10241 = vadd.f32 %v10170, %v10186
        %v10242 = vadd.f32 %v10171, %v10186
        %v10243 = vadd.f32 %v10172, %v10186
        %v10244 = vadd.f32 %v10173, %v10186
        %v10245 = vadd.f32 %v10174, %v10186
        %v10246 = vadd.f32 %v10175, %v10186
        %v10247 = vadd.f32 %v10176, %v10186
        %v10248 = vadd.f32 %v10177, %v10186
        %v10249 = vadd.f32 %v10178, %v10186
        %v10250 = vadd.f32 %v10179, %v10186
        %v10251 = vadd.f32 %v10180, %v10186
        %v10252 = vmax.f32 %v10188, 0.0
        %v10253 = vmax.f32 %v10189, 0.0
        %v10254 = vmax.f32 %v10190, 0.0
        %v10255 = vmax.f32 %v10191, 0.0
        %v10256 = vmax.f32 %v10192, 0.0
        %v10257 = vmax.f32 %v10193, 0.0
        %v10258 = vmax.f32 %v10194, 0.0
        %v10259 = vmax.f32 %v10195, 0.0
        %v10260 = vmax.f32 %v10196, 0.0
        %v10261 = vmax.f32 %v10197, 0.0
        %v10262 = vmax.f32 %v10198, 0.0
        %v10263 = vmax.f32 %v10199, 0.0
        %v10264 = vmax.f32 %v10200, 0.0
        %v10265 = vmax.f32 %v10201, 0.0
        %v10266 = vmax.f32 %v10202, 0.0
        %v10267 = vmax.f32 %v10203, 0.0
        %v10268 = vmax.f32 %v10204, 0.0
        %v10269 = vmax.f32 %v10205, 0.0
        %v10270 = vmax.f32 %v10206, 0.0
        %v10271 = vmax.f32 %v10207, 0.0
        %v10272 = vmax.f32 %v10208, 0.0
        %v10273 = vmax.f32 %v10209, 0.0
        %v10274 = vmax.f32 %v10210, 0.0
        %v10275 = vmax.f32 %v10211, 0.0
        %v10276 = vmax.f32 %v10212, 0.0
        %v10277 = vmax.f32 %v10213, 0.0
        %v10278 = vmax.f32 %v10214, 0.0
        %v10279 = vmax.f32 %v10215, 0.0
        %v10280 = vmax.f32 %v10216, 0.0
        %v10281 = vmax.f32 %v10217, 0.0
        %v10282 = vmax.f32 %v10218, 0.0
        %v10283 = vmax.f32 %v10219, 0.0
        %v10284 = vmax.f32 %v10220, 0.0
        %v10285 = vmax.f32 %v10221, 0.0
        %v10286 = vmax.f32 %v10222, 0.0
        %v10287 = vmax.f32 %v10223, 0.0
        %v10288 = vmax.f32 %v10224, 0.0
        %v10289 = vmax.f32 %v10225, 0.0
        %v10290 = vmax.f32 %v10226, 0.0
        %v10291 = vmax.f32 %v10227, 0.0
        %v10292 = vmax.f32 %v10228, 0.0
        %v10293 = vmax.f32 %v10229, 0.0
        %v10294 = vmax.f32 %v10230, 0.0
        %v10295 = vmax.f32 %v10231, 0.0
        %v10296 = vmax.f32 %v10232, 0.0
        %v10297 = vmax.f32 %v10233, 0.0
        %v10298 = vmax.f32 %v10234, 0.0
        %v10299 = vmax.f32 %v10235, 0.0
        %v10300 = vmax.f32 %v10236, 0.0
        %v10301 = vmax.f32 %v10237, 0.0
        %v10302 = vmax.f32 %v10238, 0.0
        %v10303 = vmax.f32 %v10239, 0.0
        %v10304 = vmax.f32 %v10240, 0.0
        %v10305 = vmax.f32 %v10241, 0.0
        %v10306 = vmax.f32 %v10242, 0.0
        %v10307 = vmax.f32 %v10243, 0.0
        %v10308 = vmax.f32 %v10244, 0.0
        %v10309 = vmax.f32 %v10245, 0.0
        %v10310 = vmax.f32 %v10246, 0.0
        %v10311 = vmax.f32 %v10247, 0.0
        %v10312 = vmax.f32 %v10248, 0.0
        %v10313 = vmax.f32 %v10249, 0.0
        %v10314 = vmax.f32 %v10250, 0.0
        %v10315 = vmax.f32 %v10251, 0.0
        %vm10316 = vcmask 64512
        %10317 = vst.msk [vmem:[%s368] sm:$0xff] %vm10316, %v10252
        %10318 = vst.msk [vmem:[%s368 + $0x8] sm:$0xff] %vm10316, %v10253
        %10319 = vst.msk [vmem:[%s368 + $0x10] sm:$0xff] %vm10316, %v10254
        %10320 = vst.msk [vmem:[%s368 + $0x18] sm:$0xff] %vm10316, %v10255
        %s10321 = scalar_lea.vmem %s368, 32
        %10322 = vst.msk [vmem:[%s10321] sm:$0xff] %vm10316, %v10256
        %10323 = vst.msk [vmem:[%s10321 + $0x8] sm:$0xff] %vm10316, %v10257
        %10324 = vst.msk [vmem:[%s10321 + $0x10] sm:$0xff] %vm10316, %v10258
        %10325 = vst.msk [vmem:[%s10321 + $0x18] sm:$0xff] %vm10316, %v10259
        %s10326 = scalar_lea.vmem %s368, 64
        %10327 = vst.msk [vmem:[%s10326] sm:$0xff] %vm10316, %v10260
        %10328 = vst.msk [vmem:[%s10326 + $0x8] sm:$0xff] %vm10316, %v10261
        %10329 = vst.msk [vmem:[%s10326 + $0x10] sm:$0xff] %vm10316, %v10262
        %10330 = vst.msk [vmem:[%s10326 + $0x18] sm:$0xff] %vm10316, %v10263
        %s10331 = scalar_lea.vmem %s368, 96
        %10332 = vst.msk [vmem:[%s10331] sm:$0xff] %vm10316, %v10264
        %10333 = vst.msk [vmem:[%s10331 + $0x8] sm:$0xff] %vm10316, %v10265
        %10334 = vst.msk [vmem:[%s10331 + $0x10] sm:$0xff] %vm10316, %v10266
        %10335 = vst.msk [vmem:[%s10331 + $0x18] sm:$0xff] %vm10316, %v10267
        %s10336 = scalar_lea.vmem %s368, 128
        %10337 = vst.msk [vmem:[%s10336] sm:$0xff] %vm10316, %v10268
        %10338 = vst.msk [vmem:[%s10336 + $0x8] sm:$0xff] %vm10316, %v10269
        %10339 = vst.msk [vmem:[%s10336 + $0x10] sm:$0xff] %vm10316, %v10270
        %10340 = vst.msk [vmem:[%s10336 + $0x18] sm:$0xff] %vm10316, %v10271
        %s10341 = scalar_lea.vmem %s368, 160
        %10342 = vst.msk [vmem:[%s10341] sm:$0xff] %vm10316, %v10272
        %10343 = vst.msk [vmem:[%s10341 + $0x8] sm:$0xff] %vm10316, %v10273
        %10344 = vst.msk [vmem:[%s10341 + $0x10] sm:$0xff] %vm10316, %v10274
        %10345 = vst.msk [vmem:[%s10341 + $0x18] sm:$0xff] %vm10316, %v10275
        %s10346 = scalar_lea.vmem %s368, 192
        %10347 = vst.msk [vmem:[%s10346] sm:$0xff] %vm10316, %v10276
        %10348 = vst.msk [vmem:[%s10346 + $0x8] sm:$0xff] %vm10316, %v10277
        %10349 = vst.msk [vmem:[%s10346 + $0x10] sm:$0xff] %vm10316, %v10278
        %10350 = vst.msk [vmem:[%s10346 + $0x18] sm:$0xff] %vm10316, %v10279
        %s10351 = scalar_lea.vmem %s368, 224
        %10352 = vst.msk [vmem:[%s10351] sm:$0xff] %vm10316, %v10280
        %10353 = vst.msk [vmem:[%s10351 + $0x8] sm:$0xff] %vm10316, %v10281
        %10354 = vst.msk [vmem:[%s10351 + $0x10] sm:$0xff] %vm10316, %v10282
        %10355 = vst.msk [vmem:[%s10351 + $0x18] sm:$0xff] %vm10316, %v10283
        %s10356 = scalar_lea.vmem %s368, 256
        %10357 = vst.msk [vmem:[%s10356] sm:$0xff] %vm10316, %v10284
        %10358 = vst.msk [vmem:[%s10356 + $0x8] sm:$0xff] %vm10316, %v10285
        %10359 = vst.msk [vmem:[%s10356 + $0x10] sm:$0xff] %vm10316, %v10286
        %10360 = vst.msk [vmem:[%s10356 + $0x18] sm:$0xff] %vm10316, %v10287
        %s10361 = scalar_lea.vmem %s368, 288
        %10362 = vst.msk [vmem:[%s10361] sm:$0xff] %vm10316, %v10288
        %10363 = vst.msk [vmem:[%s10361 + $0x8] sm:$0xff] %vm10316, %v10289
        %10364 = vst.msk [vmem:[%s10361 + $0x10] sm:$0xff] %vm10316, %v10290
        %10365 = vst.msk [vmem:[%s10361 + $0x18] sm:$0xff] %vm10316, %v10291
        %s10366 = scalar_lea.vmem %s368, 320
        %10367 = vst.msk [vmem:[%s10366] sm:$0xff] %vm10316, %v10292
        %10368 = vst.msk [vmem:[%s10366 + $0x8] sm:$0xff] %vm10316, %v10293
        %10369 = vst.msk [vmem:[%s10366 + $0x10] sm:$0xff] %vm10316, %v10294
        %10370 = vst.msk [vmem:[%s10366 + $0x18] sm:$0xff] %vm10316, %v10295
        %s10371 = scalar_lea.vmem %s368, 352
        %10372 = vst.msk [vmem:[%s10371] sm:$0xff] %vm10316, %v10296
        %10373 = vst.msk [vmem:[%s10371 + $0x8] sm:$0xff] %vm10316, %v10297
        %10374 = vst.msk [vmem:[%s10371 + $0x10] sm:$0xff] %vm10316, %v10298
        %10375 = vst.msk [vmem:[%s10371 + $0x18] sm:$0xff] %vm10316, %v10299
        %s10376 = scalar_lea.vmem %s368, 384
        %10377 = vst.msk [vmem:[%s10376] sm:$0xff] %vm10316, %v10300
        %10378 = vst.msk [vmem:[%s10376 + $0x8] sm:$0xff] %vm10316, %v10301
        %10379 = vst.msk [vmem:[%s10376 + $0x10] sm:$0xff] %vm10316, %v10302
        %10380 = vst.msk [vmem:[%s10376 + $0x18] sm:$0xff] %vm10316, %v10303
        %s10381 = scalar_lea.vmem %s368, 416
        %10382 = vst.msk [vmem:[%s10381] sm:$0xff] %vm10316, %v10304
        %10383 = vst.msk [vmem:[%s10381 + $0x8] sm:$0xff] %vm10316, %v10305
        %10384 = vst.msk [vmem:[%s10381 + $0x10] sm:$0xff] %vm10316, %v10306
        %10385 = vst.msk [vmem:[%s10381 + $0x18] sm:$0xff] %vm10316, %v10307
        %s10386 = scalar_lea.vmem %s368, 448
        %10387 = vst.msk [vmem:[%s10386] sm:$0xff] %vm10316, %v10308
        %10388 = vst.msk [vmem:[%s10386 + $0x8] sm:$0xff] %vm10316, %v10309
        %10389 = vst.msk [vmem:[%s10386 + $0x10] sm:$0xff] %vm10316, %v10310
        %10390 = vst.msk [vmem:[%s10386 + $0x18] sm:$0xff] %vm10316, %v10311
        %s10391 = scalar_lea.vmem %s368, 480
        %10392 = vst.msk [vmem:[%s10391] sm:$0xff] %vm10316, %v10312
        %10393 = vst.msk [vmem:[%s10391 + $0x8] sm:$0xff] %vm10316, %v10313
        %10394 = vst.msk [vmem:[%s10391 + $0x10] sm:$0xff] %vm10316, %v10314
        %10395 = vst.msk [vmem:[%s10391 + $0x18] sm:$0xff] %vm10316, %v10315
        %s10396 = smul.u32 16, %s26
        %p10397 = scmp.lt.s32.totalorder %s25, 1
        %s10398 = scalar_select %p10397, %s25, 1
        %p10399 = scmp.lt.s32.totalorder %s10396, 31
        %s10400 = scalar_select %p10399, %s10396, 31
        %s10401 = smul.addr %s10400, 4
        %s10402 = smul.addr %s10398, 128
        %s10403 = sadd.s32 %s10401, %s10402
        %s10404 = smul.addr %s10403, 8
        %s10405 = scalar_lea.vmem %s8, %s10404
        // Predicated region
        $region65: #{tpu_custom_call.1} parent=51 // pred_check
          %p10406 = pneg %p226
        $region66: #{tpu_custom_call.1} parent=51 // pred_check_branch
          %10408 = sbr.rel (%p10406) target = $region68
        $region67: #{tpu_custom_call.1} parent=51 // pred_region
          %s10409 = smul.u32 16, %s26
        $region68: #{tpu_custom_call.1} parent=51 // pred_fallthru
          _
      $region52: #{tpu_custom_call.1} parent=5 // pred_fallthru
        _
      %p10410 = scmp.le.s32.totalorder 2, %s16
      // Predicated region
      $region69: #{tpu_custom_call.1} parent=5 // pred_check
        %p10411 = pneg %p10410
      $region70: #{tpu_custom_call.1} parent=5 // pred_check_branch
        %10413 = sbr.rel (%p10411) target = $region72
      $region71: #{tpu_custom_call.1} parent=5 // pred_region
        %s10414 = ssub.s32 %s16, 2
        // Predicated region
        $region73: #{tpu_custom_call.1} parent=71 // pred_check
          %p10415 = pneg %p232
        $region74: #{tpu_custom_call.1} parent=71 // pred_check_branch
          %10417 = sbr.rel (%p10415) target = $region76
        $region75: #{tpu_custom_call.1} parent=71 // pred_region
          %s10418 = smul.u32 16, %s28
          %p10419 = scmp.lt.s32.totalorder %s27, 1
          %s10420 = scalar_select %p10419, %s27, 1
          %p10421 = scmp.lt.s32.totalorder %s10418, 31
          %s10422 = scalar_select %p10421, %s10418, 31
          %s10423 = smul.addr %s10422, 4
          %s10424 = smul.addr %s10420, 128
          %s10425 = sadd.s32 %s10423, %s10424
          %s10426 = smul.addr %s10425, 8
          %s10427 = scalar_lea.vmem %s8, %s10426
        $region76: #{tpu_custom_call.1} parent=71 // pred_fallthru
          _
      $region72: #{tpu_custom_call.1} parent=5 // pred_fallthru
        _
    $region6: #{tpu_custom_call.1} parent=1 // loop_footer
      %s20 = sadd.s32 1, %s16
    $region7: #{tpu_custom_call.1} parent=1 // loop_footer_branch
      %15 = sbr.rel target = $region3
    $region8: #{tpu_custom_call.1} parent=1 // loop_exit
      _
    %10428 = vsyncpa [#allocation4], 1
    %s10429 = scalar_lea.sflag [#allocation4], 1
    %10430 = vsyncpa %s10429, 1
    %10431 = vsyncpa [#allocation6], 1

</llo_original>
